<compile_context>
chip_gen: v7x
topology: tpu7x:2x2x1
jax: 0.10.0
libtpu: 0.0.40
codegen_flags: <defaults>
</compile_context>

<pallas_src>
import functools

import jax
import jax.numpy as jnp
import numpy as np
from jax import lax
from jax.experimental import pallas as pl
from jax.experimental.pallas import tpu as pltpu

C_OUT = 8                    # conv1 output channels
POOL_HW = 10                 # 20x20 -> maxpool(2,2) -> 10x10
P_FEAT = POOL_HW * POOL_HW   # 100 pooled positions per channel
NUM_ACTIONS = 400
HIDDEN = 128
IMG_FEAT = C_OUT * P_FEAT    # 800 (PyTorch flatten order: c*100 + i*10 + j)
LANE = 128
IMG_K = C_OUT * LANE         # 1024: each channel's 100 features padded to a 128-lane slot


def _round_up(x, m):
    return (x + m - 1) // m * m


def _tpu_defaults():
    """(conv compute dtype, batch block) per TPU generation.

    v6e / v7x have bf16-native VALUs -> bf16 conv datapath + 256-row blocks.
    v2/v3/v4/v5 (no bf16 VPU) keep f32 + 128-row blocks (avoids vreg spills).
    """
    kind = jax.devices()[0].device_kind.lower()
    legacy = any(t in kind for t in ("v2", "v3", "v4", "v5"))
    if legacy:
        return jnp.float32, 128
    return jnp.bfloat16, 256


def reward_kernel(planes_ref, conv_w_ref, conv_b_ref, act_ref,
                  w1_ref, w2_ref, b2_ref, out_ref, slab_ref):
    """One batch block of BB rows.

    planes_ref : (16, BB, 128) f32/bf16 VMEM  plane[a*4+b][:, i*10+j] = x_pad[:, 2i+a, 2j+b];
                                              lanes 100..127 are zero padding
    conv_w_ref : (8, 9)     f32 SMEM          conv weights, tap index dy*3+dx
    conv_b_ref : (8,)       f32 SMEM          conv bias
    act_ref    : (BB, 128)  f32/bf16 VMEM     gathered fc1 action columns (+ fc1 bias)
    w1_ref     : (1024,128) bf16 VMEM         fc1 image weights, channel c at rows [c*128, c*128+100)
    w2_ref     : (1, 128)   f32 VMEM          fc2 weight row
    b2_ref     : (1,)       f32 SMEM          fc2 bias
    out_ref    : (1, 1, BB) f32 VMEM          per-row reward, lane-dense
    slab_ref   : (BB, 1024) bf16 VMEM scratch fused fc1 activation slab
    """
    cdt = planes_ref.dtype   # bf16 on v6e/v7x, f32 on v5e

    # conv3x3 + bias + ReLU + 2x2 max-pool, one channel at a time; all elementwise
    # work stays in `cdt`.  No slab zero-init: every lane of every 128-lane channel
    # slot is written below (planes are pre-padded to 128 lanes; pad lanes become
    # ReLU(bias) and meet zero fc1 rows in the fused matmul, contributing 0).
    for c in range(C_OUT):
        bias = conv_b_ref[c].astype(cdt)
        pooled = None
        for qi in range(2):                       # 2x2 max-pool window position
            for qj in range(2):
                z = None
                for dy in range(3):               # 3x3 conv taps (scalar weights in SMEM)
                    for dx in range(3):
                        w = conv_w_ref[c, dy * 3 + dx].astype(cdt)
                        t = w * planes_ref[(qi + dy) * 4 + (qj + dx)]      # (BB, 128)
                        z = t if z is None else z + t                      # start at tap 0
                z = jnp.maximum(z + bias, 0.0)                             # bias + ReLU
                pooled = z if pooled is None else jnp.maximum(pooled, z)   # 2x2 max pool
        # full-width (unmasked) 128-lane store into this channel's slot of the slab
        slab_ref[:, c * LANE:(c + 1) * LANE] = pooled.astype(slab_ref.dtype)

    # Fused fc1: one bf16 MXU matmul over all 8 channels + gathered action rows
    # (fc1 bias folded in), then ReLU.  f32 accumulation / activation.
    h = jnp.dot(slab_ref[...], w1_ref[...], preferred_element_type=jnp.float32)
    h = jnp.maximum(h + act_ref[...].astype(jnp.float32), 0.0)

    # fc2 as a tiny (1,128)x(BB,128)^T f32 matmul: the result is already a lane-dense
    # (1, BB) row, so the per-block output writeback is BB*4 bytes instead of a
    # broadcast (BB, 128) slab.
    r = lax.dot_general(w2_ref[...], h, (((1,), (1,)), ((), ())),
                        preferred_element_type=jnp.float32)                # (1, BB)
    out_ref[...] = (r + b2_ref[0]).reshape(out_ref.shape)


def make_params(key):
    """Deterministic synthetic parameters with PyTorch-default-like scaling."""
    k = jax.random.split(key, 6)

    def u(kk, shape, fan_in):
        bound = 1.0 / np.sqrt(fan_in)
        return jax.random.uniform(kk, shape, jnp.float32, -bound, bound)

    conv_w = u(k[0], (C_OUT, 1, 3, 3), 9)
    conv_b = u(k[1], (C_OUT,), 9)
    fc1_w = u(k[2], (HIDDEN, IMG_FEAT + NUM_ACTIONS), IMG_FEAT + NUM_ACTIONS)
    fc1_b = u(k[3], (HIDDEN,), IMG_FEAT + NUM_ACTIONS)
    fc2_w = u(k[4], (1, HIDDEN), HIDDEN)
    fc2_b = u(k[5], (1,), HIDDEN)
    return conv_w, conv_b, fc1_w, fc1_b, fc2_w, fc2_b


@functools.partial(jax.jit, static_argnames=("block_b", "conv_dtype"))
def reward_forward(state, action, params, *, block_b=None, conv_dtype=None):
    conv_w, conv_b, fc1_w, fc1_b, fc2_w, fc2_b = params
    B = state.shape[0]

    if block_b is None or conv_dtype is None:
        d_dtype, d_block = _tpu_defaults()
        conv_dtype = d_dtype if conv_dtype is None else conv_dtype
        block_b = d_block if block_b is None else block_b

    # ---- batch tiling ---------------------------------------------------------------
    b16 = _round_up(max(B, 1), 16)               # >=16 rows keeps bf16 sublane packing clean
    BB = min(block_b, b16)
    if BB == b16 and b16 >= 32:
        # ensure >=2 grid steps when the batch permits: v7x has 2 TensorCores and the
        # grid axis is megacore-split via dimension_semantics=("parallel",).
        BB = _round_up((b16 + 1) // 2, 16)
    Bp = _round_up(B, BB)
    grid_b = Bp // BB
    pad = Bp - B
    state_p = jnp.pad(state.astype(jnp.float32), ((0, pad), (0, 0), (0, 0), (0, 0)))
    action_p = jnp.pad(action.astype(jnp.int32), ((0, pad),))

    # ---- glue: 16 stride-2 planes (static strided slices only, no gather HLOs),
    #      in the conv compute dtype, feature dim zero-padded 100 -> 128 lanes -------
    # plane[a*4+b][:, i*10+j] = x_pad[:, 2i+a, 2j+b]
    x_pad = jnp.pad(state_p[:, 0], ((0, 0), (1, 1), (1, 1))).astype(conv_dtype)  # (Bp,22,22)
    planes = jnp.stack([x_pad[:, a:a + 20:2, b:b + 20:2].reshape(Bp, P_FEAT)
                        for a in range(4) for b in range(4)])                    # (16,Bp,100)
    planes = jnp.pad(planes, ((0, 0), (0, 0), (0, LANE - P_FEAT)))               # (16,Bp,128)

    # ---- glue: parameter re-layout ---------------------------------------------------
    conv_w9 = conv_w.reshape(C_OUT, 9).astype(jnp.float32)          # [c, dy*3+dx]
    conv_b8 = conv_b.astype(jnp.float32)

    # fc1 image weights -> (1024, 128) bf16: channel c occupies rows [c*128, c*128+100),
    # pad rows are zero (matching the zero-padded plane lanes / ReLU(bias) pad lanes).
    w1_img = fc1_w[:, :IMG_FEAT].T.reshape(C_OUT, P_FEAT, HIDDEN)   # [c, p, k]
    w1_slab = jnp.zeros((C_OUT, LANE, HIDDEN), jnp.float32)
    w1_slab = w1_slab.at[:, :P_FEAT, :].set(w1_img)
    w1_slab = w1_slab.reshape(IMG_K, HIDDEN).astype(jnp.bfloat16)

    # fc1 action part: row gather replaces the one-hot matmul; fold the fc1 bias in.
    # (JAX clamps out-of-range indices, so a bad action id cannot fault.)
    act_rows = (fc1_w[:, IMG_FEAT:].T[action_p] + fc1_b[None, :]).astype(conv_dtype)

    w2 = fc2_w.reshape(1, HIDDEN).astype(jnp.float32)
    b2 = fc2_b.reshape(1).astype(jnp.float32)

    out = pl.pallas_call(
        reward_kernel,
        out_shape=jax.ShapeDtypeStruct((grid_b, 1, BB), jnp.float32),
        grid=(grid_b,),
        in_specs=[
            pl.BlockSpec((16, BB, LANE), lambda i: (0, i, 0)),         # planes (batch-tiled)
            pl.BlockSpec(memory_space=pltpu.MemorySpace.SMEM),         # conv_w9 (8,9)
            pl.BlockSpec(memory_space=pltpu.MemorySpace.SMEM),         # conv_b  (8,)
            pl.BlockSpec((BB, HIDDEN), lambda i: (i, 0)),              # gathered action rows
            pl.BlockSpec((IMG_K, HIDDEN), lambda i: (0, 0)),           # w1 slab (resident)
            pl.BlockSpec((1, HIDDEN), lambda i: (0, 0)),               # w2 row  (resident)
            pl.BlockSpec(memory_space=pltpu.MemorySpace.SMEM),         # b2      (1,)
        ],
        out_specs=pl.BlockSpec((1, 1, BB), lambda i: (i, 0, 0)),
        scratch_shapes=[pltpu.VMEM((BB, IMG_K), jnp.bfloat16)],        # fused fc1 slab
        compiler_params=pltpu.CompilerParams(
            dimension_semantics=("parallel",),                         # megacore on v7x
            vmem_limit_bytes=32 * 1024 * 1024),
    )(planes, conv_w9, conv_b8, act_rows, w1_slab, w2, b2)

    return out.reshape(Bp, 1)[:B]


def reward_reference(state, action, params):
    """Pure-JAX reference matching the PyTorch forward exactly (f32)."""
    conv_w, conv_b, fc1_w, fc1_b, fc2_w, fc2_b = params
    B = state.shape[0]
    y = lax.conv_general_dilated(state, conv_w, (1, 1), ((1, 1), (1, 1)),
                                 dimension_numbers=('NCHW', 'OIHW', 'NCHW'))
    y = jax.nn.relu(y + conv_b.reshape(1, C_OUT, 1, 1))
    y = lax.reduce_window(y, -jnp.inf, lax.max, (1, 1, 2, 2), (1, 1, 2, 2), 'VALID')
    flat = y.reshape(B, -1)
    onehot = jax.nn.one_hot(action, NUM_ACTIONS, dtype=jnp.float32)
    x = jnp.concatenate([flat, onehot], axis=1)
    h = jax.nn.relu(x @ fc1_w.T + fc1_b)
    return h @ fc2_w.T + fc2_b


if __name__ == "__main__":
    key = jax.random.PRNGKey(0)
    kp, ks, ka, ks2, ka2 = jax.random.split(key, 5)
    params = make_params(kp)

    # Small shapes implied by the module: state (B, 1, 20, 20), integer actions < 400.
    B = 2
    state = jax.random.normal(ks, (B, 1, 20, 20), jnp.float32)
    action = jax.random.randint(ka, (B,), 0, NUM_ACTIONS)

    out = reward_forward(state, action, params)
    jax.block_until_ready(out)
    ref = reward_reference(state, action, params)
    assert out.shape == (B, 1)
    # bf16 conv datapath + bf16 fc1 MXU matmul on v6e/v7x -> ~2e-2 parity vs pure f32.
    np.testing.assert_allclose(np.asarray(out), np.asarray(ref), rtol=2e-2, atol=2e-2)

    # Also exercise the multi-block, padded-batch grid path (>=2 grid steps).
    B2 = 300
    state2 = jax.random.normal(ks2, (B2, 1, 20, 20), jnp.float32)
    action2 = jax.random.randint(ka2, (B2,), 0, NUM_ACTIONS)
    out2 = reward_forward(state2, action2, params)
    jax.block_until_ready(out2)
    ref2 = reward_reference(state2, action2, params)
    np.testing.assert_allclose(np.asarray(out2), np.asarray(ref2), rtol=2e-2, atol=2e-2)

    print("KERNEL_OK")
</pallas_src>

<mosaic_0001>
module attributes {stable_mosaic.version = 11 : i64} {
  func.func @reward_kernel(%arg0: i32, %arg1: memref<16x16x128xbf16, #tpu.memory_space<vmem>>, %arg2: memref<8x9xf32, #tpu.memory_space<smem>>, %arg3: memref<8xf32, #tpu.memory_space<smem>>, %arg4: memref<16x128xbf16, #tpu.memory_space<vmem>>, %arg5: memref<1024x128xbf16, #tpu.memory_space<vmem>>, %arg6: memref<1x128xf32, #tpu.memory_space<vmem>>, %arg7: memref<1xf32, #tpu.memory_space<smem>>, %arg8: memref<1x1x16xf32, #tpu.memory_space<vmem>>, %arg9: memref<16x1024xbf16, #tpu.memory_space<vmem>>) attributes {dimension_semantics = [#tpu.dimension_semantics<parallel>], iteration_bounds = array<i64: 1>, scalar_prefetch = 0 : i64, scratch_operands = 1 : i64, tpu.core_type = #tpu.core_type<tc>, window_params = [{transform_indices = @transform_0, window_bounds = array<i64: 16, 16, 128>}, {transform_indices = @transform_1, window_bounds = array<i64: 8, 9>}, {transform_indices = @transform_2, window_bounds = array<i64: 8>}, {transform_indices = @transform_3, window_bounds = array<i64: 16, 128>}, {pipeline_mode = #tpu.pipeline_mode<synchronous>, transform_indices = @transform_4, window_bounds = array<i64: 1024, 128>}, {pipeline_mode = #tpu.pipeline_mode<synchronous>, transform_indices = @transform_5, window_bounds = array<i64: 1, 128>}, {transform_indices = @transform_6, window_bounds = array<i64: 1>}, {transform_indices = @transform_7, window_bounds = array<i64: 1, 1, 16>}]} {
    %c0 = arith.constant 0 : index
    %0 = memref.load %arg3[%c0] : memref<8xf32, #tpu.memory_space<smem>>
    %1 = arith.truncf %0 : f32 to bf16
    %c0_0 = arith.constant 0 : index
    %c0_1 = arith.constant 0 : index
    %2 = memref.load %arg2[%c0_0, %c0_1] : memref<8x9xf32, #tpu.memory_space<smem>>
    %3 = arith.truncf %2 : f32 to bf16
    %c0_2 = arith.constant 0 : index
    %c0_3 = arith.constant 0 : index
    %c0_4 = arith.constant 0 : index
    %4 = vector.load %arg1[%c0_2, %c0_3, %c0_4] : memref<16x16x128xbf16, #tpu.memory_space<vmem>>, vector<1x16x128xbf16>
    %5 = vector.shape_cast %4 : vector<1x16x128xbf16> to vector<16x128xbf16>
    %6 = vector.broadcast %3 : bf16 to vector<16x128xbf16>
    %7 = arith.mulf %6, %5 : vector<16x128xbf16>
    %c0_5 = arith.constant 0 : index
    %c1 = arith.constant 1 : index
    %8 = memref.load %arg2[%c0_5, %c1] : memref<8x9xf32, #tpu.memory_space<smem>>
    %9 = arith.truncf %8 : f32 to bf16
    %c1_6 = arith.constant 1 : index
    %c0_7 = arith.constant 0 : index
    %c0_8 = arith.constant 0 : index
    %10 = vector.load %arg1[%c1_6, %c0_7, %c0_8] : memref<16x16x128xbf16, #tpu.memory_space<vmem>>, vector<1x16x128xbf16>
    %11 = vector.shape_cast %10 : vector<1x16x128xbf16> to vector<16x128xbf16>
    %12 = vector.broadcast %9 : bf16 to vector<16x128xbf16>
    %13 = arith.mulf %12, %11 : vector<16x128xbf16>
    %14 = arith.addf %7, %13 : vector<16x128xbf16>
    %c0_9 = arith.constant 0 : index
    %c2 = arith.constant 2 : index
    %15 = memref.load %arg2[%c0_9, %c2] : memref<8x9xf32, #tpu.memory_space<smem>>
    %16 = arith.truncf %15 : f32 to bf16
    %c2_10 = arith.constant 2 : index
    %c0_11 = arith.constant 0 : index
    %c0_12 = arith.constant 0 : index
    %17 = vector.load %arg1[%c2_10, %c0_11, %c0_12] : memref<16x16x128xbf16, #tpu.memory_space<vmem>>, vector<1x16x128xbf16>
    %18 = vector.shape_cast %17 : vector<1x16x128xbf16> to vector<16x128xbf16>
    %19 = vector.broadcast %16 : bf16 to vector<16x128xbf16>
    %20 = arith.mulf %19, %18 : vector<16x128xbf16>
    %21 = arith.addf %14, %20 : vector<16x128xbf16>
    %c0_13 = arith.constant 0 : index
    %c3 = arith.constant 3 : index
    %22 = memref.load %arg2[%c0_13, %c3] : memref<8x9xf32, #tpu.memory_space<smem>>
    %23 = arith.truncf %22 : f32 to bf16
    %c4 = arith.constant 4 : index
    %c0_14 = arith.constant 0 : index
    %c0_15 = arith.constant 0 : index
    %24 = vector.load %arg1[%c4, %c0_14, %c0_15] : memref<16x16x128xbf16, #tpu.memory_space<vmem>>, vector<1x16x128xbf16>
    %25 = vector.shape_cast %24 : vector<1x16x128xbf16> to vector<16x128xbf16>
    %26 = vector.broadcast %23 : bf16 to vector<16x128xbf16>
    %27 = arith.mulf %26, %25 : vector<16x128xbf16>
    %28 = arith.addf %21, %27 : vector<16x128xbf16>
    %c0_16 = arith.constant 0 : index
    %c4_17 = arith.constant 4 : index
    %29 = memref.load %arg2[%c0_16, %c4_17] : memref<8x9xf32, #tpu.memory_space<smem>>
    %30 = arith.truncf %29 : f32 to bf16
    %c5 = arith.constant 5 : index
    %c0_18 = arith.constant 0 : index
    %c0_19 = arith.constant 0 : index
    %31 = vector.load %arg1[%c5, %c0_18, %c0_19] : memref<16x16x128xbf16, #tpu.memory_space<vmem>>, vector<1x16x128xbf16>
    %32 = vector.shape_cast %31 : vector<1x16x128xbf16> to vector<16x128xbf16>
    %33 = vector.broadcast %30 : bf16 to vector<16x128xbf16>
    %34 = arith.mulf %33, %32 : vector<16x128xbf16>
    %35 = arith.addf %28, %34 : vector<16x128xbf16>
    %c0_20 = arith.constant 0 : index
    %c5_21 = arith.constant 5 : index
    %36 = memref.load %arg2[%c0_20, %c5_21] : memref<8x9xf32, #tpu.memory_space<smem>>
    %37 = arith.truncf %36 : f32 to bf16
    %c6 = arith.constant 6 : index
    %c0_22 = arith.constant 0 : index
    %c0_23 = arith.constant 0 : index
    %38 = vector.load %arg1[%c6, %c0_22, %c0_23] : memref<16x16x128xbf16, #tpu.memory_space<vmem>>, vector<1x16x128xbf16>
    %39 = vector.shape_cast %38 : vector<1x16x128xbf16> to vector<16x128xbf16>
    %40 = vector.broadcast %37 : bf16 to vector<16x128xbf16>
    %41 = arith.mulf %40, %39 : vector<16x128xbf16>
    %42 = arith.addf %35, %41 : vector<16x128xbf16>
    %c0_24 = arith.constant 0 : index
    %c6_25 = arith.constant 6 : index
    %43 = memref.load %arg2[%c0_24, %c6_25] : memref<8x9xf32, #tpu.memory_space<smem>>
    %44 = arith.truncf %43 : f32 to bf16
    %c8 = arith.constant 8 : index
    %c0_26 = arith.constant 0 : index
    %c0_27 = arith.constant 0 : index
    %45 = vector.load %arg1[%c8, %c0_26, %c0_27] : memref<16x16x128xbf16, #tpu.memory_space<vmem>>, vector<1x16x128xbf16>
    %46 = vector.shape_cast %45 : vector<1x16x128xbf16> to vector<16x128xbf16>
    %47 = vector.broadcast %44 : bf16 to vector<16x128xbf16>
    %48 = arith.mulf %47, %46 : vector<16x128xbf16>
    %49 = arith.addf %42, %48 : vector<16x128xbf16>
    %c0_28 = arith.constant 0 : index
    %c7 = arith.constant 7 : index
    %50 = memref.load %arg2[%c0_28, %c7] : memref<8x9xf32, #tpu.memory_space<smem>>
    %51 = arith.truncf %50 : f32 to bf16
    %c9 = arith.constant 9 : index
    %c0_29 = arith.constant 0 : index
    %c0_30 = arith.constant 0 : index
    %52 = vector.load %arg1[%c9, %c0_29, %c0_30] : memref<16x16x128xbf16, #tpu.memory_space<vmem>>, vector<1x16x128xbf16>
    %53 = vector.shape_cast %52 : vector<1x16x128xbf16> to vector<16x128xbf16>
    %54 = vector.broadcast %51 : bf16 to vector<16x128xbf16>
    %55 = arith.mulf %54, %53 : vector<16x128xbf16>
    %56 = arith.addf %49, %55 : vector<16x128xbf16>
    %c0_31 = arith.constant 0 : index
    %c8_32 = arith.constant 8 : index
    %57 = memref.load %arg2[%c0_31, %c8_32] : memref<8x9xf32, #tpu.memory_space<smem>>
    %58 = arith.truncf %57 : f32 to bf16
    %c10 = arith.constant 10 : index
    %c0_33 = arith.constant 0 : index
    %c0_34 = arith.constant 0 : index
    %59 = vector.load %arg1[%c10, %c0_33, %c0_34] : memref<16x16x128xbf16, #tpu.memory_space<vmem>>, vector<1x16x128xbf16>
    %60 = vector.shape_cast %59 : vector<1x16x128xbf16> to vector<16x128xbf16>
    %61 = vector.broadcast %58 : bf16 to vector<16x128xbf16>
    %62 = arith.mulf %61, %60 : vector<16x128xbf16>
    %63 = arith.addf %56, %62 : vector<16x128xbf16>
    %64 = vector.broadcast %1 : bf16 to vector<16x128xbf16>
    %65 = arith.addf %63, %64 : vector<16x128xbf16>
    %cst = arith.constant 0.000000e+00 : bf16
    %66 = vector.broadcast %cst : bf16 to vector<16x128xbf16>
    %67 = arith.maximumf %65, %66 : vector<16x128xbf16>
    %c0_35 = arith.constant 0 : index
    %c0_36 = arith.constant 0 : index
    %68 = memref.load %arg2[%c0_35, %c0_36] : memref<8x9xf32, #tpu.memory_space<smem>>
    %69 = arith.truncf %68 : f32 to bf16
    %c1_37 = arith.constant 1 : index
    %c0_38 = arith.constant 0 : index
    %c0_39 = arith.constant 0 : index
    %70 = vector.load %arg1[%c1_37, %c0_38, %c0_39] : memref<16x16x128xbf16, #tpu.memory_space<vmem>>, vector<1x16x128xbf16>
    %71 = vector.shape_cast %70 : vector<1x16x128xbf16> to vector<16x128xbf16>
    %72 = vector.broadcast %69 : bf16 to vector<16x128xbf16>
    %73 = arith.mulf %72, %71 : vector<16x128xbf16>
    %c0_40 = arith.constant 0 : index
    %c1_41 = arith.constant 1 : index
    %74 = memref.load %arg2[%c0_40, %c1_41] : memref<8x9xf32, #tpu.memory_space<smem>>
    %75 = arith.truncf %74 : f32 to bf16
    %c2_42 = arith.constant 2 : index
    %c0_43 = arith.constant 0 : index
    %c0_44 = arith.constant 0 : index
    %76 = vector.load %arg1[%c2_42, %c0_43, %c0_44] : memref<16x16x128xbf16, #tpu.memory_space<vmem>>, vector<1x16x128xbf16>
    %77 = vector.shape_cast %76 : vector<1x16x128xbf16> to vector<16x128xbf16>
    %78 = vector.broadcast %75 : bf16 to vector<16x128xbf16>
    %79 = arith.mulf %78, %77 : vector<16x128xbf16>
    %80 = arith.addf %73, %79 : vector<16x128xbf16>
    %c0_45 = arith.constant 0 : index
    %c2_46 = arith.constant 2 : index
    %81 = memref.load %arg2[%c0_45, %c2_46] : memref<8x9xf32, #tpu.memory_space<smem>>
    %82 = arith.truncf %81 : f32 to bf16
    %c3_47 = arith.constant 3 : index
    %c0_48 = arith.constant 0 : index
    %c0_49 = arith.constant 0 : index
    %83 = vector.load %arg1[%c3_47, %c0_48, %c0_49] : memref<16x16x128xbf16, #tpu.memory_space<vmem>>, vector<1x16x128xbf16>
    %84 = vector.shape_cast %83 : vector<1x16x128xbf16> to vector<16x128xbf16>
    %85 = vector.broadcast %82 : bf16 to vector<16x128xbf16>
    %86 = arith.mulf %85, %84 : vector<16x128xbf16>
    %87 = arith.addf %80, %86 : vector<16x128xbf16>
    %c0_50 = arith.constant 0 : index
    %c3_51 = arith.constant 3 : index
    %88 = memref.load %arg2[%c0_50, %c3_51] : memref<8x9xf32, #tpu.memory_space<smem>>
    %89 = arith.truncf %88 : f32 to bf16
    %c5_52 = arith.constant 5 : index
    %c0_53 = arith.constant 0 : index
    %c0_54 = arith.constant 0 : index
    %90 = vector.load %arg1[%c5_52, %c0_53, %c0_54] : memref<16x16x128xbf16, #tpu.memory_space<vmem>>, vector<1x16x128xbf16>
    %91 = vector.shape_cast %90 : vector<1x16x128xbf16> to vector<16x128xbf16>
    %92 = vector.broadcast %89 : bf16 to vector<16x128xbf16>
    %93 = arith.mulf %92, %91 : vector<16x128xbf16>
    %94 = arith.addf %87, %93 : vector<16x128xbf16>
    %c0_55 = arith.constant 0 : index
    %c4_56 = arith.constant 4 : index
    %95 = memref.load %arg2[%c0_55, %c4_56] : memref<8x9xf32, #tpu.memory_space<smem>>
    %96 = arith.truncf %95 : f32 to bf16
    %c6_57 = arith.constant 6 : index
    %c0_58 = arith.constant 0 : index
    %c0_59 = arith.constant 0 : index
    %97 = vector.load %arg1[%c6_57, %c0_58, %c0_59] : memref<16x16x128xbf16, #tpu.memory_space<vmem>>, vector<1x16x128xbf16>
    %98 = vector.shape_cast %97 : vector<1x16x128xbf16> to vector<16x128xbf16>
    %99 = vector.broadcast %96 : bf16 to vector<16x128xbf16>
    %100 = arith.mulf %99, %98 : vector<16x128xbf16>
    %101 = arith.addf %94, %100 : vector<16x128xbf16>
    %c0_60 = arith.constant 0 : index
    %c5_61 = arith.constant 5 : index
    %102 = memref.load %arg2[%c0_60, %c5_61] : memref<8x9xf32, #tpu.memory_space<smem>>
    %103 = arith.truncf %102 : f32 to bf16
    %c7_62 = arith.constant 7 : index
    %c0_63 = arith.constant 0 : index
    %c0_64 = arith.constant 0 : index
    %104 = vector.load %arg1[%c7_62, %c0_63, %c0_64] : memref<16x16x128xbf16, #tpu.memory_space<vmem>>, vector<1x16x128xbf16>
    %105 = vector.shape_cast %104 : vector<1x16x128xbf16> to vector<16x128xbf16>
    %106 = vector.broadcast %103 : bf16 to vector<16x128xbf16>
    %107 = arith.mulf %106, %105 : vector<16x128xbf16>
    %108 = arith.addf %101, %107 : vector<16x128xbf16>
    %c0_65 = arith.constant 0 : index
    %c6_66 = arith.constant 6 : index
    %109 = memref.load %arg2[%c0_65, %c6_66] : memref<8x9xf32, #tpu.memory_space<smem>>
    %110 = arith.truncf %109 : f32 to bf16
    %c9_67 = arith.constant 9 : index
    %c0_68 = arith.constant 0 : index
    %c0_69 = arith.constant 0 : index
    %111 = vector.load %arg1[%c9_67, %c0_68, %c0_69] : memref<16x16x128xbf16, #tpu.memory_space<vmem>>, vector<1x16x128xbf16>
    %112 = vector.shape_cast %111 : vector<1x16x128xbf16> to vector<16x128xbf16>
    %113 = vector.broadcast %110 : bf16 to vector<16x128xbf16>
    %114 = arith.mulf %113, %112 : vector<16x128xbf16>
    %115 = arith.addf %108, %114 : vector<16x128xbf16>
    %c0_70 = arith.constant 0 : index
    %c7_71 = arith.constant 7 : index
    %116 = memref.load %arg2[%c0_70, %c7_71] : memref<8x9xf32, #tpu.memory_space<smem>>
    %117 = arith.truncf %116 : f32 to bf16
    %c10_72 = arith.constant 10 : index
    %c0_73 = arith.constant 0 : index
    %c0_74 = arith.constant 0 : index
    %118 = vector.load %arg1[%c10_72, %c0_73, %c0_74] : memref<16x16x128xbf16, #tpu.memory_space<vmem>>, vector<1x16x128xbf16>
    %119 = vector.shape_cast %118 : vector<1x16x128xbf16> to vector<16x128xbf16>
    %120 = vector.broadcast %117 : bf16 to vector<16x128xbf16>
    %121 = arith.mulf %120, %119 : vector<16x128xbf16>
    %122 = arith.addf %115, %121 : vector<16x128xbf16>
    %c0_75 = arith.constant 0 : index
    %c8_76 = arith.constant 8 : index
    %123 = memref.load %arg2[%c0_75, %c8_76] : memref<8x9xf32, #tpu.memory_space<smem>>
    %124 = arith.truncf %123 : f32 to bf16
    %c11 = arith.constant 11 : index
    %c0_77 = arith.constant 0 : index
    %c0_78 = arith.constant 0 : index
    %125 = vector.load %arg1[%c11, %c0_77, %c0_78] : memref<16x16x128xbf16, #tpu.memory_space<vmem>>, vector<1x16x128xbf16>
    %126 = vector.shape_cast %125 : vector<1x16x128xbf16> to vector<16x128xbf16>
    %127 = vector.broadcast %124 : bf16 to vector<16x128xbf16>
    %128 = arith.mulf %127, %126 : vector<16x128xbf16>
    %129 = arith.addf %122, %128 : vector<16x128xbf16>
    %130 = vector.broadcast %1 : bf16 to vector<16x128xbf16>
    %131 = arith.addf %129, %130 : vector<16x128xbf16>
    %cst_79 = arith.constant 0.000000e+00 : bf16
    %132 = vector.broadcast %cst_79 : bf16 to vector<16x128xbf16>
    %133 = arith.maximumf %131, %132 : vector<16x128xbf16>
    %134 = arith.maximumf %67, %133 : vector<16x128xbf16>
    %c0_80 = arith.constant 0 : index
    %c0_81 = arith.constant 0 : index
    %135 = memref.load %arg2[%c0_80, %c0_81] : memref<8x9xf32, #tpu.memory_space<smem>>
    %136 = arith.truncf %135 : f32 to bf16
    %c4_82 = arith.constant 4 : index
    %c0_83 = arith.constant 0 : index
    %c0_84 = arith.constant 0 : index
    %137 = vector.load %arg1[%c4_82, %c0_83, %c0_84] : memref<16x16x128xbf16, #tpu.memory_space<vmem>>, vector<1x16x128xbf16>
    %138 = vector.shape_cast %137 : vector<1x16x128xbf16> to vector<16x128xbf16>
    %139 = vector.broadcast %136 : bf16 to vector<16x128xbf16>
    %140 = arith.mulf %139, %138 : vector<16x128xbf16>
    %c0_85 = arith.constant 0 : index
    %c1_86 = arith.constant 1 : index
    %141 = memref.load %arg2[%c0_85, %c1_86] : memref<8x9xf32, #tpu.memory_space<smem>>
    %142 = arith.truncf %141 : f32 to bf16
    %c5_87 = arith.constant 5 : index
    %c0_88 = arith.constant 0 : index
    %c0_89 = arith.constant 0 : index
    %143 = vector.load %arg1[%c5_87, %c0_88, %c0_89] : memref<16x16x128xbf16, #tpu.memory_space<vmem>>, vector<1x16x128xbf16>
    %144 = vector.shape_cast %143 : vector<1x16x128xbf16> to vector<16x128xbf16>
    %145 = vector.broadcast %142 : bf16 to vector<16x128xbf16>
    %146 = arith.mulf %145, %144 : vector<16x128xbf16>
    %147 = arith.addf %140, %146 : vector<16x128xbf16>
    %c0_90 = arith.constant 0 : index
    %c2_91 = arith.constant 2 : index
    %148 = memref.load %arg2[%c0_90, %c2_91] : memref<8x9xf32, #tpu.memory_space<smem>>
    %149 = arith.truncf %148 : f32 to bf16
    %c6_92 = arith.constant 6 : index
    %c0_93 = arith.constant 0 : index
    %c0_94 = arith.constant 0 : index
    %150 = vector.load %arg1[%c6_92, %c0_93, %c0_94] : memref<16x16x128xbf16, #tpu.memory_space<vmem>>, vector<1x16x128xbf16>
    %151 = vector.shape_cast %150 : vector<1x16x128xbf16> to vector<16x128xbf16>
    %152 = vector.broadcast %149 : bf16 to vector<16x128xbf16>
    %153 = arith.mulf %152, %151 : vector<16x128xbf16>
    %154 = arith.addf %147, %153 : vector<16x128xbf16>
    %c0_95 = arith.constant 0 : index
    %c3_96 = arith.constant 3 : index
    %155 = memref.load %arg2[%c0_95, %c3_96] : memref<8x9xf32, #tpu.memory_space<smem>>
    %156 = arith.truncf %155 : f32 to bf16
    %c8_97 = arith.constant 8 : index
    %c0_98 = arith.constant 0 : index
    %c0_99 = arith.constant 0 : index
    %157 = vector.load %arg1[%c8_97, %c0_98, %c0_99] : memref<16x16x128xbf16, #tpu.memory_space<vmem>>, vector<1x16x128xbf16>
    %158 = vector.shape_cast %157 : vector<1x16x128xbf16> to vector<16x128xbf16>
    %159 = vector.broadcast %156 : bf16 to vector<16x128xbf16>
    %160 = arith.mulf %159, %158 : vector<16x128xbf16>
    %161 = arith.addf %154, %160 : vector<16x128xbf16>
    %c0_100 = arith.constant 0 : index
    %c4_101 = arith.constant 4 : index
    %162 = memref.load %arg2[%c0_100, %c4_101] : memref<8x9xf32, #tpu.memory_space<smem>>
    %163 = arith.truncf %162 : f32 to bf16
    %c9_102 = arith.constant 9 : index
    %c0_103 = arith.constant 0 : index
    %c0_104 = arith.constant 0 : index
    %164 = vector.load %arg1[%c9_102, %c0_103, %c0_104] : memref<16x16x128xbf16, #tpu.memory_space<vmem>>, vector<1x16x128xbf16>
    %165 = vector.shape_cast %164 : vector<1x16x128xbf16> to vector<16x128xbf16>
    %166 = vector.broadcast %163 : bf16 to vector<16x128xbf16>
    %167 = arith.mulf %166, %165 : vector<16x128xbf16>
    %168 = arith.addf %161, %167 : vector<16x128xbf16>
    %c0_105 = arith.constant 0 : index
    %c5_106 = arith.constant 5 : index
    %169 = memref.load %arg2[%c0_105, %c5_106] : memref<8x9xf32, #tpu.memory_space<smem>>
    %170 = arith.truncf %169 : f32 to bf16
    %c10_107 = arith.constant 10 : index
    %c0_108 = arith.constant 0 : index
    %c0_109 = arith.constant 0 : index
    %171 = vector.load %arg1[%c10_107, %c0_108, %c0_109] : memref<16x16x128xbf16, #tpu.memory_space<vmem>>, vector<1x16x128xbf16>
    %172 = vector.shape_cast %171 : vector<1x16x128xbf16> to vector<16x128xbf16>
    %173 = vector.broadcast %170 : bf16 to vector<16x128xbf16>
    %174 = arith.mulf %173, %172 : vector<16x128xbf16>
    %175 = arith.addf %168, %174 : vector<16x128xbf16>
    %c0_110 = arith.constant 0 : index
    %c6_111 = arith.constant 6 : index
    %176 = memref.load %arg2[%c0_110, %c6_111] : memref<8x9xf32, #tpu.memory_space<smem>>
    %177 = arith.truncf %176 : f32 to bf16
    %c12 = arith.constant 12 : index
    %c0_112 = arith.constant 0 : index
    %c0_113 = arith.constant 0 : index
    %178 = vector.load %arg1[%c12, %c0_112, %c0_113] : memref<16x16x128xbf16, #tpu.memory_space<vmem>>, vector<1x16x128xbf16>
    %179 = vector.shape_cast %178 : vector<1x16x128xbf16> to vector<16x128xbf16>
    %180 = vector.broadcast %177 : bf16 to vector<16x128xbf16>
    %181 = arith.mulf %180, %179 : vector<16x128xbf16>
    %182 = arith.addf %175, %181 : vector<16x128xbf16>
    %c0_114 = arith.constant 0 : index
    %c7_115 = arith.constant 7 : index
    %183 = memref.load %arg2[%c0_114, %c7_115] : memref<8x9xf32, #tpu.memory_space<smem>>
    %184 = arith.truncf %183 : f32 to bf16
    %c13 = arith.constant 13 : index
    %c0_116 = arith.constant 0 : index
    %c0_117 = arith.constant 0 : index
    %185 = vector.load %arg1[%c13, %c0_116, %c0_117] : memref<16x16x128xbf16, #tpu.memory_space<vmem>>, vector<1x16x128xbf16>
    %186 = vector.shape_cast %185 : vector<1x16x128xbf16> to vector<16x128xbf16>
    %187 = vector.broadcast %184 : bf16 to vector<16x128xbf16>
    %188 = arith.mulf %187, %186 : vector<16x128xbf16>
    %189 = arith.addf %182, %188 : vector<16x128xbf16>
    %c0_118 = arith.constant 0 : index
    %c8_119 = arith.constant 8 : index
    %190 = memref.load %arg2[%c0_118, %c8_119] : memref<8x9xf32, #tpu.memory_space<smem>>
    %191 = arith.truncf %190 : f32 to bf16
    %c14 = arith.constant 14 : index
    %c0_120 = arith.constant 0 : index
    %c0_121 = arith.constant 0 : index
    %192 = vector.load %arg1[%c14, %c0_120, %c0_121] : memref<16x16x128xbf16, #tpu.memory_space<vmem>>, vector<1x16x128xbf16>
    %193 = vector.shape_cast %192 : vector<1x16x128xbf16> to vector<16x128xbf16>
    %194 = vector.broadcast %191 : bf16 to vector<16x128xbf16>
    %195 = arith.mulf %194, %193 : vector<16x128xbf16>
    %196 = arith.addf %189, %195 : vector<16x128xbf16>
    %197 = vector.broadcast %1 : bf16 to vector<16x128xbf16>
    %198 = arith.addf %196, %197 : vector<16x128xbf16>
    %cst_122 = arith.constant 0.000000e+00 : bf16
    %199 = vector.broadcast %cst_122 : bf16 to vector<16x128xbf16>
    %200 = arith.maximumf %198, %199 : vector<16x128xbf16>
    %201 = arith.maximumf %134, %200 : vector<16x128xbf16>
    %c0_123 = arith.constant 0 : index
    %c0_124 = arith.constant 0 : index
    %202 = memref.load %arg2[%c0_123, %c0_124] : memref<8x9xf32, #tpu.memory_space<smem>>
    %203 = arith.truncf %202 : f32 to bf16
    %c5_125 = arith.constant 5 : index
    %c0_126 = arith.constant 0 : index
    %c0_127 = arith.constant 0 : index
    %204 = vector.load %arg1[%c5_125, %c0_126, %c0_127] : memref<16x16x128xbf16, #tpu.memory_space<vmem>>, vector<1x16x128xbf16>
    %205 = vector.shape_cast %204 : vector<1x16x128xbf16> to vector<16x128xbf16>
    %206 = vector.broadcast %203 : bf16 to vector<16x128xbf16>
    %207 = arith.mulf %206, %205 : vector<16x128xbf16>
    %c0_128 = arith.constant 0 : index
    %c1_129 = arith.constant 1 : index
    %208 = memref.load %arg2[%c0_128, %c1_129] : memref<8x9xf32, #tpu.memory_space<smem>>
    %209 = arith.truncf %208 : f32 to bf16
    %c6_130 = arith.constant 6 : index
    %c0_131 = arith.constant 0 : index
    %c0_132 = arith.constant 0 : index
    %210 = vector.load %arg1[%c6_130, %c0_131, %c0_132] : memref<16x16x128xbf16, #tpu.memory_space<vmem>>, vector<1x16x128xbf16>
    %211 = vector.shape_cast %210 : vector<1x16x128xbf16> to vector<16x128xbf16>
    %212 = vector.broadcast %209 : bf16 to vector<16x128xbf16>
    %213 = arith.mulf %212, %211 : vector<16x128xbf16>
    %214 = arith.addf %207, %213 : vector<16x128xbf16>
    %c0_133 = arith.constant 0 : index
    %c2_134 = arith.constant 2 : index
    %215 = memref.load %arg2[%c0_133, %c2_134] : memref<8x9xf32, #tpu.memory_space<smem>>
    %216 = arith.truncf %215 : f32 to bf16
    %c7_135 = arith.constant 7 : index
    %c0_136 = arith.constant 0 : index
    %c0_137 = arith.constant 0 : index
    %217 = vector.load %arg1[%c7_135, %c0_136, %c0_137] : memref<16x16x128xbf16, #tpu.memory_space<vmem>>, vector<1x16x128xbf16>
    %218 = vector.shape_cast %217 : vector<1x16x128xbf16> to vector<16x128xbf16>
    %219 = vector.broadcast %216 : bf16 to vector<16x128xbf16>
    %220 = arith.mulf %219, %218 : vector<16x128xbf16>
    %221 = arith.addf %214, %220 : vector<16x128xbf16>
    %c0_138 = arith.constant 0 : index
    %c3_139 = arith.constant 3 : index
    %222 = memref.load %arg2[%c0_138, %c3_139] : memref<8x9xf32, #tpu.memory_space<smem>>
    %223 = arith.truncf %222 : f32 to bf16
    %c9_140 = arith.constant 9 : index
    %c0_141 = arith.constant 0 : index
    %c0_142 = arith.constant 0 : index
    %224 = vector.load %arg1[%c9_140, %c0_141, %c0_142] : memref<16x16x128xbf16, #tpu.memory_space<vmem>>, vector<1x16x128xbf16>
    %225 = vector.shape_cast %224 : vector<1x16x128xbf16> to vector<16x128xbf16>
    %226 = vector.broadcast %223 : bf16 to vector<16x128xbf16>
    %227 = arith.mulf %226, %225 : vector<16x128xbf16>
    %228 = arith.addf %221, %227 : vector<16x128xbf16>
    %c0_143 = arith.constant 0 : index
    %c4_144 = arith.constant 4 : index
    %229 = memref.load %arg2[%c0_143, %c4_144] : memref<8x9xf32, #tpu.memory_space<smem>>
    %230 = arith.truncf %229 : f32 to bf16
    %c10_145 = arith.constant 10 : index
    %c0_146 = arith.constant 0 : index
    %c0_147 = arith.constant 0 : index
    %231 = vector.load %arg1[%c10_145, %c0_146, %c0_147] : memref<16x16x128xbf16, #tpu.memory_space<vmem>>, vector<1x16x128xbf16>
    %232 = vector.shape_cast %231 : vector<1x16x128xbf16> to vector<16x128xbf16>
    %233 = vector.broadcast %230 : bf16 to vector<16x128xbf16>
    %234 = arith.mulf %233, %232 : vector<16x128xbf16>
    %235 = arith.addf %228, %234 : vector<16x128xbf16>
    %c0_148 = arith.constant 0 : index
    %c5_149 = arith.constant 5 : index
    %236 = memref.load %arg2[%c0_148, %c5_149] : memref<8x9xf32, #tpu.memory_space<smem>>
    %237 = arith.truncf %236 : f32 to bf16
    %c11_150 = arith.constant 11 : index
    %c0_151 = arith.constant 0 : index
    %c0_152 = arith.constant 0 : index
    %238 = vector.load %arg1[%c11_150, %c0_151, %c0_152] : memref<16x16x128xbf16, #tpu.memory_space<vmem>>, vector<1x16x128xbf16>
    %239 = vector.shape_cast %238 : vector<1x16x128xbf16> to vector<16x128xbf16>
    %240 = vector.broadcast %237 : bf16 to vector<16x128xbf16>
    %241 = arith.mulf %240, %239 : vector<16x128xbf16>
    %242 = arith.addf %235, %241 : vector<16x128xbf16>
    %c0_153 = arith.constant 0 : index
    %c6_154 = arith.constant 6 : index
    %243 = memref.load %arg2[%c0_153, %c6_154] : memref<8x9xf32, #tpu.memory_space<smem>>
    %244 = arith.truncf %243 : f32 to bf16
    %c13_155 = arith.constant 13 : index
    %c0_156 = arith.constant 0 : index
    %c0_157 = arith.constant 0 : index
    %245 = vector.load %arg1[%c13_155, %c0_156, %c0_157] : memref<16x16x128xbf16, #tpu.memory_space<vmem>>, vector<1x16x128xbf16>
    %246 = vector.shape_cast %245 : vector<1x16x128xbf16> to vector<16x128xbf16>
    %247 = vector.broadcast %244 : bf16 to vector<16x128xbf16>
    %248 = arith.mulf %247, %246 : vector<16x128xbf16>
    %249 = arith.addf %242, %248 : vector<16x128xbf16>
    %c0_158 = arith.constant 0 : index
    %c7_159 = arith.constant 7 : index
    %250 = memref.load %arg2[%c0_158, %c7_159] : memref<8x9xf32, #tpu.memory_space<smem>>
    %251 = arith.truncf %250 : f32 to bf16
    %c14_160 = arith.constant 14 : index
    %c0_161 = arith.constant 0 : index
    %c0_162 = arith.constant 0 : index
    %252 = vector.load %arg1[%c14_160, %c0_161, %c0_162] : memref<16x16x128xbf16, #tpu.memory_space<vmem>>, vector<1x16x128xbf16>
    %253 = vector.shape_cast %252 : vector<1x16x128xbf16> to vector<16x128xbf16>
    %254 = vector.broadcast %251 : bf16 to vector<16x128xbf16>
    %255 = arith.mulf %254, %253 : vector<16x128xbf16>
    %256 = arith.addf %249, %255 : vector<16x128xbf16>
    %c0_163 = arith.constant 0 : index
    %c8_164 = arith.constant 8 : index
    %257 = memref.load %arg2[%c0_163, %c8_164] : memref<8x9xf32, #tpu.memory_space<smem>>
    %258 = arith.truncf %257 : f32 to bf16
    %c15 = arith.constant 15 : index
    %c0_165 = arith.constant 0 : index
    %c0_166 = arith.constant 0 : index
    %259 = vector.load %arg1[%c15, %c0_165, %c0_166] : memref<16x16x128xbf16, #tpu.memory_space<vmem>>, vector<1x16x128xbf16>
    %260 = vector.shape_cast %259 : vector<1x16x128xbf16> to vector<16x128xbf16>
    %261 = vector.broadcast %258 : bf16 to vector<16x128xbf16>
    %262 = arith.mulf %261, %260 : vector<16x128xbf16>
    %263 = arith.addf %256, %262 : vector<16x128xbf16>
    %264 = vector.broadcast %1 : bf16 to vector<16x128xbf16>
    %265 = arith.addf %263, %264 : vector<16x128xbf16>
    %cst_167 = arith.constant 0.000000e+00 : bf16
    %266 = vector.broadcast %cst_167 : bf16 to vector<16x128xbf16>
    %267 = arith.maximumf %265, %266 : vector<16x128xbf16>
    %268 = arith.maximumf %201, %267 : vector<16x128xbf16>
    %c0_168 = arith.constant 0 : index
    %c0_169 = arith.constant 0 : index
    %269 = vector.load %arg9[%c0_168, %c0_169] : memref<16x1024xbf16, #tpu.memory_space<vmem>>, vector<16x128xbf16>
    tpu.vector_store %arg9[%c0_168, %c0_169], %268 {strides = array<i32>} : memref<16x1024xbf16, #tpu.memory_space<vmem>>, vector<16x128xbf16>,
    %c1_170 = arith.constant 1 : index
    %270 = memref.load %arg3[%c1_170] : memref<8xf32, #tpu.memory_space<smem>>
    %271 = arith.truncf %270 : f32 to bf16
    %c1_171 = arith.constant 1 : index
    %c0_172 = arith.constant 0 : index
    %272 = memref.load %arg2[%c1_171, %c0_172] : memref<8x9xf32, #tpu.memory_space<smem>>
    %273 = arith.truncf %272 : f32 to bf16
    %c0_173 = arith.constant 0 : index
    %c0_174 = arith.constant 0 : index
    %c0_175 = arith.constant 0 : index
    %274 = vector.load %arg1[%c0_173, %c0_174, %c0_175] : memref<16x16x128xbf16, #tpu.memory_space<vmem>>, vector<1x16x128xbf16>
    %275 = vector.shape_cast %274 : vector<1x16x128xbf16> to vector<16x128xbf16>
    %276 = vector.broadcast %273 : bf16 to vector<16x128xbf16>
    %277 = arith.mulf %276, %275 : vector<16x128xbf16>
    %c1_176 = arith.constant 1 : index
    %c1_177 = arith.constant 1 : index
    %278 = memref.load %arg2[%c1_176, %c1_177] : memref<8x9xf32, #tpu.memory_space<smem>>
    %279 = arith.truncf %278 : f32 to bf16
    %c1_178 = arith.constant 1 : index
    %c0_179 = arith.constant 0 : index
    %c0_180 = arith.constant 0 : index
    %280 = vector.load %arg1[%c1_178, %c0_179, %c0_180] : memref<16x16x128xbf16, #tpu.memory_space<vmem>>, vector<1x16x128xbf16>
    %281 = vector.shape_cast %280 : vector<1x16x128xbf16> to vector<16x128xbf16>
    %282 = vector.broadcast %279 : bf16 to vector<16x128xbf16>
    %283 = arith.mulf %282, %281 : vector<16x128xbf16>
    %284 = arith.addf %277, %283 : vector<16x128xbf16>
    %c1_181 = arith.constant 1 : index
    %c2_182 = arith.constant 2 : index
    %285 = memref.load %arg2[%c1_181, %c2_182] : memref<8x9xf32, #tpu.memory_space<smem>>
    %286 = arith.truncf %285 : f32 to bf16
    %c2_183 = arith.constant 2 : index
    %c0_184 = arith.constant 0 : index
    %c0_185 = arith.constant 0 : index
    %287 = vector.load %arg1[%c2_183, %c0_184, %c0_185] : memref<16x16x128xbf16, #tpu.memory_space<vmem>>, vector<1x16x128xbf16>
    %288 = vector.shape_cast %287 : vector<1x16x128xbf16> to vector<16x128xbf16>
    %289 = vector.broadcast %286 : bf16 to vector<16x128xbf16>
    %290 = arith.mulf %289, %288 : vector<16x128xbf16>
    %291 = arith.addf %284, %290 : vector<16x128xbf16>
    %c1_186 = arith.constant 1 : index
    %c3_187 = arith.constant 3 : index
    %292 = memref.load %arg2[%c1_186, %c3_187] : memref<8x9xf32, #tpu.memory_space<smem>>
    %293 = arith.truncf %292 : f32 to bf16
    %c4_188 = arith.constant 4 : index
    %c0_189 = arith.constant 0 : index
    %c0_190 = arith.constant 0 : index
    %294 = vector.load %arg1[%c4_188, %c0_189, %c0_190] : memref<16x16x128xbf16, #tpu.memory_space<vmem>>, vector<1x16x128xbf16>
    %295 = vector.shape_cast %294 : vector<1x16x128xbf16> to vector<16x128xbf16>
    %296 = vector.broadcast %293 : bf16 to vector<16x128xbf16>
    %297 = arith.mulf %296, %295 : vector<16x128xbf16>
    %298 = arith.addf %291, %297 : vector<16x128xbf16>
    %c1_191 = arith.constant 1 : index
    %c4_192 = arith.constant 4 : index
    %299 = memref.load %arg2[%c1_191, %c4_192] : memref<8x9xf32, #tpu.memory_space<smem>>
    %300 = arith.truncf %299 : f32 to bf16
    %c5_193 = arith.constant 5 : index
    %c0_194 = arith.constant 0 : index
    %c0_195 = arith.constant 0 : index
    %301 = vector.load %arg1[%c5_193, %c0_194, %c0_195] : memref<16x16x128xbf16, #tpu.memory_space<vmem>>, vector<1x16x128xbf16>
    %302 = vector.shape_cast %301 : vector<1x16x128xbf16> to vector<16x128xbf16>
    %303 = vector.broadcast %300 : bf16 to vector<16x128xbf16>
    %304 = arith.mulf %303, %302 : vector<16x128xbf16>
    %305 = arith.addf %298, %304 : vector<16x128xbf16>
    %c1_196 = arith.constant 1 : index
    %c5_197 = arith.constant 5 : index
    %306 = memref.load %arg2[%c1_196, %c5_197] : memref<8x9xf32, #tpu.memory_space<smem>>
    %307 = arith.truncf %306 : f32 to bf16
    %c6_198 = arith.constant 6 : index
    %c0_199 = arith.constant 0 : index
    %c0_200 = arith.constant 0 : index
    %308 = vector.load %arg1[%c6_198, %c0_199, %c0_200] : memref<16x16x128xbf16, #tpu.memory_space<vmem>>, vector<1x16x128xbf16>
    %309 = vector.shape_cast %308 : vector<1x16x128xbf16> to vector<16x128xbf16>
    %310 = vector.broadcast %307 : bf16 to vector<16x128xbf16>
    %311 = arith.mulf %310, %309 : vector<16x128xbf16>
    %312 = arith.addf %305, %311 : vector<16x128xbf16>
    %c1_201 = arith.constant 1 : index
    %c6_202 = arith.constant 6 : index
    %313 = memref.load %arg2[%c1_201, %c6_202] : memref<8x9xf32, #tpu.memory_space<smem>>
    %314 = arith.truncf %313 : f32 to bf16
    %c8_203 = arith.constant 8 : index
    %c0_204 = arith.constant 0 : index
    %c0_205 = arith.constant 0 : index
    %315 = vector.load %arg1[%c8_203, %c0_204, %c0_205] : memref<16x16x128xbf16, #tpu.memory_space<vmem>>, vector<1x16x128xbf16>
    %316 = vector.shape_cast %315 : vector<1x16x128xbf16> to vector<16x128xbf16>
    %317 = vector.broadcast %314 : bf16 to vector<16x128xbf16>
    %318 = arith.mulf %317, %316 : vector<16x128xbf16>
    %319 = arith.addf %312, %318 : vector<16x128xbf16>
    %c1_206 = arith.constant 1 : index
    %c7_207 = arith.constant 7 : index
    %320 = memref.load %arg2[%c1_206, %c7_207] : memref<8x9xf32, #tpu.memory_space<smem>>
    %321 = arith.truncf %320 : f32 to bf16
    %c9_208 = arith.constant 9 : index
    %c0_209 = arith.constant 0 : index
    %c0_210 = arith.constant 0 : index
    %322 = vector.load %arg1[%c9_208, %c0_209, %c0_210] : memref<16x16x128xbf16, #tpu.memory_space<vmem>>, vector<1x16x128xbf16>
    %323 = vector.shape_cast %322 : vector<1x16x128xbf16> to vector<16x128xbf16>
    %324 = vector.broadcast %321 : bf16 to vector<16x128xbf16>
    %325 = arith.mulf %324, %323 : vector<16x128xbf16>
    %326 = arith.addf %319, %325 : vector<16x128xbf16>
    %c1_211 = arith.constant 1 : index
    %c8_212 = arith.constant 8 : index
    %327 = memref.load %arg2[%c1_211, %c8_212] : memref<8x9xf32, #tpu.memory_space<smem>>
    %328 = arith.truncf %327 : f32 to bf16
    %c10_213 = arith.constant 10 : index
    %c0_214 = arith.constant 0 : index
    %c0_215 = arith.constant 0 : index
    %329 = vector.load %arg1[%c10_213, %c0_214, %c0_215] : memref<16x16x128xbf16, #tpu.memory_space<vmem>>, vector<1x16x128xbf16>
    %330 = vector.shape_cast %329 : vector<1x16x128xbf16> to vector<16x128xbf16>
    %331 = vector.broadcast %328 : bf16 to vector<16x128xbf16>
    %332 = arith.mulf %331, %330 : vector<16x128xbf16>
    %333 = arith.addf %326, %332 : vector<16x128xbf16>
    %334 = vector.broadcast %271 : bf16 to vector<16x128xbf16>
    %335 = arith.addf %333, %334 : vector<16x128xbf16>
    %cst_216 = arith.constant 0.000000e+00 : bf16
    %336 = vector.broadcast %cst_216 : bf16 to vector<16x128xbf16>
    %337 = arith.maximumf %335, %336 : vector<16x128xbf16>
    %c1_217 = arith.constant 1 : index
    %c0_218 = arith.constant 0 : index
    %338 = memref.load %arg2[%c1_217, %c0_218] : memref<8x9xf32, #tpu.memory_space<smem>>
    %339 = arith.truncf %338 : f32 to bf16
    %c1_219 = arith.constant 1 : index
    %c0_220 = arith.constant 0 : index
    %c0_221 = arith.constant 0 : index
    %340 = vector.load %arg1[%c1_219, %c0_220, %c0_221] : memref<16x16x128xbf16, #tpu.memory_space<vmem>>, vector<1x16x128xbf16>
    %341 = vector.shape_cast %340 : vector<1x16x128xbf16> to vector<16x128xbf16>
    %342 = vector.broadcast %339 : bf16 to vector<16x128xbf16>
    %343 = arith.mulf %342, %341 : vector<16x128xbf16>
    %c1_222 = arith.constant 1 : index
    %c1_223 = arith.constant 1 : index
    %344 = memref.load %arg2[%c1_222, %c1_223] : memref<8x9xf32, #tpu.memory_space<smem>>
    %345 = arith.truncf %344 : f32 to bf16
    %c2_224 = arith.constant 2 : index
    %c0_225 = arith.constant 0 : index
    %c0_226 = arith.constant 0 : index
    %346 = vector.load %arg1[%c2_224, %c0_225, %c0_226] : memref<16x16x128xbf16, #tpu.memory_space<vmem>>, vector<1x16x128xbf16>
    %347 = vector.shape_cast %346 : vector<1x16x128xbf16> to vector<16x128xbf16>
    %348 = vector.broadcast %345 : bf16 to vector<16x128xbf16>
    %349 = arith.mulf %348, %347 : vector<16x128xbf16>
    %350 = arith.addf %343, %349 : vector<16x128xbf16>
    %c1_227 = arith.constant 1 : index
    %c2_228 = arith.constant 2 : index
    %351 = memref.load %arg2[%c1_227, %c2_228] : memref<8x9xf32, #tpu.memory_space<smem>>
    %352 = arith.truncf %351 : f32 to bf16
    %c3_229 = arith.constant 3 : index
    %c0_230 = arith.constant 0 : index
    %c0_231 = arith.constant 0 : index
    %353 = vector.load %arg1[%c3_229, %c0_230, %c0_231] : memref<16x16x128xbf16, #tpu.memory_space<vmem>>, vector<1x16x128xbf16>
    %354 = vector.shape_cast %353 : vector<1x16x128xbf16> to vector<16x128xbf16>
    %355 = vector.broadcast %352 : bf16 to vector<16x128xbf16>
    %356 = arith.mulf %355, %354 : vector<16x128xbf16>
    %357 = arith.addf %350, %356 : vector<16x128xbf16>
    %c1_232 = arith.constant 1 : index
    %c3_233 = arith.constant 3 : index
    %358 = memref.load %arg2[%c1_232, %c3_233] : memref<8x9xf32, #tpu.memory_space<smem>>
    %359 = arith.truncf %358 : f32 to bf16
    %c5_234 = arith.constant 5 : index
    %c0_235 = arith.constant 0 : index
    %c0_236 = arith.constant 0 : index
    %360 = vector.load %arg1[%c5_234, %c0_235, %c0_236] : memref<16x16x128xbf16, #tpu.memory_space<vmem>>, vector<1x16x128xbf16>
    %361 = vector.shape_cast %360 : vector<1x16x128xbf16> to vector<16x128xbf16>
    %362 = vector.broadcast %359 : bf16 to vector<16x128xbf16>
    %363 = arith.mulf %362, %361 : vector<16x128xbf16>
    %364 = arith.addf %357, %363 : vector<16x128xbf16>
    %c1_237 = arith.constant 1 : index
    %c4_238 = arith.constant 4 : index
    %365 = memref.load %arg2[%c1_237, %c4_238] : memref<8x9xf32, #tpu.memory_space<smem>>
    %366 = arith.truncf %365 : f32 to bf16
    %c6_239 = arith.constant 6 : index
    %c0_240 = arith.constant 0 : index
    %c0_241 = arith.constant 0 : index
    %367 = vector.load %arg1[%c6_239, %c0_240, %c0_241] : memref<16x16x128xbf16, #tpu.memory_space<vmem>>, vector<1x16x128xbf16>
    %368 = vector.shape_cast %367 : vector<1x16x128xbf16> to vector<16x128xbf16>
    %369 = vector.broadcast %366 : bf16 to vector<16x128xbf16>
    %370 = arith.mulf %369, %368 : vector<16x128xbf16>
    %371 = arith.addf %364, %370 : vector<16x128xbf16>
    %c1_242 = arith.constant 1 : index
    %c5_243 = arith.constant 5 : index
    %372 = memref.load %arg2[%c1_242, %c5_243] : memref<8x9xf32, #tpu.memory_space<smem>>
    %373 = arith.truncf %372 : f32 to bf16
    %c7_244 = arith.constant 7 : index
    %c0_245 = arith.constant 0 : index
    %c0_246 = arith.constant 0 : index
    %374 = vector.load %arg1[%c7_244, %c0_245, %c0_246] : memref<16x16x128xbf16, #tpu.memory_space<vmem>>, vector<1x16x128xbf16>
    %375 = vector.shape_cast %374 : vector<1x16x128xbf16> to vector<16x128xbf16>
    %376 = vector.broadcast %373 : bf16 to vector<16x128xbf16>
    %377 = arith.mulf %376, %375 : vector<16x128xbf16>
    %378 = arith.addf %371, %377 : vector<16x128xbf16>
    %c1_247 = arith.constant 1 : index
    %c6_248 = arith.constant 6 : index
    %379 = memref.load %arg2[%c1_247, %c6_248] : memref<8x9xf32, #tpu.memory_space<smem>>
    %380 = arith.truncf %379 : f32 to bf16
    %c9_249 = arith.constant 9 : index
    %c0_250 = arith.constant 0 : index
    %c0_251 = arith.constant 0 : index
    %381 = vector.load %arg1[%c9_249, %c0_250, %c0_251] : memref<16x16x128xbf16, #tpu.memory_space<vmem>>, vector<1x16x128xbf16>
    %382 = vector.shape_cast %381 : vector<1x16x128xbf16> to vector<16x128xbf16>
    %383 = vector.broadcast %380 : bf16 to vector<16x128xbf16>
    %384 = arith.mulf %383, %382 : vector<16x128xbf16>
    %385 = arith.addf %378, %384 : vector<16x128xbf16>
    %c1_252 = arith.constant 1 : index
    %c7_253 = arith.constant 7 : index
    %386 = memref.load %arg2[%c1_252, %c7_253] : memref<8x9xf32, #tpu.memory_space<smem>>
    %387 = arith.truncf %386 : f32 to bf16
    %c10_254 = arith.constant 10 : index
    %c0_255 = arith.constant 0 : index
    %c0_256 = arith.constant 0 : index
    %388 = vector.load %arg1[%c10_254, %c0_255, %c0_256] : memref<16x16x128xbf16, #tpu.memory_space<vmem>>, vector<1x16x128xbf16>
    %389 = vector.shape_cast %388 : vector<1x16x128xbf16> to vector<16x128xbf16>
    %390 = vector.broadcast %387 : bf16 to vector<16x128xbf16>
    %391 = arith.mulf %390, %389 : vector<16x128xbf16>
    %392 = arith.addf %385, %391 : vector<16x128xbf16>
    %c1_257 = arith.constant 1 : index
    %c8_258 = arith.constant 8 : index
    %393 = memref.load %arg2[%c1_257, %c8_258] : memref<8x9xf32, #tpu.memory_space<smem>>
    %394 = arith.truncf %393 : f32 to bf16
    %c11_259 = arith.constant 11 : index
    %c0_260 = arith.constant 0 : index
    %c0_261 = arith.constant 0 : index
    %395 = vector.load %arg1[%c11_259, %c0_260, %c0_261] : memref<16x16x128xbf16, #tpu.memory_space<vmem>>, vector<1x16x128xbf16>
    %396 = vector.shape_cast %395 : vector<1x16x128xbf16> to vector<16x128xbf16>
    %397 = vector.broadcast %394 : bf16 to vector<16x128xbf16>
    %398 = arith.mulf %397, %396 : vector<16x128xbf16>
    %399 = arith.addf %392, %398 : vector<16x128xbf16>
    %400 = vector.broadcast %271 : bf16 to vector<16x128xbf16>
    %401 = arith.addf %399, %400 : vector<16x128xbf16>
    %cst_262 = arith.constant 0.000000e+00 : bf16
    %402 = vector.broadcast %cst_262 : bf16 to vector<16x128xbf16>
    %403 = arith.maximumf %401, %402 : vector<16x128xbf16>
    %404 = arith.maximumf %337, %403 : vector<16x128xbf16>
    %c1_263 = arith.constant 1 : index
    %c0_264 = arith.constant 0 : index
    %405 = memref.load %arg2[%c1_263, %c0_264] : memref<8x9xf32, #tpu.memory_space<smem>>
    %406 = arith.truncf %405 : f32 to bf16
    %c4_265 = arith.constant 4 : index
    %c0_266 = arith.constant 0 : index
    %c0_267 = arith.constant 0 : index
    %407 = vector.load %arg1[%c4_265, %c0_266, %c0_267] : memref<16x16x128xbf16, #tpu.memory_space<vmem>>, vector<1x16x128xbf16>
    %408 = vector.shape_cast %407 : vector<1x16x128xbf16> to vector<16x128xbf16>
    %409 = vector.broadcast %406 : bf16 to vector<16x128xbf16>
    %410 = arith.mulf %409, %408 : vector<16x128xbf16>
    %c1_268 = arith.constant 1 : index
    %c1_269 = arith.constant 1 : index
    %411 = memref.load %arg2[%c1_268, %c1_269] : memref<8x9xf32, #tpu.memory_space<smem>>
    %412 = arith.truncf %411 : f32 to bf16
    %c5_270 = arith.constant 5 : index
    %c0_271 = arith.constant 0 : index
    %c0_272 = arith.constant 0 : index
    %413 = vector.load %arg1[%c5_270, %c0_271, %c0_272] : memref<16x16x128xbf16, #tpu.memory_space<vmem>>, vector<1x16x128xbf16>
    %414 = vector.shape_cast %413 : vector<1x16x128xbf16> to vector<16x128xbf16>
    %415 = vector.broadcast %412 : bf16 to vector<16x128xbf16>
    %416 = arith.mulf %415, %414 : vector<16x128xbf16>
    %417 = arith.addf %410, %416 : vector<16x128xbf16>
    %c1_273 = arith.constant 1 : index
    %c2_274 = arith.constant 2 : index
    %418 = memref.load %arg2[%c1_273, %c2_274] : memref<8x9xf32, #tpu.memory_space<smem>>
    %419 = arith.truncf %418 : f32 to bf16
    %c6_275 = arith.constant 6 : index
    %c0_276 = arith.constant 0 : index
    %c0_277 = arith.constant 0 : index
    %420 = vector.load %arg1[%c6_275, %c0_276, %c0_277] : memref<16x16x128xbf16, #tpu.memory_space<vmem>>, vector<1x16x128xbf16>
    %421 = vector.shape_cast %420 : vector<1x16x128xbf16> to vector<16x128xbf16>
    %422 = vector.broadcast %419 : bf16 to vector<16x128xbf16>
    %423 = arith.mulf %422, %421 : vector<16x128xbf16>
    %424 = arith.addf %417, %423 : vector<16x128xbf16>
    %c1_278 = arith.constant 1 : index
    %c3_279 = arith.constant 3 : index
    %425 = memref.load %arg2[%c1_278, %c3_279] : memref<8x9xf32, #tpu.memory_space<smem>>
    %426 = arith.truncf %425 : f32 to bf16
    %c8_280 = arith.constant 8 : index
    %c0_281 = arith.constant 0 : index
    %c0_282 = arith.constant 0 : index
    %427 = vector.load %arg1[%c8_280, %c0_281, %c0_282] : memref<16x16x128xbf16, #tpu.memory_space<vmem>>, vector<1x16x128xbf16>
    %428 = vector.shape_cast %427 : vector<1x16x128xbf16> to vector<16x128xbf16>
    %429 = vector.broadcast %426 : bf16 to vector<16x128xbf16>
    %430 = arith.mulf %429, %428 : vector<16x128xbf16>
    %431 = arith.addf %424, %430 : vector<16x128xbf16>
    %c1_283 = arith.constant 1 : index
    %c4_284 = arith.constant 4 : index
    %432 = memref.load %arg2[%c1_283, %c4_284] : memref<8x9xf32, #tpu.memory_space<smem>>
    %433 = arith.truncf %432 : f32 to bf16
    %c9_285 = arith.constant 9 : index
    %c0_286 = arith.constant 0 : index
    %c0_287 = arith.constant 0 : index
    %434 = vector.load %arg1[%c9_285, %c0_286, %c0_287] : memref<16x16x128xbf16, #tpu.memory_space<vmem>>, vector<1x16x128xbf16>
    %435 = vector.shape_cast %434 : vector<1x16x128xbf16> to vector<16x128xbf16>
    %436 = vector.broadcast %433 : bf16 to vector<16x128xbf16>
    %437 = arith.mulf %436, %435 : vector<16x128xbf16>
    %438 = arith.addf %431, %437 : vector<16x128xbf16>
    %c1_288 = arith.constant 1 : index
    %c5_289 = arith.constant 5 : index
    %439 = memref.load %arg2[%c1_288, %c5_289] : memref<8x9xf32, #tpu.memory_space<smem>>
    %440 = arith.truncf %439 : f32 to bf16
    %c10_290 = arith.constant 10 : index
    %c0_291 = arith.constant 0 : index
    %c0_292 = arith.constant 0 : index
    %441 = vector.load %arg1[%c10_290, %c0_291, %c0_292] : memref<16x16x128xbf16, #tpu.memory_space<vmem>>, vector<1x16x128xbf16>
    %442 = vector.shape_cast %441 : vector<1x16x128xbf16> to vector<16x128xbf16>
    %443 = vector.broadcast %440 : bf16 to vector<16x128xbf16>
    %444 = arith.mulf %443, %442 : vector<16x128xbf16>
    %445 = arith.addf %438, %444 : vector<16x128xbf16>
    %c1_293 = arith.constant 1 : index
    %c6_294 = arith.constant 6 : index
    %446 = memref.load %arg2[%c1_293, %c6_294] : memref<8x9xf32, #tpu.memory_space<smem>>
    %447 = arith.truncf %446 : f32 to bf16
    %c12_295 = arith.constant 12 : index
    %c0_296 = arith.constant 0 : index
    %c0_297 = arith.constant 0 : index
    %448 = vector.load %arg1[%c12_295, %c0_296, %c0_297] : memref<16x16x128xbf16, #tpu.memory_space<vmem>>, vector<1x16x128xbf16>
    %449 = vector.shape_cast %448 : vector<1x16x128xbf16> to vector<16x128xbf16>
    %450 = vector.broadcast %447 : bf16 to vector<16x128xbf16>
    %451 = arith.mulf %450, %449 : vector<16x128xbf16>
    %452 = arith.addf %445, %451 : vector<16x128xbf16>
    %c1_298 = arith.constant 1 : index
    %c7_299 = arith.constant 7 : index
    %453 = memref.load %arg2[%c1_298, %c7_299] : memref<8x9xf32, #tpu.memory_space<smem>>
    %454 = arith.truncf %453 : f32 to bf16
    %c13_300 = arith.constant 13 : index
    %c0_301 = arith.constant 0 : index
    %c0_302 = arith.constant 0 : index
    %455 = vector.load %arg1[%c13_300, %c0_301, %c0_302] : memref<16x16x128xbf16, #tpu.memory_space<vmem>>, vector<1x16x128xbf16>
    %456 = vector.shape_cast %455 : vector<1x16x128xbf16> to vector<16x128xbf16>
    %457 = vector.broadcast %454 : bf16 to vector<16x128xbf16>
    %458 = arith.mulf %457, %456 : vector<16x128xbf16>
    %459 = arith.addf %452, %458 : vector<16x128xbf16>
    %c1_303 = arith.constant 1 : index
    %c8_304 = arith.constant 8 : index
    %460 = memref.load %arg2[%c1_303, %c8_304] : memref<8x9xf32, #tpu.memory_space<smem>>
    %461 = arith.truncf %460 : f32 to bf16
    %c14_305 = arith.constant 14 : index
    %c0_306 = arith.constant 0 : index
    %c0_307 = arith.constant 0 : index
    %462 = vector.load %arg1[%c14_305, %c0_306, %c0_307] : memref<16x16x128xbf16, #tpu.memory_space<vmem>>, vector<1x16x128xbf16>
    %463 = vector.shape_cast %462 : vector<1x16x128xbf16> to vector<16x128xbf16>
    %464 = vector.broadcast %461 : bf16 to vector<16x128xbf16>
    %465 = arith.mulf %464, %463 : vector<16x128xbf16>
    %466 = arith.addf %459, %465 : vector<16x128xbf16>
    %467 = vector.broadcast %271 : bf16 to vector<16x128xbf16>
    %468 = arith.addf %466, %467 : vector<16x128xbf16>
    %cst_308 = arith.constant 0.000000e+00 : bf16
    %469 = vector.broadcast %cst_308 : bf16 to vector<16x128xbf16>
    %470 = arith.maximumf %468, %469 : vector<16x128xbf16>
    %471 = arith.maximumf %404, %470 : vector<16x128xbf16>
    %c1_309 = arith.constant 1 : index
    %c0_310 = arith.constant 0 : index
    %472 = memref.load %arg2[%c1_309, %c0_310] : memref<8x9xf32, #tpu.memory_space<smem>>
    %473 = arith.truncf %472 : f32 to bf16
    %c5_311 = arith.constant 5 : index
    %c0_312 = arith.constant 0 : index
    %c0_313 = arith.constant 0 : index
    %474 = vector.load %arg1[%c5_311, %c0_312, %c0_313] : memref<16x16x128xbf16, #tpu.memory_space<vmem>>, vector<1x16x128xbf16>
    %475 = vector.shape_cast %474 : vector<1x16x128xbf16> to vector<16x128xbf16>
    %476 = vector.broadcast %473 : bf16 to vector<16x128xbf16>
    %477 = arith.mulf %476, %475 : vector<16x128xbf16>
    %c1_314 = arith.constant 1 : index
    %c1_315 = arith.constant 1 : index
    %478 = memref.load %arg2[%c1_314, %c1_315] : memref<8x9xf32, #tpu.memory_space<smem>>
    %479 = arith.truncf %478 : f32 to bf16
    %c6_316 = arith.constant 6 : index
    %c0_317 = arith.constant 0 : index
    %c0_318 = arith.constant 0 : index
    %480 = vector.load %arg1[%c6_316, %c0_317, %c0_318] : memref<16x16x128xbf16, #tpu.memory_space<vmem>>, vector<1x16x128xbf16>
    %481 = vector.shape_cast %480 : vector<1x16x128xbf16> to vector<16x128xbf16>
    %482 = vector.broadcast %479 : bf16 to vector<16x128xbf16>
    %483 = arith.mulf %482, %481 : vector<16x128xbf16>
    %484 = arith.addf %477, %483 : vector<16x128xbf16>
    %c1_319 = arith.constant 1 : index
    %c2_320 = arith.constant 2 : index
    %485 = memref.load %arg2[%c1_319, %c2_320] : memref<8x9xf32, #tpu.memory_space<smem>>
    %486 = arith.truncf %485 : f32 to bf16
    %c7_321 = arith.constant 7 : index
    %c0_322 = arith.constant 0 : index
    %c0_323 = arith.constant 0 : index
    %487 = vector.load %arg1[%c7_321, %c0_322, %c0_323] : memref<16x16x128xbf16, #tpu.memory_space<vmem>>, vector<1x16x128xbf16>
    %488 = vector.shape_cast %487 : vector<1x16x128xbf16> to vector<16x128xbf16>
    %489 = vector.broadcast %486 : bf16 to vector<16x128xbf16>
    %490 = arith.mulf %489, %488 : vector<16x128xbf16>
    %491 = arith.addf %484, %490 : vector<16x128xbf16>
    %c1_324 = arith.constant 1 : index
    %c3_325 = arith.constant 3 : index
    %492 = memref.load %arg2[%c1_324, %c3_325] : memref<8x9xf32, #tpu.memory_space<smem>>
    %493 = arith.truncf %492 : f32 to bf16
    %c9_326 = arith.constant 9 : index
    %c0_327 = arith.constant 0 : index
    %c0_328 = arith.constant 0 : index
    %494 = vector.load %arg1[%c9_326, %c0_327, %c0_328] : memref<16x16x128xbf16, #tpu.memory_space<vmem>>, vector<1x16x128xbf16>
    %495 = vector.shape_cast %494 : vector<1x16x128xbf16> to vector<16x128xbf16>
    %496 = vector.broadcast %493 : bf16 to vector<16x128xbf16>
    %497 = arith.mulf %496, %495 : vector<16x128xbf16>
    %498 = arith.addf %491, %497 : vector<16x128xbf16>
    %c1_329 = arith.constant 1 : index
    %c4_330 = arith.constant 4 : index
    %499 = memref.load %arg2[%c1_329, %c4_330] : memref<8x9xf32, #tpu.memory_space<smem>>
    %500 = arith.truncf %499 : f32 to bf16
    %c10_331 = arith.constant 10 : index
    %c0_332 = arith.constant 0 : index
    %c0_333 = arith.constant 0 : index
    %501 = vector.load %arg1[%c10_331, %c0_332, %c0_333] : memref<16x16x128xbf16, #tpu.memory_space<vmem>>, vector<1x16x128xbf16>
    %502 = vector.shape_cast %501 : vector<1x16x128xbf16> to vector<16x128xbf16>
    %503 = vector.broadcast %500 : bf16 to vector<16x128xbf16>
    %504 = arith.mulf %503, %502 : vector<16x128xbf16>
    %505 = arith.addf %498, %504 : vector<16x128xbf16>
    %c1_334 = arith.constant 1 : index
    %c5_335 = arith.constant 5 : index
    %506 = memref.load %arg2[%c1_334, %c5_335] : memref<8x9xf32, #tpu.memory_space<smem>>
    %507 = arith.truncf %506 : f32 to bf16
    %c11_336 = arith.constant 11 : index
    %c0_337 = arith.constant 0 : index
    %c0_338 = arith.constant 0 : index
    %508 = vector.load %arg1[%c11_336, %c0_337, %c0_338] : memref<16x16x128xbf16, #tpu.memory_space<vmem>>, vector<1x16x128xbf16>
    %509 = vector.shape_cast %508 : vector<1x16x128xbf16> to vector<16x128xbf16>
    %510 = vector.broadcast %507 : bf16 to vector<16x128xbf16>
    %511 = arith.mulf %510, %509 : vector<16x128xbf16>
    %512 = arith.addf %505, %511 : vector<16x128xbf16>
    %c1_339 = arith.constant 1 : index
    %c6_340 = arith.constant 6 : index
    %513 = memref.load %arg2[%c1_339, %c6_340] : memref<8x9xf32, #tpu.memory_space<smem>>
    %514 = arith.truncf %513 : f32 to bf16
    %c13_341 = arith.constant 13 : index
    %c0_342 = arith.constant 0 : index
    %c0_343 = arith.constant 0 : index
    %515 = vector.load %arg1[%c13_341, %c0_342, %c0_343] : memref<16x16x128xbf16, #tpu.memory_space<vmem>>, vector<1x16x128xbf16>
    %516 = vector.shape_cast %515 : vector<1x16x128xbf16> to vector<16x128xbf16>
    %517 = vector.broadcast %514 : bf16 to vector<16x128xbf16>
    %518 = arith.mulf %517, %516 : vector<16x128xbf16>
    %519 = arith.addf %512, %518 : vector<16x128xbf16>
    %c1_344 = arith.constant 1 : index
    %c7_345 = arith.constant 7 : index
    %520 = memref.load %arg2[%c1_344, %c7_345] : memref<8x9xf32, #tpu.memory_space<smem>>
    %521 = arith.truncf %520 : f32 to bf16
    %c14_346 = arith.constant 14 : index
    %c0_347 = arith.constant 0 : index
    %c0_348 = arith.constant 0 : index
    %522 = vector.load %arg1[%c14_346, %c0_347, %c0_348] : memref<16x16x128xbf16, #tpu.memory_space<vmem>>, vector<1x16x128xbf16>
    %523 = vector.shape_cast %522 : vector<1x16x128xbf16> to vector<16x128xbf16>
    %524 = vector.broadcast %521 : bf16 to vector<16x128xbf16>
    %525 = arith.mulf %524, %523 : vector<16x128xbf16>
    %526 = arith.addf %519, %525 : vector<16x128xbf16>
    %c1_349 = arith.constant 1 : index
    %c8_350 = arith.constant 8 : index
    %527 = memref.load %arg2[%c1_349, %c8_350] : memref<8x9xf32, #tpu.memory_space<smem>>
    %528 = arith.truncf %527 : f32 to bf16
    %c15_351 = arith.constant 15 : index
    %c0_352 = arith.constant 0 : index
    %c0_353 = arith.constant 0 : index
    %529 = vector.load %arg1[%c15_351, %c0_352, %c0_353] : memref<16x16x128xbf16, #tpu.memory_space<vmem>>, vector<1x16x128xbf16>
    %530 = vector.shape_cast %529 : vector<1x16x128xbf16> to vector<16x128xbf16>
    %531 = vector.broadcast %528 : bf16 to vector<16x128xbf16>
    %532 = arith.mulf %531, %530 : vector<16x128xbf16>
    %533 = arith.addf %526, %532 : vector<16x128xbf16>
    %534 = vector.broadcast %271 : bf16 to vector<16x128xbf16>
    %535 = arith.addf %533, %534 : vector<16x128xbf16>
    %cst_354 = arith.constant 0.000000e+00 : bf16
    %536 = vector.broadcast %cst_354 : bf16 to vector<16x128xbf16>
    %537 = arith.maximumf %535, %536 : vector<16x128xbf16>
    %538 = arith.maximumf %471, %537 : vector<16x128xbf16>
    %c0_355 = arith.constant 0 : index
    %c128 = arith.constant 128 : index
    %539 = vector.load %arg9[%c0_355, %c128] : memref<16x1024xbf16, #tpu.memory_space<vmem>>, vector<16x128xbf16>
    tpu.vector_store %arg9[%c0_355, %c128], %538 {strides = array<i32>} : memref<16x1024xbf16, #tpu.memory_space<vmem>>, vector<16x128xbf16>,
    %c2_356 = arith.constant 2 : index
    %540 = memref.load %arg3[%c2_356] : memref<8xf32, #tpu.memory_space<smem>>
    %541 = arith.truncf %540 : f32 to bf16
    %c2_357 = arith.constant 2 : index
    %c0_358 = arith.constant 0 : index
    %542 = memref.load %arg2[%c2_357, %c0_358] : memref<8x9xf32, #tpu.memory_space<smem>>
    %543 = arith.truncf %542 : f32 to bf16
    %c0_359 = arith.constant 0 : index
    %c0_360 = arith.constant 0 : index
    %c0_361 = arith.constant 0 : index
    %544 = vector.load %arg1[%c0_359, %c0_360, %c0_361] : memref<16x16x128xbf16, #tpu.memory_space<vmem>>, vector<1x16x128xbf16>
    %545 = vector.shape_cast %544 : vector<1x16x128xbf16> to vector<16x128xbf16>
    %546 = vector.broadcast %543 : bf16 to vector<16x128xbf16>
    %547 = arith.mulf %546, %545 : vector<16x128xbf16>
    %c2_362 = arith.constant 2 : index
    %c1_363 = arith.constant 1 : index
    %548 = memref.load %arg2[%c2_362, %c1_363] : memref<8x9xf32, #tpu.memory_space<smem>>
    %549 = arith.truncf %548 : f32 to bf16
    %c1_364 = arith.constant 1 : index
    %c0_365 = arith.constant 0 : index
    %c0_366 = arith.constant 0 : index
    %550 = vector.load %arg1[%c1_364, %c0_365, %c0_366] : memref<16x16x128xbf16, #tpu.memory_space<vmem>>, vector<1x16x128xbf16>
    %551 = vector.shape_cast %550 : vector<1x16x128xbf16> to vector<16x128xbf16>
    %552 = vector.broadcast %549 : bf16 to vector<16x128xbf16>
    %553 = arith.mulf %552, %551 : vector<16x128xbf16>
    %554 = arith.addf %547, %553 : vector<16x128xbf16>
    %c2_367 = arith.constant 2 : index
    %c2_368 = arith.constant 2 : index
    %555 = memref.load %arg2[%c2_367, %c2_368] : memref<8x9xf32, #tpu.memory_space<smem>>
    %556 = arith.truncf %555 : f32 to bf16
    %c2_369 = arith.constant 2 : index
    %c0_370 = arith.constant 0 : index
    %c0_371 = arith.constant 0 : index
    %557 = vector.load %arg1[%c2_369, %c0_370, %c0_371] : memref<16x16x128xbf16, #tpu.memory_space<vmem>>, vector<1x16x128xbf16>
    %558 = vector.shape_cast %557 : vector<1x16x128xbf16> to vector<16x128xbf16>
    %559 = vector.broadcast %556 : bf16 to vector<16x128xbf16>
    %560 = arith.mulf %559, %558 : vector<16x128xbf16>
    %561 = arith.addf %554, %560 : vector<16x128xbf16>
    %c2_372 = arith.constant 2 : index
    %c3_373 = arith.constant 3 : index
    %562 = memref.load %arg2[%c2_372, %c3_373] : memref<8x9xf32, #tpu.memory_space<smem>>
    %563 = arith.truncf %562 : f32 to bf16
    %c4_374 = arith.constant 4 : index
    %c0_375 = arith.constant 0 : index
    %c0_376 = arith.constant 0 : index
    %564 = vector.load %arg1[%c4_374, %c0_375, %c0_376] : memref<16x16x128xbf16, #tpu.memory_space<vmem>>, vector<1x16x128xbf16>
    %565 = vector.shape_cast %564 : vector<1x16x128xbf16> to vector<16x128xbf16>
    %566 = vector.broadcast %563 : bf16 to vector<16x128xbf16>
    %567 = arith.mulf %566, %565 : vector<16x128xbf16>
    %568 = arith.addf %561, %567 : vector<16x128xbf16>
    %c2_377 = arith.constant 2 : index
    %c4_378 = arith.constant 4 : index
    %569 = memref.load %arg2[%c2_377, %c4_378] : memref<8x9xf32, #tpu.memory_space<smem>>
    %570 = arith.truncf %569 : f32 to bf16
    %c5_379 = arith.constant 5 : index
    %c0_380 = arith.constant 0 : index
    %c0_381 = arith.constant 0 : index
    %571 = vector.load %arg1[%c5_379, %c0_380, %c0_381] : memref<16x16x128xbf16, #tpu.memory_space<vmem>>, vector<1x16x128xbf16>
    %572 = vector.shape_cast %571 : vector<1x16x128xbf16> to vector<16x128xbf16>
    %573 = vector.broadcast %570 : bf16 to vector<16x128xbf16>
    %574 = arith.mulf %573, %572 : vector<16x128xbf16>
    %575 = arith.addf %568, %574 : vector<16x128xbf16>
    %c2_382 = arith.constant 2 : index
    %c5_383 = arith.constant 5 : index
    %576 = memref.load %arg2[%c2_382, %c5_383] : memref<8x9xf32, #tpu.memory_space<smem>>
    %577 = arith.truncf %576 : f32 to bf16
    %c6_384 = arith.constant 6 : index
    %c0_385 = arith.constant 0 : index
    %c0_386 = arith.constant 0 : index
    %578 = vector.load %arg1[%c6_384, %c0_385, %c0_386] : memref<16x16x128xbf16, #tpu.memory_space<vmem>>, vector<1x16x128xbf16>
    %579 = vector.shape_cast %578 : vector<1x16x128xbf16> to vector<16x128xbf16>
    %580 = vector.broadcast %577 : bf16 to vector<16x128xbf16>
    %581 = arith.mulf %580, %579 : vector<16x128xbf16>
    %582 = arith.addf %575, %581 : vector<16x128xbf16>
    %c2_387 = arith.constant 2 : index
    %c6_388 = arith.constant 6 : index
    %583 = memref.load %arg2[%c2_387, %c6_388] : memref<8x9xf32, #tpu.memory_space<smem>>
    %584 = arith.truncf %583 : f32 to bf16
    %c8_389 = arith.constant 8 : index
    %c0_390 = arith.constant 0 : index
    %c0_391 = arith.constant 0 : index
    %585 = vector.load %arg1[%c8_389, %c0_390, %c0_391] : memref<16x16x128xbf16, #tpu.memory_space<vmem>>, vector<1x16x128xbf16>
    %586 = vector.shape_cast %585 : vector<1x16x128xbf16> to vector<16x128xbf16>
    %587 = vector.broadcast %584 : bf16 to vector<16x128xbf16>
    %588 = arith.mulf %587, %586 : vector<16x128xbf16>
    %589 = arith.addf %582, %588 : vector<16x128xbf16>
    %c2_392 = arith.constant 2 : index
    %c7_393 = arith.constant 7 : index
    %590 = memref.load %arg2[%c2_392, %c7_393] : memref<8x9xf32, #tpu.memory_space<smem>>
    %591 = arith.truncf %590 : f32 to bf16
    %c9_394 = arith.constant 9 : index
    %c0_395 = arith.constant 0 : index
    %c0_396 = arith.constant 0 : index
    %592 = vector.load %arg1[%c9_394, %c0_395, %c0_396] : memref<16x16x128xbf16, #tpu.memory_space<vmem>>, vector<1x16x128xbf16>
    %593 = vector.shape_cast %592 : vector<1x16x128xbf16> to vector<16x128xbf16>
    %594 = vector.broadcast %591 : bf16 to vector<16x128xbf16>
    %595 = arith.mulf %594, %593 : vector<16x128xbf16>
    %596 = arith.addf %589, %595 : vector<16x128xbf16>
    %c2_397 = arith.constant 2 : index
    %c8_398 = arith.constant 8 : index
    %597 = memref.load %arg2[%c2_397, %c8_398] : memref<8x9xf32, #tpu.memory_space<smem>>
    %598 = arith.truncf %597 : f32 to bf16
    %c10_399 = arith.constant 10 : index
    %c0_400 = arith.constant 0 : index
    %c0_401 = arith.constant 0 : index
    %599 = vector.load %arg1[%c10_399, %c0_400, %c0_401] : memref<16x16x128xbf16, #tpu.memory_space<vmem>>, vector<1x16x128xbf16>
    %600 = vector.shape_cast %599 : vector<1x16x128xbf16> to vector<16x128xbf16>
    %601 = vector.broadcast %598 : bf16 to vector<16x128xbf16>
    %602 = arith.mulf %601, %600 : vector<16x128xbf16>
    %603 = arith.addf %596, %602 : vector<16x128xbf16>
    %604 = vector.broadcast %541 : bf16 to vector<16x128xbf16>
    %605 = arith.addf %603, %604 : vector<16x128xbf16>
    %cst_402 = arith.constant 0.000000e+00 : bf16
    %606 = vector.broadcast %cst_402 : bf16 to vector<16x128xbf16>
    %607 = arith.maximumf %605, %606 : vector<16x128xbf16>
    %c2_403 = arith.constant 2 : index
    %c0_404 = arith.constant 0 : index
    %608 = memref.load %arg2[%c2_403, %c0_404] : memref<8x9xf32, #tpu.memory_space<smem>>
    %609 = arith.truncf %608 : f32 to bf16
    %c1_405 = arith.constant 1 : index
    %c0_406 = arith.constant 0 : index
    %c0_407 = arith.constant 0 : index
    %610 = vector.load %arg1[%c1_405, %c0_406, %c0_407] : memref<16x16x128xbf16, #tpu.memory_space<vmem>>, vector<1x16x128xbf16>
    %611 = vector.shape_cast %610 : vector<1x16x128xbf16> to vector<16x128xbf16>
    %612 = vector.broadcast %609 : bf16 to vector<16x128xbf16>
    %613 = arith.mulf %612, %611 : vector<16x128xbf16>
    %c2_408 = arith.constant 2 : index
    %c1_409 = arith.constant 1 : index
    %614 = memref.load %arg2[%c2_408, %c1_409] : memref<8x9xf32, #tpu.memory_space<smem>>
    %615 = arith.truncf %614 : f32 to bf16
    %c2_410 = arith.constant 2 : index
    %c0_411 = arith.constant 0 : index
    %c0_412 = arith.constant 0 : index
    %616 = vector.load %arg1[%c2_410, %c0_411, %c0_412] : memref<16x16x128xbf16, #tpu.memory_space<vmem>>, vector<1x16x128xbf16>
    %617 = vector.shape_cast %616 : vector<1x16x128xbf16> to vector<16x128xbf16>
    %618 = vector.broadcast %615 : bf16 to vector<16x128xbf16>
    %619 = arith.mulf %618, %617 : vector<16x128xbf16>
    %620 = arith.addf %613, %619 : vector<16x128xbf16>
    %c2_413 = arith.constant 2 : index
    %c2_414 = arith.constant 2 : index
    %621 = memref.load %arg2[%c2_413, %c2_414] : memref<8x9xf32, #tpu.memory_space<smem>>
    %622 = arith.truncf %621 : f32 to bf16
    %c3_415 = arith.constant 3 : index
    %c0_416 = arith.constant 0 : index
    %c0_417 = arith.constant 0 : index
    %623 = vector.load %arg1[%c3_415, %c0_416, %c0_417] : memref<16x16x128xbf16, #tpu.memory_space<vmem>>, vector<1x16x128xbf16>
    %624 = vector.shape_cast %623 : vector<1x16x128xbf16> to vector<16x128xbf16>
    %625 = vector.broadcast %622 : bf16 to vector<16x128xbf16>
    %626 = arith.mulf %625, %624 : vector<16x128xbf16>
    %627 = arith.addf %620, %626 : vector<16x128xbf16>
    %c2_418 = arith.constant 2 : index
    %c3_419 = arith.constant 3 : index
    %628 = memref.load %arg2[%c2_418, %c3_419] : memref<8x9xf32, #tpu.memory_space<smem>>
    %629 = arith.truncf %628 : f32 to bf16
    %c5_420 = arith.constant 5 : index
    %c0_421 = arith.constant 0 : index
    %c0_422 = arith.constant 0 : index
    %630 = vector.load %arg1[%c5_420, %c0_421, %c0_422] : memref<16x16x128xbf16, #tpu.memory_space<vmem>>, vector<1x16x128xbf16>
    %631 = vector.shape_cast %630 : vector<1x16x128xbf16> to vector<16x128xbf16>
    %632 = vector.broadcast %629 : bf16 to vector<16x128xbf16>
    %633 = arith.mulf %632, %631 : vector<16x128xbf16>
    %634 = arith.addf %627, %633 : vector<16x128xbf16>
    %c2_423 = arith.constant 2 : index
    %c4_424 = arith.constant 4 : index
    %635 = memref.load %arg2[%c2_423, %c4_424] : memref<8x9xf32, #tpu.memory_space<smem>>
    %636 = arith.truncf %635 : f32 to bf16
    %c6_425 = arith.constant 6 : index
    %c0_426 = arith.constant 0 : index
    %c0_427 = arith.constant 0 : index
    %637 = vector.load %arg1[%c6_425, %c0_426, %c0_427] : memref<16x16x128xbf16, #tpu.memory_space<vmem>>, vector<1x16x128xbf16>
    %638 = vector.shape_cast %637 : vector<1x16x128xbf16> to vector<16x128xbf16>
    %639 = vector.broadcast %636 : bf16 to vector<16x128xbf16>
    %640 = arith.mulf %639, %638 : vector<16x128xbf16>
    %641 = arith.addf %634, %640 : vector<16x128xbf16>
    %c2_428 = arith.constant 2 : index
    %c5_429 = arith.constant 5 : index
    %642 = memref.load %arg2[%c2_428, %c5_429] : memref<8x9xf32, #tpu.memory_space<smem>>
    %643 = arith.truncf %642 : f32 to bf16
    %c7_430 = arith.constant 7 : index
    %c0_431 = arith.constant 0 : index
    %c0_432 = arith.constant 0 : index
    %644 = vector.load %arg1[%c7_430, %c0_431, %c0_432] : memref<16x16x128xbf16, #tpu.memory_space<vmem>>, vector<1x16x128xbf16>
    %645 = vector.shape_cast %644 : vector<1x16x128xbf16> to vector<16x128xbf16>
    %646 = vector.broadcast %643 : bf16 to vector<16x128xbf16>
    %647 = arith.mulf %646, %645 : vector<16x128xbf16>
    %648 = arith.addf %641, %647 : vector<16x128xbf16>
    %c2_433 = arith.constant 2 : index
    %c6_434 = arith.constant 6 : index
    %649 = memref.load %arg2[%c2_433, %c6_434] : memref<8x9xf32, #tpu.memory_space<smem>>
    %650 = arith.truncf %649 : f32 to bf16
    %c9_435 = arith.constant 9 : index
    %c0_436 = arith.constant 0 : index
    %c0_437 = arith.constant 0 : index
    %651 = vector.load %arg1[%c9_435, %c0_436, %c0_437] : memref<16x16x128xbf16, #tpu.memory_space<vmem>>, vector<1x16x128xbf16>
    %652 = vector.shape_cast %651 : vector<1x16x128xbf16> to vector<16x128xbf16>
    %653 = vector.broadcast %650 : bf16 to vector<16x128xbf16>
    %654 = arith.mulf %653, %652 : vector<16x128xbf16>
    %655 = arith.addf %648, %654 : vector<16x128xbf16>
    %c2_438 = arith.constant 2 : index
    %c7_439 = arith.constant 7 : index
    %656 = memref.load %arg2[%c2_438, %c7_439] : memref<8x9xf32, #tpu.memory_space<smem>>
    %657 = arith.truncf %656 : f32 to bf16
    %c10_440 = arith.constant 10 : index
    %c0_441 = arith.constant 0 : index
    %c0_442 = arith.constant 0 : index
    %658 = vector.load %arg1[%c10_440, %c0_441, %c0_442] : memref<16x16x128xbf16, #tpu.memory_space<vmem>>, vector<1x16x128xbf16>
    %659 = vector.shape_cast %658 : vector<1x16x128xbf16> to vector<16x128xbf16>
    %660 = vector.broadcast %657 : bf16 to vector<16x128xbf16>
    %661 = arith.mulf %660, %659 : vector<16x128xbf16>
    %662 = arith.addf %655, %661 : vector<16x128xbf16>
    %c2_443 = arith.constant 2 : index
    %c8_444 = arith.constant 8 : index
    %663 = memref.load %arg2[%c2_443, %c8_444] : memref<8x9xf32, #tpu.memory_space<smem>>
    %664 = arith.truncf %663 : f32 to bf16
    %c11_445 = arith.constant 11 : index
    %c0_446 = arith.constant 0 : index
    %c0_447 = arith.constant 0 : index
    %665 = vector.load %arg1[%c11_445, %c0_446, %c0_447] : memref<16x16x128xbf16, #tpu.memory_space<vmem>>, vector<1x16x128xbf16>
    %666 = vector.shape_cast %665 : vector<1x16x128xbf16> to vector<16x128xbf16>
    %667 = vector.broadcast %664 : bf16 to vector<16x128xbf16>
    %668 = arith.mulf %667, %666 : vector<16x128xbf16>
    %669 = arith.addf %662, %668 : vector<16x128xbf16>
    %670 = vector.broadcast %541 : bf16 to vector<16x128xbf16>
    %671 = arith.addf %669, %670 : vector<16x128xbf16>
    %cst_448 = arith.constant 0.000000e+00 : bf16
    %672 = vector.broadcast %cst_448 : bf16 to vector<16x128xbf16>
    %673 = arith.maximumf %671, %672 : vector<16x128xbf16>
    %674 = arith.maximumf %607, %673 : vector<16x128xbf16>
    %c2_449 = arith.constant 2 : index
    %c0_450 = arith.constant 0 : index
    %675 = memref.load %arg2[%c2_449, %c0_450] : memref<8x9xf32, #tpu.memory_space<smem>>
    %676 = arith.truncf %675 : f32 to bf16
    %c4_451 = arith.constant 4 : index
    %c0_452 = arith.constant 0 : index
    %c0_453 = arith.constant 0 : index
    %677 = vector.load %arg1[%c4_451, %c0_452, %c0_453] : memref<16x16x128xbf16, #tpu.memory_space<vmem>>, vector<1x16x128xbf16>
    %678 = vector.shape_cast %677 : vector<1x16x128xbf16> to vector<16x128xbf16>
    %679 = vector.broadcast %676 : bf16 to vector<16x128xbf16>
    %680 = arith.mulf %679, %678 : vector<16x128xbf16>
    %c2_454 = arith.constant 2 : index
    %c1_455 = arith.constant 1 : index
    %681 = memref.load %arg2[%c2_454, %c1_455] : memref<8x9xf32, #tpu.memory_space<smem>>
    %682 = arith.truncf %681 : f32 to bf16
    %c5_456 = arith.constant 5 : index
    %c0_457 = arith.constant 0 : index
    %c0_458 = arith.constant 0 : index
    %683 = vector.load %arg1[%c5_456, %c0_457, %c0_458] : memref<16x16x128xbf16, #tpu.memory_space<vmem>>, vector<1x16x128xbf16>
    %684 = vector.shape_cast %683 : vector<1x16x128xbf16> to vector<16x128xbf16>
    %685 = vector.broadcast %682 : bf16 to vector<16x128xbf16>
    %686 = arith.mulf %685, %684 : vector<16x128xbf16>
    %687 = arith.addf %680, %686 : vector<16x128xbf16>
    %c2_459 = arith.constant 2 : index
    %c2_460 = arith.constant 2 : index
    %688 = memref.load %arg2[%c2_459, %c2_460] : memref<8x9xf32, #tpu.memory_space<smem>>
    %689 = arith.truncf %688 : f32 to bf16
    %c6_461 = arith.constant 6 : index
    %c0_462 = arith.constant 0 : index
    %c0_463 = arith.constant 0 : index
    %690 = vector.load %arg1[%c6_461, %c0_462, %c0_463] : memref<16x16x128xbf16, #tpu.memory_space<vmem>>, vector<1x16x128xbf16>
    %691 = vector.shape_cast %690 : vector<1x16x128xbf16> to vector<16x128xbf16>
    %692 = vector.broadcast %689 : bf16 to vector<16x128xbf16>
    %693 = arith.mulf %692, %691 : vector<16x128xbf16>
    %694 = arith.addf %687, %693 : vector<16x128xbf16>
    %c2_464 = arith.constant 2 : index
    %c3_465 = arith.constant 3 : index
    %695 = memref.load %arg2[%c2_464, %c3_465] : memref<8x9xf32, #tpu.memory_space<smem>>
    %696 = arith.truncf %695 : f32 to bf16
    %c8_466 = arith.constant 8 : index
    %c0_467 = arith.constant 0 : index
    %c0_468 = arith.constant 0 : index
    %697 = vector.load %arg1[%c8_466, %c0_467, %c0_468] : memref<16x16x128xbf16, #tpu.memory_space<vmem>>, vector<1x16x128xbf16>
    %698 = vector.shape_cast %697 : vector<1x16x128xbf16> to vector<16x128xbf16>
    %699 = vector.broadcast %696 : bf16 to vector<16x128xbf16>
    %700 = arith.mulf %699, %698 : vector<16x128xbf16>
    %701 = arith.addf %694, %700 : vector<16x128xbf16>
    %c2_469 = arith.constant 2 : index
    %c4_470 = arith.constant 4 : index
    %702 = memref.load %arg2[%c2_469, %c4_470] : memref<8x9xf32, #tpu.memory_space<smem>>
    %703 = arith.truncf %702 : f32 to bf16
    %c9_471 = arith.constant 9 : index
    %c0_472 = arith.constant 0 : index
    %c0_473 = arith.constant 0 : index
    %704 = vector.load %arg1[%c9_471, %c0_472, %c0_473] : memref<16x16x128xbf16, #tpu.memory_space<vmem>>, vector<1x16x128xbf16>
    %705 = vector.shape_cast %704 : vector<1x16x128xbf16> to vector<16x128xbf16>
    %706 = vector.broadcast %703 : bf16 to vector<16x128xbf16>
    %707 = arith.mulf %706, %705 : vector<16x128xbf16>
    %708 = arith.addf %701, %707 : vector<16x128xbf16>
    %c2_474 = arith.constant 2 : index
    %c5_475 = arith.constant 5 : index
    %709 = memref.load %arg2[%c2_474, %c5_475] : memref<8x9xf32, #tpu.memory_space<smem>>
    %710 = arith.truncf %709 : f32 to bf16
    %c10_476 = arith.constant 10 : index
    %c0_477 = arith.constant 0 : index
    %c0_478 = arith.constant 0 : index
    %711 = vector.load %arg1[%c10_476, %c0_477, %c0_478] : memref<16x16x128xbf16, #tpu.memory_space<vmem>>, vector<1x16x128xbf16>
    %712 = vector.shape_cast %711 : vector<1x16x128xbf16> to vector<16x128xbf16>
    %713 = vector.broadcast %710 : bf16 to vector<16x128xbf16>
    %714 = arith.mulf %713, %712 : vector<16x128xbf16>
    %715 = arith.addf %708, %714 : vector<16x128xbf16>
    %c2_479 = arith.constant 2 : index
    %c6_480 = arith.constant 6 : index
    %716 = memref.load %arg2[%c2_479, %c6_480] : memref<8x9xf32, #tpu.memory_space<smem>>
    %717 = arith.truncf %716 : f32 to bf16
    %c12_481 = arith.constant 12 : index
    %c0_482 = arith.constant 0 : index
    %c0_483 = arith.constant 0 : index
    %718 = vector.load %arg1[%c12_481, %c0_482, %c0_483] : memref<16x16x128xbf16, #tpu.memory_space<vmem>>, vector<1x16x128xbf16>
    %719 = vector.shape_cast %718 : vector<1x16x128xbf16> to vector<16x128xbf16>
    %720 = vector.broadcast %717 : bf16 to vector<16x128xbf16>
    %721 = arith.mulf %720, %719 : vector<16x128xbf16>
    %722 = arith.addf %715, %721 : vector<16x128xbf16>
    %c2_484 = arith.constant 2 : index
    %c7_485 = arith.constant 7 : index
    %723 = memref.load %arg2[%c2_484, %c7_485] : memref<8x9xf32, #tpu.memory_space<smem>>
    %724 = arith.truncf %723 : f32 to bf16
    %c13_486 = arith.constant 13 : index
    %c0_487 = arith.constant 0 : index
    %c0_488 = arith.constant 0 : index
    %725 = vector.load %arg1[%c13_486, %c0_487, %c0_488] : memref<16x16x128xbf16, #tpu.memory_space<vmem>>, vector<1x16x128xbf16>
    %726 = vector.shape_cast %725 : vector<1x16x128xbf16> to vector<16x128xbf16>
    %727 = vector.broadcast %724 : bf16 to vector<16x128xbf16>
    %728 = arith.mulf %727, %726 : vector<16x128xbf16>
    %729 = arith.addf %722, %728 : vector<16x128xbf16>
    %c2_489 = arith.constant 2 : index
    %c8_490 = arith.constant 8 : index
    %730 = memref.load %arg2[%c2_489, %c8_490] : memref<8x9xf32, #tpu.memory_space<smem>>
    %731 = arith.truncf %730 : f32 to bf16
    %c14_491 = arith.constant 14 : index
    %c0_492 = arith.constant 0 : index
    %c0_493 = arith.constant 0 : index
    %732 = vector.load %arg1[%c14_491, %c0_492, %c0_493] : memref<16x16x128xbf16, #tpu.memory_space<vmem>>, vector<1x16x128xbf16>
    %733 = vector.shape_cast %732 : vector<1x16x128xbf16> to vector<16x128xbf16>
    %734 = vector.broadcast %731 : bf16 to vector<16x128xbf16>
    %735 = arith.mulf %734, %733 : vector<16x128xbf16>
    %736 = arith.addf %729, %735 : vector<16x128xbf16>
    %737 = vector.broadcast %541 : bf16 to vector<16x128xbf16>
    %738 = arith.addf %736, %737 : vector<16x128xbf16>
    %cst_494 = arith.constant 0.000000e+00 : bf16
    %739 = vector.broadcast %cst_494 : bf16 to vector<16x128xbf16>
    %740 = arith.maximumf %738, %739 : vector<16x128xbf16>
    %741 = arith.maximumf %674, %740 : vector<16x128xbf16>
    %c2_495 = arith.constant 2 : index
    %c0_496 = arith.constant 0 : index
    %742 = memref.load %arg2[%c2_495, %c0_496] : memref<8x9xf32, #tpu.memory_space<smem>>
    %743 = arith.truncf %742 : f32 to bf16
    %c5_497 = arith.constant 5 : index
    %c0_498 = arith.constant 0 : index
    %c0_499 = arith.constant 0 : index
    %744 = vector.load %arg1[%c5_497, %c0_498, %c0_499] : memref<16x16x128xbf16, #tpu.memory_space<vmem>>, vector<1x16x128xbf16>
    %745 = vector.shape_cast %744 : vector<1x16x128xbf16> to vector<16x128xbf16>
    %746 = vector.broadcast %743 : bf16 to vector<16x128xbf16>
    %747 = arith.mulf %746, %745 : vector<16x128xbf16>
    %c2_500 = arith.constant 2 : index
    %c1_501 = arith.constant 1 : index
    %748 = memref.load %arg2[%c2_500, %c1_501] : memref<8x9xf32, #tpu.memory_space<smem>>
    %749 = arith.truncf %748 : f32 to bf16
    %c6_502 = arith.constant 6 : index
    %c0_503 = arith.constant 0 : index
    %c0_504 = arith.constant 0 : index
    %750 = vector.load %arg1[%c6_502, %c0_503, %c0_504] : memref<16x16x128xbf16, #tpu.memory_space<vmem>>, vector<1x16x128xbf16>
    %751 = vector.shape_cast %750 : vector<1x16x128xbf16> to vector<16x128xbf16>
    %752 = vector.broadcast %749 : bf16 to vector<16x128xbf16>
    %753 = arith.mulf %752, %751 : vector<16x128xbf16>
    %754 = arith.addf %747, %753 : vector<16x128xbf16>
    %c2_505 = arith.constant 2 : index
    %c2_506 = arith.constant 2 : index
    %755 = memref.load %arg2[%c2_505, %c2_506] : memref<8x9xf32, #tpu.memory_space<smem>>
    %756 = arith.truncf %755 : f32 to bf16
    %c7_507 = arith.constant 7 : index
    %c0_508 = arith.constant 0 : index
    %c0_509 = arith.constant 0 : index
    %757 = vector.load %arg1[%c7_507, %c0_508, %c0_509] : memref<16x16x128xbf16, #tpu.memory_space<vmem>>, vector<1x16x128xbf16>
    %758 = vector.shape_cast %757 : vector<1x16x128xbf16> to vector<16x128xbf16>
    %759 = vector.broadcast %756 : bf16 to vector<16x128xbf16>
    %760 = arith.mulf %759, %758 : vector<16x128xbf16>
    %761 = arith.addf %754, %760 : vector<16x128xbf16>
    %c2_510 = arith.constant 2 : index
    %c3_511 = arith.constant 3 : index
    %762 = memref.load %arg2[%c2_510, %c3_511] : memref<8x9xf32, #tpu.memory_space<smem>>
    %763 = arith.truncf %762 : f32 to bf16
    %c9_512 = arith.constant 9 : index
    %c0_513 = arith.constant 0 : index
    %c0_514 = arith.constant 0 : index
    %764 = vector.load %arg1[%c9_512, %c0_513, %c0_514] : memref<16x16x128xbf16, #tpu.memory_space<vmem>>, vector<1x16x128xbf16>
    %765 = vector.shape_cast %764 : vector<1x16x128xbf16> to vector<16x128xbf16>
    %766 = vector.broadcast %763 : bf16 to vector<16x128xbf16>
    %767 = arith.mulf %766, %765 : vector<16x128xbf16>
    %768 = arith.addf %761, %767 : vector<16x128xbf16>
    %c2_515 = arith.constant 2 : index
    %c4_516 = arith.constant 4 : index
    %769 = memref.load %arg2[%c2_515, %c4_516] : memref<8x9xf32, #tpu.memory_space<smem>>
    %770 = arith.truncf %769 : f32 to bf16
    %c10_517 = arith.constant 10 : index
    %c0_518 = arith.constant 0 : index
    %c0_519 = arith.constant 0 : index
    %771 = vector.load %arg1[%c10_517, %c0_518, %c0_519] : memref<16x16x128xbf16, #tpu.memory_space<vmem>>, vector<1x16x128xbf16>
    %772 = vector.shape_cast %771 : vector<1x16x128xbf16> to vector<16x128xbf16>
    %773 = vector.broadcast %770 : bf16 to vector<16x128xbf16>
    %774 = arith.mulf %773, %772 : vector<16x128xbf16>
    %775 = arith.addf %768, %774 : vector<16x128xbf16>
    %c2_520 = arith.constant 2 : index
    %c5_521 = arith.constant 5 : index
    %776 = memref.load %arg2[%c2_520, %c5_521] : memref<8x9xf32, #tpu.memory_space<smem>>
    %777 = arith.truncf %776 : f32 to bf16
    %c11_522 = arith.constant 11 : index
    %c0_523 = arith.constant 0 : index
    %c0_524 = arith.constant 0 : index
    %778 = vector.load %arg1[%c11_522, %c0_523, %c0_524] : memref<16x16x128xbf16, #tpu.memory_space<vmem>>, vector<1x16x128xbf16>
    %779 = vector.shape_cast %778 : vector<1x16x128xbf16> to vector<16x128xbf16>
    %780 = vector.broadcast %777 : bf16 to vector<16x128xbf16>
    %781 = arith.mulf %780, %779 : vector<16x128xbf16>
    %782 = arith.addf %775, %781 : vector<16x128xbf16>
    %c2_525 = arith.constant 2 : index
    %c6_526 = arith.constant 6 : index
    %783 = memref.load %arg2[%c2_525, %c6_526] : memref<8x9xf32, #tpu.memory_space<smem>>
    %784 = arith.truncf %783 : f32 to bf16
    %c13_527 = arith.constant 13 : index
    %c0_528 = arith.constant 0 : index
    %c0_529 = arith.constant 0 : index
    %785 = vector.load %arg1[%c13_527, %c0_528, %c0_529] : memref<16x16x128xbf16, #tpu.memory_space<vmem>>, vector<1x16x128xbf16>
    %786 = vector.shape_cast %785 : vector<1x16x128xbf16> to vector<16x128xbf16>
    %787 = vector.broadcast %784 : bf16 to vector<16x128xbf16>
    %788 = arith.mulf %787, %786 : vector<16x128xbf16>
    %789 = arith.addf %782, %788 : vector<16x128xbf16>
    %c2_530 = arith.constant 2 : index
    %c7_531 = arith.constant 7 : index
    %790 = memref.load %arg2[%c2_530, %c7_531] : memref<8x9xf32, #tpu.memory_space<smem>>
    %791 = arith.truncf %790 : f32 to bf16
    %c14_532 = arith.constant 14 : index
    %c0_533 = arith.constant 0 : index
    %c0_534 = arith.constant 0 : index
    %792 = vector.load %arg1[%c14_532, %c0_533, %c0_534] : memref<16x16x128xbf16, #tpu.memory_space<vmem>>, vector<1x16x128xbf16>
    %793 = vector.shape_cast %792 : vector<1x16x128xbf16> to vector<16x128xbf16>
    %794 = vector.broadcast %791 : bf16 to vector<16x128xbf16>
    %795 = arith.mulf %794, %793 : vector<16x128xbf16>
    %796 = arith.addf %789, %795 : vector<16x128xbf16>
    %c2_535 = arith.constant 2 : index
    %c8_536 = arith.constant 8 : index
    %797 = memref.load %arg2[%c2_535, %c8_536] : memref<8x9xf32, #tpu.memory_space<smem>>
    %798 = arith.truncf %797 : f32 to bf16
    %c15_537 = arith.constant 15 : index
    %c0_538 = arith.constant 0 : index
    %c0_539 = arith.constant 0 : index
    %799 = vector.load %arg1[%c15_537, %c0_538, %c0_539] : memref<16x16x128xbf16, #tpu.memory_space<vmem>>, vector<1x16x128xbf16>
    %800 = vector.shape_cast %799 : vector<1x16x128xbf16> to vector<16x128xbf16>
    %801 = vector.broadcast %798 : bf16 to vector<16x128xbf16>
    %802 = arith.mulf %801, %800 : vector<16x128xbf16>
    %803 = arith.addf %796, %802 : vector<16x128xbf16>
    %804 = vector.broadcast %541 : bf16 to vector<16x128xbf16>
    %805 = arith.addf %803, %804 : vector<16x128xbf16>
    %cst_540 = arith.constant 0.000000e+00 : bf16
    %806 = vector.broadcast %cst_540 : bf16 to vector<16x128xbf16>
    %807 = arith.maximumf %805, %806 : vector<16x128xbf16>
    %808 = arith.maximumf %741, %807 : vector<16x128xbf16>
    %c0_541 = arith.constant 0 : index
    %c256 = arith.constant 256 : index
    %809 = vector.load %arg9[%c0_541, %c256] : memref<16x1024xbf16, #tpu.memory_space<vmem>>, vector<16x128xbf16>
    tpu.vector_store %arg9[%c0_541, %c256], %808 {strides = array<i32>} : memref<16x1024xbf16, #tpu.memory_space<vmem>>, vector<16x128xbf16>,
    %c3_542 = arith.constant 3 : index
    %810 = memref.load %arg3[%c3_542] : memref<8xf32, #tpu.memory_space<smem>>
    %811 = arith.truncf %810 : f32 to bf16
    %c3_543 = arith.constant 3 : index
    %c0_544 = arith.constant 0 : index
    %812 = memref.load %arg2[%c3_543, %c0_544] : memref<8x9xf32, #tpu.memory_space<smem>>
    %813 = arith.truncf %812 : f32 to bf16
    %c0_545 = arith.constant 0 : index
    %c0_546 = arith.constant 0 : index
    %c0_547 = arith.constant 0 : index
    %814 = vector.load %arg1[%c0_545, %c0_546, %c0_547] : memref<16x16x128xbf16, #tpu.memory_space<vmem>>, vector<1x16x128xbf16>
    %815 = vector.shape_cast %814 : vector<1x16x128xbf16> to vector<16x128xbf16>
    %816 = vector.broadcast %813 : bf16 to vector<16x128xbf16>
    %817 = arith.mulf %816, %815 : vector<16x128xbf16>
    %c3_548 = arith.constant 3 : index
    %c1_549 = arith.constant 1 : index
    %818 = memref.load %arg2[%c3_548, %c1_549] : memref<8x9xf32, #tpu.memory_space<smem>>
    %819 = arith.truncf %818 : f32 to bf16
    %c1_550 = arith.constant 1 : index
    %c0_551 = arith.constant 0 : index
    %c0_552 = arith.constant 0 : index
    %820 = vector.load %arg1[%c1_550, %c0_551, %c0_552] : memref<16x16x128xbf16, #tpu.memory_space<vmem>>, vector<1x16x128xbf16>
    %821 = vector.shape_cast %820 : vector<1x16x128xbf16> to vector<16x128xbf16>
    %822 = vector.broadcast %819 : bf16 to vector<16x128xbf16>
    %823 = arith.mulf %822, %821 : vector<16x128xbf16>
    %824 = arith.addf %817, %823 : vector<16x128xbf16>
    %c3_553 = arith.constant 3 : index
    %c2_554 = arith.constant 2 : index
    %825 = memref.load %arg2[%c3_553, %c2_554] : memref<8x9xf32, #tpu.memory_space<smem>>
    %826 = arith.truncf %825 : f32 to bf16
    %c2_555 = arith.constant 2 : index
    %c0_556 = arith.constant 0 : index
    %c0_557 = arith.constant 0 : index
    %827 = vector.load %arg1[%c2_555, %c0_556, %c0_557] : memref<16x16x128xbf16, #tpu.memory_space<vmem>>, vector<1x16x128xbf16>
    %828 = vector.shape_cast %827 : vector<1x16x128xbf16> to vector<16x128xbf16>
    %829 = vector.broadcast %826 : bf16 to vector<16x128xbf16>
    %830 = arith.mulf %829, %828 : vector<16x128xbf16>
    %831 = arith.addf %824, %830 : vector<16x128xbf16>
    %c3_558 = arith.constant 3 : index
    %c3_559 = arith.constant 3 : index
    %832 = memref.load %arg2[%c3_558, %c3_559] : memref<8x9xf32, #tpu.memory_space<smem>>
    %833 = arith.truncf %832 : f32 to bf16
    %c4_560 = arith.constant 4 : index
    %c0_561 = arith.constant 0 : index
    %c0_562 = arith.constant 0 : index
    %834 = vector.load %arg1[%c4_560, %c0_561, %c0_562] : memref<16x16x128xbf16, #tpu.memory_space<vmem>>, vector<1x16x128xbf16>
    %835 = vector.shape_cast %834 : vector<1x16x128xbf16> to vector<16x128xbf16>
    %836 = vector.broadcast %833 : bf16 to vector<16x128xbf16>
    %837 = arith.mulf %836, %835 : vector<16x128xbf16>
    %838 = arith.addf %831, %837 : vector<16x128xbf16>
    %c3_563 = arith.constant 3 : index
    %c4_564 = arith.constant 4 : index
    %839 = memref.load %arg2[%c3_563, %c4_564] : memref<8x9xf32, #tpu.memory_space<smem>>
    %840 = arith.truncf %839 : f32 to bf16
    %c5_565 = arith.constant 5 : index
    %c0_566 = arith.constant 0 : index
    %c0_567 = arith.constant 0 : index
    %841 = vector.load %arg1[%c5_565, %c0_566, %c0_567] : memref<16x16x128xbf16, #tpu.memory_space<vmem>>, vector<1x16x128xbf16>
    %842 = vector.shape_cast %841 : vector<1x16x128xbf16> to vector<16x128xbf16>
    %843 = vector.broadcast %840 : bf16 to vector<16x128xbf16>
    %844 = arith.mulf %843, %842 : vector<16x128xbf16>
    %845 = arith.addf %838, %844 : vector<16x128xbf16>
    %c3_568 = arith.constant 3 : index
    %c5_569 = arith.constant 5 : index
    %846 = memref.load %arg2[%c3_568, %c5_569] : memref<8x9xf32, #tpu.memory_space<smem>>
    %847 = arith.truncf %846 : f32 to bf16
    %c6_570 = arith.constant 6 : index
    %c0_571 = arith.constant 0 : index
    %c0_572 = arith.constant 0 : index
    %848 = vector.load %arg1[%c6_570, %c0_571, %c0_572] : memref<16x16x128xbf16, #tpu.memory_space<vmem>>, vector<1x16x128xbf16>
    %849 = vector.shape_cast %848 : vector<1x16x128xbf16> to vector<16x128xbf16>
    %850 = vector.broadcast %847 : bf16 to vector<16x128xbf16>
    %851 = arith.mulf %850, %849 : vector<16x128xbf16>
    %852 = arith.addf %845, %851 : vector<16x128xbf16>
    %c3_573 = arith.constant 3 : index
    %c6_574 = arith.constant 6 : index
    %853 = memref.load %arg2[%c3_573, %c6_574] : memref<8x9xf32, #tpu.memory_space<smem>>
    %854 = arith.truncf %853 : f32 to bf16
    %c8_575 = arith.constant 8 : index
    %c0_576 = arith.constant 0 : index
    %c0_577 = arith.constant 0 : index
    %855 = vector.load %arg1[%c8_575, %c0_576, %c0_577] : memref<16x16x128xbf16, #tpu.memory_space<vmem>>, vector<1x16x128xbf16>
    %856 = vector.shape_cast %855 : vector<1x16x128xbf16> to vector<16x128xbf16>
    %857 = vector.broadcast %854 : bf16 to vector<16x128xbf16>
    %858 = arith.mulf %857, %856 : vector<16x128xbf16>
    %859 = arith.addf %852, %858 : vector<16x128xbf16>
    %c3_578 = arith.constant 3 : index
    %c7_579 = arith.constant 7 : index
    %860 = memref.load %arg2[%c3_578, %c7_579] : memref<8x9xf32, #tpu.memory_space<smem>>
    %861 = arith.truncf %860 : f32 to bf16
    %c9_580 = arith.constant 9 : index
    %c0_581 = arith.constant 0 : index
    %c0_582 = arith.constant 0 : index
    %862 = vector.load %arg1[%c9_580, %c0_581, %c0_582] : memref<16x16x128xbf16, #tpu.memory_space<vmem>>, vector<1x16x128xbf16>
    %863 = vector.shape_cast %862 : vector<1x16x128xbf16> to vector<16x128xbf16>
    %864 = vector.broadcast %861 : bf16 to vector<16x128xbf16>
    %865 = arith.mulf %864, %863 : vector<16x128xbf16>
    %866 = arith.addf %859, %865 : vector<16x128xbf16>
    %c3_583 = arith.constant 3 : index
    %c8_584 = arith.constant 8 : index
    %867 = memref.load %arg2[%c3_583, %c8_584] : memref<8x9xf32, #tpu.memory_space<smem>>
    %868 = arith.truncf %867 : f32 to bf16
    %c10_585 = arith.constant 10 : index
    %c0_586 = arith.constant 0 : index
    %c0_587 = arith.constant 0 : index
    %869 = vector.load %arg1[%c10_585, %c0_586, %c0_587] : memref<16x16x128xbf16, #tpu.memory_space<vmem>>, vector<1x16x128xbf16>
    %870 = vector.shape_cast %869 : vector<1x16x128xbf16> to vector<16x128xbf16>
    %871 = vector.broadcast %868 : bf16 to vector<16x128xbf16>
    %872 = arith.mulf %871, %870 : vector<16x128xbf16>
    %873 = arith.addf %866, %872 : vector<16x128xbf16>
    %874 = vector.broadcast %811 : bf16 to vector<16x128xbf16>
    %875 = arith.addf %873, %874 : vector<16x128xbf16>
    %cst_588 = arith.constant 0.000000e+00 : bf16
    %876 = vector.broadcast %cst_588 : bf16 to vector<16x128xbf16>
    %877 = arith.maximumf %875, %876 : vector<16x128xbf16>
    %c3_589 = arith.constant 3 : index
    %c0_590 = arith.constant 0 : index
    %878 = memref.load %arg2[%c3_589, %c0_590] : memref<8x9xf32, #tpu.memory_space<smem>>
    %879 = arith.truncf %878 : f32 to bf16
    %c1_591 = arith.constant 1 : index
    %c0_592 = arith.constant 0 : index
    %c0_593 = arith.constant 0 : index
    %880 = vector.load %arg1[%c1_591, %c0_592, %c0_593] : memref<16x16x128xbf16, #tpu.memory_space<vmem>>, vector<1x16x128xbf16>
    %881 = vector.shape_cast %880 : vector<1x16x128xbf16> to vector<16x128xbf16>
    %882 = vector.broadcast %879 : bf16 to vector<16x128xbf16>
    %883 = arith.mulf %882, %881 : vector<16x128xbf16>
    %c3_594 = arith.constant 3 : index
    %c1_595 = arith.constant 1 : index
    %884 = memref.load %arg2[%c3_594, %c1_595] : memref<8x9xf32, #tpu.memory_space<smem>>
    %885 = arith.truncf %884 : f32 to bf16
    %c2_596 = arith.constant 2 : index
    %c0_597 = arith.constant 0 : index
    %c0_598 = arith.constant 0 : index
    %886 = vector.load %arg1[%c2_596, %c0_597, %c0_598] : memref<16x16x128xbf16, #tpu.memory_space<vmem>>, vector<1x16x128xbf16>
    %887 = vector.shape_cast %886 : vector<1x16x128xbf16> to vector<16x128xbf16>
    %888 = vector.broadcast %885 : bf16 to vector<16x128xbf16>
    %889 = arith.mulf %888, %887 : vector<16x128xbf16>
    %890 = arith.addf %883, %889 : vector<16x128xbf16>
    %c3_599 = arith.constant 3 : index
    %c2_600 = arith.constant 2 : index
    %891 = memref.load %arg2[%c3_599, %c2_600] : memref<8x9xf32, #tpu.memory_space<smem>>
    %892 = arith.truncf %891 : f32 to bf16
    %c3_601 = arith.constant 3 : index
    %c0_602 = arith.constant 0 : index
    %c0_603 = arith.constant 0 : index
    %893 = vector.load %arg1[%c3_601, %c0_602, %c0_603] : memref<16x16x128xbf16, #tpu.memory_space<vmem>>, vector<1x16x128xbf16>
    %894 = vector.shape_cast %893 : vector<1x16x128xbf16> to vector<16x128xbf16>
    %895 = vector.broadcast %892 : bf16 to vector<16x128xbf16>
    %896 = arith.mulf %895, %894 : vector<16x128xbf16>
    %897 = arith.addf %890, %896 : vector<16x128xbf16>
    %c3_604 = arith.constant 3 : index
    %c3_605 = arith.constant 3 : index
    %898 = memref.load %arg2[%c3_604, %c3_605] : memref<8x9xf32, #tpu.memory_space<smem>>
    %899 = arith.truncf %898 : f32 to bf16
    %c5_606 = arith.constant 5 : index
    %c0_607 = arith.constant 0 : index
    %c0_608 = arith.constant 0 : index
    %900 = vector.load %arg1[%c5_606, %c0_607, %c0_608] : memref<16x16x128xbf16, #tpu.memory_space<vmem>>, vector<1x16x128xbf16>
    %901 = vector.shape_cast %900 : vector<1x16x128xbf16> to vector<16x128xbf16>
    %902 = vector.broadcast %899 : bf16 to vector<16x128xbf16>
    %903 = arith.mulf %902, %901 : vector<16x128xbf16>
    %904 = arith.addf %897, %903 : vector<16x128xbf16>
    %c3_609 = arith.constant 3 : index
    %c4_610 = arith.constant 4 : index
    %905 = memref.load %arg2[%c3_609, %c4_610] : memref<8x9xf32, #tpu.memory_space<smem>>
    %906 = arith.truncf %905 : f32 to bf16
    %c6_611 = arith.constant 6 : index
    %c0_612 = arith.constant 0 : index
    %c0_613 = arith.constant 0 : index
    %907 = vector.load %arg1[%c6_611, %c0_612, %c0_613] : memref<16x16x128xbf16, #tpu.memory_space<vmem>>, vector<1x16x128xbf16>
    %908 = vector.shape_cast %907 : vector<1x16x128xbf16> to vector<16x128xbf16>
    %909 = vector.broadcast %906 : bf16 to vector<16x128xbf16>
    %910 = arith.mulf %909, %908 : vector<16x128xbf16>
    %911 = arith.addf %904, %910 : vector<16x128xbf16>
    %c3_614 = arith.constant 3 : index
    %c5_615 = arith.constant 5 : index
    %912 = memref.load %arg2[%c3_614, %c5_615] : memref<8x9xf32, #tpu.memory_space<smem>>
    %913 = arith.truncf %912 : f32 to bf16
    %c7_616 = arith.constant 7 : index
    %c0_617 = arith.constant 0 : index
    %c0_618 = arith.constant 0 : index
    %914 = vector.load %arg1[%c7_616, %c0_617, %c0_618] : memref<16x16x128xbf16, #tpu.memory_space<vmem>>, vector<1x16x128xbf16>
    %915 = vector.shape_cast %914 : vector<1x16x128xbf16> to vector<16x128xbf16>
    %916 = vector.broadcast %913 : bf16 to vector<16x128xbf16>
    %917 = arith.mulf %916, %915 : vector<16x128xbf16>
    %918 = arith.addf %911, %917 : vector<16x128xbf16>
    %c3_619 = arith.constant 3 : index
    %c6_620 = arith.constant 6 : index
    %919 = memref.load %arg2[%c3_619, %c6_620] : memref<8x9xf32, #tpu.memory_space<smem>>
    %920 = arith.truncf %919 : f32 to bf16
    %c9_621 = arith.constant 9 : index
    %c0_622 = arith.constant 0 : index
    %c0_623 = arith.constant 0 : index
    %921 = vector.load %arg1[%c9_621, %c0_622, %c0_623] : memref<16x16x128xbf16, #tpu.memory_space<vmem>>, vector<1x16x128xbf16>
    %922 = vector.shape_cast %921 : vector<1x16x128xbf16> to vector<16x128xbf16>
    %923 = vector.broadcast %920 : bf16 to vector<16x128xbf16>
    %924 = arith.mulf %923, %922 : vector<16x128xbf16>
    %925 = arith.addf %918, %924 : vector<16x128xbf16>
    %c3_624 = arith.constant 3 : index
    %c7_625 = arith.constant 7 : index
    %926 = memref.load %arg2[%c3_624, %c7_625] : memref<8x9xf32, #tpu.memory_space<smem>>
    %927 = arith.truncf %926 : f32 to bf16
    %c10_626 = arith.constant 10 : index
    %c0_627 = arith.constant 0 : index
    %c0_628 = arith.constant 0 : index
    %928 = vector.load %arg1[%c10_626, %c0_627, %c0_628] : memref<16x16x128xbf16, #tpu.memory_space<vmem>>, vector<1x16x128xbf16>
    %929 = vector.shape_cast %928 : vector<1x16x128xbf16> to vector<16x128xbf16>
    %930 = vector.broadcast %927 : bf16 to vector<16x128xbf16>
    %931 = arith.mulf %930, %929 : vector<16x128xbf16>
    %932 = arith.addf %925, %931 : vector<16x128xbf16>
    %c3_629 = arith.constant 3 : index
    %c8_630 = arith.constant 8 : index
    %933 = memref.load %arg2[%c3_629, %c8_630] : memref<8x9xf32, #tpu.memory_space<smem>>
    %934 = arith.truncf %933 : f32 to bf16
    %c11_631 = arith.constant 11 : index
    %c0_632 = arith.constant 0 : index
    %c0_633 = arith.constant 0 : index
    %935 = vector.load %arg1[%c11_631, %c0_632, %c0_633] : memref<16x16x128xbf16, #tpu.memory_space<vmem>>, vector<1x16x128xbf16>
    %936 = vector.shape_cast %935 : vector<1x16x128xbf16> to vector<16x128xbf16>
    %937 = vector.broadcast %934 : bf16 to vector<16x128xbf16>
    %938 = arith.mulf %937, %936 : vector<16x128xbf16>
    %939 = arith.addf %932, %938 : vector<16x128xbf16>
    %940 = vector.broadcast %811 : bf16 to vector<16x128xbf16>
    %941 = arith.addf %939, %940 : vector<16x128xbf16>
    %cst_634 = arith.constant 0.000000e+00 : bf16
    %942 = vector.broadcast %cst_634 : bf16 to vector<16x128xbf16>
    %943 = arith.maximumf %941, %942 : vector<16x128xbf16>
    %944 = arith.maximumf %877, %943 : vector<16x128xbf16>
    %c3_635 = arith.constant 3 : index
    %c0_636 = arith.constant 0 : index
    %945 = memref.load %arg2[%c3_635, %c0_636] : memref<8x9xf32, #tpu.memory_space<smem>>
    %946 = arith.truncf %945 : f32 to bf16
    %c4_637 = arith.constant 4 : index
    %c0_638 = arith.constant 0 : index
    %c0_639 = arith.constant 0 : index
    %947 = vector.load %arg1[%c4_637, %c0_638, %c0_639] : memref<16x16x128xbf16, #tpu.memory_space<vmem>>, vector<1x16x128xbf16>
    %948 = vector.shape_cast %947 : vector<1x16x128xbf16> to vector<16x128xbf16>
    %949 = vector.broadcast %946 : bf16 to vector<16x128xbf16>
    %950 = arith.mulf %949, %948 : vector<16x128xbf16>
    %c3_640 = arith.constant 3 : index
    %c1_641 = arith.constant 1 : index
    %951 = memref.load %arg2[%c3_640, %c1_641] : memref<8x9xf32, #tpu.memory_space<smem>>
    %952 = arith.truncf %951 : f32 to bf16
    %c5_642 = arith.constant 5 : index
    %c0_643 = arith.constant 0 : index
    %c0_644 = arith.constant 0 : index
    %953 = vector.load %arg1[%c5_642, %c0_643, %c0_644] : memref<16x16x128xbf16, #tpu.memory_space<vmem>>, vector<1x16x128xbf16>
    %954 = vector.shape_cast %953 : vector<1x16x128xbf16> to vector<16x128xbf16>
    %955 = vector.broadcast %952 : bf16 to vector<16x128xbf16>
    %956 = arith.mulf %955, %954 : vector<16x128xbf16>
    %957 = arith.addf %950, %956 : vector<16x128xbf16>
    %c3_645 = arith.constant 3 : index
    %c2_646 = arith.constant 2 : index
    %958 = memref.load %arg2[%c3_645, %c2_646] : memref<8x9xf32, #tpu.memory_space<smem>>
    %959 = arith.truncf %958 : f32 to bf16
    %c6_647 = arith.constant 6 : index
    %c0_648 = arith.constant 0 : index
    %c0_649 = arith.constant 0 : index
    %960 = vector.load %arg1[%c6_647, %c0_648, %c0_649] : memref<16x16x128xbf16, #tpu.memory_space<vmem>>, vector<1x16x128xbf16>
    %961 = vector.shape_cast %960 : vector<1x16x128xbf16> to vector<16x128xbf16>
    %962 = vector.broadcast %959 : bf16 to vector<16x128xbf16>
    %963 = arith.mulf %962, %961 : vector<16x128xbf16>
    %964 = arith.addf %957, %963 : vector<16x128xbf16>
    %c3_650 = arith.constant 3 : index
    %c3_651 = arith.constant 3 : index
    %965 = memref.load %arg2[%c3_650, %c3_651] : memref<8x9xf32, #tpu.memory_space<smem>>
    %966 = arith.truncf %965 : f32 to bf16
    %c8_652 = arith.constant 8 : index
    %c0_653 = arith.constant 0 : index
    %c0_654 = arith.constant 0 : index
    %967 = vector.load %arg1[%c8_652, %c0_653, %c0_654] : memref<16x16x128xbf16, #tpu.memory_space<vmem>>, vector<1x16x128xbf16>
    %968 = vector.shape_cast %967 : vector<1x16x128xbf16> to vector<16x128xbf16>
    %969 = vector.broadcast %966 : bf16 to vector<16x128xbf16>
    %970 = arith.mulf %969, %968 : vector<16x128xbf16>
    %971 = arith.addf %964, %970 : vector<16x128xbf16>
    %c3_655 = arith.constant 3 : index
    %c4_656 = arith.constant 4 : index
    %972 = memref.load %arg2[%c3_655, %c4_656] : memref<8x9xf32, #tpu.memory_space<smem>>
    %973 = arith.truncf %972 : f32 to bf16
    %c9_657 = arith.constant 9 : index
    %c0_658 = arith.constant 0 : index
    %c0_659 = arith.constant 0 : index
    %974 = vector.load %arg1[%c9_657, %c0_658, %c0_659] : memref<16x16x128xbf16, #tpu.memory_space<vmem>>, vector<1x16x128xbf16>
    %975 = vector.shape_cast %974 : vector<1x16x128xbf16> to vector<16x128xbf16>
    %976 = vector.broadcast %973 : bf16 to vector<16x128xbf16>
    %977 = arith.mulf %976, %975 : vector<16x128xbf16>
    %978 = arith.addf %971, %977 : vector<16x128xbf16>
    %c3_660 = arith.constant 3 : index
    %c5_661 = arith.constant 5 : index
    %979 = memref.load %arg2[%c3_660, %c5_661] : memref<8x9xf32, #tpu.memory_space<smem>>
    %980 = arith.truncf %979 : f32 to bf16
    %c10_662 = arith.constant 10 : index
    %c0_663 = arith.constant 0 : index
    %c0_664 = arith.constant 0 : index
    %981 = vector.load %arg1[%c10_662, %c0_663, %c0_664] : memref<16x16x128xbf16, #tpu.memory_space<vmem>>, vector<1x16x128xbf16>
    %982 = vector.shape_cast %981 : vector<1x16x128xbf16> to vector<16x128xbf16>
    %983 = vector.broadcast %980 : bf16 to vector<16x128xbf16>
    %984 = arith.mulf %983, %982 : vector<16x128xbf16>
    %985 = arith.addf %978, %984 : vector<16x128xbf16>
    %c3_665 = arith.constant 3 : index
    %c6_666 = arith.constant 6 : index
    %986 = memref.load %arg2[%c3_665, %c6_666] : memref<8x9xf32, #tpu.memory_space<smem>>
    %987 = arith.truncf %986 : f32 to bf16
    %c12_667 = arith.constant 12 : index
    %c0_668 = arith.constant 0 : index
    %c0_669 = arith.constant 0 : index
    %988 = vector.load %arg1[%c12_667, %c0_668, %c0_669] : memref<16x16x128xbf16, #tpu.memory_space<vmem>>, vector<1x16x128xbf16>
    %989 = vector.shape_cast %988 : vector<1x16x128xbf16> to vector<16x128xbf16>
    %990 = vector.broadcast %987 : bf16 to vector<16x128xbf16>
    %991 = arith.mulf %990, %989 : vector<16x128xbf16>
    %992 = arith.addf %985, %991 : vector<16x128xbf16>
    %c3_670 = arith.constant 3 : index
    %c7_671 = arith.constant 7 : index
    %993 = memref.load %arg2[%c3_670, %c7_671] : memref<8x9xf32, #tpu.memory_space<smem>>
    %994 = arith.truncf %993 : f32 to bf16
    %c13_672 = arith.constant 13 : index
    %c0_673 = arith.constant 0 : index
    %c0_674 = arith.constant 0 : index
    %995 = vector.load %arg1[%c13_672, %c0_673, %c0_674] : memref<16x16x128xbf16, #tpu.memory_space<vmem>>, vector<1x16x128xbf16>
    %996 = vector.shape_cast %995 : vector<1x16x128xbf16> to vector<16x128xbf16>
    %997 = vector.broadcast %994 : bf16 to vector<16x128xbf16>
    %998 = arith.mulf %997, %996 : vector<16x128xbf16>
    %999 = arith.addf %992, %998 : vector<16x128xbf16>
    %c3_675 = arith.constant 3 : index
    %c8_676 = arith.constant 8 : index
    %1000 = memref.load %arg2[%c3_675, %c8_676] : memref<8x9xf32, #tpu.memory_space<smem>>
    %1001 = arith.truncf %1000 : f32 to bf16
    %c14_677 = arith.constant 14 : index
    %c0_678 = arith.constant 0 : index
    %c0_679 = arith.constant 0 : index
    %1002 = vector.load %arg1[%c14_677, %c0_678, %c0_679] : memref<16x16x128xbf16, #tpu.memory_space<vmem>>, vector<1x16x128xbf16>
    %1003 = vector.shape_cast %1002 : vector<1x16x128xbf16> to vector<16x128xbf16>
    %1004 = vector.broadcast %1001 : bf16 to vector<16x128xbf16>
    %1005 = arith.mulf %1004, %1003 : vector<16x128xbf16>
    %1006 = arith.addf %999, %1005 : vector<16x128xbf16>
    %1007 = vector.broadcast %811 : bf16 to vector<16x128xbf16>
    %1008 = arith.addf %1006, %1007 : vector<16x128xbf16>
    %cst_680 = arith.constant 0.000000e+00 : bf16
    %1009 = vector.broadcast %cst_680 : bf16 to vector<16x128xbf16>
    %1010 = arith.maximumf %1008, %1009 : vector<16x128xbf16>
    %1011 = arith.maximumf %944, %1010 : vector<16x128xbf16>
    %c3_681 = arith.constant 3 : index
    %c0_682 = arith.constant 0 : index
    %1012 = memref.load %arg2[%c3_681, %c0_682] : memref<8x9xf32, #tpu.memory_space<smem>>
    %1013 = arith.truncf %1012 : f32 to bf16
    %c5_683 = arith.constant 5 : index
    %c0_684 = arith.constant 0 : index
    %c0_685 = arith.constant 0 : index
    %1014 = vector.load %arg1[%c5_683, %c0_684, %c0_685] : memref<16x16x128xbf16, #tpu.memory_space<vmem>>, vector<1x16x128xbf16>
    %1015 = vector.shape_cast %1014 : vector<1x16x128xbf16> to vector<16x128xbf16>
    %1016 = vector.broadcast %1013 : bf16 to vector<16x128xbf16>
    %1017 = arith.mulf %1016, %1015 : vector<16x128xbf16>
    %c3_686 = arith.constant 3 : index
    %c1_687 = arith.constant 1 : index
    %1018 = memref.load %arg2[%c3_686, %c1_687] : memref<8x9xf32, #tpu.memory_space<smem>>
    %1019 = arith.truncf %1018 : f32 to bf16
    %c6_688 = arith.constant 6 : index
    %c0_689 = arith.constant 0 : index
    %c0_690 = arith.constant 0 : index
    %1020 = vector.load %arg1[%c6_688, %c0_689, %c0_690] : memref<16x16x128xbf16, #tpu.memory_space<vmem>>, vector<1x16x128xbf16>
    %1021 = vector.shape_cast %1020 : vector<1x16x128xbf16> to vector<16x128xbf16>
    %1022 = vector.broadcast %1019 : bf16 to vector<16x128xbf16>
    %1023 = arith.mulf %1022, %1021 : vector<16x128xbf16>
    %1024 = arith.addf %1017, %1023 : vector<16x128xbf16>
    %c3_691 = arith.constant 3 : index
    %c2_692 = arith.constant 2 : index
    %1025 = memref.load %arg2[%c3_691, %c2_692] : memref<8x9xf32, #tpu.memory_space<smem>>
    %1026 = arith.truncf %1025 : f32 to bf16
    %c7_693 = arith.constant 7 : index
    %c0_694 = arith.constant 0 : index
    %c0_695 = arith.constant 0 : index
    %1027 = vector.load %arg1[%c7_693, %c0_694, %c0_695] : memref<16x16x128xbf16, #tpu.memory_space<vmem>>, vector<1x16x128xbf16>
    %1028 = vector.shape_cast %1027 : vector<1x16x128xbf16> to vector<16x128xbf16>
    %1029 = vector.broadcast %1026 : bf16 to vector<16x128xbf16>
    %1030 = arith.mulf %1029, %1028 : vector<16x128xbf16>
    %1031 = arith.addf %1024, %1030 : vector<16x128xbf16>
    %c3_696 = arith.constant 3 : index
    %c3_697 = arith.constant 3 : index
    %1032 = memref.load %arg2[%c3_696, %c3_697] : memref<8x9xf32, #tpu.memory_space<smem>>
    %1033 = arith.truncf %1032 : f32 to bf16
    %c9_698 = arith.constant 9 : index
    %c0_699 = arith.constant 0 : index
    %c0_700 = arith.constant 0 : index
    %1034 = vector.load %arg1[%c9_698, %c0_699, %c0_700] : memref<16x16x128xbf16, #tpu.memory_space<vmem>>, vector<1x16x128xbf16>
    %1035 = vector.shape_cast %1034 : vector<1x16x128xbf16> to vector<16x128xbf16>
    %1036 = vector.broadcast %1033 : bf16 to vector<16x128xbf16>
    %1037 = arith.mulf %1036, %1035 : vector<16x128xbf16>
    %1038 = arith.addf %1031, %1037 : vector<16x128xbf16>
    %c3_701 = arith.constant 3 : index
    %c4_702 = arith.constant 4 : index
    %1039 = memref.load %arg2[%c3_701, %c4_702] : memref<8x9xf32, #tpu.memory_space<smem>>
    %1040 = arith.truncf %1039 : f32 to bf16
    %c10_703 = arith.constant 10 : index
    %c0_704 = arith.constant 0 : index
    %c0_705 = arith.constant 0 : index
    %1041 = vector.load %arg1[%c10_703, %c0_704, %c0_705] : memref<16x16x128xbf16, #tpu.memory_space<vmem>>, vector<1x16x128xbf16>
    %1042 = vector.shape_cast %1041 : vector<1x16x128xbf16> to vector<16x128xbf16>
    %1043 = vector.broadcast %1040 : bf16 to vector<16x128xbf16>
    %1044 = arith.mulf %1043, %1042 : vector<16x128xbf16>
    %1045 = arith.addf %1038, %1044 : vector<16x128xbf16>
    %c3_706 = arith.constant 3 : index
    %c5_707 = arith.constant 5 : index
    %1046 = memref.load %arg2[%c3_706, %c5_707] : memref<8x9xf32, #tpu.memory_space<smem>>
    %1047 = arith.truncf %1046 : f32 to bf16
    %c11_708 = arith.constant 11 : index
    %c0_709 = arith.constant 0 : index
    %c0_710 = arith.constant 0 : index
    %1048 = vector.load %arg1[%c11_708, %c0_709, %c0_710] : memref<16x16x128xbf16, #tpu.memory_space<vmem>>, vector<1x16x128xbf16>
    %1049 = vector.shape_cast %1048 : vector<1x16x128xbf16> to vector<16x128xbf16>
    %1050 = vector.broadcast %1047 : bf16 to vector<16x128xbf16>
    %1051 = arith.mulf %1050, %1049 : vector<16x128xbf16>
    %1052 = arith.addf %1045, %1051 : vector<16x128xbf16>
    %c3_711 = arith.constant 3 : index
    %c6_712 = arith.constant 6 : index
    %1053 = memref.load %arg2[%c3_711, %c6_712] : memref<8x9xf32, #tpu.memory_space<smem>>
    %1054 = arith.truncf %1053 : f32 to bf16
    %c13_713 = arith.constant 13 : index
    %c0_714 = arith.constant 0 : index
    %c0_715 = arith.constant 0 : index
    %1055 = vector.load %arg1[%c13_713, %c0_714, %c0_715] : memref<16x16x128xbf16, #tpu.memory_space<vmem>>, vector<1x16x128xbf16>
    %1056 = vector.shape_cast %1055 : vector<1x16x128xbf16> to vector<16x128xbf16>
    %1057 = vector.broadcast %1054 : bf16 to vector<16x128xbf16>
    %1058 = arith.mulf %1057, %1056 : vector<16x128xbf16>
    %1059 = arith.addf %1052, %1058 : vector<16x128xbf16>
    %c3_716 = arith.constant 3 : index
    %c7_717 = arith.constant 7 : index
    %1060 = memref.load %arg2[%c3_716, %c7_717] : memref<8x9xf32, #tpu.memory_space<smem>>
    %1061 = arith.truncf %1060 : f32 to bf16
    %c14_718 = arith.constant 14 : index
    %c0_719 = arith.constant 0 : index
    %c0_720 = arith.constant 0 : index
    %1062 = vector.load %arg1[%c14_718, %c0_719, %c0_720] : memref<16x16x128xbf16, #tpu.memory_space<vmem>>, vector<1x16x128xbf16>
    %1063 = vector.shape_cast %1062 : vector<1x16x128xbf16> to vector<16x128xbf16>
    %1064 = vector.broadcast %1061 : bf16 to vector<16x128xbf16>
    %1065 = arith.mulf %1064, %1063 : vector<16x128xbf16>
    %1066 = arith.addf %1059, %1065 : vector<16x128xbf16>
    %c3_721 = arith.constant 3 : index
    %c8_722 = arith.constant 8 : index
    %1067 = memref.load %arg2[%c3_721, %c8_722] : memref<8x9xf32, #tpu.memory_space<smem>>
    %1068 = arith.truncf %1067 : f32 to bf16
    %c15_723 = arith.constant 15 : index
    %c0_724 = arith.constant 0 : index
    %c0_725 = arith.constant 0 : index
    %1069 = vector.load %arg1[%c15_723, %c0_724, %c0_725] : memref<16x16x128xbf16, #tpu.memory_space<vmem>>, vector<1x16x128xbf16>
    %1070 = vector.shape_cast %1069 : vector<1x16x128xbf16> to vector<16x128xbf16>
    %1071 = vector.broadcast %1068 : bf16 to vector<16x128xbf16>
    %1072 = arith.mulf %1071, %1070 : vector<16x128xbf16>
    %1073 = arith.addf %1066, %1072 : vector<16x128xbf16>
    %1074 = vector.broadcast %811 : bf16 to vector<16x128xbf16>
    %1075 = arith.addf %1073, %1074 : vector<16x128xbf16>
    %cst_726 = arith.constant 0.000000e+00 : bf16
    %1076 = vector.broadcast %cst_726 : bf16 to vector<16x128xbf16>
    %1077 = arith.maximumf %1075, %1076 : vector<16x128xbf16>
    %1078 = arith.maximumf %1011, %1077 : vector<16x128xbf16>
    %c0_727 = arith.constant 0 : index
    %c384 = arith.constant 384 : index
    %1079 = vector.load %arg9[%c0_727, %c384] : memref<16x1024xbf16, #tpu.memory_space<vmem>>, vector<16x128xbf16>
    tpu.vector_store %arg9[%c0_727, %c384], %1078 {strides = array<i32>} : memref<16x1024xbf16, #tpu.memory_space<vmem>>, vector<16x128xbf16>,
    %c4_728 = arith.constant 4 : index
    %1080 = memref.load %arg3[%c4_728] : memref<8xf32, #tpu.memory_space<smem>>
    %1081 = arith.truncf %1080 : f32 to bf16
    %c4_729 = arith.constant 4 : index
    %c0_730 = arith.constant 0 : index
    %1082 = memref.load %arg2[%c4_729, %c0_730] : memref<8x9xf32, #tpu.memory_space<smem>>
    %1083 = arith.truncf %1082 : f32 to bf16
    %c0_731 = arith.constant 0 : index
    %c0_732 = arith.constant 0 : index
    %c0_733 = arith.constant 0 : index
    %1084 = vector.load %arg1[%c0_731, %c0_732, %c0_733] : memref<16x16x128xbf16, #tpu.memory_space<vmem>>, vector<1x16x128xbf16>
    %1085 = vector.shape_cast %1084 : vector<1x16x128xbf16> to vector<16x128xbf16>
    %1086 = vector.broadcast %1083 : bf16 to vector<16x128xbf16>
    %1087 = arith.mulf %1086, %1085 : vector<16x128xbf16>
    %c4_734 = arith.constant 4 : index
    %c1_735 = arith.constant 1 : index
    %1088 = memref.load %arg2[%c4_734, %c1_735] : memref<8x9xf32, #tpu.memory_space<smem>>
    %1089 = arith.truncf %1088 : f32 to bf16
    %c1_736 = arith.constant 1 : index
    %c0_737 = arith.constant 0 : index
    %c0_738 = arith.constant 0 : index
    %1090 = vector.load %arg1[%c1_736, %c0_737, %c0_738] : memref<16x16x128xbf16, #tpu.memory_space<vmem>>, vector<1x16x128xbf16>
    %1091 = vector.shape_cast %1090 : vector<1x16x128xbf16> to vector<16x128xbf16>
    %1092 = vector.broadcast %1089 : bf16 to vector<16x128xbf16>
    %1093 = arith.mulf %1092, %1091 : vector<16x128xbf16>
    %1094 = arith.addf %1087, %1093 : vector<16x128xbf16>
    %c4_739 = arith.constant 4 : index
    %c2_740 = arith.constant 2 : index
    %1095 = memref.load %arg2[%c4_739, %c2_740] : memref<8x9xf32, #tpu.memory_space<smem>>
    %1096 = arith.truncf %1095 : f32 to bf16
    %c2_741 = arith.constant 2 : index
    %c0_742 = arith.constant 0 : index
    %c0_743 = arith.constant 0 : index
    %1097 = vector.load %arg1[%c2_741, %c0_742, %c0_743] : memref<16x16x128xbf16, #tpu.memory_space<vmem>>, vector<1x16x128xbf16>
    %1098 = vector.shape_cast %1097 : vector<1x16x128xbf16> to vector<16x128xbf16>
    %1099 = vector.broadcast %1096 : bf16 to vector<16x128xbf16>
    %1100 = arith.mulf %1099, %1098 : vector<16x128xbf16>
    %1101 = arith.addf %1094, %1100 : vector<16x128xbf16>
    %c4_744 = arith.constant 4 : index
    %c3_745 = arith.constant 3 : index
    %1102 = memref.load %arg2[%c4_744, %c3_745] : memref<8x9xf32, #tpu.memory_space<smem>>
    %1103 = arith.truncf %1102 : f32 to bf16
    %c4_746 = arith.constant 4 : index
    %c0_747 = arith.constant 0 : index
    %c0_748 = arith.constant 0 : index
    %1104 = vector.load %arg1[%c4_746, %c0_747, %c0_748] : memref<16x16x128xbf16, #tpu.memory_space<vmem>>, vector<1x16x128xbf16>
    %1105 = vector.shape_cast %1104 : vector<1x16x128xbf16> to vector<16x128xbf16>
    %1106 = vector.broadcast %1103 : bf16 to vector<16x128xbf16>
    %1107 = arith.mulf %1106, %1105 : vector<16x128xbf16>
    %1108 = arith.addf %1101, %1107 : vector<16x128xbf16>
    %c4_749 = arith.constant 4 : index
    %c4_750 = arith.constant 4 : index
    %1109 = memref.load %arg2[%c4_749, %c4_750] : memref<8x9xf32, #tpu.memory_space<smem>>
    %1110 = arith.truncf %1109 : f32 to bf16
    %c5_751 = arith.constant 5 : index
    %c0_752 = arith.constant 0 : index
    %c0_753 = arith.constant 0 : index
    %1111 = vector.load %arg1[%c5_751, %c0_752, %c0_753] : memref<16x16x128xbf16, #tpu.memory_space<vmem>>, vector<1x16x128xbf16>
    %1112 = vector.shape_cast %1111 : vector<1x16x128xbf16> to vector<16x128xbf16>
    %1113 = vector.broadcast %1110 : bf16 to vector<16x128xbf16>
    %1114 = arith.mulf %1113, %1112 : vector<16x128xbf16>
    %1115 = arith.addf %1108, %1114 : vector<16x128xbf16>
    %c4_754 = arith.constant 4 : index
    %c5_755 = arith.constant 5 : index
    %1116 = memref.load %arg2[%c4_754, %c5_755] : memref<8x9xf32, #tpu.memory_space<smem>>
    %1117 = arith.truncf %1116 : f32 to bf16
    %c6_756 = arith.constant 6 : index
    %c0_757 = arith.constant 0 : index
    %c0_758 = arith.constant 0 : index
    %1118 = vector.load %arg1[%c6_756, %c0_757, %c0_758] : memref<16x16x128xbf16, #tpu.memory_space<vmem>>, vector<1x16x128xbf16>
    %1119 = vector.shape_cast %1118 : vector<1x16x128xbf16> to vector<16x128xbf16>
    %1120 = vector.broadcast %1117 : bf16 to vector<16x128xbf16>
    %1121 = arith.mulf %1120, %1119 : vector<16x128xbf16>
    %1122 = arith.addf %1115, %1121 : vector<16x128xbf16>
    %c4_759 = arith.constant 4 : index
    %c6_760 = arith.constant 6 : index
    %1123 = memref.load %arg2[%c4_759, %c6_760] : memref<8x9xf32, #tpu.memory_space<smem>>
    %1124 = arith.truncf %1123 : f32 to bf16
    %c8_761 = arith.constant 8 : index
    %c0_762 = arith.constant 0 : index
    %c0_763 = arith.constant 0 : index
    %1125 = vector.load %arg1[%c8_761, %c0_762, %c0_763] : memref<16x16x128xbf16, #tpu.memory_space<vmem>>, vector<1x16x128xbf16>
    %1126 = vector.shape_cast %1125 : vector<1x16x128xbf16> to vector<16x128xbf16>
    %1127 = vector.broadcast %1124 : bf16 to vector<16x128xbf16>
    %1128 = arith.mulf %1127, %1126 : vector<16x128xbf16>
    %1129 = arith.addf %1122, %1128 : vector<16x128xbf16>
    %c4_764 = arith.constant 4 : index
    %c7_765 = arith.constant 7 : index
    %1130 = memref.load %arg2[%c4_764, %c7_765] : memref<8x9xf32, #tpu.memory_space<smem>>
    %1131 = arith.truncf %1130 : f32 to bf16
    %c9_766 = arith.constant 9 : index
    %c0_767 = arith.constant 0 : index
    %c0_768 = arith.constant 0 : index
    %1132 = vector.load %arg1[%c9_766, %c0_767, %c0_768] : memref<16x16x128xbf16, #tpu.memory_space<vmem>>, vector<1x16x128xbf16>
    %1133 = vector.shape_cast %1132 : vector<1x16x128xbf16> to vector<16x128xbf16>
    %1134 = vector.broadcast %1131 : bf16 to vector<16x128xbf16>
    %1135 = arith.mulf %1134, %1133 : vector<16x128xbf16>
    %1136 = arith.addf %1129, %1135 : vector<16x128xbf16>
    %c4_769 = arith.constant 4 : index
    %c8_770 = arith.constant 8 : index
    %1137 = memref.load %arg2[%c4_769, %c8_770] : memref<8x9xf32, #tpu.memory_space<smem>>
    %1138 = arith.truncf %1137 : f32 to bf16
    %c10_771 = arith.constant 10 : index
    %c0_772 = arith.constant 0 : index
    %c0_773 = arith.constant 0 : index
    %1139 = vector.load %arg1[%c10_771, %c0_772, %c0_773] : memref<16x16x128xbf16, #tpu.memory_space<vmem>>, vector<1x16x128xbf16>
    %1140 = vector.shape_cast %1139 : vector<1x16x128xbf16> to vector<16x128xbf16>
    %1141 = vector.broadcast %1138 : bf16 to vector<16x128xbf16>
    %1142 = arith.mulf %1141, %1140 : vector<16x128xbf16>
    %1143 = arith.addf %1136, %1142 : vector<16x128xbf16>
    %1144 = vector.broadcast %1081 : bf16 to vector<16x128xbf16>
    %1145 = arith.addf %1143, %1144 : vector<16x128xbf16>
    %cst_774 = arith.constant 0.000000e+00 : bf16
    %1146 = vector.broadcast %cst_774 : bf16 to vector<16x128xbf16>
    %1147 = arith.maximumf %1145, %1146 : vector<16x128xbf16>
    %c4_775 = arith.constant 4 : index
    %c0_776 = arith.constant 0 : index
    %1148 = memref.load %arg2[%c4_775, %c0_776] : memref<8x9xf32, #tpu.memory_space<smem>>
    %1149 = arith.truncf %1148 : f32 to bf16
    %c1_777 = arith.constant 1 : index
    %c0_778 = arith.constant 0 : index
    %c0_779 = arith.constant 0 : index
    %1150 = vector.load %arg1[%c1_777, %c0_778, %c0_779] : memref<16x16x128xbf16, #tpu.memory_space<vmem>>, vector<1x16x128xbf16>
    %1151 = vector.shape_cast %1150 : vector<1x16x128xbf16> to vector<16x128xbf16>
    %1152 = vector.broadcast %1149 : bf16 to vector<16x128xbf16>
    %1153 = arith.mulf %1152, %1151 : vector<16x128xbf16>
    %c4_780 = arith.constant 4 : index
    %c1_781 = arith.constant 1 : index
    %1154 = memref.load %arg2[%c4_780, %c1_781] : memref<8x9xf32, #tpu.memory_space<smem>>
    %1155 = arith.truncf %1154 : f32 to bf16
    %c2_782 = arith.constant 2 : index
    %c0_783 = arith.constant 0 : index
    %c0_784 = arith.constant 0 : index
    %1156 = vector.load %arg1[%c2_782, %c0_783, %c0_784] : memref<16x16x128xbf16, #tpu.memory_space<vmem>>, vector<1x16x128xbf16>
    %1157 = vector.shape_cast %1156 : vector<1x16x128xbf16> to vector<16x128xbf16>
    %1158 = vector.broadcast %1155 : bf16 to vector<16x128xbf16>
    %1159 = arith.mulf %1158, %1157 : vector<16x128xbf16>
    %1160 = arith.addf %1153, %1159 : vector<16x128xbf16>
    %c4_785 = arith.constant 4 : index
    %c2_786 = arith.constant 2 : index
    %1161 = memref.load %arg2[%c4_785, %c2_786] : memref<8x9xf32, #tpu.memory_space<smem>>
    %1162 = arith.truncf %1161 : f32 to bf16
    %c3_787 = arith.constant 3 : index
    %c0_788 = arith.constant 0 : index
    %c0_789 = arith.constant 0 : index
    %1163 = vector.load %arg1[%c3_787, %c0_788, %c0_789] : memref<16x16x128xbf16, #tpu.memory_space<vmem>>, vector<1x16x128xbf16>
    %1164 = vector.shape_cast %1163 : vector<1x16x128xbf16> to vector<16x128xbf16>
    %1165 = vector.broadcast %1162 : bf16 to vector<16x128xbf16>
    %1166 = arith.mulf %1165, %1164 : vector<16x128xbf16>
    %1167 = arith.addf %1160, %1166 : vector<16x128xbf16>
    %c4_790 = arith.constant 4 : index
    %c3_791 = arith.constant 3 : index
    %1168 = memref.load %arg2[%c4_790, %c3_791] : memref<8x9xf32, #tpu.memory_space<smem>>
    %1169 = arith.truncf %1168 : f32 to bf16
    %c5_792 = arith.constant 5 : index
    %c0_793 = arith.constant 0 : index
    %c0_794 = arith.constant 0 : index
    %1170 = vector.load %arg1[%c5_792, %c0_793, %c0_794] : memref<16x16x128xbf16, #tpu.memory_space<vmem>>, vector<1x16x128xbf16>
    %1171 = vector.shape_cast %1170 : vector<1x16x128xbf16> to vector<16x128xbf16>
    %1172 = vector.broadcast %1169 : bf16 to vector<16x128xbf16>
    %1173 = arith.mulf %1172, %1171 : vector<16x128xbf16>
    %1174 = arith.addf %1167, %1173 : vector<16x128xbf16>
    %c4_795 = arith.constant 4 : index
    %c4_796 = arith.constant 4 : index
    %1175 = memref.load %arg2[%c4_795, %c4_796] : memref<8x9xf32, #tpu.memory_space<smem>>
    %1176 = arith.truncf %1175 : f32 to bf16
    %c6_797 = arith.constant 6 : index
    %c0_798 = arith.constant 0 : index
    %c0_799 = arith.constant 0 : index
    %1177 = vector.load %arg1[%c6_797, %c0_798, %c0_799] : memref<16x16x128xbf16, #tpu.memory_space<vmem>>, vector<1x16x128xbf16>
    %1178 = vector.shape_cast %1177 : vector<1x16x128xbf16> to vector<16x128xbf16>
    %1179 = vector.broadcast %1176 : bf16 to vector<16x128xbf16>
    %1180 = arith.mulf %1179, %1178 : vector<16x128xbf16>
    %1181 = arith.addf %1174, %1180 : vector<16x128xbf16>
    %c4_800 = arith.constant 4 : index
    %c5_801 = arith.constant 5 : index
    %1182 = memref.load %arg2[%c4_800, %c5_801] : memref<8x9xf32, #tpu.memory_space<smem>>
    %1183 = arith.truncf %1182 : f32 to bf16
    %c7_802 = arith.constant 7 : index
    %c0_803 = arith.constant 0 : index
    %c0_804 = arith.constant 0 : index
    %1184 = vector.load %arg1[%c7_802, %c0_803, %c0_804] : memref<16x16x128xbf16, #tpu.memory_space<vmem>>, vector<1x16x128xbf16>
    %1185 = vector.shape_cast %1184 : vector<1x16x128xbf16> to vector<16x128xbf16>
    %1186 = vector.broadcast %1183 : bf16 to vector<16x128xbf16>
    %1187 = arith.mulf %1186, %1185 : vector<16x128xbf16>
    %1188 = arith.addf %1181, %1187 : vector<16x128xbf16>
    %c4_805 = arith.constant 4 : index
    %c6_806 = arith.constant 6 : index
    %1189 = memref.load %arg2[%c4_805, %c6_806] : memref<8x9xf32, #tpu.memory_space<smem>>
    %1190 = arith.truncf %1189 : f32 to bf16
    %c9_807 = arith.constant 9 : index
    %c0_808 = arith.constant 0 : index
    %c0_809 = arith.constant 0 : index
    %1191 = vector.load %arg1[%c9_807, %c0_808, %c0_809] : memref<16x16x128xbf16, #tpu.memory_space<vmem>>, vector<1x16x128xbf16>
    %1192 = vector.shape_cast %1191 : vector<1x16x128xbf16> to vector<16x128xbf16>
    %1193 = vector.broadcast %1190 : bf16 to vector<16x128xbf16>
    %1194 = arith.mulf %1193, %1192 : vector<16x128xbf16>
    %1195 = arith.addf %1188, %1194 : vector<16x128xbf16>
    %c4_810 = arith.constant 4 : index
    %c7_811 = arith.constant 7 : index
    %1196 = memref.load %arg2[%c4_810, %c7_811] : memref<8x9xf32, #tpu.memory_space<smem>>
    %1197 = arith.truncf %1196 : f32 to bf16
    %c10_812 = arith.constant 10 : index
    %c0_813 = arith.constant 0 : index
    %c0_814 = arith.constant 0 : index
    %1198 = vector.load %arg1[%c10_812, %c0_813, %c0_814] : memref<16x16x128xbf16, #tpu.memory_space<vmem>>, vector<1x16x128xbf16>
    %1199 = vector.shape_cast %1198 : vector<1x16x128xbf16> to vector<16x128xbf16>
    %1200 = vector.broadcast %1197 : bf16 to vector<16x128xbf16>
    %1201 = arith.mulf %1200, %1199 : vector<16x128xbf16>
    %1202 = arith.addf %1195, %1201 : vector<16x128xbf16>
    %c4_815 = arith.constant 4 : index
    %c8_816 = arith.constant 8 : index
    %1203 = memref.load %arg2[%c4_815, %c8_816] : memref<8x9xf32, #tpu.memory_space<smem>>
    %1204 = arith.truncf %1203 : f32 to bf16
    %c11_817 = arith.constant 11 : index
    %c0_818 = arith.constant 0 : index
    %c0_819 = arith.constant 0 : index
    %1205 = vector.load %arg1[%c11_817, %c0_818, %c0_819] : memref<16x16x128xbf16, #tpu.memory_space<vmem>>, vector<1x16x128xbf16>
    %1206 = vector.shape_cast %1205 : vector<1x16x128xbf16> to vector<16x128xbf16>
    %1207 = vector.broadcast %1204 : bf16 to vector<16x128xbf16>
    %1208 = arith.mulf %1207, %1206 : vector<16x128xbf16>
    %1209 = arith.addf %1202, %1208 : vector<16x128xbf16>
    %1210 = vector.broadcast %1081 : bf16 to vector<16x128xbf16>
    %1211 = arith.addf %1209, %1210 : vector<16x128xbf16>
    %cst_820 = arith.constant 0.000000e+00 : bf16
    %1212 = vector.broadcast %cst_820 : bf16 to vector<16x128xbf16>
    %1213 = arith.maximumf %1211, %1212 : vector<16x128xbf16>
    %1214 = arith.maximumf %1147, %1213 : vector<16x128xbf16>
    %c4_821 = arith.constant 4 : index
    %c0_822 = arith.constant 0 : index
    %1215 = memref.load %arg2[%c4_821, %c0_822] : memref<8x9xf32, #tpu.memory_space<smem>>
    %1216 = arith.truncf %1215 : f32 to bf16
    %c4_823 = arith.constant 4 : index
    %c0_824 = arith.constant 0 : index
    %c0_825 = arith.constant 0 : index
    %1217 = vector.load %arg1[%c4_823, %c0_824, %c0_825] : memref<16x16x128xbf16, #tpu.memory_space<vmem>>, vector<1x16x128xbf16>
    %1218 = vector.shape_cast %1217 : vector<1x16x128xbf16> to vector<16x128xbf16>
    %1219 = vector.broadcast %1216 : bf16 to vector<16x128xbf16>
    %1220 = arith.mulf %1219, %1218 : vector<16x128xbf16>
    %c4_826 = arith.constant 4 : index
    %c1_827 = arith.constant 1 : index
    %1221 = memref.load %arg2[%c4_826, %c1_827] : memref<8x9xf32, #tpu.memory_space<smem>>
    %1222 = arith.truncf %1221 : f32 to bf16
    %c5_828 = arith.constant 5 : index
    %c0_829 = arith.constant 0 : index
    %c0_830 = arith.constant 0 : index
    %1223 = vector.load %arg1[%c5_828, %c0_829, %c0_830] : memref<16x16x128xbf16, #tpu.memory_space<vmem>>, vector<1x16x128xbf16>
    %1224 = vector.shape_cast %1223 : vector<1x16x128xbf16> to vector<16x128xbf16>
    %1225 = vector.broadcast %1222 : bf16 to vector<16x128xbf16>
    %1226 = arith.mulf %1225, %1224 : vector<16x128xbf16>
    %1227 = arith.addf %1220, %1226 : vector<16x128xbf16>
    %c4_831 = arith.constant 4 : index
    %c2_832 = arith.constant 2 : index
    %1228 = memref.load %arg2[%c4_831, %c2_832] : memref<8x9xf32, #tpu.memory_space<smem>>
    %1229 = arith.truncf %1228 : f32 to bf16
    %c6_833 = arith.constant 6 : index
    %c0_834 = arith.constant 0 : index
    %c0_835 = arith.constant 0 : index
    %1230 = vector.load %arg1[%c6_833, %c0_834, %c0_835] : memref<16x16x128xbf16, #tpu.memory_space<vmem>>, vector<1x16x128xbf16>
    %1231 = vector.shape_cast %1230 : vector<1x16x128xbf16> to vector<16x128xbf16>
    %1232 = vector.broadcast %1229 : bf16 to vector<16x128xbf16>
    %1233 = arith.mulf %1232, %1231 : vector<16x128xbf16>
    %1234 = arith.addf %1227, %1233 : vector<16x128xbf16>
    %c4_836 = arith.constant 4 : index
    %c3_837 = arith.constant 3 : index
    %1235 = memref.load %arg2[%c4_836, %c3_837] : memref<8x9xf32, #tpu.memory_space<smem>>
    %1236 = arith.truncf %1235 : f32 to bf16
    %c8_838 = arith.constant 8 : index
    %c0_839 = arith.constant 0 : index
    %c0_840 = arith.constant 0 : index
    %1237 = vector.load %arg1[%c8_838, %c0_839, %c0_840] : memref<16x16x128xbf16, #tpu.memory_space<vmem>>, vector<1x16x128xbf16>
    %1238 = vector.shape_cast %1237 : vector<1x16x128xbf16> to vector<16x128xbf16>
    %1239 = vector.broadcast %1236 : bf16 to vector<16x128xbf16>
    %1240 = arith.mulf %1239, %1238 : vector<16x128xbf16>
    %1241 = arith.addf %1234, %1240 : vector<16x128xbf16>
    %c4_841 = arith.constant 4 : index
    %c4_842 = arith.constant 4 : index
    %1242 = memref.load %arg2[%c4_841, %c4_842] : memref<8x9xf32, #tpu.memory_space<smem>>
    %1243 = arith.truncf %1242 : f32 to bf16
    %c9_843 = arith.constant 9 : index
    %c0_844 = arith.constant 0 : index
    %c0_845 = arith.constant 0 : index
    %1244 = vector.load %arg1[%c9_843, %c0_844, %c0_845] : memref<16x16x128xbf16, #tpu.memory_space<vmem>>, vector<1x16x128xbf16>
    %1245 = vector.shape_cast %1244 : vector<1x16x128xbf16> to vector<16x128xbf16>
    %1246 = vector.broadcast %1243 : bf16 to vector<16x128xbf16>
    %1247 = arith.mulf %1246, %1245 : vector<16x128xbf16>
    %1248 = arith.addf %1241, %1247 : vector<16x128xbf16>
    %c4_846 = arith.constant 4 : index
    %c5_847 = arith.constant 5 : index
    %1249 = memref.load %arg2[%c4_846, %c5_847] : memref<8x9xf32, #tpu.memory_space<smem>>
    %1250 = arith.truncf %1249 : f32 to bf16
    %c10_848 = arith.constant 10 : index
    %c0_849 = arith.constant 0 : index
    %c0_850 = arith.constant 0 : index
    %1251 = vector.load %arg1[%c10_848, %c0_849, %c0_850] : memref<16x16x128xbf16, #tpu.memory_space<vmem>>, vector<1x16x128xbf16>
    %1252 = vector.shape_cast %1251 : vector<1x16x128xbf16> to vector<16x128xbf16>
    %1253 = vector.broadcast %1250 : bf16 to vector<16x128xbf16>
    %1254 = arith.mulf %1253, %1252 : vector<16x128xbf16>
    %1255 = arith.addf %1248, %1254 : vector<16x128xbf16>
    %c4_851 = arith.constant 4 : index
    %c6_852 = arith.constant 6 : index
    %1256 = memref.load %arg2[%c4_851, %c6_852] : memref<8x9xf32, #tpu.memory_space<smem>>
    %1257 = arith.truncf %1256 : f32 to bf16
    %c12_853 = arith.constant 12 : index
    %c0_854 = arith.constant 0 : index
    %c0_855 = arith.constant 0 : index
    %1258 = vector.load %arg1[%c12_853, %c0_854, %c0_855] : memref<16x16x128xbf16, #tpu.memory_space<vmem>>, vector<1x16x128xbf16>
    %1259 = vector.shape_cast %1258 : vector<1x16x128xbf16> to vector<16x128xbf16>
    %1260 = vector.broadcast %1257 : bf16 to vector<16x128xbf16>
    %1261 = arith.mulf %1260, %1259 : vector<16x128xbf16>
    %1262 = arith.addf %1255, %1261 : vector<16x128xbf16>
    %c4_856 = arith.constant 4 : index
    %c7_857 = arith.constant 7 : index
    %1263 = memref.load %arg2[%c4_856, %c7_857] : memref<8x9xf32, #tpu.memory_space<smem>>
    %1264 = arith.truncf %1263 : f32 to bf16
    %c13_858 = arith.constant 13 : index
    %c0_859 = arith.constant 0 : index
    %c0_860 = arith.constant 0 : index
    %1265 = vector.load %arg1[%c13_858, %c0_859, %c0_860] : memref<16x16x128xbf16, #tpu.memory_space<vmem>>, vector<1x16x128xbf16>
    %1266 = vector.shape_cast %1265 : vector<1x16x128xbf16> to vector<16x128xbf16>
    %1267 = vector.broadcast %1264 : bf16 to vector<16x128xbf16>
    %1268 = arith.mulf %1267, %1266 : vector<16x128xbf16>
    %1269 = arith.addf %1262, %1268 : vector<16x128xbf16>
    %c4_861 = arith.constant 4 : index
    %c8_862 = arith.constant 8 : index
    %1270 = memref.load %arg2[%c4_861, %c8_862] : memref<8x9xf32, #tpu.memory_space<smem>>
    %1271 = arith.truncf %1270 : f32 to bf16
    %c14_863 = arith.constant 14 : index
    %c0_864 = arith.constant 0 : index
    %c0_865 = arith.constant 0 : index
    %1272 = vector.load %arg1[%c14_863, %c0_864, %c0_865] : memref<16x16x128xbf16, #tpu.memory_space<vmem>>, vector<1x16x128xbf16>
    %1273 = vector.shape_cast %1272 : vector<1x16x128xbf16> to vector<16x128xbf16>
    %1274 = vector.broadcast %1271 : bf16 to vector<16x128xbf16>
    %1275 = arith.mulf %1274, %1273 : vector<16x128xbf16>
    %1276 = arith.addf %1269, %1275 : vector<16x128xbf16>
    %1277 = vector.broadcast %1081 : bf16 to vector<16x128xbf16>
    %1278 = arith.addf %1276, %1277 : vector<16x128xbf16>
    %cst_866 = arith.constant 0.000000e+00 : bf16
    %1279 = vector.broadcast %cst_866 : bf16 to vector<16x128xbf16>
    %1280 = arith.maximumf %1278, %1279 : vector<16x128xbf16>
    %1281 = arith.maximumf %1214, %1280 : vector<16x128xbf16>
    %c4_867 = arith.constant 4 : index
    %c0_868 = arith.constant 0 : index
    %1282 = memref.load %arg2[%c4_867, %c0_868] : memref<8x9xf32, #tpu.memory_space<smem>>
    %1283 = arith.truncf %1282 : f32 to bf16
    %c5_869 = arith.constant 5 : index
    %c0_870 = arith.constant 0 : index
    %c0_871 = arith.constant 0 : index
    %1284 = vector.load %arg1[%c5_869, %c0_870, %c0_871] : memref<16x16x128xbf16, #tpu.memory_space<vmem>>, vector<1x16x128xbf16>
    %1285 = vector.shape_cast %1284 : vector<1x16x128xbf16> to vector<16x128xbf16>
    %1286 = vector.broadcast %1283 : bf16 to vector<16x128xbf16>
    %1287 = arith.mulf %1286, %1285 : vector<16x128xbf16>
    %c4_872 = arith.constant 4 : index
    %c1_873 = arith.constant 1 : index
    %1288 = memref.load %arg2[%c4_872, %c1_873] : memref<8x9xf32, #tpu.memory_space<smem>>
    %1289 = arith.truncf %1288 : f32 to bf16
    %c6_874 = arith.constant 6 : index
    %c0_875 = arith.constant 0 : index
    %c0_876 = arith.constant 0 : index
    %1290 = vector.load %arg1[%c6_874, %c0_875, %c0_876] : memref<16x16x128xbf16, #tpu.memory_space<vmem>>, vector<1x16x128xbf16>
    %1291 = vector.shape_cast %1290 : vector<1x16x128xbf16> to vector<16x128xbf16>
    %1292 = vector.broadcast %1289 : bf16 to vector<16x128xbf16>
    %1293 = arith.mulf %1292, %1291 : vector<16x128xbf16>
    %1294 = arith.addf %1287, %1293 : vector<16x128xbf16>
    %c4_877 = arith.constant 4 : index
    %c2_878 = arith.constant 2 : index
    %1295 = memref.load %arg2[%c4_877, %c2_878] : memref<8x9xf32, #tpu.memory_space<smem>>
    %1296 = arith.truncf %1295 : f32 to bf16
    %c7_879 = arith.constant 7 : index
    %c0_880 = arith.constant 0 : index
    %c0_881 = arith.constant 0 : index
    %1297 = vector.load %arg1[%c7_879, %c0_880, %c0_881] : memref<16x16x128xbf16, #tpu.memory_space<vmem>>, vector<1x16x128xbf16>
    %1298 = vector.shape_cast %1297 : vector<1x16x128xbf16> to vector<16x128xbf16>
    %1299 = vector.broadcast %1296 : bf16 to vector<16x128xbf16>
    %1300 = arith.mulf %1299, %1298 : vector<16x128xbf16>
    %1301 = arith.addf %1294, %1300 : vector<16x128xbf16>
    %c4_882 = arith.constant 4 : index
    %c3_883 = arith.constant 3 : index
    %1302 = memref.load %arg2[%c4_882, %c3_883] : memref<8x9xf32, #tpu.memory_space<smem>>
    %1303 = arith.truncf %1302 : f32 to bf16
    %c9_884 = arith.constant 9 : index
    %c0_885 = arith.constant 0 : index
    %c0_886 = arith.constant 0 : index
    %1304 = vector.load %arg1[%c9_884, %c0_885, %c0_886] : memref<16x16x128xbf16, #tpu.memory_space<vmem>>, vector<1x16x128xbf16>
    %1305 = vector.shape_cast %1304 : vector<1x16x128xbf16> to vector<16x128xbf16>
    %1306 = vector.broadcast %1303 : bf16 to vector<16x128xbf16>
    %1307 = arith.mulf %1306, %1305 : vector<16x128xbf16>
    %1308 = arith.addf %1301, %1307 : vector<16x128xbf16>
    %c4_887 = arith.constant 4 : index
    %c4_888 = arith.constant 4 : index
    %1309 = memref.load %arg2[%c4_887, %c4_888] : memref<8x9xf32, #tpu.memory_space<smem>>
    %1310 = arith.truncf %1309 : f32 to bf16
    %c10_889 = arith.constant 10 : index
    %c0_890 = arith.constant 0 : index
    %c0_891 = arith.constant 0 : index
    %1311 = vector.load %arg1[%c10_889, %c0_890, %c0_891] : memref<16x16x128xbf16, #tpu.memory_space<vmem>>, vector<1x16x128xbf16>
    %1312 = vector.shape_cast %1311 : vector<1x16x128xbf16> to vector<16x128xbf16>
    %1313 = vector.broadcast %1310 : bf16 to vector<16x128xbf16>
    %1314 = arith.mulf %1313, %1312 : vector<16x128xbf16>
    %1315 = arith.addf %1308, %1314 : vector<16x128xbf16>
    %c4_892 = arith.constant 4 : index
    %c5_893 = arith.constant 5 : index
    %1316 = memref.load %arg2[%c4_892, %c5_893] : memref<8x9xf32, #tpu.memory_space<smem>>
    %1317 = arith.truncf %1316 : f32 to bf16
    %c11_894 = arith.constant 11 : index
    %c0_895 = arith.constant 0 : index
    %c0_896 = arith.constant 0 : index
    %1318 = vector.load %arg1[%c11_894, %c0_895, %c0_896] : memref<16x16x128xbf16, #tpu.memory_space<vmem>>, vector<1x16x128xbf16>
    %1319 = vector.shape_cast %1318 : vector<1x16x128xbf16> to vector<16x128xbf16>
    %1320 = vector.broadcast %1317 : bf16 to vector<16x128xbf16>
    %1321 = arith.mulf %1320, %1319 : vector<16x128xbf16>
    %1322 = arith.addf %1315, %1321 : vector<16x128xbf16>
    %c4_897 = arith.constant 4 : index
    %c6_898 = arith.constant 6 : index
    %1323 = memref.load %arg2[%c4_897, %c6_898] : memref<8x9xf32, #tpu.memory_space<smem>>
    %1324 = arith.truncf %1323 : f32 to bf16
    %c13_899 = arith.constant 13 : index
    %c0_900 = arith.constant 0 : index
    %c0_901 = arith.constant 0 : index
    %1325 = vector.load %arg1[%c13_899, %c0_900, %c0_901] : memref<16x16x128xbf16, #tpu.memory_space<vmem>>, vector<1x16x128xbf16>
    %1326 = vector.shape_cast %1325 : vector<1x16x128xbf16> to vector<16x128xbf16>
    %1327 = vector.broadcast %1324 : bf16 to vector<16x128xbf16>
    %1328 = arith.mulf %1327, %1326 : vector<16x128xbf16>
    %1329 = arith.addf %1322, %1328 : vector<16x128xbf16>
    %c4_902 = arith.constant 4 : index
    %c7_903 = arith.constant 7 : index
    %1330 = memref.load %arg2[%c4_902, %c7_903] : memref<8x9xf32, #tpu.memory_space<smem>>
    %1331 = arith.truncf %1330 : f32 to bf16
    %c14_904 = arith.constant 14 : index
    %c0_905 = arith.constant 0 : index
    %c0_906 = arith.constant 0 : index
    %1332 = vector.load %arg1[%c14_904, %c0_905, %c0_906] : memref<16x16x128xbf16, #tpu.memory_space<vmem>>, vector<1x16x128xbf16>
    %1333 = vector.shape_cast %1332 : vector<1x16x128xbf16> to vector<16x128xbf16>
    %1334 = vector.broadcast %1331 : bf16 to vector<16x128xbf16>
    %1335 = arith.mulf %1334, %1333 : vector<16x128xbf16>
    %1336 = arith.addf %1329, %1335 : vector<16x128xbf16>
    %c4_907 = arith.constant 4 : index
    %c8_908 = arith.constant 8 : index
    %1337 = memref.load %arg2[%c4_907, %c8_908] : memref<8x9xf32, #tpu.memory_space<smem>>
    %1338 = arith.truncf %1337 : f32 to bf16
    %c15_909 = arith.constant 15 : index
    %c0_910 = arith.constant 0 : index
    %c0_911 = arith.constant 0 : index
    %1339 = vector.load %arg1[%c15_909, %c0_910, %c0_911] : memref<16x16x128xbf16, #tpu.memory_space<vmem>>, vector<1x16x128xbf16>
    %1340 = vector.shape_cast %1339 : vector<1x16x128xbf16> to vector<16x128xbf16>
    %1341 = vector.broadcast %1338 : bf16 to vector<16x128xbf16>
    %1342 = arith.mulf %1341, %1340 : vector<16x128xbf16>
    %1343 = arith.addf %1336, %1342 : vector<16x128xbf16>
    %1344 = vector.broadcast %1081 : bf16 to vector<16x128xbf16>
    %1345 = arith.addf %1343, %1344 : vector<16x128xbf16>
    %cst_912 = arith.constant 0.000000e+00 : bf16
    %1346 = vector.broadcast %cst_912 : bf16 to vector<16x128xbf16>
    %1347 = arith.maximumf %1345, %1346 : vector<16x128xbf16>
    %1348 = arith.maximumf %1281, %1347 : vector<16x128xbf16>
    %c0_913 = arith.constant 0 : index
    %c512 = arith.constant 512 : index
    %1349 = vector.load %arg9[%c0_913, %c512] : memref<16x1024xbf16, #tpu.memory_space<vmem>>, vector<16x128xbf16>
    tpu.vector_store %arg9[%c0_913, %c512], %1348 {strides = array<i32>} : memref<16x1024xbf16, #tpu.memory_space<vmem>>, vector<16x128xbf16>,
    %c5_914 = arith.constant 5 : index
    %1350 = memref.load %arg3[%c5_914] : memref<8xf32, #tpu.memory_space<smem>>
    %1351 = arith.truncf %1350 : f32 to bf16
    %c5_915 = arith.constant 5 : index
    %c0_916 = arith.constant 0 : index
    %1352 = memref.load %arg2[%c5_915, %c0_916] : memref<8x9xf32, #tpu.memory_space<smem>>
    %1353 = arith.truncf %1352 : f32 to bf16
    %c0_917 = arith.constant 0 : index
    %c0_918 = arith.constant 0 : index
    %c0_919 = arith.constant 0 : index
    %1354 = vector.load %arg1[%c0_917, %c0_918, %c0_919] : memref<16x16x128xbf16, #tpu.memory_space<vmem>>, vector<1x16x128xbf16>
    %1355 = vector.shape_cast %1354 : vector<1x16x128xbf16> to vector<16x128xbf16>
    %1356 = vector.broadcast %1353 : bf16 to vector<16x128xbf16>
    %1357 = arith.mulf %1356, %1355 : vector<16x128xbf16>
    %c5_920 = arith.constant 5 : index
    %c1_921 = arith.constant 1 : index
    %1358 = memref.load %arg2[%c5_920, %c1_921] : memref<8x9xf32, #tpu.memory_space<smem>>
    %1359 = arith.truncf %1358 : f32 to bf16
    %c1_922 = arith.constant 1 : index
    %c0_923 = arith.constant 0 : index
    %c0_924 = arith.constant 0 : index
    %1360 = vector.load %arg1[%c1_922, %c0_923, %c0_924] : memref<16x16x128xbf16, #tpu.memory_space<vmem>>, vector<1x16x128xbf16>
    %1361 = vector.shape_cast %1360 : vector<1x16x128xbf16> to vector<16x128xbf16>
    %1362 = vector.broadcast %1359 : bf16 to vector<16x128xbf16>
    %1363 = arith.mulf %1362, %1361 : vector<16x128xbf16>
    %1364 = arith.addf %1357, %1363 : vector<16x128xbf16>
    %c5_925 = arith.constant 5 : index
    %c2_926 = arith.constant 2 : index
    %1365 = memref.load %arg2[%c5_925, %c2_926] : memref<8x9xf32, #tpu.memory_space<smem>>
    %1366 = arith.truncf %1365 : f32 to bf16
    %c2_927 = arith.constant 2 : index
    %c0_928 = arith.constant 0 : index
    %c0_929 = arith.constant 0 : index
    %1367 = vector.load %arg1[%c2_927, %c0_928, %c0_929] : memref<16x16x128xbf16, #tpu.memory_space<vmem>>, vector<1x16x128xbf16>
    %1368 = vector.shape_cast %1367 : vector<1x16x128xbf16> to vector<16x128xbf16>
    %1369 = vector.broadcast %1366 : bf16 to vector<16x128xbf16>
    %1370 = arith.mulf %1369, %1368 : vector<16x128xbf16>
    %1371 = arith.addf %1364, %1370 : vector<16x128xbf16>
    %c5_930 = arith.constant 5 : index
    %c3_931 = arith.constant 3 : index
    %1372 = memref.load %arg2[%c5_930, %c3_931] : memref<8x9xf32, #tpu.memory_space<smem>>
    %1373 = arith.truncf %1372 : f32 to bf16
    %c4_932 = arith.constant 4 : index
    %c0_933 = arith.constant 0 : index
    %c0_934 = arith.constant 0 : index
    %1374 = vector.load %arg1[%c4_932, %c0_933, %c0_934] : memref<16x16x128xbf16, #tpu.memory_space<vmem>>, vector<1x16x128xbf16>
    %1375 = vector.shape_cast %1374 : vector<1x16x128xbf16> to vector<16x128xbf16>
    %1376 = vector.broadcast %1373 : bf16 to vector<16x128xbf16>
    %1377 = arith.mulf %1376, %1375 : vector<16x128xbf16>
    %1378 = arith.addf %1371, %1377 : vector<16x128xbf16>
    %c5_935 = arith.constant 5 : index
    %c4_936 = arith.constant 4 : index
    %1379 = memref.load %arg2[%c5_935, %c4_936] : memref<8x9xf32, #tpu.memory_space<smem>>
    %1380 = arith.truncf %1379 : f32 to bf16
    %c5_937 = arith.constant 5 : index
    %c0_938 = arith.constant 0 : index
    %c0_939 = arith.constant 0 : index
    %1381 = vector.load %arg1[%c5_937, %c0_938, %c0_939] : memref<16x16x128xbf16, #tpu.memory_space<vmem>>, vector<1x16x128xbf16>
    %1382 = vector.shape_cast %1381 : vector<1x16x128xbf16> to vector<16x128xbf16>
    %1383 = vector.broadcast %1380 : bf16 to vector<16x128xbf16>
    %1384 = arith.mulf %1383, %1382 : vector<16x128xbf16>
    %1385 = arith.addf %1378, %1384 : vector<16x128xbf16>
    %c5_940 = arith.constant 5 : index
    %c5_941 = arith.constant 5 : index
    %1386 = memref.load %arg2[%c5_940, %c5_941] : memref<8x9xf32, #tpu.memory_space<smem>>
    %1387 = arith.truncf %1386 : f32 to bf16
    %c6_942 = arith.constant 6 : index
    %c0_943 = arith.constant 0 : index
    %c0_944 = arith.constant 0 : index
    %1388 = vector.load %arg1[%c6_942, %c0_943, %c0_944] : memref<16x16x128xbf16, #tpu.memory_space<vmem>>, vector<1x16x128xbf16>
    %1389 = vector.shape_cast %1388 : vector<1x16x128xbf16> to vector<16x128xbf16>
    %1390 = vector.broadcast %1387 : bf16 to vector<16x128xbf16>
    %1391 = arith.mulf %1390, %1389 : vector<16x128xbf16>
    %1392 = arith.addf %1385, %1391 : vector<16x128xbf16>
    %c5_945 = arith.constant 5 : index
    %c6_946 = arith.constant 6 : index
    %1393 = memref.load %arg2[%c5_945, %c6_946] : memref<8x9xf32, #tpu.memory_space<smem>>
    %1394 = arith.truncf %1393 : f32 to bf16
    %c8_947 = arith.constant 8 : index
    %c0_948 = arith.constant 0 : index
    %c0_949 = arith.constant 0 : index
    %1395 = vector.load %arg1[%c8_947, %c0_948, %c0_949] : memref<16x16x128xbf16, #tpu.memory_space<vmem>>, vector<1x16x128xbf16>
    %1396 = vector.shape_cast %1395 : vector<1x16x128xbf16> to vector<16x128xbf16>
    %1397 = vector.broadcast %1394 : bf16 to vector<16x128xbf16>
    %1398 = arith.mulf %1397, %1396 : vector<16x128xbf16>
    %1399 = arith.addf %1392, %1398 : vector<16x128xbf16>
    %c5_950 = arith.constant 5 : index
    %c7_951 = arith.constant 7 : index
    %1400 = memref.load %arg2[%c5_950, %c7_951] : memref<8x9xf32, #tpu.memory_space<smem>>
    %1401 = arith.truncf %1400 : f32 to bf16
    %c9_952 = arith.constant 9 : index
    %c0_953 = arith.constant 0 : index
    %c0_954 = arith.constant 0 : index
    %1402 = vector.load %arg1[%c9_952, %c0_953, %c0_954] : memref<16x16x128xbf16, #tpu.memory_space<vmem>>, vector<1x16x128xbf16>
    %1403 = vector.shape_cast %1402 : vector<1x16x128xbf16> to vector<16x128xbf16>
    %1404 = vector.broadcast %1401 : bf16 to vector<16x128xbf16>
    %1405 = arith.mulf %1404, %1403 : vector<16x128xbf16>
    %1406 = arith.addf %1399, %1405 : vector<16x128xbf16>
    %c5_955 = arith.constant 5 : index
    %c8_956 = arith.constant 8 : index
    %1407 = memref.load %arg2[%c5_955, %c8_956] : memref<8x9xf32, #tpu.memory_space<smem>>
    %1408 = arith.truncf %1407 : f32 to bf16
    %c10_957 = arith.constant 10 : index
    %c0_958 = arith.constant 0 : index
    %c0_959 = arith.constant 0 : index
    %1409 = vector.load %arg1[%c10_957, %c0_958, %c0_959] : memref<16x16x128xbf16, #tpu.memory_space<vmem>>, vector<1x16x128xbf16>
    %1410 = vector.shape_cast %1409 : vector<1x16x128xbf16> to vector<16x128xbf16>
    %1411 = vector.broadcast %1408 : bf16 to vector<16x128xbf16>
    %1412 = arith.mulf %1411, %1410 : vector<16x128xbf16>
    %1413 = arith.addf %1406, %1412 : vector<16x128xbf16>
    %1414 = vector.broadcast %1351 : bf16 to vector<16x128xbf16>
    %1415 = arith.addf %1413, %1414 : vector<16x128xbf16>
    %cst_960 = arith.constant 0.000000e+00 : bf16
    %1416 = vector.broadcast %cst_960 : bf16 to vector<16x128xbf16>
    %1417 = arith.maximumf %1415, %1416 : vector<16x128xbf16>
    %c5_961 = arith.constant 5 : index
    %c0_962 = arith.constant 0 : index
    %1418 = memref.load %arg2[%c5_961, %c0_962] : memref<8x9xf32, #tpu.memory_space<smem>>
    %1419 = arith.truncf %1418 : f32 to bf16
    %c1_963 = arith.constant 1 : index
    %c0_964 = arith.constant 0 : index
    %c0_965 = arith.constant 0 : index
    %1420 = vector.load %arg1[%c1_963, %c0_964, %c0_965] : memref<16x16x128xbf16, #tpu.memory_space<vmem>>, vector<1x16x128xbf16>
    %1421 = vector.shape_cast %1420 : vector<1x16x128xbf16> to vector<16x128xbf16>
    %1422 = vector.broadcast %1419 : bf16 to vector<16x128xbf16>
    %1423 = arith.mulf %1422, %1421 : vector<16x128xbf16>
    %c5_966 = arith.constant 5 : index
    %c1_967 = arith.constant 1 : index
    %1424 = memref.load %arg2[%c5_966, %c1_967] : memref<8x9xf32, #tpu.memory_space<smem>>
    %1425 = arith.truncf %1424 : f32 to bf16
    %c2_968 = arith.constant 2 : index
    %c0_969 = arith.constant 0 : index
    %c0_970 = arith.constant 0 : index
    %1426 = vector.load %arg1[%c2_968, %c0_969, %c0_970] : memref<16x16x128xbf16, #tpu.memory_space<vmem>>, vector<1x16x128xbf16>
    %1427 = vector.shape_cast %1426 : vector<1x16x128xbf16> to vector<16x128xbf16>
    %1428 = vector.broadcast %1425 : bf16 to vector<16x128xbf16>
    %1429 = arith.mulf %1428, %1427 : vector<16x128xbf16>
    %1430 = arith.addf %1423, %1429 : vector<16x128xbf16>
    %c5_971 = arith.constant 5 : index
    %c2_972 = arith.constant 2 : index
    %1431 = memref.load %arg2[%c5_971, %c2_972] : memref<8x9xf32, #tpu.memory_space<smem>>
    %1432 = arith.truncf %1431 : f32 to bf16
    %c3_973 = arith.constant 3 : index
    %c0_974 = arith.constant 0 : index
    %c0_975 = arith.constant 0 : index
    %1433 = vector.load %arg1[%c3_973, %c0_974, %c0_975] : memref<16x16x128xbf16, #tpu.memory_space<vmem>>, vector<1x16x128xbf16>
    %1434 = vector.shape_cast %1433 : vector<1x16x128xbf16> to vector<16x128xbf16>
    %1435 = vector.broadcast %1432 : bf16 to vector<16x128xbf16>
    %1436 = arith.mulf %1435, %1434 : vector<16x128xbf16>
    %1437 = arith.addf %1430, %1436 : vector<16x128xbf16>
    %c5_976 = arith.constant 5 : index
    %c3_977 = arith.constant 3 : index
    %1438 = memref.load %arg2[%c5_976, %c3_977] : memref<8x9xf32, #tpu.memory_space<smem>>
    %1439 = arith.truncf %1438 : f32 to bf16
    %c5_978 = arith.constant 5 : index
    %c0_979 = arith.constant 0 : index
    %c0_980 = arith.constant 0 : index
    %1440 = vector.load %arg1[%c5_978, %c0_979, %c0_980] : memref<16x16x128xbf16, #tpu.memory_space<vmem>>, vector<1x16x128xbf16>
    %1441 = vector.shape_cast %1440 : vector<1x16x128xbf16> to vector<16x128xbf16>
    %1442 = vector.broadcast %1439 : bf16 to vector<16x128xbf16>
    %1443 = arith.mulf %1442, %1441 : vector<16x128xbf16>
    %1444 = arith.addf %1437, %1443 : vector<16x128xbf16>
    %c5_981 = arith.constant 5 : index
    %c4_982 = arith.constant 4 : index
    %1445 = memref.load %arg2[%c5_981, %c4_982] : memref<8x9xf32, #tpu.memory_space<smem>>
    %1446 = arith.truncf %1445 : f32 to bf16
    %c6_983 = arith.constant 6 : index
    %c0_984 = arith.constant 0 : index
    %c0_985 = arith.constant 0 : index
    %1447 = vector.load %arg1[%c6_983, %c0_984, %c0_985] : memref<16x16x128xbf16, #tpu.memory_space<vmem>>, vector<1x16x128xbf16>
    %1448 = vector.shape_cast %1447 : vector<1x16x128xbf16> to vector<16x128xbf16>
    %1449 = vector.broadcast %1446 : bf16 to vector<16x128xbf16>
    %1450 = arith.mulf %1449, %1448 : vector<16x128xbf16>
    %1451 = arith.addf %1444, %1450 : vector<16x128xbf16>
    %c5_986 = arith.constant 5 : index
    %c5_987 = arith.constant 5 : index
    %1452 = memref.load %arg2[%c5_986, %c5_987] : memref<8x9xf32, #tpu.memory_space<smem>>
    %1453 = arith.truncf %1452 : f32 to bf16
    %c7_988 = arith.constant 7 : index
    %c0_989 = arith.constant 0 : index
    %c0_990 = arith.constant 0 : index
    %1454 = vector.load %arg1[%c7_988, %c0_989, %c0_990] : memref<16x16x128xbf16, #tpu.memory_space<vmem>>, vector<1x16x128xbf16>
    %1455 = vector.shape_cast %1454 : vector<1x16x128xbf16> to vector<16x128xbf16>
    %1456 = vector.broadcast %1453 : bf16 to vector<16x128xbf16>
    %1457 = arith.mulf %1456, %1455 : vector<16x128xbf16>
    %1458 = arith.addf %1451, %1457 : vector<16x128xbf16>
    %c5_991 = arith.constant 5 : index
    %c6_992 = arith.constant 6 : index
    %1459 = memref.load %arg2[%c5_991, %c6_992] : memref<8x9xf32, #tpu.memory_space<smem>>
    %1460 = arith.truncf %1459 : f32 to bf16
    %c9_993 = arith.constant 9 : index
    %c0_994 = arith.constant 0 : index
    %c0_995 = arith.constant 0 : index
    %1461 = vector.load %arg1[%c9_993, %c0_994, %c0_995] : memref<16x16x128xbf16, #tpu.memory_space<vmem>>, vector<1x16x128xbf16>
    %1462 = vector.shape_cast %1461 : vector<1x16x128xbf16> to vector<16x128xbf16>
    %1463 = vector.broadcast %1460 : bf16 to vector<16x128xbf16>
    %1464 = arith.mulf %1463, %1462 : vector<16x128xbf16>
    %1465 = arith.addf %1458, %1464 : vector<16x128xbf16>
    %c5_996 = arith.constant 5 : index
    %c7_997 = arith.constant 7 : index
    %1466 = memref.load %arg2[%c5_996, %c7_997] : memref<8x9xf32, #tpu.memory_space<smem>>
    %1467 = arith.truncf %1466 : f32 to bf16
    %c10_998 = arith.constant 10 : index
    %c0_999 = arith.constant 0 : index
    %c0_1000 = arith.constant 0 : index
    %1468 = vector.load %arg1[%c10_998, %c0_999, %c0_1000] : memref<16x16x128xbf16, #tpu.memory_space<vmem>>, vector<1x16x128xbf16>
    %1469 = vector.shape_cast %1468 : vector<1x16x128xbf16> to vector<16x128xbf16>
    %1470 = vector.broadcast %1467 : bf16 to vector<16x128xbf16>
    %1471 = arith.mulf %1470, %1469 : vector<16x128xbf16>
    %1472 = arith.addf %1465, %1471 : vector<16x128xbf16>
    %c5_1001 = arith.constant 5 : index
    %c8_1002 = arith.constant 8 : index
    %1473 = memref.load %arg2[%c5_1001, %c8_1002] : memref<8x9xf32, #tpu.memory_space<smem>>
    %1474 = arith.truncf %1473 : f32 to bf16
    %c11_1003 = arith.constant 11 : index
    %c0_1004 = arith.constant 0 : index
    %c0_1005 = arith.constant 0 : index
    %1475 = vector.load %arg1[%c11_1003, %c0_1004, %c0_1005] : memref<16x16x128xbf16, #tpu.memory_space<vmem>>, vector<1x16x128xbf16>
    %1476 = vector.shape_cast %1475 : vector<1x16x128xbf16> to vector<16x128xbf16>
    %1477 = vector.broadcast %1474 : bf16 to vector<16x128xbf16>
    %1478 = arith.mulf %1477, %1476 : vector<16x128xbf16>
    %1479 = arith.addf %1472, %1478 : vector<16x128xbf16>
    %1480 = vector.broadcast %1351 : bf16 to vector<16x128xbf16>
    %1481 = arith.addf %1479, %1480 : vector<16x128xbf16>
    %cst_1006 = arith.constant 0.000000e+00 : bf16
    %1482 = vector.broadcast %cst_1006 : bf16 to vector<16x128xbf16>
    %1483 = arith.maximumf %1481, %1482 : vector<16x128xbf16>
    %1484 = arith.maximumf %1417, %1483 : vector<16x128xbf16>
    %c5_1007 = arith.constant 5 : index
    %c0_1008 = arith.constant 0 : index
    %1485 = memref.load %arg2[%c5_1007, %c0_1008] : memref<8x9xf32, #tpu.memory_space<smem>>
    %1486 = arith.truncf %1485 : f32 to bf16
    %c4_1009 = arith.constant 4 : index
    %c0_1010 = arith.constant 0 : index
    %c0_1011 = arith.constant 0 : index
    %1487 = vector.load %arg1[%c4_1009, %c0_1010, %c0_1011] : memref<16x16x128xbf16, #tpu.memory_space<vmem>>, vector<1x16x128xbf16>
    %1488 = vector.shape_cast %1487 : vector<1x16x128xbf16> to vector<16x128xbf16>
    %1489 = vector.broadcast %1486 : bf16 to vector<16x128xbf16>
    %1490 = arith.mulf %1489, %1488 : vector<16x128xbf16>
    %c5_1012 = arith.constant 5 : index
    %c1_1013 = arith.constant 1 : index
    %1491 = memref.load %arg2[%c5_1012, %c1_1013] : memref<8x9xf32, #tpu.memory_space<smem>>
    %1492 = arith.truncf %1491 : f32 to bf16
    %c5_1014 = arith.constant 5 : index
    %c0_1015 = arith.constant 0 : index
    %c0_1016 = arith.constant 0 : index
    %1493 = vector.load %arg1[%c5_1014, %c0_1015, %c0_1016] : memref<16x16x128xbf16, #tpu.memory_space<vmem>>, vector<1x16x128xbf16>
    %1494 = vector.shape_cast %1493 : vector<1x16x128xbf16> to vector<16x128xbf16>
    %1495 = vector.broadcast %1492 : bf16 to vector<16x128xbf16>
    %1496 = arith.mulf %1495, %1494 : vector<16x128xbf16>
    %1497 = arith.addf %1490, %1496 : vector<16x128xbf16>
    %c5_1017 = arith.constant 5 : index
    %c2_1018 = arith.constant 2 : index
    %1498 = memref.load %arg2[%c5_1017, %c2_1018] : memref<8x9xf32, #tpu.memory_space<smem>>
    %1499 = arith.truncf %1498 : f32 to bf16
    %c6_1019 = arith.constant 6 : index
    %c0_1020 = arith.constant 0 : index
    %c0_1021 = arith.constant 0 : index
    %1500 = vector.load %arg1[%c6_1019, %c0_1020, %c0_1021] : memref<16x16x128xbf16, #tpu.memory_space<vmem>>, vector<1x16x128xbf16>
    %1501 = vector.shape_cast %1500 : vector<1x16x128xbf16> to vector<16x128xbf16>
    %1502 = vector.broadcast %1499 : bf16 to vector<16x128xbf16>
    %1503 = arith.mulf %1502, %1501 : vector<16x128xbf16>
    %1504 = arith.addf %1497, %1503 : vector<16x128xbf16>
    %c5_1022 = arith.constant 5 : index
    %c3_1023 = arith.constant 3 : index
    %1505 = memref.load %arg2[%c5_1022, %c3_1023] : memref<8x9xf32, #tpu.memory_space<smem>>
    %1506 = arith.truncf %1505 : f32 to bf16
    %c8_1024 = arith.constant 8 : index
    %c0_1025 = arith.constant 0 : index
    %c0_1026 = arith.constant 0 : index
    %1507 = vector.load %arg1[%c8_1024, %c0_1025, %c0_1026] : memref<16x16x128xbf16, #tpu.memory_space<vmem>>, vector<1x16x128xbf16>
    %1508 = vector.shape_cast %1507 : vector<1x16x128xbf16> to vector<16x128xbf16>
    %1509 = vector.broadcast %1506 : bf16 to vector<16x128xbf16>
    %1510 = arith.mulf %1509, %1508 : vector<16x128xbf16>
    %1511 = arith.addf %1504, %1510 : vector<16x128xbf16>
    %c5_1027 = arith.constant 5 : index
    %c4_1028 = arith.constant 4 : index
    %1512 = memref.load %arg2[%c5_1027, %c4_1028] : memref<8x9xf32, #tpu.memory_space<smem>>
    %1513 = arith.truncf %1512 : f32 to bf16
    %c9_1029 = arith.constant 9 : index
    %c0_1030 = arith.constant 0 : index
    %c0_1031 = arith.constant 0 : index
    %1514 = vector.load %arg1[%c9_1029, %c0_1030, %c0_1031] : memref<16x16x128xbf16, #tpu.memory_space<vmem>>, vector<1x16x128xbf16>
    %1515 = vector.shape_cast %1514 : vector<1x16x128xbf16> to vector<16x128xbf16>
    %1516 = vector.broadcast %1513 : bf16 to vector<16x128xbf16>
    %1517 = arith.mulf %1516, %1515 : vector<16x128xbf16>
    %1518 = arith.addf %1511, %1517 : vector<16x128xbf16>
    %c5_1032 = arith.constant 5 : index
    %c5_1033 = arith.constant 5 : index
    %1519 = memref.load %arg2[%c5_1032, %c5_1033] : memref<8x9xf32, #tpu.memory_space<smem>>
    %1520 = arith.truncf %1519 : f32 to bf16
    %c10_1034 = arith.constant 10 : index
    %c0_1035 = arith.constant 0 : index
    %c0_1036 = arith.constant 0 : index
    %1521 = vector.load %arg1[%c10_1034, %c0_1035, %c0_1036] : memref<16x16x128xbf16, #tpu.memory_space<vmem>>, vector<1x16x128xbf16>
    %1522 = vector.shape_cast %1521 : vector<1x16x128xbf16> to vector<16x128xbf16>
    %1523 = vector.broadcast %1520 : bf16 to vector<16x128xbf16>
    %1524 = arith.mulf %1523, %1522 : vector<16x128xbf16>
    %1525 = arith.addf %1518, %1524 : vector<16x128xbf16>
    %c5_1037 = arith.constant 5 : index
    %c6_1038 = arith.constant 6 : index
    %1526 = memref.load %arg2[%c5_1037, %c6_1038] : memref<8x9xf32, #tpu.memory_space<smem>>
    %1527 = arith.truncf %1526 : f32 to bf16
    %c12_1039 = arith.constant 12 : index
    %c0_1040 = arith.constant 0 : index
    %c0_1041 = arith.constant 0 : index
    %1528 = vector.load %arg1[%c12_1039, %c0_1040, %c0_1041] : memref<16x16x128xbf16, #tpu.memory_space<vmem>>, vector<1x16x128xbf16>
    %1529 = vector.shape_cast %1528 : vector<1x16x128xbf16> to vector<16x128xbf16>
    %1530 = vector.broadcast %1527 : bf16 to vector<16x128xbf16>
    %1531 = arith.mulf %1530, %1529 : vector<16x128xbf16>
    %1532 = arith.addf %1525, %1531 : vector<16x128xbf16>
    %c5_1042 = arith.constant 5 : index
    %c7_1043 = arith.constant 7 : index
    %1533 = memref.load %arg2[%c5_1042, %c7_1043] : memref<8x9xf32, #tpu.memory_space<smem>>
    %1534 = arith.truncf %1533 : f32 to bf16
    %c13_1044 = arith.constant 13 : index
    %c0_1045 = arith.constant 0 : index
    %c0_1046 = arith.constant 0 : index
    %1535 = vector.load %arg1[%c13_1044, %c0_1045, %c0_1046] : memref<16x16x128xbf16, #tpu.memory_space<vmem>>, vector<1x16x128xbf16>
    %1536 = vector.shape_cast %1535 : vector<1x16x128xbf16> to vector<16x128xbf16>
    %1537 = vector.broadcast %1534 : bf16 to vector<16x128xbf16>
    %1538 = arith.mulf %1537, %1536 : vector<16x128xbf16>
    %1539 = arith.addf %1532, %1538 : vector<16x128xbf16>
    %c5_1047 = arith.constant 5 : index
    %c8_1048 = arith.constant 8 : index
    %1540 = memref.load %arg2[%c5_1047, %c8_1048] : memref<8x9xf32, #tpu.memory_space<smem>>
    %1541 = arith.truncf %1540 : f32 to bf16
    %c14_1049 = arith.constant 14 : index
    %c0_1050 = arith.constant 0 : index
    %c0_1051 = arith.constant 0 : index
    %1542 = vector.load %arg1[%c14_1049, %c0_1050, %c0_1051] : memref<16x16x128xbf16, #tpu.memory_space<vmem>>, vector<1x16x128xbf16>
    %1543 = vector.shape_cast %1542 : vector<1x16x128xbf16> to vector<16x128xbf16>
    %1544 = vector.broadcast %1541 : bf16 to vector<16x128xbf16>
    %1545 = arith.mulf %1544, %1543 : vector<16x128xbf16>
    %1546 = arith.addf %1539, %1545 : vector<16x128xbf16>
    %1547 = vector.broadcast %1351 : bf16 to vector<16x128xbf16>
    %1548 = arith.addf %1546, %1547 : vector<16x128xbf16>
    %cst_1052 = arith.constant 0.000000e+00 : bf16
    %1549 = vector.broadcast %cst_1052 : bf16 to vector<16x128xbf16>
    %1550 = arith.maximumf %1548, %1549 : vector<16x128xbf16>
    %1551 = arith.maximumf %1484, %1550 : vector<16x128xbf16>
    %c5_1053 = arith.constant 5 : index
    %c0_1054 = arith.constant 0 : index
    %1552 = memref.load %arg2[%c5_1053, %c0_1054] : memref<8x9xf32, #tpu.memory_space<smem>>
    %1553 = arith.truncf %1552 : f32 to bf16
    %c5_1055 = arith.constant 5 : index
    %c0_1056 = arith.constant 0 : index
    %c0_1057 = arith.constant 0 : index
    %1554 = vector.load %arg1[%c5_1055, %c0_1056, %c0_1057] : memref<16x16x128xbf16, #tpu.memory_space<vmem>>, vector<1x16x128xbf16>
    %1555 = vector.shape_cast %1554 : vector<1x16x128xbf16> to vector<16x128xbf16>
    %1556 = vector.broadcast %1553 : bf16 to vector<16x128xbf16>
    %1557 = arith.mulf %1556, %1555 : vector<16x128xbf16>
    %c5_1058 = arith.constant 5 : index
    %c1_1059 = arith.constant 1 : index
    %1558 = memref.load %arg2[%c5_1058, %c1_1059] : memref<8x9xf32, #tpu.memory_space<smem>>
    %1559 = arith.truncf %1558 : f32 to bf16
    %c6_1060 = arith.constant 6 : index
    %c0_1061 = arith.constant 0 : index
    %c0_1062 = arith.constant 0 : index
    %1560 = vector.load %arg1[%c6_1060, %c0_1061, %c0_1062] : memref<16x16x128xbf16, #tpu.memory_space<vmem>>, vector<1x16x128xbf16>
    %1561 = vector.shape_cast %1560 : vector<1x16x128xbf16> to vector<16x128xbf16>
    %1562 = vector.broadcast %1559 : bf16 to vector<16x128xbf16>
    %1563 = arith.mulf %1562, %1561 : vector<16x128xbf16>
    %1564 = arith.addf %1557, %1563 : vector<16x128xbf16>
    %c5_1063 = arith.constant 5 : index
    %c2_1064 = arith.constant 2 : index
    %1565 = memref.load %arg2[%c5_1063, %c2_1064] : memref<8x9xf32, #tpu.memory_space<smem>>
    %1566 = arith.truncf %1565 : f32 to bf16
    %c7_1065 = arith.constant 7 : index
    %c0_1066 = arith.constant 0 : index
    %c0_1067 = arith.constant 0 : index
    %1567 = vector.load %arg1[%c7_1065, %c0_1066, %c0_1067] : memref<16x16x128xbf16, #tpu.memory_space<vmem>>, vector<1x16x128xbf16>
    %1568 = vector.shape_cast %1567 : vector<1x16x128xbf16> to vector<16x128xbf16>
    %1569 = vector.broadcast %1566 : bf16 to vector<16x128xbf16>
    %1570 = arith.mulf %1569, %1568 : vector<16x128xbf16>
    %1571 = arith.addf %1564, %1570 : vector<16x128xbf16>
    %c5_1068 = arith.constant 5 : index
    %c3_1069 = arith.constant 3 : index
    %1572 = memref.load %arg2[%c5_1068, %c3_1069] : memref<8x9xf32, #tpu.memory_space<smem>>
    %1573 = arith.truncf %1572 : f32 to bf16
    %c9_1070 = arith.constant 9 : index
    %c0_1071 = arith.constant 0 : index
    %c0_1072 = arith.constant 0 : index
    %1574 = vector.load %arg1[%c9_1070, %c0_1071, %c0_1072] : memref<16x16x128xbf16, #tpu.memory_space<vmem>>, vector<1x16x128xbf16>
    %1575 = vector.shape_cast %1574 : vector<1x16x128xbf16> to vector<16x128xbf16>
    %1576 = vector.broadcast %1573 : bf16 to vector<16x128xbf16>
    %1577 = arith.mulf %1576, %1575 : vector<16x128xbf16>
    %1578 = arith.addf %1571, %1577 : vector<16x128xbf16>
    %c5_1073 = arith.constant 5 : index
    %c4_1074 = arith.constant 4 : index
    %1579 = memref.load %arg2[%c5_1073, %c4_1074] : memref<8x9xf32, #tpu.memory_space<smem>>
    %1580 = arith.truncf %1579 : f32 to bf16
    %c10_1075 = arith.constant 10 : index
    %c0_1076 = arith.constant 0 : index
    %c0_1077 = arith.constant 0 : index
    %1581 = vector.load %arg1[%c10_1075, %c0_1076, %c0_1077] : memref<16x16x128xbf16, #tpu.memory_space<vmem>>, vector<1x16x128xbf16>
    %1582 = vector.shape_cast %1581 : vector<1x16x128xbf16> to vector<16x128xbf16>
    %1583 = vector.broadcast %1580 : bf16 to vector<16x128xbf16>
    %1584 = arith.mulf %1583, %1582 : vector<16x128xbf16>
    %1585 = arith.addf %1578, %1584 : vector<16x128xbf16>
    %c5_1078 = arith.constant 5 : index
    %c5_1079 = arith.constant 5 : index
    %1586 = memref.load %arg2[%c5_1078, %c5_1079] : memref<8x9xf32, #tpu.memory_space<smem>>
    %1587 = arith.truncf %1586 : f32 to bf16
    %c11_1080 = arith.constant 11 : index
    %c0_1081 = arith.constant 0 : index
    %c0_1082 = arith.constant 0 : index
    %1588 = vector.load %arg1[%c11_1080, %c0_1081, %c0_1082] : memref<16x16x128xbf16, #tpu.memory_space<vmem>>, vector<1x16x128xbf16>
    %1589 = vector.shape_cast %1588 : vector<1x16x128xbf16> to vector<16x128xbf16>
    %1590 = vector.broadcast %1587 : bf16 to vector<16x128xbf16>
    %1591 = arith.mulf %1590, %1589 : vector<16x128xbf16>
    %1592 = arith.addf %1585, %1591 : vector<16x128xbf16>
    %c5_1083 = arith.constant 5 : index
    %c6_1084 = arith.constant 6 : index
    %1593 = memref.load %arg2[%c5_1083, %c6_1084] : memref<8x9xf32, #tpu.memory_space<smem>>
    %1594 = arith.truncf %1593 : f32 to bf16
    %c13_1085 = arith.constant 13 : index
    %c0_1086 = arith.constant 0 : index
    %c0_1087 = arith.constant 0 : index
    %1595 = vector.load %arg1[%c13_1085, %c0_1086, %c0_1087] : memref<16x16x128xbf16, #tpu.memory_space<vmem>>, vector<1x16x128xbf16>
    %1596 = vector.shape_cast %1595 : vector<1x16x128xbf16> to vector<16x128xbf16>
    %1597 = vector.broadcast %1594 : bf16 to vector<16x128xbf16>
    %1598 = arith.mulf %1597, %1596 : vector<16x128xbf16>
    %1599 = arith.addf %1592, %1598 : vector<16x128xbf16>
    %c5_1088 = arith.constant 5 : index
    %c7_1089 = arith.constant 7 : index
    %1600 = memref.load %arg2[%c5_1088, %c7_1089] : memref<8x9xf32, #tpu.memory_space<smem>>
    %1601 = arith.truncf %1600 : f32 to bf16
    %c14_1090 = arith.constant 14 : index
    %c0_1091 = arith.constant 0 : index
    %c0_1092 = arith.constant 0 : index
    %1602 = vector.load %arg1[%c14_1090, %c0_1091, %c0_1092] : memref<16x16x128xbf16, #tpu.memory_space<vmem>>, vector<1x16x128xbf16>
    %1603 = vector.shape_cast %1602 : vector<1x16x128xbf16> to vector<16x128xbf16>
    %1604 = vector.broadcast %1601 : bf16 to vector<16x128xbf16>
    %1605 = arith.mulf %1604, %1603 : vector<16x128xbf16>
    %1606 = arith.addf %1599, %1605 : vector<16x128xbf16>
    %c5_1093 = arith.constant 5 : index
    %c8_1094 = arith.constant 8 : index
    %1607 = memref.load %arg2[%c5_1093, %c8_1094] : memref<8x9xf32, #tpu.memory_space<smem>>
    %1608 = arith.truncf %1607 : f32 to bf16
    %c15_1095 = arith.constant 15 : index
    %c0_1096 = arith.constant 0 : index
    %c0_1097 = arith.constant 0 : index
    %1609 = vector.load %arg1[%c15_1095, %c0_1096, %c0_1097] : memref<16x16x128xbf16, #tpu.memory_space<vmem>>, vector<1x16x128xbf16>
    %1610 = vector.shape_cast %1609 : vector<1x16x128xbf16> to vector<16x128xbf16>
    %1611 = vector.broadcast %1608 : bf16 to vector<16x128xbf16>
    %1612 = arith.mulf %1611, %1610 : vector<16x128xbf16>
    %1613 = arith.addf %1606, %1612 : vector<16x128xbf16>
    %1614 = vector.broadcast %1351 : bf16 to vector<16x128xbf16>
    %1615 = arith.addf %1613, %1614 : vector<16x128xbf16>
    %cst_1098 = arith.constant 0.000000e+00 : bf16
    %1616 = vector.broadcast %cst_1098 : bf16 to vector<16x128xbf16>
    %1617 = arith.maximumf %1615, %1616 : vector<16x128xbf16>
    %1618 = arith.maximumf %1551, %1617 : vector<16x128xbf16>
    %c0_1099 = arith.constant 0 : index
    %c640 = arith.constant 640 : index
    %1619 = vector.load %arg9[%c0_1099, %c640] : memref<16x1024xbf16, #tpu.memory_space<vmem>>, vector<16x128xbf16>
    tpu.vector_store %arg9[%c0_1099, %c640], %1618 {strides = array<i32>} : memref<16x1024xbf16, #tpu.memory_space<vmem>>, vector<16x128xbf16>,
    %c6_1100 = arith.constant 6 : index
    %1620 = memref.load %arg3[%c6_1100] : memref<8xf32, #tpu.memory_space<smem>>
    %1621 = arith.truncf %1620 : f32 to bf16
    %c6_1101 = arith.constant 6 : index
    %c0_1102 = arith.constant 0 : index
    %1622 = memref.load %arg2[%c6_1101, %c0_1102] : memref<8x9xf32, #tpu.memory_space<smem>>
    %1623 = arith.truncf %1622 : f32 to bf16
    %c0_1103 = arith.constant 0 : index
    %c0_1104 = arith.constant 0 : index
    %c0_1105 = arith.constant 0 : index
    %1624 = vector.load %arg1[%c0_1103, %c0_1104, %c0_1105] : memref<16x16x128xbf16, #tpu.memory_space<vmem>>, vector<1x16x128xbf16>
    %1625 = vector.shape_cast %1624 : vector<1x16x128xbf16> to vector<16x128xbf16>
    %1626 = vector.broadcast %1623 : bf16 to vector<16x128xbf16>
    %1627 = arith.mulf %1626, %1625 : vector<16x128xbf16>
    %c6_1106 = arith.constant 6 : index
    %c1_1107 = arith.constant 1 : index
    %1628 = memref.load %arg2[%c6_1106, %c1_1107] : memref<8x9xf32, #tpu.memory_space<smem>>
    %1629 = arith.truncf %1628 : f32 to bf16
    %c1_1108 = arith.constant 1 : index
    %c0_1109 = arith.constant 0 : index
    %c0_1110 = arith.constant 0 : index
    %1630 = vector.load %arg1[%c1_1108, %c0_1109, %c0_1110] : memref<16x16x128xbf16, #tpu.memory_space<vmem>>, vector<1x16x128xbf16>
    %1631 = vector.shape_cast %1630 : vector<1x16x128xbf16> to vector<16x128xbf16>
    %1632 = vector.broadcast %1629 : bf16 to vector<16x128xbf16>
    %1633 = arith.mulf %1632, %1631 : vector<16x128xbf16>
    %1634 = arith.addf %1627, %1633 : vector<16x128xbf16>
    %c6_1111 = arith.constant 6 : index
    %c2_1112 = arith.constant 2 : index
    %1635 = memref.load %arg2[%c6_1111, %c2_1112] : memref<8x9xf32, #tpu.memory_space<smem>>
    %1636 = arith.truncf %1635 : f32 to bf16
    %c2_1113 = arith.constant 2 : index
    %c0_1114 = arith.constant 0 : index
    %c0_1115 = arith.constant 0 : index
    %1637 = vector.load %arg1[%c2_1113, %c0_1114, %c0_1115] : memref<16x16x128xbf16, #tpu.memory_space<vmem>>, vector<1x16x128xbf16>
    %1638 = vector.shape_cast %1637 : vector<1x16x128xbf16> to vector<16x128xbf16>
    %1639 = vector.broadcast %1636 : bf16 to vector<16x128xbf16>
    %1640 = arith.mulf %1639, %1638 : vector<16x128xbf16>
    %1641 = arith.addf %1634, %1640 : vector<16x128xbf16>
    %c6_1116 = arith.constant 6 : index
    %c3_1117 = arith.constant 3 : index
    %1642 = memref.load %arg2[%c6_1116, %c3_1117] : memref<8x9xf32, #tpu.memory_space<smem>>
    %1643 = arith.truncf %1642 : f32 to bf16
    %c4_1118 = arith.constant 4 : index
    %c0_1119 = arith.constant 0 : index
    %c0_1120 = arith.constant 0 : index
    %1644 = vector.load %arg1[%c4_1118, %c0_1119, %c0_1120] : memref<16x16x128xbf16, #tpu.memory_space<vmem>>, vector<1x16x128xbf16>
    %1645 = vector.shape_cast %1644 : vector<1x16x128xbf16> to vector<16x128xbf16>
    %1646 = vector.broadcast %1643 : bf16 to vector<16x128xbf16>
    %1647 = arith.mulf %1646, %1645 : vector<16x128xbf16>
    %1648 = arith.addf %1641, %1647 : vector<16x128xbf16>
    %c6_1121 = arith.constant 6 : index
    %c4_1122 = arith.constant 4 : index
    %1649 = memref.load %arg2[%c6_1121, %c4_1122] : memref<8x9xf32, #tpu.memory_space<smem>>
    %1650 = arith.truncf %1649 : f32 to bf16
    %c5_1123 = arith.constant 5 : index
    %c0_1124 = arith.constant 0 : index
    %c0_1125 = arith.constant 0 : index
    %1651 = vector.load %arg1[%c5_1123, %c0_1124, %c0_1125] : memref<16x16x128xbf16, #tpu.memory_space<vmem>>, vector<1x16x128xbf16>
    %1652 = vector.shape_cast %1651 : vector<1x16x128xbf16> to vector<16x128xbf16>
    %1653 = vector.broadcast %1650 : bf16 to vector<16x128xbf16>
    %1654 = arith.mulf %1653, %1652 : vector<16x128xbf16>
    %1655 = arith.addf %1648, %1654 : vector<16x128xbf16>
    %c6_1126 = arith.constant 6 : index
    %c5_1127 = arith.constant 5 : index
    %1656 = memref.load %arg2[%c6_1126, %c5_1127] : memref<8x9xf32, #tpu.memory_space<smem>>
    %1657 = arith.truncf %1656 : f32 to bf16
    %c6_1128 = arith.constant 6 : index
    %c0_1129 = arith.constant 0 : index
    %c0_1130 = arith.constant 0 : index
    %1658 = vector.load %arg1[%c6_1128, %c0_1129, %c0_1130] : memref<16x16x128xbf16, #tpu.memory_space<vmem>>, vector<1x16x128xbf16>
    %1659 = vector.shape_cast %1658 : vector<1x16x128xbf16> to vector<16x128xbf16>
    %1660 = vector.broadcast %1657 : bf16 to vector<16x128xbf16>
    %1661 = arith.mulf %1660, %1659 : vector<16x128xbf16>
    %1662 = arith.addf %1655, %1661 : vector<16x128xbf16>
    %c6_1131 = arith.constant 6 : index
    %c6_1132 = arith.constant 6 : index
    %1663 = memref.load %arg2[%c6_1131, %c6_1132] : memref<8x9xf32, #tpu.memory_space<smem>>
    %1664 = arith.truncf %1663 : f32 to bf16
    %c8_1133 = arith.constant 8 : index
    %c0_1134 = arith.constant 0 : index
    %c0_1135 = arith.constant 0 : index
    %1665 = vector.load %arg1[%c8_1133, %c0_1134, %c0_1135] : memref<16x16x128xbf16, #tpu.memory_space<vmem>>, vector<1x16x128xbf16>
    %1666 = vector.shape_cast %1665 : vector<1x16x128xbf16> to vector<16x128xbf16>
    %1667 = vector.broadcast %1664 : bf16 to vector<16x128xbf16>
    %1668 = arith.mulf %1667, %1666 : vector<16x128xbf16>
    %1669 = arith.addf %1662, %1668 : vector<16x128xbf16>
    %c6_1136 = arith.constant 6 : index
    %c7_1137 = arith.constant 7 : index
    %1670 = memref.load %arg2[%c6_1136, %c7_1137] : memref<8x9xf32, #tpu.memory_space<smem>>
    %1671 = arith.truncf %1670 : f32 to bf16
    %c9_1138 = arith.constant 9 : index
    %c0_1139 = arith.constant 0 : index
    %c0_1140 = arith.constant 0 : index
    %1672 = vector.load %arg1[%c9_1138, %c0_1139, %c0_1140] : memref<16x16x128xbf16, #tpu.memory_space<vmem>>, vector<1x16x128xbf16>
    %1673 = vector.shape_cast %1672 : vector<1x16x128xbf16> to vector<16x128xbf16>
    %1674 = vector.broadcast %1671 : bf16 to vector<16x128xbf16>
    %1675 = arith.mulf %1674, %1673 : vector<16x128xbf16>
    %1676 = arith.addf %1669, %1675 : vector<16x128xbf16>
    %c6_1141 = arith.constant 6 : index
    %c8_1142 = arith.constant 8 : index
    %1677 = memref.load %arg2[%c6_1141, %c8_1142] : memref<8x9xf32, #tpu.memory_space<smem>>
    %1678 = arith.truncf %1677 : f32 to bf16
    %c10_1143 = arith.constant 10 : index
    %c0_1144 = arith.constant 0 : index
    %c0_1145 = arith.constant 0 : index
    %1679 = vector.load %arg1[%c10_1143, %c0_1144, %c0_1145] : memref<16x16x128xbf16, #tpu.memory_space<vmem>>, vector<1x16x128xbf16>
    %1680 = vector.shape_cast %1679 : vector<1x16x128xbf16> to vector<16x128xbf16>
    %1681 = vector.broadcast %1678 : bf16 to vector<16x128xbf16>
    %1682 = arith.mulf %1681, %1680 : vector<16x128xbf16>
    %1683 = arith.addf %1676, %1682 : vector<16x128xbf16>
    %1684 = vector.broadcast %1621 : bf16 to vector<16x128xbf16>
    %1685 = arith.addf %1683, %1684 : vector<16x128xbf16>
    %cst_1146 = arith.constant 0.000000e+00 : bf16
    %1686 = vector.broadcast %cst_1146 : bf16 to vector<16x128xbf16>
    %1687 = arith.maximumf %1685, %1686 : vector<16x128xbf16>
    %c6_1147 = arith.constant 6 : index
    %c0_1148 = arith.constant 0 : index
    %1688 = memref.load %arg2[%c6_1147, %c0_1148] : memref<8x9xf32, #tpu.memory_space<smem>>
    %1689 = arith.truncf %1688 : f32 to bf16
    %c1_1149 = arith.constant 1 : index
    %c0_1150 = arith.constant 0 : index
    %c0_1151 = arith.constant 0 : index
    %1690 = vector.load %arg1[%c1_1149, %c0_1150, %c0_1151] : memref<16x16x128xbf16, #tpu.memory_space<vmem>>, vector<1x16x128xbf16>
    %1691 = vector.shape_cast %1690 : vector<1x16x128xbf16> to vector<16x128xbf16>
    %1692 = vector.broadcast %1689 : bf16 to vector<16x128xbf16>
    %1693 = arith.mulf %1692, %1691 : vector<16x128xbf16>
    %c6_1152 = arith.constant 6 : index
    %c1_1153 = arith.constant 1 : index
    %1694 = memref.load %arg2[%c6_1152, %c1_1153] : memref<8x9xf32, #tpu.memory_space<smem>>
    %1695 = arith.truncf %1694 : f32 to bf16
    %c2_1154 = arith.constant 2 : index
    %c0_1155 = arith.constant 0 : index
    %c0_1156 = arith.constant 0 : index
    %1696 = vector.load %arg1[%c2_1154, %c0_1155, %c0_1156] : memref<16x16x128xbf16, #tpu.memory_space<vmem>>, vector<1x16x128xbf16>
    %1697 = vector.shape_cast %1696 : vector<1x16x128xbf16> to vector<16x128xbf16>
    %1698 = vector.broadcast %1695 : bf16 to vector<16x128xbf16>
    %1699 = arith.mulf %1698, %1697 : vector<16x128xbf16>
    %1700 = arith.addf %1693, %1699 : vector<16x128xbf16>
    %c6_1157 = arith.constant 6 : index
    %c2_1158 = arith.constant 2 : index
    %1701 = memref.load %arg2[%c6_1157, %c2_1158] : memref<8x9xf32, #tpu.memory_space<smem>>
    %1702 = arith.truncf %1701 : f32 to bf16
    %c3_1159 = arith.constant 3 : index
    %c0_1160 = arith.constant 0 : index
    %c0_1161 = arith.constant 0 : index
    %1703 = vector.load %arg1[%c3_1159, %c0_1160, %c0_1161] : memref<16x16x128xbf16, #tpu.memory_space<vmem>>, vector<1x16x128xbf16>
    %1704 = vector.shape_cast %1703 : vector<1x16x128xbf16> to vector<16x128xbf16>
    %1705 = vector.broadcast %1702 : bf16 to vector<16x128xbf16>
    %1706 = arith.mulf %1705, %1704 : vector<16x128xbf16>
    %1707 = arith.addf %1700, %1706 : vector<16x128xbf16>
    %c6_1162 = arith.constant 6 : index
    %c3_1163 = arith.constant 3 : index
    %1708 = memref.load %arg2[%c6_1162, %c3_1163] : memref<8x9xf32, #tpu.memory_space<smem>>
    %1709 = arith.truncf %1708 : f32 to bf16
    %c5_1164 = arith.constant 5 : index
    %c0_1165 = arith.constant 0 : index
    %c0_1166 = arith.constant 0 : index
    %1710 = vector.load %arg1[%c5_1164, %c0_1165, %c0_1166] : memref<16x16x128xbf16, #tpu.memory_space<vmem>>, vector<1x16x128xbf16>
    %1711 = vector.shape_cast %1710 : vector<1x16x128xbf16> to vector<16x128xbf16>
    %1712 = vector.broadcast %1709 : bf16 to vector<16x128xbf16>
    %1713 = arith.mulf %1712, %1711 : vector<16x128xbf16>
    %1714 = arith.addf %1707, %1713 : vector<16x128xbf16>
    %c6_1167 = arith.constant 6 : index
    %c4_1168 = arith.constant 4 : index
    %1715 = memref.load %arg2[%c6_1167, %c4_1168] : memref<8x9xf32, #tpu.memory_space<smem>>
    %1716 = arith.truncf %1715 : f32 to bf16
    %c6_1169 = arith.constant 6 : index
    %c0_1170 = arith.constant 0 : index
    %c0_1171 = arith.constant 0 : index
    %1717 = vector.load %arg1[%c6_1169, %c0_1170, %c0_1171] : memref<16x16x128xbf16, #tpu.memory_space<vmem>>, vector<1x16x128xbf16>
    %1718 = vector.shape_cast %1717 : vector<1x16x128xbf16> to vector<16x128xbf16>
    %1719 = vector.broadcast %1716 : bf16 to vector<16x128xbf16>
    %1720 = arith.mulf %1719, %1718 : vector<16x128xbf16>
    %1721 = arith.addf %1714, %1720 : vector<16x128xbf16>
    %c6_1172 = arith.constant 6 : index
    %c5_1173 = arith.constant 5 : index
    %1722 = memref.load %arg2[%c6_1172, %c5_1173] : memref<8x9xf32, #tpu.memory_space<smem>>
    %1723 = arith.truncf %1722 : f32 to bf16
    %c7_1174 = arith.constant 7 : index
    %c0_1175 = arith.constant 0 : index
    %c0_1176 = arith.constant 0 : index
    %1724 = vector.load %arg1[%c7_1174, %c0_1175, %c0_1176] : memref<16x16x128xbf16, #tpu.memory_space<vmem>>, vector<1x16x128xbf16>
    %1725 = vector.shape_cast %1724 : vector<1x16x128xbf16> to vector<16x128xbf16>
    %1726 = vector.broadcast %1723 : bf16 to vector<16x128xbf16>
    %1727 = arith.mulf %1726, %1725 : vector<16x128xbf16>
    %1728 = arith.addf %1721, %1727 : vector<16x128xbf16>
    %c6_1177 = arith.constant 6 : index
    %c6_1178 = arith.constant 6 : index
    %1729 = memref.load %arg2[%c6_1177, %c6_1178] : memref<8x9xf32, #tpu.memory_space<smem>>
    %1730 = arith.truncf %1729 : f32 to bf16
    %c9_1179 = arith.constant 9 : index
    %c0_1180 = arith.constant 0 : index
    %c0_1181 = arith.constant 0 : index
    %1731 = vector.load %arg1[%c9_1179, %c0_1180, %c0_1181] : memref<16x16x128xbf16, #tpu.memory_space<vmem>>, vector<1x16x128xbf16>
    %1732 = vector.shape_cast %1731 : vector<1x16x128xbf16> to vector<16x128xbf16>
    %1733 = vector.broadcast %1730 : bf16 to vector<16x128xbf16>
    %1734 = arith.mulf %1733, %1732 : vector<16x128xbf16>
    %1735 = arith.addf %1728, %1734 : vector<16x128xbf16>
    %c6_1182 = arith.constant 6 : index
    %c7_1183 = arith.constant 7 : index
    %1736 = memref.load %arg2[%c6_1182, %c7_1183] : memref<8x9xf32, #tpu.memory_space<smem>>
    %1737 = arith.truncf %1736 : f32 to bf16
    %c10_1184 = arith.constant 10 : index
    %c0_1185 = arith.constant 0 : index
    %c0_1186 = arith.constant 0 : index
    %1738 = vector.load %arg1[%c10_1184, %c0_1185, %c0_1186] : memref<16x16x128xbf16, #tpu.memory_space<vmem>>, vector<1x16x128xbf16>
    %1739 = vector.shape_cast %1738 : vector<1x16x128xbf16> to vector<16x128xbf16>
    %1740 = vector.broadcast %1737 : bf16 to vector<16x128xbf16>
    %1741 = arith.mulf %1740, %1739 : vector<16x128xbf16>
    %1742 = arith.addf %1735, %1741 : vector<16x128xbf16>
    %c6_1187 = arith.constant 6 : index
    %c8_1188 = arith.constant 8 : index
    %1743 = memref.load %arg2[%c6_1187, %c8_1188] : memref<8x9xf32, #tpu.memory_space<smem>>
    %1744 = arith.truncf %1743 : f32 to bf16
    %c11_1189 = arith.constant 11 : index
    %c0_1190 = arith.constant 0 : index
    %c0_1191 = arith.constant 0 : index
    %1745 = vector.load %arg1[%c11_1189, %c0_1190, %c0_1191] : memref<16x16x128xbf16, #tpu.memory_space<vmem>>, vector<1x16x128xbf16>
    %1746 = vector.shape_cast %1745 : vector<1x16x128xbf16> to vector<16x128xbf16>
    %1747 = vector.broadcast %1744 : bf16 to vector<16x128xbf16>
    %1748 = arith.mulf %1747, %1746 : vector<16x128xbf16>
    %1749 = arith.addf %1742, %1748 : vector<16x128xbf16>
    %1750 = vector.broadcast %1621 : bf16 to vector<16x128xbf16>
    %1751 = arith.addf %1749, %1750 : vector<16x128xbf16>
    %cst_1192 = arith.constant 0.000000e+00 : bf16
    %1752 = vector.broadcast %cst_1192 : bf16 to vector<16x128xbf16>
    %1753 = arith.maximumf %1751, %1752 : vector<16x128xbf16>
    %1754 = arith.maximumf %1687, %1753 : vector<16x128xbf16>
    %c6_1193 = arith.constant 6 : index
    %c0_1194 = arith.constant 0 : index
    %1755 = memref.load %arg2[%c6_1193, %c0_1194] : memref<8x9xf32, #tpu.memory_space<smem>>
    %1756 = arith.truncf %1755 : f32 to bf16
    %c4_1195 = arith.constant 4 : index
    %c0_1196 = arith.constant 0 : index
    %c0_1197 = arith.constant 0 : index
    %1757 = vector.load %arg1[%c4_1195, %c0_1196, %c0_1197] : memref<16x16x128xbf16, #tpu.memory_space<vmem>>, vector<1x16x128xbf16>
    %1758 = vector.shape_cast %1757 : vector<1x16x128xbf16> to vector<16x128xbf16>
    %1759 = vector.broadcast %1756 : bf16 to vector<16x128xbf16>
    %1760 = arith.mulf %1759, %1758 : vector<16x128xbf16>
    %c6_1198 = arith.constant 6 : index
    %c1_1199 = arith.constant 1 : index
    %1761 = memref.load %arg2[%c6_1198, %c1_1199] : memref<8x9xf32, #tpu.memory_space<smem>>
    %1762 = arith.truncf %1761 : f32 to bf16
    %c5_1200 = arith.constant 5 : index
    %c0_1201 = arith.constant 0 : index
    %c0_1202 = arith.constant 0 : index
    %1763 = vector.load %arg1[%c5_1200, %c0_1201, %c0_1202] : memref<16x16x128xbf16, #tpu.memory_space<vmem>>, vector<1x16x128xbf16>
    %1764 = vector.shape_cast %1763 : vector<1x16x128xbf16> to vector<16x128xbf16>
    %1765 = vector.broadcast %1762 : bf16 to vector<16x128xbf16>
    %1766 = arith.mulf %1765, %1764 : vector<16x128xbf16>
    %1767 = arith.addf %1760, %1766 : vector<16x128xbf16>
    %c6_1203 = arith.constant 6 : index
    %c2_1204 = arith.constant 2 : index
    %1768 = memref.load %arg2[%c6_1203, %c2_1204] : memref<8x9xf32, #tpu.memory_space<smem>>
    %1769 = arith.truncf %1768 : f32 to bf16
    %c6_1205 = arith.constant 6 : index
    %c0_1206 = arith.constant 0 : index
    %c0_1207 = arith.constant 0 : index
    %1770 = vector.load %arg1[%c6_1205, %c0_1206, %c0_1207] : memref<16x16x128xbf16, #tpu.memory_space<vmem>>, vector<1x16x128xbf16>
    %1771 = vector.shape_cast %1770 : vector<1x16x128xbf16> to vector<16x128xbf16>
    %1772 = vector.broadcast %1769 : bf16 to vector<16x128xbf16>
    %1773 = arith.mulf %1772, %1771 : vector<16x128xbf16>
    %1774 = arith.addf %1767, %1773 : vector<16x128xbf16>
    %c6_1208 = arith.constant 6 : index
    %c3_1209 = arith.constant 3 : index
    %1775 = memref.load %arg2[%c6_1208, %c3_1209] : memref<8x9xf32, #tpu.memory_space<smem>>
    %1776 = arith.truncf %1775 : f32 to bf16
    %c8_1210 = arith.constant 8 : index
    %c0_1211 = arith.constant 0 : index
    %c0_1212 = arith.constant 0 : index
    %1777 = vector.load %arg1[%c8_1210, %c0_1211, %c0_1212] : memref<16x16x128xbf16, #tpu.memory_space<vmem>>, vector<1x16x128xbf16>
    %1778 = vector.shape_cast %1777 : vector<1x16x128xbf16> to vector<16x128xbf16>
    %1779 = vector.broadcast %1776 : bf16 to vector<16x128xbf16>
    %1780 = arith.mulf %1779, %1778 : vector<16x128xbf16>
    %1781 = arith.addf %1774, %1780 : vector<16x128xbf16>
    %c6_1213 = arith.constant 6 : index
    %c4_1214 = arith.constant 4 : index
    %1782 = memref.load %arg2[%c6_1213, %c4_1214] : memref<8x9xf32, #tpu.memory_space<smem>>
    %1783 = arith.truncf %1782 : f32 to bf16
    %c9_1215 = arith.constant 9 : index
    %c0_1216 = arith.constant 0 : index
    %c0_1217 = arith.constant 0 : index
    %1784 = vector.load %arg1[%c9_1215, %c0_1216, %c0_1217] : memref<16x16x128xbf16, #tpu.memory_space<vmem>>, vector<1x16x128xbf16>
    %1785 = vector.shape_cast %1784 : vector<1x16x128xbf16> to vector<16x128xbf16>
    %1786 = vector.broadcast %1783 : bf16 to vector<16x128xbf16>
    %1787 = arith.mulf %1786, %1785 : vector<16x128xbf16>
    %1788 = arith.addf %1781, %1787 : vector<16x128xbf16>
    %c6_1218 = arith.constant 6 : index
    %c5_1219 = arith.constant 5 : index
    %1789 = memref.load %arg2[%c6_1218, %c5_1219] : memref<8x9xf32, #tpu.memory_space<smem>>
    %1790 = arith.truncf %1789 : f32 to bf16
    %c10_1220 = arith.constant 10 : index
    %c0_1221 = arith.constant 0 : index
    %c0_1222 = arith.constant 0 : index
    %1791 = vector.load %arg1[%c10_1220, %c0_1221, %c0_1222] : memref<16x16x128xbf16, #tpu.memory_space<vmem>>, vector<1x16x128xbf16>
    %1792 = vector.shape_cast %1791 : vector<1x16x128xbf16> to vector<16x128xbf16>
    %1793 = vector.broadcast %1790 : bf16 to vector<16x128xbf16>
    %1794 = arith.mulf %1793, %1792 : vector<16x128xbf16>
    %1795 = arith.addf %1788, %1794 : vector<16x128xbf16>
    %c6_1223 = arith.constant 6 : index
    %c6_1224 = arith.constant 6 : index
    %1796 = memref.load %arg2[%c6_1223, %c6_1224] : memref<8x9xf32, #tpu.memory_space<smem>>
    %1797 = arith.truncf %1796 : f32 to bf16
    %c12_1225 = arith.constant 12 : index
    %c0_1226 = arith.constant 0 : index
    %c0_1227 = arith.constant 0 : index
    %1798 = vector.load %arg1[%c12_1225, %c0_1226, %c0_1227] : memref<16x16x128xbf16, #tpu.memory_space<vmem>>, vector<1x16x128xbf16>
    %1799 = vector.shape_cast %1798 : vector<1x16x128xbf16> to vector<16x128xbf16>
    %1800 = vector.broadcast %1797 : bf16 to vector<16x128xbf16>
    %1801 = arith.mulf %1800, %1799 : vector<16x128xbf16>
    %1802 = arith.addf %1795, %1801 : vector<16x128xbf16>
    %c6_1228 = arith.constant 6 : index
    %c7_1229 = arith.constant 7 : index
    %1803 = memref.load %arg2[%c6_1228, %c7_1229] : memref<8x9xf32, #tpu.memory_space<smem>>
    %1804 = arith.truncf %1803 : f32 to bf16
    %c13_1230 = arith.constant 13 : index
    %c0_1231 = arith.constant 0 : index
    %c0_1232 = arith.constant 0 : index
    %1805 = vector.load %arg1[%c13_1230, %c0_1231, %c0_1232] : memref<16x16x128xbf16, #tpu.memory_space<vmem>>, vector<1x16x128xbf16>
    %1806 = vector.shape_cast %1805 : vector<1x16x128xbf16> to vector<16x128xbf16>
    %1807 = vector.broadcast %1804 : bf16 to vector<16x128xbf16>
    %1808 = arith.mulf %1807, %1806 : vector<16x128xbf16>
    %1809 = arith.addf %1802, %1808 : vector<16x128xbf16>
    %c6_1233 = arith.constant 6 : index
    %c8_1234 = arith.constant 8 : index
    %1810 = memref.load %arg2[%c6_1233, %c8_1234] : memref<8x9xf32, #tpu.memory_space<smem>>
    %1811 = arith.truncf %1810 : f32 to bf16
    %c14_1235 = arith.constant 14 : index
    %c0_1236 = arith.constant 0 : index
    %c0_1237 = arith.constant 0 : index
    %1812 = vector.load %arg1[%c14_1235, %c0_1236, %c0_1237] : memref<16x16x128xbf16, #tpu.memory_space<vmem>>, vector<1x16x128xbf16>
    %1813 = vector.shape_cast %1812 : vector<1x16x128xbf16> to vector<16x128xbf16>
    %1814 = vector.broadcast %1811 : bf16 to vector<16x128xbf16>
    %1815 = arith.mulf %1814, %1813 : vector<16x128xbf16>
    %1816 = arith.addf %1809, %1815 : vector<16x128xbf16>
    %1817 = vector.broadcast %1621 : bf16 to vector<16x128xbf16>
    %1818 = arith.addf %1816, %1817 : vector<16x128xbf16>
    %cst_1238 = arith.constant 0.000000e+00 : bf16
    %1819 = vector.broadcast %cst_1238 : bf16 to vector<16x128xbf16>
    %1820 = arith.maximumf %1818, %1819 : vector<16x128xbf16>
    %1821 = arith.maximumf %1754, %1820 : vector<16x128xbf16>
    %c6_1239 = arith.constant 6 : index
    %c0_1240 = arith.constant 0 : index
    %1822 = memref.load %arg2[%c6_1239, %c0_1240] : memref<8x9xf32, #tpu.memory_space<smem>>
    %1823 = arith.truncf %1822 : f32 to bf16
    %c5_1241 = arith.constant 5 : index
    %c0_1242 = arith.constant 0 : index
    %c0_1243 = arith.constant 0 : index
    %1824 = vector.load %arg1[%c5_1241, %c0_1242, %c0_1243] : memref<16x16x128xbf16, #tpu.memory_space<vmem>>, vector<1x16x128xbf16>
    %1825 = vector.shape_cast %1824 : vector<1x16x128xbf16> to vector<16x128xbf16>
    %1826 = vector.broadcast %1823 : bf16 to vector<16x128xbf16>
    %1827 = arith.mulf %1826, %1825 : vector<16x128xbf16>
    %c6_1244 = arith.constant 6 : index
    %c1_1245 = arith.constant 1 : index
    %1828 = memref.load %arg2[%c6_1244, %c1_1245] : memref<8x9xf32, #tpu.memory_space<smem>>
    %1829 = arith.truncf %1828 : f32 to bf16
    %c6_1246 = arith.constant 6 : index
    %c0_1247 = arith.constant 0 : index
    %c0_1248 = arith.constant 0 : index
    %1830 = vector.load %arg1[%c6_1246, %c0_1247, %c0_1248] : memref<16x16x128xbf16, #tpu.memory_space<vmem>>, vector<1x16x128xbf16>
    %1831 = vector.shape_cast %1830 : vector<1x16x128xbf16> to vector<16x128xbf16>
    %1832 = vector.broadcast %1829 : bf16 to vector<16x128xbf16>
    %1833 = arith.mulf %1832, %1831 : vector<16x128xbf16>
    %1834 = arith.addf %1827, %1833 : vector<16x128xbf16>
    %c6_1249 = arith.constant 6 : index
    %c2_1250 = arith.constant 2 : index
    %1835 = memref.load %arg2[%c6_1249, %c2_1250] : memref<8x9xf32, #tpu.memory_space<smem>>
    %1836 = arith.truncf %1835 : f32 to bf16
    %c7_1251 = arith.constant 7 : index
    %c0_1252 = arith.constant 0 : index
    %c0_1253 = arith.constant 0 : index
    %1837 = vector.load %arg1[%c7_1251, %c0_1252, %c0_1253] : memref<16x16x128xbf16, #tpu.memory_space<vmem>>, vector<1x16x128xbf16>
    %1838 = vector.shape_cast %1837 : vector<1x16x128xbf16> to vector<16x128xbf16>
    %1839 = vector.broadcast %1836 : bf16 to vector<16x128xbf16>
    %1840 = arith.mulf %1839, %1838 : vector<16x128xbf16>
    %1841 = arith.addf %1834, %1840 : vector<16x128xbf16>
    %c6_1254 = arith.constant 6 : index
    %c3_1255 = arith.constant 3 : index
    %1842 = memref.load %arg2[%c6_1254, %c3_1255] : memref<8x9xf32, #tpu.memory_space<smem>>
    %1843 = arith.truncf %1842 : f32 to bf16
    %c9_1256 = arith.constant 9 : index
    %c0_1257 = arith.constant 0 : index
    %c0_1258 = arith.constant 0 : index
    %1844 = vector.load %arg1[%c9_1256, %c0_1257, %c0_1258] : memref<16x16x128xbf16, #tpu.memory_space<vmem>>, vector<1x16x128xbf16>
    %1845 = vector.shape_cast %1844 : vector<1x16x128xbf16> to vector<16x128xbf16>
    %1846 = vector.broadcast %1843 : bf16 to vector<16x128xbf16>
    %1847 = arith.mulf %1846, %1845 : vector<16x128xbf16>
    %1848 = arith.addf %1841, %1847 : vector<16x128xbf16>
    %c6_1259 = arith.constant 6 : index
    %c4_1260 = arith.constant 4 : index
    %1849 = memref.load %arg2[%c6_1259, %c4_1260] : memref<8x9xf32, #tpu.memory_space<smem>>
    %1850 = arith.truncf %1849 : f32 to bf16
    %c10_1261 = arith.constant 10 : index
    %c0_1262 = arith.constant 0 : index
    %c0_1263 = arith.constant 0 : index
    %1851 = vector.load %arg1[%c10_1261, %c0_1262, %c0_1263] : memref<16x16x128xbf16, #tpu.memory_space<vmem>>, vector<1x16x128xbf16>
    %1852 = vector.shape_cast %1851 : vector<1x16x128xbf16> to vector<16x128xbf16>
    %1853 = vector.broadcast %1850 : bf16 to vector<16x128xbf16>
    %1854 = arith.mulf %1853, %1852 : vector<16x128xbf16>
    %1855 = arith.addf %1848, %1854 : vector<16x128xbf16>
    %c6_1264 = arith.constant 6 : index
    %c5_1265 = arith.constant 5 : index
    %1856 = memref.load %arg2[%c6_1264, %c5_1265] : memref<8x9xf32, #tpu.memory_space<smem>>
    %1857 = arith.truncf %1856 : f32 to bf16
    %c11_1266 = arith.constant 11 : index
    %c0_1267 = arith.constant 0 : index
    %c0_1268 = arith.constant 0 : index
    %1858 = vector.load %arg1[%c11_1266, %c0_1267, %c0_1268] : memref<16x16x128xbf16, #tpu.memory_space<vmem>>, vector<1x16x128xbf16>
    %1859 = vector.shape_cast %1858 : vector<1x16x128xbf16> to vector<16x128xbf16>
    %1860 = vector.broadcast %1857 : bf16 to vector<16x128xbf16>
    %1861 = arith.mulf %1860, %1859 : vector<16x128xbf16>
    %1862 = arith.addf %1855, %1861 : vector<16x128xbf16>
    %c6_1269 = arith.constant 6 : index
    %c6_1270 = arith.constant 6 : index
    %1863 = memref.load %arg2[%c6_1269, %c6_1270] : memref<8x9xf32, #tpu.memory_space<smem>>
    %1864 = arith.truncf %1863 : f32 to bf16
    %c13_1271 = arith.constant 13 : index
    %c0_1272 = arith.constant 0 : index
    %c0_1273 = arith.constant 0 : index
    %1865 = vector.load %arg1[%c13_1271, %c0_1272, %c0_1273] : memref<16x16x128xbf16, #tpu.memory_space<vmem>>, vector<1x16x128xbf16>
    %1866 = vector.shape_cast %1865 : vector<1x16x128xbf16> to vector<16x128xbf16>
    %1867 = vector.broadcast %1864 : bf16 to vector<16x128xbf16>
    %1868 = arith.mulf %1867, %1866 : vector<16x128xbf16>
    %1869 = arith.addf %1862, %1868 : vector<16x128xbf16>
    %c6_1274 = arith.constant 6 : index
    %c7_1275 = arith.constant 7 : index
    %1870 = memref.load %arg2[%c6_1274, %c7_1275] : memref<8x9xf32, #tpu.memory_space<smem>>
    %1871 = arith.truncf %1870 : f32 to bf16
    %c14_1276 = arith.constant 14 : index
    %c0_1277 = arith.constant 0 : index
    %c0_1278 = arith.constant 0 : index
    %1872 = vector.load %arg1[%c14_1276, %c0_1277, %c0_1278] : memref<16x16x128xbf16, #tpu.memory_space<vmem>>, vector<1x16x128xbf16>
    %1873 = vector.shape_cast %1872 : vector<1x16x128xbf16> to vector<16x128xbf16>
    %1874 = vector.broadcast %1871 : bf16 to vector<16x128xbf16>
    %1875 = arith.mulf %1874, %1873 : vector<16x128xbf16>
    %1876 = arith.addf %1869, %1875 : vector<16x128xbf16>
    %c6_1279 = arith.constant 6 : index
    %c8_1280 = arith.constant 8 : index
    %1877 = memref.load %arg2[%c6_1279, %c8_1280] : memref<8x9xf32, #tpu.memory_space<smem>>
    %1878 = arith.truncf %1877 : f32 to bf16
    %c15_1281 = arith.constant 15 : index
    %c0_1282 = arith.constant 0 : index
    %c0_1283 = arith.constant 0 : index
    %1879 = vector.load %arg1[%c15_1281, %c0_1282, %c0_1283] : memref<16x16x128xbf16, #tpu.memory_space<vmem>>, vector<1x16x128xbf16>
    %1880 = vector.shape_cast %1879 : vector<1x16x128xbf16> to vector<16x128xbf16>
    %1881 = vector.broadcast %1878 : bf16 to vector<16x128xbf16>
    %1882 = arith.mulf %1881, %1880 : vector<16x128xbf16>
    %1883 = arith.addf %1876, %1882 : vector<16x128xbf16>
    %1884 = vector.broadcast %1621 : bf16 to vector<16x128xbf16>
    %1885 = arith.addf %1883, %1884 : vector<16x128xbf16>
    %cst_1284 = arith.constant 0.000000e+00 : bf16
    %1886 = vector.broadcast %cst_1284 : bf16 to vector<16x128xbf16>
    %1887 = arith.maximumf %1885, %1886 : vector<16x128xbf16>
    %1888 = arith.maximumf %1821, %1887 : vector<16x128xbf16>
    %c0_1285 = arith.constant 0 : index
    %c768 = arith.constant 768 : index
    %1889 = vector.load %arg9[%c0_1285, %c768] : memref<16x1024xbf16, #tpu.memory_space<vmem>>, vector<16x128xbf16>
    tpu.vector_store %arg9[%c0_1285, %c768], %1888 {strides = array<i32>} : memref<16x1024xbf16, #tpu.memory_space<vmem>>, vector<16x128xbf16>,
    %c7_1286 = arith.constant 7 : index
    %1890 = memref.load %arg3[%c7_1286] : memref<8xf32, #tpu.memory_space<smem>>
    %1891 = arith.truncf %1890 : f32 to bf16
    %c7_1287 = arith.constant 7 : index
    %c0_1288 = arith.constant 0 : index
    %1892 = memref.load %arg2[%c7_1287, %c0_1288] : memref<8x9xf32, #tpu.memory_space<smem>>
    %1893 = arith.truncf %1892 : f32 to bf16
    %c0_1289 = arith.constant 0 : index
    %c0_1290 = arith.constant 0 : index
    %c0_1291 = arith.constant 0 : index
    %1894 = vector.load %arg1[%c0_1289, %c0_1290, %c0_1291] : memref<16x16x128xbf16, #tpu.memory_space<vmem>>, vector<1x16x128xbf16>
    %1895 = vector.shape_cast %1894 : vector<1x16x128xbf16> to vector<16x128xbf16>
    %1896 = vector.broadcast %1893 : bf16 to vector<16x128xbf16>
    %1897 = arith.mulf %1896, %1895 : vector<16x128xbf16>
    %c7_1292 = arith.constant 7 : index
    %c1_1293 = arith.constant 1 : index
    %1898 = memref.load %arg2[%c7_1292, %c1_1293] : memref<8x9xf32, #tpu.memory_space<smem>>
    %1899 = arith.truncf %1898 : f32 to bf16
    %c1_1294 = arith.constant 1 : index
    %c0_1295 = arith.constant 0 : index
    %c0_1296 = arith.constant 0 : index
    %1900 = vector.load %arg1[%c1_1294, %c0_1295, %c0_1296] : memref<16x16x128xbf16, #tpu.memory_space<vmem>>, vector<1x16x128xbf16>
    %1901 = vector.shape_cast %1900 : vector<1x16x128xbf16> to vector<16x128xbf16>
    %1902 = vector.broadcast %1899 : bf16 to vector<16x128xbf16>
    %1903 = arith.mulf %1902, %1901 : vector<16x128xbf16>
    %1904 = arith.addf %1897, %1903 : vector<16x128xbf16>
    %c7_1297 = arith.constant 7 : index
    %c2_1298 = arith.constant 2 : index
    %1905 = memref.load %arg2[%c7_1297, %c2_1298] : memref<8x9xf32, #tpu.memory_space<smem>>
    %1906 = arith.truncf %1905 : f32 to bf16
    %c2_1299 = arith.constant 2 : index
    %c0_1300 = arith.constant 0 : index
    %c0_1301 = arith.constant 0 : index
    %1907 = vector.load %arg1[%c2_1299, %c0_1300, %c0_1301] : memref<16x16x128xbf16, #tpu.memory_space<vmem>>, vector<1x16x128xbf16>
    %1908 = vector.shape_cast %1907 : vector<1x16x128xbf16> to vector<16x128xbf16>
    %1909 = vector.broadcast %1906 : bf16 to vector<16x128xbf16>
    %1910 = arith.mulf %1909, %1908 : vector<16x128xbf16>
    %1911 = arith.addf %1904, %1910 : vector<16x128xbf16>
    %c7_1302 = arith.constant 7 : index
    %c3_1303 = arith.constant 3 : index
    %1912 = memref.load %arg2[%c7_1302, %c3_1303] : memref<8x9xf32, #tpu.memory_space<smem>>
    %1913 = arith.truncf %1912 : f32 to bf16
    %c4_1304 = arith.constant 4 : index
    %c0_1305 = arith.constant 0 : index
    %c0_1306 = arith.constant 0 : index
    %1914 = vector.load %arg1[%c4_1304, %c0_1305, %c0_1306] : memref<16x16x128xbf16, #tpu.memory_space<vmem>>, vector<1x16x128xbf16>
    %1915 = vector.shape_cast %1914 : vector<1x16x128xbf16> to vector<16x128xbf16>
    %1916 = vector.broadcast %1913 : bf16 to vector<16x128xbf16>
    %1917 = arith.mulf %1916, %1915 : vector<16x128xbf16>
    %1918 = arith.addf %1911, %1917 : vector<16x128xbf16>
    %c7_1307 = arith.constant 7 : index
    %c4_1308 = arith.constant 4 : index
    %1919 = memref.load %arg2[%c7_1307, %c4_1308] : memref<8x9xf32, #tpu.memory_space<smem>>
    %1920 = arith.truncf %1919 : f32 to bf16
    %c5_1309 = arith.constant 5 : index
    %c0_1310 = arith.constant 0 : index
    %c0_1311 = arith.constant 0 : index
    %1921 = vector.load %arg1[%c5_1309, %c0_1310, %c0_1311] : memref<16x16x128xbf16, #tpu.memory_space<vmem>>, vector<1x16x128xbf16>
    %1922 = vector.shape_cast %1921 : vector<1x16x128xbf16> to vector<16x128xbf16>
    %1923 = vector.broadcast %1920 : bf16 to vector<16x128xbf16>
    %1924 = arith.mulf %1923, %1922 : vector<16x128xbf16>
    %1925 = arith.addf %1918, %1924 : vector<16x128xbf16>
    %c7_1312 = arith.constant 7 : index
    %c5_1313 = arith.constant 5 : index
    %1926 = memref.load %arg2[%c7_1312, %c5_1313] : memref<8x9xf32, #tpu.memory_space<smem>>
    %1927 = arith.truncf %1926 : f32 to bf16
    %c6_1314 = arith.constant 6 : index
    %c0_1315 = arith.constant 0 : index
    %c0_1316 = arith.constant 0 : index
    %1928 = vector.load %arg1[%c6_1314, %c0_1315, %c0_1316] : memref<16x16x128xbf16, #tpu.memory_space<vmem>>, vector<1x16x128xbf16>
    %1929 = vector.shape_cast %1928 : vector<1x16x128xbf16> to vector<16x128xbf16>
    %1930 = vector.broadcast %1927 : bf16 to vector<16x128xbf16>
    %1931 = arith.mulf %1930, %1929 : vector<16x128xbf16>
    %1932 = arith.addf %1925, %1931 : vector<16x128xbf16>
    %c7_1317 = arith.constant 7 : index
    %c6_1318 = arith.constant 6 : index
    %1933 = memref.load %arg2[%c7_1317, %c6_1318] : memref<8x9xf32, #tpu.memory_space<smem>>
    %1934 = arith.truncf %1933 : f32 to bf16
    %c8_1319 = arith.constant 8 : index
    %c0_1320 = arith.constant 0 : index
    %c0_1321 = arith.constant 0 : index
    %1935 = vector.load %arg1[%c8_1319, %c0_1320, %c0_1321] : memref<16x16x128xbf16, #tpu.memory_space<vmem>>, vector<1x16x128xbf16>
    %1936 = vector.shape_cast %1935 : vector<1x16x128xbf16> to vector<16x128xbf16>
    %1937 = vector.broadcast %1934 : bf16 to vector<16x128xbf16>
    %1938 = arith.mulf %1937, %1936 : vector<16x128xbf16>
    %1939 = arith.addf %1932, %1938 : vector<16x128xbf16>
    %c7_1322 = arith.constant 7 : index
    %c7_1323 = arith.constant 7 : index
    %1940 = memref.load %arg2[%c7_1322, %c7_1323] : memref<8x9xf32, #tpu.memory_space<smem>>
    %1941 = arith.truncf %1940 : f32 to bf16
    %c9_1324 = arith.constant 9 : index
    %c0_1325 = arith.constant 0 : index
    %c0_1326 = arith.constant 0 : index
    %1942 = vector.load %arg1[%c9_1324, %c0_1325, %c0_1326] : memref<16x16x128xbf16, #tpu.memory_space<vmem>>, vector<1x16x128xbf16>
    %1943 = vector.shape_cast %1942 : vector<1x16x128xbf16> to vector<16x128xbf16>
    %1944 = vector.broadcast %1941 : bf16 to vector<16x128xbf16>
    %1945 = arith.mulf %1944, %1943 : vector<16x128xbf16>
    %1946 = arith.addf %1939, %1945 : vector<16x128xbf16>
    %c7_1327 = arith.constant 7 : index
    %c8_1328 = arith.constant 8 : index
    %1947 = memref.load %arg2[%c7_1327, %c8_1328] : memref<8x9xf32, #tpu.memory_space<smem>>
    %1948 = arith.truncf %1947 : f32 to bf16
    %c10_1329 = arith.constant 10 : index
    %c0_1330 = arith.constant 0 : index
    %c0_1331 = arith.constant 0 : index
    %1949 = vector.load %arg1[%c10_1329, %c0_1330, %c0_1331] : memref<16x16x128xbf16, #tpu.memory_space<vmem>>, vector<1x16x128xbf16>
    %1950 = vector.shape_cast %1949 : vector<1x16x128xbf16> to vector<16x128xbf16>
    %1951 = vector.broadcast %1948 : bf16 to vector<16x128xbf16>
    %1952 = arith.mulf %1951, %1950 : vector<16x128xbf16>
    %1953 = arith.addf %1946, %1952 : vector<16x128xbf16>
    %1954 = vector.broadcast %1891 : bf16 to vector<16x128xbf16>
    %1955 = arith.addf %1953, %1954 : vector<16x128xbf16>
    %cst_1332 = arith.constant 0.000000e+00 : bf16
    %1956 = vector.broadcast %cst_1332 : bf16 to vector<16x128xbf16>
    %1957 = arith.maximumf %1955, %1956 : vector<16x128xbf16>
    %c7_1333 = arith.constant 7 : index
    %c0_1334 = arith.constant 0 : index
    %1958 = memref.load %arg2[%c7_1333, %c0_1334] : memref<8x9xf32, #tpu.memory_space<smem>>
    %1959 = arith.truncf %1958 : f32 to bf16
    %c1_1335 = arith.constant 1 : index
    %c0_1336 = arith.constant 0 : index
    %c0_1337 = arith.constant 0 : index
    %1960 = vector.load %arg1[%c1_1335, %c0_1336, %c0_1337] : memref<16x16x128xbf16, #tpu.memory_space<vmem>>, vector<1x16x128xbf16>
    %1961 = vector.shape_cast %1960 : vector<1x16x128xbf16> to vector<16x128xbf16>
    %1962 = vector.broadcast %1959 : bf16 to vector<16x128xbf16>
    %1963 = arith.mulf %1962, %1961 : vector<16x128xbf16>
    %c7_1338 = arith.constant 7 : index
    %c1_1339 = arith.constant 1 : index
    %1964 = memref.load %arg2[%c7_1338, %c1_1339] : memref<8x9xf32, #tpu.memory_space<smem>>
    %1965 = arith.truncf %1964 : f32 to bf16
    %c2_1340 = arith.constant 2 : index
    %c0_1341 = arith.constant 0 : index
    %c0_1342 = arith.constant 0 : index
    %1966 = vector.load %arg1[%c2_1340, %c0_1341, %c0_1342] : memref<16x16x128xbf16, #tpu.memory_space<vmem>>, vector<1x16x128xbf16>
    %1967 = vector.shape_cast %1966 : vector<1x16x128xbf16> to vector<16x128xbf16>
    %1968 = vector.broadcast %1965 : bf16 to vector<16x128xbf16>
    %1969 = arith.mulf %1968, %1967 : vector<16x128xbf16>
    %1970 = arith.addf %1963, %1969 : vector<16x128xbf16>
    %c7_1343 = arith.constant 7 : index
    %c2_1344 = arith.constant 2 : index
    %1971 = memref.load %arg2[%c7_1343, %c2_1344] : memref<8x9xf32, #tpu.memory_space<smem>>
    %1972 = arith.truncf %1971 : f32 to bf16
    %c3_1345 = arith.constant 3 : index
    %c0_1346 = arith.constant 0 : index
    %c0_1347 = arith.constant 0 : index
    %1973 = vector.load %arg1[%c3_1345, %c0_1346, %c0_1347] : memref<16x16x128xbf16, #tpu.memory_space<vmem>>, vector<1x16x128xbf16>
    %1974 = vector.shape_cast %1973 : vector<1x16x128xbf16> to vector<16x128xbf16>
    %1975 = vector.broadcast %1972 : bf16 to vector<16x128xbf16>
    %1976 = arith.mulf %1975, %1974 : vector<16x128xbf16>
    %1977 = arith.addf %1970, %1976 : vector<16x128xbf16>
    %c7_1348 = arith.constant 7 : index
    %c3_1349 = arith.constant 3 : index
    %1978 = memref.load %arg2[%c7_1348, %c3_1349] : memref<8x9xf32, #tpu.memory_space<smem>>
    %1979 = arith.truncf %1978 : f32 to bf16
    %c5_1350 = arith.constant 5 : index
    %c0_1351 = arith.constant 0 : index
    %c0_1352 = arith.constant 0 : index
    %1980 = vector.load %arg1[%c5_1350, %c0_1351, %c0_1352] : memref<16x16x128xbf16, #tpu.memory_space<vmem>>, vector<1x16x128xbf16>
    %1981 = vector.shape_cast %1980 : vector<1x16x128xbf16> to vector<16x128xbf16>
    %1982 = vector.broadcast %1979 : bf16 to vector<16x128xbf16>
    %1983 = arith.mulf %1982, %1981 : vector<16x128xbf16>
    %1984 = arith.addf %1977, %1983 : vector<16x128xbf16>
    %c7_1353 = arith.constant 7 : index
    %c4_1354 = arith.constant 4 : index
    %1985 = memref.load %arg2[%c7_1353, %c4_1354] : memref<8x9xf32, #tpu.memory_space<smem>>
    %1986 = arith.truncf %1985 : f32 to bf16
    %c6_1355 = arith.constant 6 : index
    %c0_1356 = arith.constant 0 : index
    %c0_1357 = arith.constant 0 : index
    %1987 = vector.load %arg1[%c6_1355, %c0_1356, %c0_1357] : memref<16x16x128xbf16, #tpu.memory_space<vmem>>, vector<1x16x128xbf16>
    %1988 = vector.shape_cast %1987 : vector<1x16x128xbf16> to vector<16x128xbf16>
    %1989 = vector.broadcast %1986 : bf16 to vector<16x128xbf16>
    %1990 = arith.mulf %1989, %1988 : vector<16x128xbf16>
    %1991 = arith.addf %1984, %1990 : vector<16x128xbf16>
    %c7_1358 = arith.constant 7 : index
    %c5_1359 = arith.constant 5 : index
    %1992 = memref.load %arg2[%c7_1358, %c5_1359] : memref<8x9xf32, #tpu.memory_space<smem>>
    %1993 = arith.truncf %1992 : f32 to bf16
    %c7_1360 = arith.constant 7 : index
    %c0_1361 = arith.constant 0 : index
    %c0_1362 = arith.constant 0 : index
    %1994 = vector.load %arg1[%c7_1360, %c0_1361, %c0_1362] : memref<16x16x128xbf16, #tpu.memory_space<vmem>>, vector<1x16x128xbf16>
    %1995 = vector.shape_cast %1994 : vector<1x16x128xbf16> to vector<16x128xbf16>
    %1996 = vector.broadcast %1993 : bf16 to vector<16x128xbf16>
    %1997 = arith.mulf %1996, %1995 : vector<16x128xbf16>
    %1998 = arith.addf %1991, %1997 : vector<16x128xbf16>
    %c7_1363 = arith.constant 7 : index
    %c6_1364 = arith.constant 6 : index
    %1999 = memref.load %arg2[%c7_1363, %c6_1364] : memref<8x9xf32, #tpu.memory_space<smem>>
    %2000 = arith.truncf %1999 : f32 to bf16
    %c9_1365 = arith.constant 9 : index
    %c0_1366 = arith.constant 0 : index
    %c0_1367 = arith.constant 0 : index
    %2001 = vector.load %arg1[%c9_1365, %c0_1366, %c0_1367] : memref<16x16x128xbf16, #tpu.memory_space<vmem>>, vector<1x16x128xbf16>
    %2002 = vector.shape_cast %2001 : vector<1x16x128xbf16> to vector<16x128xbf16>
    %2003 = vector.broadcast %2000 : bf16 to vector<16x128xbf16>
    %2004 = arith.mulf %2003, %2002 : vector<16x128xbf16>
    %2005 = arith.addf %1998, %2004 : vector<16x128xbf16>
    %c7_1368 = arith.constant 7 : index
    %c7_1369 = arith.constant 7 : index
    %2006 = memref.load %arg2[%c7_1368, %c7_1369] : memref<8x9xf32, #tpu.memory_space<smem>>
    %2007 = arith.truncf %2006 : f32 to bf16
    %c10_1370 = arith.constant 10 : index
    %c0_1371 = arith.constant 0 : index
    %c0_1372 = arith.constant 0 : index
    %2008 = vector.load %arg1[%c10_1370, %c0_1371, %c0_1372] : memref<16x16x128xbf16, #tpu.memory_space<vmem>>, vector<1x16x128xbf16>
    %2009 = vector.shape_cast %2008 : vector<1x16x128xbf16> to vector<16x128xbf16>
    %2010 = vector.broadcast %2007 : bf16 to vector<16x128xbf16>
    %2011 = arith.mulf %2010, %2009 : vector<16x128xbf16>
    %2012 = arith.addf %2005, %2011 : vector<16x128xbf16>
    %c7_1373 = arith.constant 7 : index
    %c8_1374 = arith.constant 8 : index
    %2013 = memref.load %arg2[%c7_1373, %c8_1374] : memref<8x9xf32, #tpu.memory_space<smem>>
    %2014 = arith.truncf %2013 : f32 to bf16
    %c11_1375 = arith.constant 11 : index
    %c0_1376 = arith.constant 0 : index
    %c0_1377 = arith.constant 0 : index
    %2015 = vector.load %arg1[%c11_1375, %c0_1376, %c0_1377] : memref<16x16x128xbf16, #tpu.memory_space<vmem>>, vector<1x16x128xbf16>
    %2016 = vector.shape_cast %2015 : vector<1x16x128xbf16> to vector<16x128xbf16>
    %2017 = vector.broadcast %2014 : bf16 to vector<16x128xbf16>
    %2018 = arith.mulf %2017, %2016 : vector<16x128xbf16>
    %2019 = arith.addf %2012, %2018 : vector<16x128xbf16>
    %2020 = vector.broadcast %1891 : bf16 to vector<16x128xbf16>
    %2021 = arith.addf %2019, %2020 : vector<16x128xbf16>
    %cst_1378 = arith.constant 0.000000e+00 : bf16
    %2022 = vector.broadcast %cst_1378 : bf16 to vector<16x128xbf16>
    %2023 = arith.maximumf %2021, %2022 : vector<16x128xbf16>
    %2024 = arith.maximumf %1957, %2023 : vector<16x128xbf16>
    %c7_1379 = arith.constant 7 : index
    %c0_1380 = arith.constant 0 : index
    %2025 = memref.load %arg2[%c7_1379, %c0_1380] : memref<8x9xf32, #tpu.memory_space<smem>>
    %2026 = arith.truncf %2025 : f32 to bf16
    %c4_1381 = arith.constant 4 : index
    %c0_1382 = arith.constant 0 : index
    %c0_1383 = arith.constant 0 : index
    %2027 = vector.load %arg1[%c4_1381, %c0_1382, %c0_1383] : memref<16x16x128xbf16, #tpu.memory_space<vmem>>, vector<1x16x128xbf16>
    %2028 = vector.shape_cast %2027 : vector<1x16x128xbf16> to vector<16x128xbf16>
    %2029 = vector.broadcast %2026 : bf16 to vector<16x128xbf16>
    %2030 = arith.mulf %2029, %2028 : vector<16x128xbf16>
    %c7_1384 = arith.constant 7 : index
    %c1_1385 = arith.constant 1 : index
    %2031 = memref.load %arg2[%c7_1384, %c1_1385] : memref<8x9xf32, #tpu.memory_space<smem>>
    %2032 = arith.truncf %2031 : f32 to bf16
    %c5_1386 = arith.constant 5 : index
    %c0_1387 = arith.constant 0 : index
    %c0_1388 = arith.constant 0 : index
    %2033 = vector.load %arg1[%c5_1386, %c0_1387, %c0_1388] : memref<16x16x128xbf16, #tpu.memory_space<vmem>>, vector<1x16x128xbf16>
    %2034 = vector.shape_cast %2033 : vector<1x16x128xbf16> to vector<16x128xbf16>
    %2035 = vector.broadcast %2032 : bf16 to vector<16x128xbf16>
    %2036 = arith.mulf %2035, %2034 : vector<16x128xbf16>
    %2037 = arith.addf %2030, %2036 : vector<16x128xbf16>
    %c7_1389 = arith.constant 7 : index
    %c2_1390 = arith.constant 2 : index
    %2038 = memref.load %arg2[%c7_1389, %c2_1390] : memref<8x9xf32, #tpu.memory_space<smem>>
    %2039 = arith.truncf %2038 : f32 to bf16
    %c6_1391 = arith.constant 6 : index
    %c0_1392 = arith.constant 0 : index
    %c0_1393 = arith.constant 0 : index
    %2040 = vector.load %arg1[%c6_1391, %c0_1392, %c0_1393] : memref<16x16x128xbf16, #tpu.memory_space<vmem>>, vector<1x16x128xbf16>
    %2041 = vector.shape_cast %2040 : vector<1x16x128xbf16> to vector<16x128xbf16>
    %2042 = vector.broadcast %2039 : bf16 to vector<16x128xbf16>
    %2043 = arith.mulf %2042, %2041 : vector<16x128xbf16>
    %2044 = arith.addf %2037, %2043 : vector<16x128xbf16>
    %c7_1394 = arith.constant 7 : index
    %c3_1395 = arith.constant 3 : index
    %2045 = memref.load %arg2[%c7_1394, %c3_1395] : memref<8x9xf32, #tpu.memory_space<smem>>
    %2046 = arith.truncf %2045 : f32 to bf16
    %c8_1396 = arith.constant 8 : index
    %c0_1397 = arith.constant 0 : index
    %c0_1398 = arith.constant 0 : index
    %2047 = vector.load %arg1[%c8_1396, %c0_1397, %c0_1398] : memref<16x16x128xbf16, #tpu.memory_space<vmem>>, vector<1x16x128xbf16>
    %2048 = vector.shape_cast %2047 : vector<1x16x128xbf16> to vector<16x128xbf16>
    %2049 = vector.broadcast %2046 : bf16 to vector<16x128xbf16>
    %2050 = arith.mulf %2049, %2048 : vector<16x128xbf16>
    %2051 = arith.addf %2044, %2050 : vector<16x128xbf16>
    %c7_1399 = arith.constant 7 : index
    %c4_1400 = arith.constant 4 : index
    %2052 = memref.load %arg2[%c7_1399, %c4_1400] : memref<8x9xf32, #tpu.memory_space<smem>>
    %2053 = arith.truncf %2052 : f32 to bf16
    %c9_1401 = arith.constant 9 : index
    %c0_1402 = arith.constant 0 : index
    %c0_1403 = arith.constant 0 : index
    %2054 = vector.load %arg1[%c9_1401, %c0_1402, %c0_1403] : memref<16x16x128xbf16, #tpu.memory_space<vmem>>, vector<1x16x128xbf16>
    %2055 = vector.shape_cast %2054 : vector<1x16x128xbf16> to vector<16x128xbf16>
    %2056 = vector.broadcast %2053 : bf16 to vector<16x128xbf16>
    %2057 = arith.mulf %2056, %2055 : vector<16x128xbf16>
    %2058 = arith.addf %2051, %2057 : vector<16x128xbf16>
    %c7_1404 = arith.constant 7 : index
    %c5_1405 = arith.constant 5 : index
    %2059 = memref.load %arg2[%c7_1404, %c5_1405] : memref<8x9xf32, #tpu.memory_space<smem>>
    %2060 = arith.truncf %2059 : f32 to bf16
    %c10_1406 = arith.constant 10 : index
    %c0_1407 = arith.constant 0 : index
    %c0_1408 = arith.constant 0 : index
    %2061 = vector.load %arg1[%c10_1406, %c0_1407, %c0_1408] : memref<16x16x128xbf16, #tpu.memory_space<vmem>>, vector<1x16x128xbf16>
    %2062 = vector.shape_cast %2061 : vector<1x16x128xbf16> to vector<16x128xbf16>
    %2063 = vector.broadcast %2060 : bf16 to vector<16x128xbf16>
    %2064 = arith.mulf %2063, %2062 : vector<16x128xbf16>
    %2065 = arith.addf %2058, %2064 : vector<16x128xbf16>
    %c7_1409 = arith.constant 7 : index
    %c6_1410 = arith.constant 6 : index
    %2066 = memref.load %arg2[%c7_1409, %c6_1410] : memref<8x9xf32, #tpu.memory_space<smem>>
    %2067 = arith.truncf %2066 : f32 to bf16
    %c12_1411 = arith.constant 12 : index
    %c0_1412 = arith.constant 0 : index
    %c0_1413 = arith.constant 0 : index
    %2068 = vector.load %arg1[%c12_1411, %c0_1412, %c0_1413] : memref<16x16x128xbf16, #tpu.memory_space<vmem>>, vector<1x16x128xbf16>
    %2069 = vector.shape_cast %2068 : vector<1x16x128xbf16> to vector<16x128xbf16>
    %2070 = vector.broadcast %2067 : bf16 to vector<16x128xbf16>
    %2071 = arith.mulf %2070, %2069 : vector<16x128xbf16>
    %2072 = arith.addf %2065, %2071 : vector<16x128xbf16>
    %c7_1414 = arith.constant 7 : index
    %c7_1415 = arith.constant 7 : index
    %2073 = memref.load %arg2[%c7_1414, %c7_1415] : memref<8x9xf32, #tpu.memory_space<smem>>
    %2074 = arith.truncf %2073 : f32 to bf16
    %c13_1416 = arith.constant 13 : index
    %c0_1417 = arith.constant 0 : index
    %c0_1418 = arith.constant 0 : index
    %2075 = vector.load %arg1[%c13_1416, %c0_1417, %c0_1418] : memref<16x16x128xbf16, #tpu.memory_space<vmem>>, vector<1x16x128xbf16>
    %2076 = vector.shape_cast %2075 : vector<1x16x128xbf16> to vector<16x128xbf16>
    %2077 = vector.broadcast %2074 : bf16 to vector<16x128xbf16>
    %2078 = arith.mulf %2077, %2076 : vector<16x128xbf16>
    %2079 = arith.addf %2072, %2078 : vector<16x128xbf16>
    %c7_1419 = arith.constant 7 : index
    %c8_1420 = arith.constant 8 : index
    %2080 = memref.load %arg2[%c7_1419, %c8_1420] : memref<8x9xf32, #tpu.memory_space<smem>>
    %2081 = arith.truncf %2080 : f32 to bf16
    %c14_1421 = arith.constant 14 : index
    %c0_1422 = arith.constant 0 : index
    %c0_1423 = arith.constant 0 : index
    %2082 = vector.load %arg1[%c14_1421, %c0_1422, %c0_1423] : memref<16x16x128xbf16, #tpu.memory_space<vmem>>, vector<1x16x128xbf16>
    %2083 = vector.shape_cast %2082 : vector<1x16x128xbf16> to vector<16x128xbf16>
    %2084 = vector.broadcast %2081 : bf16 to vector<16x128xbf16>
    %2085 = arith.mulf %2084, %2083 : vector<16x128xbf16>
    %2086 = arith.addf %2079, %2085 : vector<16x128xbf16>
    %2087 = vector.broadcast %1891 : bf16 to vector<16x128xbf16>
    %2088 = arith.addf %2086, %2087 : vector<16x128xbf16>
    %cst_1424 = arith.constant 0.000000e+00 : bf16
    %2089 = vector.broadcast %cst_1424 : bf16 to vector<16x128xbf16>
    %2090 = arith.maximumf %2088, %2089 : vector<16x128xbf16>
    %2091 = arith.maximumf %2024, %2090 : vector<16x128xbf16>
    %c7_1425 = arith.constant 7 : index
    %c0_1426 = arith.constant 0 : index
    %2092 = memref.load %arg2[%c7_1425, %c0_1426] : memref<8x9xf32, #tpu.memory_space<smem>>
    %2093 = arith.truncf %2092 : f32 to bf16
    %c5_1427 = arith.constant 5 : index
    %c0_1428 = arith.constant 0 : index
    %c0_1429 = arith.constant 0 : index
    %2094 = vector.load %arg1[%c5_1427, %c0_1428, %c0_1429] : memref<16x16x128xbf16, #tpu.memory_space<vmem>>, vector<1x16x128xbf16>
    %2095 = vector.shape_cast %2094 : vector<1x16x128xbf16> to vector<16x128xbf16>
    %2096 = vector.broadcast %2093 : bf16 to vector<16x128xbf16>
    %2097 = arith.mulf %2096, %2095 : vector<16x128xbf16>
    %c7_1430 = arith.constant 7 : index
    %c1_1431 = arith.constant 1 : index
    %2098 = memref.load %arg2[%c7_1430, %c1_1431] : memref<8x9xf32, #tpu.memory_space<smem>>
    %2099 = arith.truncf %2098 : f32 to bf16
    %c6_1432 = arith.constant 6 : index
    %c0_1433 = arith.constant 0 : index
    %c0_1434 = arith.constant 0 : index
    %2100 = vector.load %arg1[%c6_1432, %c0_1433, %c0_1434] : memref<16x16x128xbf16, #tpu.memory_space<vmem>>, vector<1x16x128xbf16>
    %2101 = vector.shape_cast %2100 : vector<1x16x128xbf16> to vector<16x128xbf16>
    %2102 = vector.broadcast %2099 : bf16 to vector<16x128xbf16>
    %2103 = arith.mulf %2102, %2101 : vector<16x128xbf16>
    %2104 = arith.addf %2097, %2103 : vector<16x128xbf16>
    %c7_1435 = arith.constant 7 : index
    %c2_1436 = arith.constant 2 : index
    %2105 = memref.load %arg2[%c7_1435, %c2_1436] : memref<8x9xf32, #tpu.memory_space<smem>>
    %2106 = arith.truncf %2105 : f32 to bf16
    %c7_1437 = arith.constant 7 : index
    %c0_1438 = arith.constant 0 : index
    %c0_1439 = arith.constant 0 : index
    %2107 = vector.load %arg1[%c7_1437, %c0_1438, %c0_1439] : memref<16x16x128xbf16, #tpu.memory_space<vmem>>, vector<1x16x128xbf16>
    %2108 = vector.shape_cast %2107 : vector<1x16x128xbf16> to vector<16x128xbf16>
    %2109 = vector.broadcast %2106 : bf16 to vector<16x128xbf16>
    %2110 = arith.mulf %2109, %2108 : vector<16x128xbf16>
    %2111 = arith.addf %2104, %2110 : vector<16x128xbf16>
    %c7_1440 = arith.constant 7 : index
    %c3_1441 = arith.constant 3 : index
    %2112 = memref.load %arg2[%c7_1440, %c3_1441] : memref<8x9xf32, #tpu.memory_space<smem>>
    %2113 = arith.truncf %2112 : f32 to bf16
    %c9_1442 = arith.constant 9 : index
    %c0_1443 = arith.constant 0 : index
    %c0_1444 = arith.constant 0 : index
    %2114 = vector.load %arg1[%c9_1442, %c0_1443, %c0_1444] : memref<16x16x128xbf16, #tpu.memory_space<vmem>>, vector<1x16x128xbf16>
    %2115 = vector.shape_cast %2114 : vector<1x16x128xbf16> to vector<16x128xbf16>
    %2116 = vector.broadcast %2113 : bf16 to vector<16x128xbf16>
    %2117 = arith.mulf %2116, %2115 : vector<16x128xbf16>
    %2118 = arith.addf %2111, %2117 : vector<16x128xbf16>
    %c7_1445 = arith.constant 7 : index
    %c4_1446 = arith.constant 4 : index
    %2119 = memref.load %arg2[%c7_1445, %c4_1446] : memref<8x9xf32, #tpu.memory_space<smem>>
    %2120 = arith.truncf %2119 : f32 to bf16
    %c10_1447 = arith.constant 10 : index
    %c0_1448 = arith.constant 0 : index
    %c0_1449 = arith.constant 0 : index
    %2121 = vector.load %arg1[%c10_1447, %c0_1448, %c0_1449] : memref<16x16x128xbf16, #tpu.memory_space<vmem>>, vector<1x16x128xbf16>
    %2122 = vector.shape_cast %2121 : vector<1x16x128xbf16> to vector<16x128xbf16>
    %2123 = vector.broadcast %2120 : bf16 to vector<16x128xbf16>
    %2124 = arith.mulf %2123, %2122 : vector<16x128xbf16>
    %2125 = arith.addf %2118, %2124 : vector<16x128xbf16>
    %c7_1450 = arith.constant 7 : index
    %c5_1451 = arith.constant 5 : index
    %2126 = memref.load %arg2[%c7_1450, %c5_1451] : memref<8x9xf32, #tpu.memory_space<smem>>
    %2127 = arith.truncf %2126 : f32 to bf16
    %c11_1452 = arith.constant 11 : index
    %c0_1453 = arith.constant 0 : index
    %c0_1454 = arith.constant 0 : index
    %2128 = vector.load %arg1[%c11_1452, %c0_1453, %c0_1454] : memref<16x16x128xbf16, #tpu.memory_space<vmem>>, vector<1x16x128xbf16>
    %2129 = vector.shape_cast %2128 : vector<1x16x128xbf16> to vector<16x128xbf16>
    %2130 = vector.broadcast %2127 : bf16 to vector<16x128xbf16>
    %2131 = arith.mulf %2130, %2129 : vector<16x128xbf16>
    %2132 = arith.addf %2125, %2131 : vector<16x128xbf16>
    %c7_1455 = arith.constant 7 : index
    %c6_1456 = arith.constant 6 : index
    %2133 = memref.load %arg2[%c7_1455, %c6_1456] : memref<8x9xf32, #tpu.memory_space<smem>>
    %2134 = arith.truncf %2133 : f32 to bf16
    %c13_1457 = arith.constant 13 : index
    %c0_1458 = arith.constant 0 : index
    %c0_1459 = arith.constant 0 : index
    %2135 = vector.load %arg1[%c13_1457, %c0_1458, %c0_1459] : memref<16x16x128xbf16, #tpu.memory_space<vmem>>, vector<1x16x128xbf16>
    %2136 = vector.shape_cast %2135 : vector<1x16x128xbf16> to vector<16x128xbf16>
    %2137 = vector.broadcast %2134 : bf16 to vector<16x128xbf16>
    %2138 = arith.mulf %2137, %2136 : vector<16x128xbf16>
    %2139 = arith.addf %2132, %2138 : vector<16x128xbf16>
    %c7_1460 = arith.constant 7 : index
    %c7_1461 = arith.constant 7 : index
    %2140 = memref.load %arg2[%c7_1460, %c7_1461] : memref<8x9xf32, #tpu.memory_space<smem>>
    %2141 = arith.truncf %2140 : f32 to bf16
    %c14_1462 = arith.constant 14 : index
    %c0_1463 = arith.constant 0 : index
    %c0_1464 = arith.constant 0 : index
    %2142 = vector.load %arg1[%c14_1462, %c0_1463, %c0_1464] : memref<16x16x128xbf16, #tpu.memory_space<vmem>>, vector<1x16x128xbf16>
    %2143 = vector.shape_cast %2142 : vector<1x16x128xbf16> to vector<16x128xbf16>
    %2144 = vector.broadcast %2141 : bf16 to vector<16x128xbf16>
    %2145 = arith.mulf %2144, %2143 : vector<16x128xbf16>
    %2146 = arith.addf %2139, %2145 : vector<16x128xbf16>
    %c7_1465 = arith.constant 7 : index
    %c8_1466 = arith.constant 8 : index
    %2147 = memref.load %arg2[%c7_1465, %c8_1466] : memref<8x9xf32, #tpu.memory_space<smem>>
    %2148 = arith.truncf %2147 : f32 to bf16
    %c15_1467 = arith.constant 15 : index
    %c0_1468 = arith.constant 0 : index
    %c0_1469 = arith.constant 0 : index
    %2149 = vector.load %arg1[%c15_1467, %c0_1468, %c0_1469] : memref<16x16x128xbf16, #tpu.memory_space<vmem>>, vector<1x16x128xbf16>
    %2150 = vector.shape_cast %2149 : vector<1x16x128xbf16> to vector<16x128xbf16>
    %2151 = vector.broadcast %2148 : bf16 to vector<16x128xbf16>
    %2152 = arith.mulf %2151, %2150 : vector<16x128xbf16>
    %2153 = arith.addf %2146, %2152 : vector<16x128xbf16>
    %2154 = vector.broadcast %1891 : bf16 to vector<16x128xbf16>
    %2155 = arith.addf %2153, %2154 : vector<16x128xbf16>
    %cst_1470 = arith.constant 0.000000e+00 : bf16
    %2156 = vector.broadcast %cst_1470 : bf16 to vector<16x128xbf16>
    %2157 = arith.maximumf %2155, %2156 : vector<16x128xbf16>
    %2158 = arith.maximumf %2091, %2157 : vector<16x128xbf16>
    %c0_1471 = arith.constant 0 : index
    %c896 = arith.constant 896 : index
    %2159 = vector.load %arg9[%c0_1471, %c896] : memref<16x1024xbf16, #tpu.memory_space<vmem>>, vector<16x128xbf16>
    tpu.vector_store %arg9[%c0_1471, %c896], %2158 {strides = array<i32>} : memref<16x1024xbf16, #tpu.memory_space<vmem>>, vector<16x128xbf16>,
    %c0_1472 = arith.constant 0 : index
    %c0_1473 = arith.constant 0 : index
    %2160 = vector.load %arg9[%c0_1472, %c0_1473] : memref<16x1024xbf16, #tpu.memory_space<vmem>>, vector<16x1024xbf16>
    %c0_1474 = arith.constant 0 : index
    %c0_1475 = arith.constant 0 : index
    %2161 = vector.load %arg5[%c0_1474, %c0_1475] : memref<1024x128xbf16, #tpu.memory_space<vmem>>, vector<1024x128xbf16>
    %cst_1476 = arith.constant dense<0.000000e+00> : vector<16x128xf32>
    %2162 = tpu.matmul %2160, %2161, %cst_1476 {dimension_numbers = #tpu.dot_dimension_numbers<[1], [0], [0], [1], [0, 0, 1, 1], [], []>} : vector<16x1024xbf16>, vector<1024x128xbf16>, vector<16x128xf32> -> vector<16x128xf32>
    %c0_1477 = arith.constant 0 : index
    %c0_1478 = arith.constant 0 : index
    %2163 = vector.load %arg4[%c0_1477, %c0_1478] : memref<16x128xbf16, #tpu.memory_space<vmem>>, vector<16x128xbf16>
    %2164 = arith.extf %2163 : vector<16x128xbf16> to vector<16x128xf32>
    %2165 = arith.addf %2162, %2164 : vector<16x128xf32>
    %cst_1479 = arith.constant 0.000000e+00 : f32
    %2166 = vector.broadcast %cst_1479 : f32 to vector<16x128xf32>
    %2167 = arith.maximumf %2165, %2166 : vector<16x128xf32>
    %c0_1480 = arith.constant 0 : index
    %c0_1481 = arith.constant 0 : index
    %2168 = vector.load %arg6[%c0_1480, %c0_1481] : memref<1x128xf32, #tpu.memory_space<vmem>>, vector<1x128xf32>
    %cst_1482 = arith.constant dense<0.000000e+00> : vector<1x16xf32>
    %2169 = tpu.matmul %2168, %2167, %cst_1482 {dimension_numbers = #tpu.dot_dimension_numbers<[1], [1], [0], [0], [0, 0, 1, 0], [], []>} : vector<1x128xf32>, vector<16x128xf32>, vector<1x16xf32> -> vector<1x16xf32>
    %c0_1483 = arith.constant 0 : index
    %2170 = memref.load %arg7[%c0_1483] : memref<1xf32, #tpu.memory_space<smem>>
    %2171 = vector.broadcast %2170 : f32 to vector<1x16xf32>
    %2172 = arith.addf %2169, %2171 : vector<1x16xf32>
    %2173 = vector.shape_cast %2172 : vector<1x16xf32> to vector<1x1x16xf32>
    %c0_1484 = arith.constant 0 : index
    %c0_1485 = arith.constant 0 : index
    %c0_1486 = arith.constant 0 : index
    %2174 = vector.load %arg8[%c0_1484, %c0_1485, %c0_1486] : memref<1x1x16xf32, #tpu.memory_space<vmem>>, vector<1x1x16xf32>
    tpu.vector_store %arg8[%c0_1484, %c0_1485, %c0_1486], %2173 {strides = array<i32>} : memref<1x1x16xf32, #tpu.memory_space<vmem>>, vector<1x1x16xf32>,
    return
  }
  func.func @transform_0(%arg0: i32) -> (i32, i32, i32) {
    %c0_i32 = arith.constant 0 : i32
    %c0_i32_0 = arith.constant 0 : i32
    %c0_i32_1 = arith.constant 0 : i32
    return %c0_i32, %arg0, %c0_i32_0 : i32, i32, i32
  }
  func.func @transform_1(%arg0: i32) -> (i32, i32) {
    %c0_i32 = arith.constant 0 : i32
    %c0_i32_0 = arith.constant 0 : i32
    %c0_i32_1 = arith.constant 0 : i32
    return %c0_i32, %c0_i32_0 : i32, i32
  }
  func.func @transform_2(%arg0: i32) -> i32 {
    %c0_i32 = arith.constant 0 : i32
    %c0_i32_0 = arith.constant 0 : i32
    return %c0_i32 : i32
  }
  func.func @transform_3(%arg0: i32) -> (i32, i32) {
    %c0_i32 = arith.constant 0 : i32
    %c0_i32_0 = arith.constant 0 : i32
    return %arg0, %c0_i32 : i32, i32
  }
  func.func @transform_4(%arg0: i32) -> (i32, i32) {
    %c0_i32 = arith.constant 0 : i32
    %c0_i32_0 = arith.constant 0 : i32
    %c0_i32_1 = arith.constant 0 : i32
    return %c0_i32, %c0_i32_0 : i32, i32
  }
  func.func @transform_5(%arg0: i32) -> (i32, i32) {
    %c0_i32 = arith.constant 0 : i32
    %c0_i32_0 = arith.constant 0 : i32
    %c0_i32_1 = arith.constant 0 : i32
    return %c0_i32, %c0_i32_0 : i32, i32
  }
  func.func @transform_6(%arg0: i32) -> i32 {
    %c0_i32 = arith.constant 0 : i32
    %c0_i32_0 = arith.constant 0 : i32
    return %c0_i32 : i32
  }
  func.func @transform_7(%arg0: i32) -> (i32, i32, i32) {
    %c0_i32 = arith.constant 0 : i32
    %c0_i32_0 = arith.constant 0 : i32
    %c0_i32_1 = arith.constant 0 : i32
    return %arg0, %c0_i32, %c0_i32_0 : i32, i32, i32
  }
}

</mosaic_0001>

<llo_original>
// kernel: reward_forward.1
$region0: #{reward_forward.1}
  #allocation0 [shape = 'u32[]', space=smem, size = 0x4, offset = 0x4, fixed_abs, tag = 'smem constant byte address 0x4 - core index']
  #allocation1 [shape = 'u32[144,128]{1,0:T(1,128)}', space=vmem, size = 0x12000, scoped, tag = 'internal scratch']
  #allocation2 [shape = 'bf16[16,1024]{1,0:T(16,128)(2,1)}', space=vmem, size = 0x8000, scoped, tag = 'scratch operand']
  #allocation3 [shape = 'f32[1]{0:T(128)S(6)}', space=smem, size = 0x200, scoped, tag = 'scoped memory for reward_forward.1']
  %s0 = inlined_call_operand.vmem [shape: bf16[16,16,128], index: 0, kind: input, shape index: {}]
  %s1 = inlined_call_operand.vmem [shape: f32[8,9], index: 1, kind: input, shape index: {}]
  %s2 = inlined_call_operand.vmem [shape: f32[8], index: 2, kind: input, shape index: {}]
  %s3 = inlined_call_operand.vmem [shape: bf16[16,128], index: 3, kind: input, shape index: {}]
  %s4 = inlined_call_operand.vmem [shape: bf16[1024,128], index: 4, kind: input, shape index: {}]
  %s5 = inlined_call_operand.vmem [shape: f32[1,128], index: 5, kind: input, shape index: {}]
  %s6 = inlined_call_operand.<no memory space> [shape: f32[1], index: 6, kind: input, shape index: {}]
  %s7 = inlined_call_operand.vmem [shape: f32[1,1,16], index: 7, kind: output, shape index: {}]
  %s8 = sld [smem:[#allocation0]]
  $region46: #{reward_forward.1} parent=0
    _
  %s10 = ssub.s32 1, %s8
  %s11 = scalar_select 0, %s10, %s8
  %12 = sst [smem:[#allocation3]] %s6
  $region1: #{reward_forward.1} parent=0
    #allocation4 [shape = 'u8[4096]{0}', space=smem, size = 0x1000, scoped, tag = 'input window, operand 1, single buffered']
    #allocation5 [shape = 's32[1]{0}', space=sflag, size = 0x4, scoped, tag = 'scoped memory for reward_forward.1']
    #allocation6 [shape = 'u8[512]{0}', space=smem, size = 0x200, scoped, tag = 'input window, operand 2, single buffered']
    #allocation7 [shape = 's32[1]{0}', space=sflag, size = 0x4, scoped, tag = 'scoped memory for reward_forward.1']
    %13 = vsyncpa [#allocation5], 0
    %14 = vsyncpa [#allocation7], 0
    // Predicated region
    $region2: #{reward_forward.1} parent=1 // pred_check
      _
    $region3: #{reward_forward.1} parent=1 // pred_check_branch
      %16 = sbr.rel (0) target = $region5
    $region4: #{reward_forward.1} parent=1 // pred_region
      _
    $region5: #{reward_forward.1} parent=1 // pred_fallthru
      _
    // Predicated region
    $region6: #{reward_forward.1} parent=1 // pred_check
      _
    $region7: #{reward_forward.1} parent=1 // pred_check_branch
      %18 = sbr.rel (0) target = $region9
    $region8: #{reward_forward.1} parent=1 // pred_region
      %s20 = ssub.s32 128, 128
      %21 = vsyncadd [#allocation5], %s20
      %s23 = sshll.u32 %s1, 4
      %s24 = int_to_ptr.vmem [resolvable:$true] %s23
      %26 = dma.vmem_to_smem %s24, 128, [#allocation4], [#allocation5]
    $region9: #{reward_forward.1} parent=1 // pred_fallthru
      _
    // Predicated region
    $region10: #{reward_forward.1} parent=1 // pred_check
      _
    $region11: #{reward_forward.1} parent=1 // pred_check_branch
      %28 = sbr.rel (0) target = $region13
    $region12: #{reward_forward.1} parent=1 // pred_region
      %s30 = ssub.s32 16, 16
      %31 = vsyncadd [#allocation7], %s30
      %s33 = sshll.u32 %s2, 4
      %s34 = int_to_ptr.vmem [resolvable:$true] %s33
      %36 = dma.vmem_to_smem %s34, 16, [#allocation6], [#allocation7]
    $region13: #{reward_forward.1} parent=1 // pred_fallthru
      _
    // Predicated region
    $region14: #{reward_forward.1} parent=1 // pred_check
      _
    $region15: #{reward_forward.1} parent=1 // pred_check_branch
      %38 = sbr.rel (0) target = $region17
    $region16: #{reward_forward.1} parent=1 // pred_region
      _
    $region17: #{reward_forward.1} parent=1 // pred_fallthru
      _
    // Predicated region
    $region18: #{reward_forward.1} parent=1 // pred_check
      _
    $region19: #{reward_forward.1} parent=1 // pred_check_branch
      %40 = sbr.rel (0) target = $region21
    $region20: #{reward_forward.1} parent=1 // pred_region
      _
    $region21: #{reward_forward.1} parent=1 // pred_fallthru
      _
    // Predicated region
    $region22: #{reward_forward.1} parent=1 // pred_check
      _
    $region23: #{reward_forward.1} parent=1 // pred_check_branch
      %42 = sbr.rel (0) target = $region25
    $region24: #{reward_forward.1} parent=1 // pred_region
      _
    $region25: #{reward_forward.1} parent=1 // pred_fallthru
      _
    // Predicated region
    $region26: #{reward_forward.1} parent=1 // pred_check
      _
    $region27: #{reward_forward.1} parent=1 // pred_check_branch
      %44 = sbr.rel (0) target = $region29
    $region28: #{reward_forward.1} parent=1 // pred_region
      _
    $region29: #{reward_forward.1} parent=1 // pred_fallthru
      _
    // Predicated region
    $region30: #{reward_forward.1} parent=1 // pred_check
      _
    $region31: #{reward_forward.1} parent=1 // pred_check_branch
      %46 = sbr.rel (0) target = $region33
    $region32: #{reward_forward.1} parent=1 // pred_region
      %47 = dma.done [#allocation5], 128
    $region33: #{reward_forward.1} parent=1 // pred_fallthru
      _
    // Predicated region
    $region34: #{reward_forward.1} parent=1 // pred_check
      _
    $region35: #{reward_forward.1} parent=1 // pred_check_branch
      %49 = sbr.rel (0) target = $region37
    $region36: #{reward_forward.1} parent=1 // pred_region
      %50 = dma.done [#allocation7], 16
    $region37: #{reward_forward.1} parent=1 // pred_fallthru
      _
    %51 = sfence
    %s53 = sld [smem:[#allocation6]]
    %p55 = scmp.ne.f32.partialorder %s53, %s53
    %s56 = sshrl.u32 %s53, 16
    %s57 = sand.u32 %s56, 1
    %s58 = sadd.s32 32767, %s57
    %s59 = sadd.s32 %s53, %s58
    %s60 = sand.u32 %s59, 4294901760
    %s61 = scalar_select %p55, 2143289344, %s60
    %s63 = sshrl.u32 %s61, 16
    %s64 = sld [smem:[#allocation4]]
    %p66 = scmp.ne.f32.partialorder %s64, %s64
    %s67 = sshrl.u32 %s64, 16
    %s68 = sand.u32 %s67, 1
    %s69 = sadd.s32 32767, %s68
    %s70 = sadd.s32 %s64, %s69
    %s71 = sand.u32 %s70, 4294901760
    %s72 = scalar_select %p66, 2143289344, %s71
    %s74 = sshrl.u32 %s72, 16
    %v75 = vld [vmem:[%s0] sm:$0xf]
    %v76 = vld [vmem:[%s0 + $0x4] sm:$0xf]
    %s77 = sshll.u32 %s74, 16
    %s78 = sor.u32 %s74, %s77
    %v79 = vstv %s78
    %v81 = vmul.bf16 %v79, %v75
    %v82 = vmul.bf16 %v79, %v76
    %s83 = sld [smem:[#allocation4 + $0x1]]
    %p85 = scmp.ne.f32.partialorder %s83, %s83
    %s86 = sshrl.u32 %s83, 16
    %s87 = sand.u32 %s86, 1
    %s88 = sadd.s32 32767, %s87
    %s89 = sadd.s32 %s83, %s88
    %s90 = sand.u32 %s89, 4294901760
    %s91 = scalar_select %p85, 2143289344, %s90
    %s93 = sshrl.u32 %s91, 16
    %s94 = scalar_lea.vmem %s0, 8
    %v95 = vld [vmem:[%s94] sm:$0xf]
    %v96 = vld [vmem:[%s94 + $0x4] sm:$0xf]
    %s97 = sshll.u32 %s93, 16
    %s98 = sor.u32 %s93, %s97
    %v99 = vstv %s98
    %v101 = vmul.bf16 %v99, %v95
    %v102 = vmul.bf16 %v99, %v96
    %v103 = vadd.bf16 %v81, %v101
    %v104 = vadd.bf16 %v82, %v102
    %s105 = sld [smem:[#allocation4 + $0x2]]
    %p107 = scmp.ne.f32.partialorder %s105, %s105
    %s108 = sshrl.u32 %s105, 16
    %s109 = sand.u32 %s108, 1
    %s110 = sadd.s32 32767, %s109
    %s111 = sadd.s32 %s105, %s110
    %s112 = sand.u32 %s111, 4294901760
    %s113 = scalar_select %p107, 2143289344, %s112
    %s115 = sshrl.u32 %s113, 16
    %s116 = scalar_lea.vmem %s0, 16
    %v117 = vld [vmem:[%s116] sm:$0xf]
    %v118 = vld [vmem:[%s116 + $0x4] sm:$0xf]
    %s119 = sshll.u32 %s115, 16
    %s120 = sor.u32 %s115, %s119
    %v121 = vstv %s120
    %v123 = vmul.bf16 %v121, %v117
    %v124 = vmul.bf16 %v121, %v118
    %v125 = vadd.bf16 %v103, %v123
    %v126 = vadd.bf16 %v104, %v124
    %s127 = sld [smem:[#allocation4 + $0x3]]
    %p129 = scmp.ne.f32.partialorder %s127, %s127
    %s130 = sshrl.u32 %s127, 16
    %s131 = sand.u32 %s130, 1
    %s132 = sadd.s32 32767, %s131
    %s133 = sadd.s32 %s127, %s132
    %s134 = sand.u32 %s133, 4294901760
    %s135 = scalar_select %p129, 2143289344, %s134
    %s137 = sshrl.u32 %s135, 16
    %s138 = scalar_lea.vmem %s0, 32
    %v139 = vld [vmem:[%s138] sm:$0xf]
    %v140 = vld [vmem:[%s138 + $0x4] sm:$0xf]
    %s141 = sshll.u32 %s137, 16
    %s142 = sor.u32 %s137, %s141
    %v143 = vstv %s142
    %v145 = vmul.bf16 %v143, %v139
    %v146 = vmul.bf16 %v143, %v140
    %v147 = vadd.bf16 %v125, %v145
    %v148 = vadd.bf16 %v126, %v146
    %s149 = sld [smem:[#allocation4 + $0x4]]
    %p151 = scmp.ne.f32.partialorder %s149, %s149
    %s152 = sshrl.u32 %s149, 16
    %s153 = sand.u32 %s152, 1
    %s154 = sadd.s32 32767, %s153
    %s155 = sadd.s32 %s149, %s154
    %s156 = sand.u32 %s155, 4294901760
    %s157 = scalar_select %p151, 2143289344, %s156
    %s159 = sshrl.u32 %s157, 16
    %s160 = scalar_lea.vmem %s0, 40
    %v161 = vld [vmem:[%s160] sm:$0xf]
    %v162 = vld [vmem:[%s160 + $0x4] sm:$0xf]
    %s163 = sshll.u32 %s159, 16
    %s164 = sor.u32 %s159, %s163
    %v165 = vstv %s164
    %v167 = vmul.bf16 %v165, %v161
    %v168 = vmul.bf16 %v165, %v162
    %v169 = vadd.bf16 %v147, %v167
    %v170 = vadd.bf16 %v148, %v168
    %s171 = sld [smem:[#allocation4 + $0x5]]
    %p173 = scmp.ne.f32.partialorder %s171, %s171
    %s174 = sshrl.u32 %s171, 16
    %s175 = sand.u32 %s174, 1
    %s176 = sadd.s32 32767, %s175
    %s177 = sadd.s32 %s171, %s176
    %s178 = sand.u32 %s177, 4294901760
    %s179 = scalar_select %p173, 2143289344, %s178
    %s181 = sshrl.u32 %s179, 16
    %s182 = scalar_lea.vmem %s0, 48
    %v183 = vld [vmem:[%s182] sm:$0xf]
    %v184 = vld [vmem:[%s182 + $0x4] sm:$0xf]
    %s185 = sshll.u32 %s181, 16
    %s186 = sor.u32 %s181, %s185
    %v187 = vstv %s186
    %v189 = vmul.bf16 %v187, %v183
    %v190 = vmul.bf16 %v187, %v184
    %v191 = vadd.bf16 %v169, %v189
    %v192 = vadd.bf16 %v170, %v190
    %s193 = sld [smem:[#allocation4 + $0x6]]
    %p195 = scmp.ne.f32.partialorder %s193, %s193
    %s196 = sshrl.u32 %s193, 16
    %s197 = sand.u32 %s196, 1
    %s198 = sadd.s32 32767, %s197
    %s199 = sadd.s32 %s193, %s198
    %s200 = sand.u32 %s199, 4294901760
    %s201 = scalar_select %p195, 2143289344, %s200
    %s203 = sshrl.u32 %s201, 16
    %s204 = scalar_lea.vmem %s0, 64
    %v205 = vld [vmem:[%s204] sm:$0xf]
    %v206 = vld [vmem:[%s204 + $0x4] sm:$0xf]
    %s207 = sshll.u32 %s203, 16
    %s208 = sor.u32 %s203, %s207
    %v209 = vstv %s208
    %v211 = vmul.bf16 %v209, %v205
    %v212 = vmul.bf16 %v209, %v206
    %v213 = vadd.bf16 %v191, %v211
    %v214 = vadd.bf16 %v192, %v212
    %s215 = sld [smem:[#allocation4 + $0x7]]
    %p217 = scmp.ne.f32.partialorder %s215, %s215
    %s218 = sshrl.u32 %s215, 16
    %s219 = sand.u32 %s218, 1
    %s220 = sadd.s32 32767, %s219
    %s221 = sadd.s32 %s215, %s220
    %s222 = sand.u32 %s221, 4294901760
    %s223 = scalar_select %p217, 2143289344, %s222
    %s225 = sshrl.u32 %s223, 16
    %s226 = scalar_lea.vmem %s0, 72
    %v227 = vld [vmem:[%s226] sm:$0xf]
    %v228 = vld [vmem:[%s226 + $0x4] sm:$0xf]
    %s229 = sshll.u32 %s225, 16
    %s230 = sor.u32 %s225, %s229
    %v231 = vstv %s230
    %v233 = vmul.bf16 %v231, %v227
    %v234 = vmul.bf16 %v231, %v228
    %v235 = vadd.bf16 %v213, %v233
    %v236 = vadd.bf16 %v214, %v234
    %s237 = sld [smem:[#allocation4 + $0x8]]
    %p239 = scmp.ne.f32.partialorder %s237, %s237
    %s240 = sshrl.u32 %s237, 16
    %s241 = sand.u32 %s240, 1
    %s242 = sadd.s32 32767, %s241
    %s243 = sadd.s32 %s237, %s242
    %s244 = sand.u32 %s243, 4294901760
    %s245 = scalar_select %p239, 2143289344, %s244
    %s247 = sshrl.u32 %s245, 16
    %s248 = scalar_lea.vmem %s0, 80
    %v249 = vld [vmem:[%s248] sm:$0xf]
    %v250 = vld [vmem:[%s248 + $0x4] sm:$0xf]
    %s251 = sshll.u32 %s247, 16
    %s252 = sor.u32 %s247, %s251
    %v253 = vstv %s252
    %v255 = vmul.bf16 %v253, %v249
    %v256 = vmul.bf16 %v253, %v250
    %v257 = vadd.bf16 %v235, %v255
    %v258 = vadd.bf16 %v236, %v256
    %s259 = sshll.u32 %s63, 16
    %s260 = sor.u32 %s63, %s259
    %v261 = vstv %s260
    %v263 = vadd.bf16 %v257, %v261
    %v264 = vadd.bf16 %v258, %v261
    %v265 = vmax.bf16 %v263, 0
    %v266 = vmax.bf16 %v264, 0
    %v267 = vmul.bf16 %v79, %v95
    %v268 = vmul.bf16 %v79, %v96
    %v269 = vmul.bf16 %v99, %v117
    %v270 = vmul.bf16 %v99, %v118
    %v271 = vadd.bf16 %v267, %v269
    %v272 = vadd.bf16 %v268, %v270
    %s273 = scalar_lea.vmem %s0, 24
    %v274 = vld [vmem:[%s273] sm:$0xf]
    %v275 = vld [vmem:[%s273 + $0x4] sm:$0xf]
    %v276 = vmul.bf16 %v121, %v274
    %v277 = vmul.bf16 %v121, %v275
    %v278 = vadd.bf16 %v271, %v276
    %v279 = vadd.bf16 %v272, %v277
    %v280 = vmul.bf16 %v143, %v161
    %v281 = vmul.bf16 %v143, %v162
    %v282 = vadd.bf16 %v278, %v280
    %v283 = vadd.bf16 %v279, %v281
    %v284 = vmul.bf16 %v165, %v183
    %v285 = vmul.bf16 %v165, %v184
    %v286 = vadd.bf16 %v282, %v284
    %v287 = vadd.bf16 %v283, %v285
    %s288 = scalar_lea.vmem %s0, 56
    %v289 = vld [vmem:[%s288] sm:$0xf]
    %v290 = vld [vmem:[%s288 + $0x4] sm:$0xf]
    %v291 = vmul.bf16 %v187, %v289
    %v292 = vmul.bf16 %v187, %v290
    %v293 = vadd.bf16 %v286, %v291
    %v294 = vadd.bf16 %v287, %v292
    %v295 = vmul.bf16 %v209, %v227
    %v296 = vmul.bf16 %v209, %v228
    %v297 = vadd.bf16 %v293, %v295
    %v298 = vadd.bf16 %v294, %v296
    %v299 = vmul.bf16 %v231, %v249
    %v300 = vmul.bf16 %v231, %v250
    %v301 = vadd.bf16 %v297, %v299
    %v302 = vadd.bf16 %v298, %v300
    %s303 = scalar_lea.vmem %s0, 88
    %v304 = vld [vmem:[%s303] sm:$0xf]
    %v305 = vld [vmem:[%s303 + $0x4] sm:$0xf]
    %v306 = vmul.bf16 %v253, %v304
    %v307 = vmul.bf16 %v253, %v305
    %v308 = vadd.bf16 %v301, %v306
    %v309 = vadd.bf16 %v302, %v307
    %v310 = vadd.bf16 %v308, %v261
    %v311 = vadd.bf16 %v309, %v261
    %v312 = vmax.bf16 %v310, 0
    %v313 = vmax.bf16 %v311, 0
    %v314 = vmax.bf16 %v265, %v312
    %v315 = vmax.bf16 %v266, %v313
    %v316 = vmul.bf16 %v79, %v139
    %v317 = vmul.bf16 %v79, %v140
    %v318 = vmul.bf16 %v99, %v161
    %v319 = vmul.bf16 %v99, %v162
    %v320 = vadd.bf16 %v316, %v318
    %v321 = vadd.bf16 %v317, %v319
    %v322 = vmul.bf16 %v121, %v183
    %v323 = vmul.bf16 %v121, %v184
    %v324 = vadd.bf16 %v320, %v322
    %v325 = vadd.bf16 %v321, %v323
    %v326 = vmul.bf16 %v143, %v205
    %v327 = vmul.bf16 %v143, %v206
    %v328 = vadd.bf16 %v324, %v326
    %v329 = vadd.bf16 %v325, %v327
    %v330 = vmul.bf16 %v165, %v227
    %v331 = vmul.bf16 %v165, %v228
    %v332 = vadd.bf16 %v328, %v330
    %v333 = vadd.bf16 %v329, %v331
    %v334 = vmul.bf16 %v187, %v249
    %v335 = vmul.bf16 %v187, %v250
    %v336 = vadd.bf16 %v332, %v334
    %v337 = vadd.bf16 %v333, %v335
    %s338 = scalar_lea.vmem %s0, 96
    %v339 = vld [vmem:[%s338] sm:$0xf]
    %v340 = vld [vmem:[%s338 + $0x4] sm:$0xf]
    %v341 = vmul.bf16 %v209, %v339
    %v342 = vmul.bf16 %v209, %v340
    %v343 = vadd.bf16 %v336, %v341
    %v344 = vadd.bf16 %v337, %v342
    %s345 = scalar_lea.vmem %s0, 104
    %v346 = vld [vmem:[%s345] sm:$0xf]
    %v347 = vld [vmem:[%s345 + $0x4] sm:$0xf]
    %v348 = vmul.bf16 %v231, %v346
    %v349 = vmul.bf16 %v231, %v347
    %v350 = vadd.bf16 %v343, %v348
    %v351 = vadd.bf16 %v344, %v349
    %s352 = scalar_lea.vmem %s0, 112
    %v353 = vld [vmem:[%s352] sm:$0xf]
    %v354 = vld [vmem:[%s352 + $0x4] sm:$0xf]
    %v355 = vmul.bf16 %v253, %v353
    %v356 = vmul.bf16 %v253, %v354
    %v357 = vadd.bf16 %v350, %v355
    %v358 = vadd.bf16 %v351, %v356
    %v359 = vadd.bf16 %v357, %v261
    %v360 = vadd.bf16 %v358, %v261
    %v361 = vmax.bf16 %v359, 0
    %v362 = vmax.bf16 %v360, 0
    %v363 = vmax.bf16 %v314, %v361
    %v364 = vmax.bf16 %v315, %v362
    %v365 = vmul.bf16 %v79, %v161
    %v366 = vmul.bf16 %v79, %v162
    %v367 = vmul.bf16 %v99, %v183
    %v368 = vmul.bf16 %v99, %v184
    %v369 = vadd.bf16 %v365, %v367
    %v370 = vadd.bf16 %v366, %v368
    %v371 = vmul.bf16 %v121, %v289
    %v372 = vmul.bf16 %v121, %v290
    %v373 = vadd.bf16 %v369, %v371
    %v374 = vadd.bf16 %v370, %v372
    %v375 = vmul.bf16 %v143, %v227
    %v376 = vmul.bf16 %v143, %v228
    %v377 = vadd.bf16 %v373, %v375
    %v378 = vadd.bf16 %v374, %v376
    %v379 = vmul.bf16 %v165, %v249
    %v380 = vmul.bf16 %v165, %v250
    %v381 = vadd.bf16 %v377, %v379
    %v382 = vadd.bf16 %v378, %v380
    %v383 = vmul.bf16 %v187, %v304
    %v384 = vmul.bf16 %v187, %v305
    %v385 = vadd.bf16 %v381, %v383
    %v386 = vadd.bf16 %v382, %v384
    %v387 = vmul.bf16 %v209, %v346
    %v388 = vmul.bf16 %v209, %v347
    %v389 = vadd.bf16 %v385, %v387
    %v390 = vadd.bf16 %v386, %v388
    %v391 = vmul.bf16 %v231, %v353
    %v392 = vmul.bf16 %v231, %v354
    %v393 = vadd.bf16 %v389, %v391
    %v394 = vadd.bf16 %v390, %v392
    %s395 = scalar_lea.vmem %s0, 120
    %v396 = vld [vmem:[%s395] sm:$0xf]
    %v397 = vld [vmem:[%s395 + $0x4] sm:$0xf]
    %v398 = vmul.bf16 %v253, %v396
    %v399 = vmul.bf16 %v253, %v397
    %v400 = vadd.bf16 %v393, %v398
    %v401 = vadd.bf16 %v394, %v399
    %v402 = vadd.bf16 %v400, %v261
    %v403 = vadd.bf16 %v401, %v261
    %v404 = vmax.bf16 %v402, 0
    %v405 = vmax.bf16 %v403, 0
    %v406 = vmax.bf16 %v363, %v404
    %v407 = vmax.bf16 %v364, %v405
    %v410 = vunpack.c.l.b16 %v406
    %v411 = vunpack.c.l.b16 %v407
    %v412 = vpack.c.b16 %v411, %v410
    %414 = vst [vmem:[#allocation2] sm:$0xff] %v412
    %s415 = sld [smem:[#allocation6 + $0x1]]
    %p417 = scmp.ne.f32.partialorder %s415, %s415
    %s418 = sshrl.u32 %s415, 16
    %s419 = sand.u32 %s418, 1
    %s420 = sadd.s32 32767, %s419
    %s421 = sadd.s32 %s415, %s420
    %s422 = sand.u32 %s421, 4294901760
    %s423 = scalar_select %p417, 2143289344, %s422
    %s425 = sshrl.u32 %s423, 16
    %s426 = sld [smem:[#allocation4 + $0x80]]
    %p428 = scmp.ne.f32.partialorder %s426, %s426
    %s429 = sshrl.u32 %s426, 16
    %s430 = sand.u32 %s429, 1
    %s431 = sadd.s32 32767, %s430
    %s432 = sadd.s32 %s426, %s431
    %s433 = sand.u32 %s432, 4294901760
    %s434 = scalar_select %p428, 2143289344, %s433
    %s436 = sshrl.u32 %s434, 16
    %v437 = vld [vmem:[%s0] sm:$0xf]
    %v438 = vld [vmem:[%s0 + $0x4] sm:$0xf]
    %s439 = sshll.u32 %s436, 16
    %s440 = sor.u32 %s436, %s439
    %v441 = vstv %s440
    %v443 = vmul.bf16 %v441, %v437
    %v444 = vmul.bf16 %v441, %v438
    %s445 = sld [smem:[#allocation4 + $0x81]]
    %p447 = scmp.ne.f32.partialorder %s445, %s445
    %s448 = sshrl.u32 %s445, 16
    %s449 = sand.u32 %s448, 1
    %s450 = sadd.s32 32767, %s449
    %s451 = sadd.s32 %s445, %s450
    %s452 = sand.u32 %s451, 4294901760
    %s453 = scalar_select %p447, 2143289344, %s452
    %s455 = sshrl.u32 %s453, 16
    %v456 = vld [vmem:[%s94] sm:$0xf]
    %v457 = vld [vmem:[%s94 + $0x4] sm:$0xf]
    %s458 = sshll.u32 %s455, 16
    %s459 = sor.u32 %s455, %s458
    %v460 = vstv %s459
    %v462 = vmul.bf16 %v460, %v456
    %v463 = vmul.bf16 %v460, %v457
    %v464 = vadd.bf16 %v443, %v462
    %v465 = vadd.bf16 %v444, %v463
    %s466 = sld [smem:[#allocation4 + $0x82]]
    %p468 = scmp.ne.f32.partialorder %s466, %s466
    %s469 = sshrl.u32 %s466, 16
    %s470 = sand.u32 %s469, 1
    %s471 = sadd.s32 32767, %s470
    %s472 = sadd.s32 %s466, %s471
    %s473 = sand.u32 %s472, 4294901760
    %s474 = scalar_select %p468, 2143289344, %s473
    %s476 = sshrl.u32 %s474, 16
    %v477 = vld [vmem:[%s116] sm:$0xf]
    %v478 = vld [vmem:[%s116 + $0x4] sm:$0xf]
    %s479 = sshll.u32 %s476, 16
    %s480 = sor.u32 %s476, %s479
    %v481 = vstv %s480
    %v483 = vmul.bf16 %v481, %v477
    %v484 = vmul.bf16 %v481, %v478
    %v485 = vadd.bf16 %v464, %v483
    %v486 = vadd.bf16 %v465, %v484
    %s487 = sld [smem:[#allocation4 + $0x83]]
    %p489 = scmp.ne.f32.partialorder %s487, %s487
    %s490 = sshrl.u32 %s487, 16
    %s491 = sand.u32 %s490, 1
    %s492 = sadd.s32 32767, %s491
    %s493 = sadd.s32 %s487, %s492
    %s494 = sand.u32 %s493, 4294901760
    %s495 = scalar_select %p489, 2143289344, %s494
    %s497 = sshrl.u32 %s495, 16
    %v498 = vld [vmem:[%s138] sm:$0xf]
    %v499 = vld [vmem:[%s138 + $0x4] sm:$0xf]
    %s500 = sshll.u32 %s497, 16
    %s501 = sor.u32 %s497, %s500
    %v502 = vstv %s501
    %v504 = vmul.bf16 %v502, %v498
    %v505 = vmul.bf16 %v502, %v499
    %v506 = vadd.bf16 %v485, %v504
    %v507 = vadd.bf16 %v486, %v505
    %s508 = sld [smem:[#allocation4 + $0x84]]
    %p510 = scmp.ne.f32.partialorder %s508, %s508
    %s511 = sshrl.u32 %s508, 16
    %s512 = sand.u32 %s511, 1
    %s513 = sadd.s32 32767, %s512
    %s514 = sadd.s32 %s508, %s513
    %s515 = sand.u32 %s514, 4294901760
    %s516 = scalar_select %p510, 2143289344, %s515
    %s518 = sshrl.u32 %s516, 16
    %v519 = vld [vmem:[%s160] sm:$0xf]
    %v520 = vld [vmem:[%s160 + $0x4] sm:$0xf]
    %s521 = sshll.u32 %s518, 16
    %s522 = sor.u32 %s518, %s521
    %v523 = vstv %s522
    %v525 = vmul.bf16 %v523, %v519
    %v526 = vmul.bf16 %v523, %v520
    %v527 = vadd.bf16 %v506, %v525
    %v528 = vadd.bf16 %v507, %v526
    %s529 = sld [smem:[#allocation4 + $0x85]]
    %p531 = scmp.ne.f32.partialorder %s529, %s529
    %s532 = sshrl.u32 %s529, 16
    %s533 = sand.u32 %s532, 1
    %s534 = sadd.s32 32767, %s533
    %s535 = sadd.s32 %s529, %s534
    %s536 = sand.u32 %s535, 4294901760
    %s537 = scalar_select %p531, 2143289344, %s536
    %s539 = sshrl.u32 %s537, 16
    %v540 = vld [vmem:[%s182] sm:$0xf]
    %v541 = vld [vmem:[%s182 + $0x4] sm:$0xf]
    %s542 = sshll.u32 %s539, 16
    %s543 = sor.u32 %s539, %s542
    %v544 = vstv %s543
    %v546 = vmul.bf16 %v544, %v540
    %v547 = vmul.bf16 %v544, %v541
    %v548 = vadd.bf16 %v527, %v546
    %v549 = vadd.bf16 %v528, %v547
    %s550 = sld [smem:[#allocation4 + $0x86]]
    %p552 = scmp.ne.f32.partialorder %s550, %s550
    %s553 = sshrl.u32 %s550, 16
    %s554 = sand.u32 %s553, 1
    %s555 = sadd.s32 32767, %s554
    %s556 = sadd.s32 %s550, %s555
    %s557 = sand.u32 %s556, 4294901760
    %s558 = scalar_select %p552, 2143289344, %s557
    %s560 = sshrl.u32 %s558, 16
    %v561 = vld [vmem:[%s204] sm:$0xf]
    %v562 = vld [vmem:[%s204 + $0x4] sm:$0xf]
    %s563 = sshll.u32 %s560, 16
    %s564 = sor.u32 %s560, %s563
    %v565 = vstv %s564
    %v567 = vmul.bf16 %v565, %v561
    %v568 = vmul.bf16 %v565, %v562
    %v569 = vadd.bf16 %v548, %v567
    %v570 = vadd.bf16 %v549, %v568
    %s571 = sld [smem:[#allocation4 + $0x87]]
    %p573 = scmp.ne.f32.partialorder %s571, %s571
    %s574 = sshrl.u32 %s571, 16
    %s575 = sand.u32 %s574, 1
    %s576 = sadd.s32 32767, %s575
    %s577 = sadd.s32 %s571, %s576
    %s578 = sand.u32 %s577, 4294901760
    %s579 = scalar_select %p573, 2143289344, %s578
    %s581 = sshrl.u32 %s579, 16
    %v582 = vld [vmem:[%s226] sm:$0xf]
    %v583 = vld [vmem:[%s226 + $0x4] sm:$0xf]
    %s584 = sshll.u32 %s581, 16
    %s585 = sor.u32 %s581, %s584
    %v586 = vstv %s585
    %v588 = vmul.bf16 %v586, %v582
    %v589 = vmul.bf16 %v586, %v583
    %v590 = vadd.bf16 %v569, %v588
    %v591 = vadd.bf16 %v570, %v589
    %s592 = sld [smem:[#allocation4 + $0x88]]
    %p594 = scmp.ne.f32.partialorder %s592, %s592
    %s595 = sshrl.u32 %s592, 16
    %s596 = sand.u32 %s595, 1
    %s597 = sadd.s32 32767, %s596
    %s598 = sadd.s32 %s592, %s597
    %s599 = sand.u32 %s598, 4294901760
    %s600 = scalar_select %p594, 2143289344, %s599
    %s602 = sshrl.u32 %s600, 16
    %v603 = vld [vmem:[%s248] sm:$0xf]
    %v604 = vld [vmem:[%s248 + $0x4] sm:$0xf]
    %s605 = sshll.u32 %s602, 16
    %s606 = sor.u32 %s602, %s605
    %v607 = vstv %s606
    %v609 = vmul.bf16 %v607, %v603
    %v610 = vmul.bf16 %v607, %v604
    %v611 = vadd.bf16 %v590, %v609
    %v612 = vadd.bf16 %v591, %v610
    %s613 = sshll.u32 %s425, 16
    %s614 = sor.u32 %s425, %s613
    %v615 = vstv %s614
    %v617 = vadd.bf16 %v611, %v615
    %v618 = vadd.bf16 %v612, %v615
    %v619 = vmax.bf16 %v617, 0
    %v620 = vmax.bf16 %v618, 0
    %v621 = vmul.bf16 %v441, %v456
    %v622 = vmul.bf16 %v441, %v457
    %v623 = vmul.bf16 %v460, %v477
    %v624 = vmul.bf16 %v460, %v478
    %v625 = vadd.bf16 %v621, %v623
    %v626 = vadd.bf16 %v622, %v624
    %v627 = vld [vmem:[%s273] sm:$0xf]
    %v628 = vld [vmem:[%s273 + $0x4] sm:$0xf]
    %v629 = vmul.bf16 %v481, %v627
    %v630 = vmul.bf16 %v481, %v628
    %v631 = vadd.bf16 %v625, %v629
    %v632 = vadd.bf16 %v626, %v630
    %v633 = vmul.bf16 %v502, %v519
    %v634 = vmul.bf16 %v502, %v520
    %v635 = vadd.bf16 %v631, %v633
    %v636 = vadd.bf16 %v632, %v634
    %v637 = vmul.bf16 %v523, %v540
    %v638 = vmul.bf16 %v523, %v541
    %v639 = vadd.bf16 %v635, %v637
    %v640 = vadd.bf16 %v636, %v638
    %v641 = vld [vmem:[%s288] sm:$0xf]
    %v642 = vld [vmem:[%s288 + $0x4] sm:$0xf]
    %v643 = vmul.bf16 %v544, %v641
    %v644 = vmul.bf16 %v544, %v642
    %v645 = vadd.bf16 %v639, %v643
    %v646 = vadd.bf16 %v640, %v644
    %v647 = vmul.bf16 %v565, %v582
    %v648 = vmul.bf16 %v565, %v583
    %v649 = vadd.bf16 %v645, %v647
    %v650 = vadd.bf16 %v646, %v648
    %v651 = vmul.bf16 %v586, %v603
    %v652 = vmul.bf16 %v586, %v604
    %v653 = vadd.bf16 %v649, %v651
    %v654 = vadd.bf16 %v650, %v652
    %v655 = vld [vmem:[%s303] sm:$0xf]
    %v656 = vld [vmem:[%s303 + $0x4] sm:$0xf]
    %v657 = vmul.bf16 %v607, %v655
    %v658 = vmul.bf16 %v607, %v656
    %v659 = vadd.bf16 %v653, %v657
    %v660 = vadd.bf16 %v654, %v658
    %v661 = vadd.bf16 %v659, %v615
    %v662 = vadd.bf16 %v660, %v615
    %v663 = vmax.bf16 %v661, 0
    %v664 = vmax.bf16 %v662, 0
    %v665 = vmax.bf16 %v619, %v663
    %v666 = vmax.bf16 %v620, %v664
    %v667 = vmul.bf16 %v441, %v498
    %v668 = vmul.bf16 %v441, %v499
    %v669 = vmul.bf16 %v460, %v519
    %v670 = vmul.bf16 %v460, %v520
    %v671 = vadd.bf16 %v667, %v669
    %v672 = vadd.bf16 %v668, %v670
    %v673 = vmul.bf16 %v481, %v540
    %v674 = vmul.bf16 %v481, %v541
    %v675 = vadd.bf16 %v671, %v673
    %v676 = vadd.bf16 %v672, %v674
    %v677 = vmul.bf16 %v502, %v561
    %v678 = vmul.bf16 %v502, %v562
    %v679 = vadd.bf16 %v675, %v677
    %v680 = vadd.bf16 %v676, %v678
    %v681 = vmul.bf16 %v523, %v582
    %v682 = vmul.bf16 %v523, %v583
    %v683 = vadd.bf16 %v679, %v681
    %v684 = vadd.bf16 %v680, %v682
    %v685 = vmul.bf16 %v544, %v603
    %v686 = vmul.bf16 %v544, %v604
    %v687 = vadd.bf16 %v683, %v685
    %v688 = vadd.bf16 %v684, %v686
    %v689 = vld [vmem:[%s338] sm:$0xf]
    %v690 = vld [vmem:[%s338 + $0x4] sm:$0xf]
    %v691 = vmul.bf16 %v565, %v689
    %v692 = vmul.bf16 %v565, %v690
    %v693 = vadd.bf16 %v687, %v691
    %v694 = vadd.bf16 %v688, %v692
    %v695 = vld [vmem:[%s345] sm:$0xf]
    %v696 = vld [vmem:[%s345 + $0x4] sm:$0xf]
    %v697 = vmul.bf16 %v586, %v695
    %v698 = vmul.bf16 %v586, %v696
    %v699 = vadd.bf16 %v693, %v697
    %v700 = vadd.bf16 %v694, %v698
    %v701 = vld [vmem:[%s352] sm:$0xf]
    %v702 = vld [vmem:[%s352 + $0x4] sm:$0xf]
    %v703 = vmul.bf16 %v607, %v701
    %v704 = vmul.bf16 %v607, %v702
    %v705 = vadd.bf16 %v699, %v703
    %v706 = vadd.bf16 %v700, %v704
    %v707 = vadd.bf16 %v705, %v615
    %v708 = vadd.bf16 %v706, %v615
    %v709 = vmax.bf16 %v707, 0
    %v710 = vmax.bf16 %v708, 0
    %v711 = vmax.bf16 %v665, %v709
    %v712 = vmax.bf16 %v666, %v710
    %v713 = vmul.bf16 %v441, %v519
    %v714 = vmul.bf16 %v441, %v520
    %v715 = vmul.bf16 %v460, %v540
    %v716 = vmul.bf16 %v460, %v541
    %v717 = vadd.bf16 %v713, %v715
    %v718 = vadd.bf16 %v714, %v716
    %v719 = vmul.bf16 %v481, %v641
    %v720 = vmul.bf16 %v481, %v642
    %v721 = vadd.bf16 %v717, %v719
    %v722 = vadd.bf16 %v718, %v720
    %v723 = vmul.bf16 %v502, %v582
    %v724 = vmul.bf16 %v502, %v583
    %v725 = vadd.bf16 %v721, %v723
    %v726 = vadd.bf16 %v722, %v724
    %v727 = vmul.bf16 %v523, %v603
    %v728 = vmul.bf16 %v523, %v604
    %v729 = vadd.bf16 %v725, %v727
    %v730 = vadd.bf16 %v726, %v728
    %v731 = vmul.bf16 %v544, %v655
    %v732 = vmul.bf16 %v544, %v656
    %v733 = vadd.bf16 %v729, %v731
    %v734 = vadd.bf16 %v730, %v732
    %v735 = vmul.bf16 %v565, %v695
    %v736 = vmul.bf16 %v565, %v696
    %v737 = vadd.bf16 %v733, %v735
    %v738 = vadd.bf16 %v734, %v736
    %v739 = vmul.bf16 %v586, %v701
    %v740 = vmul.bf16 %v586, %v702
    %v741 = vadd.bf16 %v737, %v739
    %v742 = vadd.bf16 %v738, %v740
    %v743 = vld [vmem:[%s395] sm:$0xf]
    %v744 = vld [vmem:[%s395 + $0x4] sm:$0xf]
    %v745 = vmul.bf16 %v607, %v743
    %v746 = vmul.bf16 %v607, %v744
    %v747 = vadd.bf16 %v741, %v745
    %v748 = vadd.bf16 %v742, %v746
    %v749 = vadd.bf16 %v747, %v615
    %v750 = vadd.bf16 %v748, %v615
    %v751 = vmax.bf16 %v749, 0
    %v752 = vmax.bf16 %v750, 0
    %v753 = vmax.bf16 %v711, %v751
    %v754 = vmax.bf16 %v712, %v752
    %v757 = vunpack.c.l.b16 %v753
    %v758 = vunpack.c.l.b16 %v754
    %v759 = vpack.c.b16 %v758, %v757
    %761 = vst [vmem:[#allocation2 + $0x8] sm:$0xff] %v759
    %s762 = sld [smem:[#allocation6 + $0x2]]
    %p764 = scmp.ne.f32.partialorder %s762, %s762
    %s765 = sshrl.u32 %s762, 16
    %s766 = sand.u32 %s765, 1
    %s767 = sadd.s32 32767, %s766
    %s768 = sadd.s32 %s762, %s767
    %s769 = sand.u32 %s768, 4294901760
    %s770 = scalar_select %p764, 2143289344, %s769
    %s772 = sshrl.u32 %s770, 16
    %s773 = sld [smem:[#allocation4 + $0x100]]
    %p775 = scmp.ne.f32.partialorder %s773, %s773
    %s776 = sshrl.u32 %s773, 16
    %s777 = sand.u32 %s776, 1
    %s778 = sadd.s32 32767, %s777
    %s779 = sadd.s32 %s773, %s778
    %s780 = sand.u32 %s779, 4294901760
    %s781 = scalar_select %p775, 2143289344, %s780
    %s783 = sshrl.u32 %s781, 16
    %v784 = vld [vmem:[%s0] sm:$0xf]
    %v785 = vld [vmem:[%s0 + $0x4] sm:$0xf]
    %s786 = sshll.u32 %s783, 16
    %s787 = sor.u32 %s783, %s786
    %v788 = vstv %s787
    %v790 = vmul.bf16 %v788, %v784
    %v791 = vmul.bf16 %v788, %v785
    %s792 = sld [smem:[#allocation4 + $0x101]]
    %p794 = scmp.ne.f32.partialorder %s792, %s792
    %s795 = sshrl.u32 %s792, 16
    %s796 = sand.u32 %s795, 1
    %s797 = sadd.s32 32767, %s796
    %s798 = sadd.s32 %s792, %s797
    %s799 = sand.u32 %s798, 4294901760
    %s800 = scalar_select %p794, 2143289344, %s799
    %s802 = sshrl.u32 %s800, 16
    %v803 = vld [vmem:[%s94] sm:$0xf]
    %v804 = vld [vmem:[%s94 + $0x4] sm:$0xf]
    %s805 = sshll.u32 %s802, 16
    %s806 = sor.u32 %s802, %s805
    %v807 = vstv %s806
    %v809 = vmul.bf16 %v807, %v803
    %v810 = vmul.bf16 %v807, %v804
    %v811 = vadd.bf16 %v790, %v809
    %v812 = vadd.bf16 %v791, %v810
    %s813 = sld [smem:[#allocation4 + $0x102]]
    %p815 = scmp.ne.f32.partialorder %s813, %s813
    %s816 = sshrl.u32 %s813, 16
    %s817 = sand.u32 %s816, 1
    %s818 = sadd.s32 32767, %s817
    %s819 = sadd.s32 %s813, %s818
    %s820 = sand.u32 %s819, 4294901760
    %s821 = scalar_select %p815, 2143289344, %s820
    %s823 = sshrl.u32 %s821, 16
    %v824 = vld [vmem:[%s116] sm:$0xf]
    %v825 = vld [vmem:[%s116 + $0x4] sm:$0xf]
    %s826 = sshll.u32 %s823, 16
    %s827 = sor.u32 %s823, %s826
    %v828 = vstv %s827
    %v830 = vmul.bf16 %v828, %v824
    %v831 = vmul.bf16 %v828, %v825
    %v832 = vadd.bf16 %v811, %v830
    %v833 = vadd.bf16 %v812, %v831
    %s834 = sld [smem:[#allocation4 + $0x103]]
    %p836 = scmp.ne.f32.partialorder %s834, %s834
    %s837 = sshrl.u32 %s834, 16
    %s838 = sand.u32 %s837, 1
    %s839 = sadd.s32 32767, %s838
    %s840 = sadd.s32 %s834, %s839
    %s841 = sand.u32 %s840, 4294901760
    %s842 = scalar_select %p836, 2143289344, %s841
    %s844 = sshrl.u32 %s842, 16
    %v845 = vld [vmem:[%s138] sm:$0xf]
    %v846 = vld [vmem:[%s138 + $0x4] sm:$0xf]
    %s847 = sshll.u32 %s844, 16
    %s848 = sor.u32 %s844, %s847
    %v849 = vstv %s848
    %v851 = vmul.bf16 %v849, %v845
    %v852 = vmul.bf16 %v849, %v846
    %v853 = vadd.bf16 %v832, %v851
    %v854 = vadd.bf16 %v833, %v852
    %s855 = sld [smem:[#allocation4 + $0x104]]
    %p857 = scmp.ne.f32.partialorder %s855, %s855
    %s858 = sshrl.u32 %s855, 16
    %s859 = sand.u32 %s858, 1
    %s860 = sadd.s32 32767, %s859
    %s861 = sadd.s32 %s855, %s860
    %s862 = sand.u32 %s861, 4294901760
    %s863 = scalar_select %p857, 2143289344, %s862
    %s865 = sshrl.u32 %s863, 16
    %v866 = vld [vmem:[%s160] sm:$0xf]
    %v867 = vld [vmem:[%s160 + $0x4] sm:$0xf]
    %s868 = sshll.u32 %s865, 16
    %s869 = sor.u32 %s865, %s868
    %v870 = vstv %s869
    %v872 = vmul.bf16 %v870, %v866
    %v873 = vmul.bf16 %v870, %v867
    %v874 = vadd.bf16 %v853, %v872
    %v875 = vadd.bf16 %v854, %v873
    %s876 = sld [smem:[#allocation4 + $0x105]]
    %p878 = scmp.ne.f32.partialorder %s876, %s876
    %s879 = sshrl.u32 %s876, 16
    %s880 = sand.u32 %s879, 1
    %s881 = sadd.s32 32767, %s880
    %s882 = sadd.s32 %s876, %s881
    %s883 = sand.u32 %s882, 4294901760
    %s884 = scalar_select %p878, 2143289344, %s883
    %s886 = sshrl.u32 %s884, 16
    %v887 = vld [vmem:[%s182] sm:$0xf]
    %v888 = vld [vmem:[%s182 + $0x4] sm:$0xf]
    %s889 = sshll.u32 %s886, 16
    %s890 = sor.u32 %s886, %s889
    %v891 = vstv %s890
    %v893 = vmul.bf16 %v891, %v887
    %v894 = vmul.bf16 %v891, %v888
    %v895 = vadd.bf16 %v874, %v893
    %v896 = vadd.bf16 %v875, %v894
    %s897 = sld [smem:[#allocation4 + $0x106]]
    %p899 = scmp.ne.f32.partialorder %s897, %s897
    %s900 = sshrl.u32 %s897, 16
    %s901 = sand.u32 %s900, 1
    %s902 = sadd.s32 32767, %s901
    %s903 = sadd.s32 %s897, %s902
    %s904 = sand.u32 %s903, 4294901760
    %s905 = scalar_select %p899, 2143289344, %s904
    %s907 = sshrl.u32 %s905, 16
    %v908 = vld [vmem:[%s204] sm:$0xf]
    %v909 = vld [vmem:[%s204 + $0x4] sm:$0xf]
    %s910 = sshll.u32 %s907, 16
    %s911 = sor.u32 %s907, %s910
    %v912 = vstv %s911
    %v914 = vmul.bf16 %v912, %v908
    %v915 = vmul.bf16 %v912, %v909
    %v916 = vadd.bf16 %v895, %v914
    %v917 = vadd.bf16 %v896, %v915
    %s918 = sld [smem:[#allocation4 + $0x107]]
    %p920 = scmp.ne.f32.partialorder %s918, %s918
    %s921 = sshrl.u32 %s918, 16
    %s922 = sand.u32 %s921, 1
    %s923 = sadd.s32 32767, %s922
    %s924 = sadd.s32 %s918, %s923
    %s925 = sand.u32 %s924, 4294901760
    %s926 = scalar_select %p920, 2143289344, %s925
    %s928 = sshrl.u32 %s926, 16
    %v929 = vld [vmem:[%s226] sm:$0xf]
    %v930 = vld [vmem:[%s226 + $0x4] sm:$0xf]
    %s931 = sshll.u32 %s928, 16
    %s932 = sor.u32 %s928, %s931
    %v933 = vstv %s932
    %v935 = vmul.bf16 %v933, %v929
    %v936 = vmul.bf16 %v933, %v930
    %v937 = vadd.bf16 %v916, %v935
    %v938 = vadd.bf16 %v917, %v936
    %s939 = sld [smem:[#allocation4 + $0x108]]
    %p941 = scmp.ne.f32.partialorder %s939, %s939
    %s942 = sshrl.u32 %s939, 16
    %s943 = sand.u32 %s942, 1
    %s944 = sadd.s32 32767, %s943
    %s945 = sadd.s32 %s939, %s944
    %s946 = sand.u32 %s945, 4294901760
    %s947 = scalar_select %p941, 2143289344, %s946
    %s949 = sshrl.u32 %s947, 16
    %v950 = vld [vmem:[%s248] sm:$0xf]
    %v951 = vld [vmem:[%s248 + $0x4] sm:$0xf]
    %s952 = sshll.u32 %s949, 16
    %s953 = sor.u32 %s949, %s952
    %v954 = vstv %s953
    %v956 = vmul.bf16 %v954, %v950
    %v957 = vmul.bf16 %v954, %v951
    %v958 = vadd.bf16 %v937, %v956
    %v959 = vadd.bf16 %v938, %v957
    %s960 = sshll.u32 %s772, 16
    %s961 = sor.u32 %s772, %s960
    %v962 = vstv %s961
    %v964 = vadd.bf16 %v958, %v962
    %v965 = vadd.bf16 %v959, %v962
    %v966 = vmax.bf16 %v964, 0
    %v967 = vmax.bf16 %v965, 0
    %v968 = vmul.bf16 %v788, %v803
    %v969 = vmul.bf16 %v788, %v804
    %v970 = vmul.bf16 %v807, %v824
    %v971 = vmul.bf16 %v807, %v825
    %v972 = vadd.bf16 %v968, %v970
    %v973 = vadd.bf16 %v969, %v971
    %v974 = vld [vmem:[%s273] sm:$0xf]
    %v975 = vld [vmem:[%s273 + $0x4] sm:$0xf]
    %v976 = vmul.bf16 %v828, %v974
    %v977 = vmul.bf16 %v828, %v975
    %v978 = vadd.bf16 %v972, %v976
    %v979 = vadd.bf16 %v973, %v977
    %v980 = vmul.bf16 %v849, %v866
    %v981 = vmul.bf16 %v849, %v867
    %v982 = vadd.bf16 %v978, %v980
    %v983 = vadd.bf16 %v979, %v981
    %v984 = vmul.bf16 %v870, %v887
    %v985 = vmul.bf16 %v870, %v888
    %v986 = vadd.bf16 %v982, %v984
    %v987 = vadd.bf16 %v983, %v985
    %v988 = vld [vmem:[%s288] sm:$0xf]
    %v989 = vld [vmem:[%s288 + $0x4] sm:$0xf]
    %v990 = vmul.bf16 %v891, %v988
    %v991 = vmul.bf16 %v891, %v989
    %v992 = vadd.bf16 %v986, %v990
    %v993 = vadd.bf16 %v987, %v991
    %v994 = vmul.bf16 %v912, %v929
    %v995 = vmul.bf16 %v912, %v930
    %v996 = vadd.bf16 %v992, %v994
    %v997 = vadd.bf16 %v993, %v995
    %v998 = vmul.bf16 %v933, %v950
    %v999 = vmul.bf16 %v933, %v951
    %v1000 = vadd.bf16 %v996, %v998
    %v1001 = vadd.bf16 %v997, %v999
    %v1002 = vld [vmem:[%s303] sm:$0xf]
    %v1003 = vld [vmem:[%s303 + $0x4] sm:$0xf]
    %v1004 = vmul.bf16 %v954, %v1002
    %v1005 = vmul.bf16 %v954, %v1003
    %v1006 = vadd.bf16 %v1000, %v1004
    %v1007 = vadd.bf16 %v1001, %v1005
    %v1008 = vadd.bf16 %v1006, %v962
    %v1009 = vadd.bf16 %v1007, %v962
    %v1010 = vmax.bf16 %v1008, 0
    %v1011 = vmax.bf16 %v1009, 0
    %v1012 = vmax.bf16 %v966, %v1010
    %v1013 = vmax.bf16 %v967, %v1011
    %v1014 = vmul.bf16 %v788, %v845
    %v1015 = vmul.bf16 %v788, %v846
    %v1016 = vmul.bf16 %v807, %v866
    %v1017 = vmul.bf16 %v807, %v867
    %v1018 = vadd.bf16 %v1014, %v1016
    %v1019 = vadd.bf16 %v1015, %v1017
    %v1020 = vmul.bf16 %v828, %v887
    %v1021 = vmul.bf16 %v828, %v888
    %v1022 = vadd.bf16 %v1018, %v1020
    %v1023 = vadd.bf16 %v1019, %v1021
    %v1024 = vmul.bf16 %v849, %v908
    %v1025 = vmul.bf16 %v849, %v909
    %v1026 = vadd.bf16 %v1022, %v1024
    %v1027 = vadd.bf16 %v1023, %v1025
    %v1028 = vmul.bf16 %v870, %v929
    %v1029 = vmul.bf16 %v870, %v930
    %v1030 = vadd.bf16 %v1026, %v1028
    %v1031 = vadd.bf16 %v1027, %v1029
    %v1032 = vmul.bf16 %v891, %v950
    %v1033 = vmul.bf16 %v891, %v951
    %v1034 = vadd.bf16 %v1030, %v1032
    %v1035 = vadd.bf16 %v1031, %v1033
    %v1036 = vld [vmem:[%s338] sm:$0xf]
    %v1037 = vld [vmem:[%s338 + $0x4] sm:$0xf]
    %v1038 = vmul.bf16 %v912, %v1036
    %v1039 = vmul.bf16 %v912, %v1037
    %v1040 = vadd.bf16 %v1034, %v1038
    %v1041 = vadd.bf16 %v1035, %v1039
    %v1042 = vld [vmem:[%s345] sm:$0xf]
    %v1043 = vld [vmem:[%s345 + $0x4] sm:$0xf]
    %v1044 = vmul.bf16 %v933, %v1042
    %v1045 = vmul.bf16 %v933, %v1043
    %v1046 = vadd.bf16 %v1040, %v1044
    %v1047 = vadd.bf16 %v1041, %v1045
    %v1048 = vld [vmem:[%s352] sm:$0xf]
    %v1049 = vld [vmem:[%s352 + $0x4] sm:$0xf]
    %v1050 = vmul.bf16 %v954, %v1048
    %v1051 = vmul.bf16 %v954, %v1049
    %v1052 = vadd.bf16 %v1046, %v1050
    %v1053 = vadd.bf16 %v1047, %v1051
    %v1054 = vadd.bf16 %v1052, %v962
    %v1055 = vadd.bf16 %v1053, %v962
    %v1056 = vmax.bf16 %v1054, 0
    %v1057 = vmax.bf16 %v1055, 0
    %v1058 = vmax.bf16 %v1012, %v1056
    %v1059 = vmax.bf16 %v1013, %v1057
    %v1060 = vmul.bf16 %v788, %v866
    %v1061 = vmul.bf16 %v788, %v867
    %v1062 = vmul.bf16 %v807, %v887
    %v1063 = vmul.bf16 %v807, %v888
    %v1064 = vadd.bf16 %v1060, %v1062
    %v1065 = vadd.bf16 %v1061, %v1063
    %v1066 = vmul.bf16 %v828, %v988
    %v1067 = vmul.bf16 %v828, %v989
    %v1068 = vadd.bf16 %v1064, %v1066
    %v1069 = vadd.bf16 %v1065, %v1067
    %v1070 = vmul.bf16 %v849, %v929
    %v1071 = vmul.bf16 %v849, %v930
    %v1072 = vadd.bf16 %v1068, %v1070
    %v1073 = vadd.bf16 %v1069, %v1071
    %v1074 = vmul.bf16 %v870, %v950
    %v1075 = vmul.bf16 %v870, %v951
    %v1076 = vadd.bf16 %v1072, %v1074
    %v1077 = vadd.bf16 %v1073, %v1075
    %v1078 = vmul.bf16 %v891, %v1002
    %v1079 = vmul.bf16 %v891, %v1003
    %v1080 = vadd.bf16 %v1076, %v1078
    %v1081 = vadd.bf16 %v1077, %v1079
    %v1082 = vmul.bf16 %v912, %v1042
    %v1083 = vmul.bf16 %v912, %v1043
    %v1084 = vadd.bf16 %v1080, %v1082
    %v1085 = vadd.bf16 %v1081, %v1083
    %v1086 = vmul.bf16 %v933, %v1048
    %v1087 = vmul.bf16 %v933, %v1049
    %v1088 = vadd.bf16 %v1084, %v1086
    %v1089 = vadd.bf16 %v1085, %v1087
    %v1090 = vld [vmem:[%s395] sm:$0xf]
    %v1091 = vld [vmem:[%s395 + $0x4] sm:$0xf]
    %v1092 = vmul.bf16 %v954, %v1090
    %v1093 = vmul.bf16 %v954, %v1091
    %v1094 = vadd.bf16 %v1088, %v1092
    %v1095 = vadd.bf16 %v1089, %v1093
    %v1096 = vadd.bf16 %v1094, %v962
    %v1097 = vadd.bf16 %v1095, %v962
    %v1098 = vmax.bf16 %v1096, 0
    %v1099 = vmax.bf16 %v1097, 0
    %v1100 = vmax.bf16 %v1058, %v1098
    %v1101 = vmax.bf16 %v1059, %v1099
    %v1104 = vunpack.c.l.b16 %v1100
    %v1105 = vunpack.c.l.b16 %v1101
    %v1106 = vpack.c.b16 %v1105, %v1104
    %1108 = vst [vmem:[#allocation2 + $0x10] sm:$0xff] %v1106
    %s1109 = sld [smem:[#allocation6 + $0x3]]
    %p1111 = scmp.ne.f32.partialorder %s1109, %s1109
    %s1112 = sshrl.u32 %s1109, 16
    %s1113 = sand.u32 %s1112, 1
    %s1114 = sadd.s32 32767, %s1113
    %s1115 = sadd.s32 %s1109, %s1114
    %s1116 = sand.u32 %s1115, 4294901760
    %s1117 = scalar_select %p1111, 2143289344, %s1116
    %s1119 = sshrl.u32 %s1117, 16
    %s1120 = sld [smem:[#allocation4 + $0x180]]
    %p1122 = scmp.ne.f32.partialorder %s1120, %s1120
    %s1123 = sshrl.u32 %s1120, 16
    %s1124 = sand.u32 %s1123, 1
    %s1125 = sadd.s32 32767, %s1124
    %s1126 = sadd.s32 %s1120, %s1125
    %s1127 = sand.u32 %s1126, 4294901760
    %s1128 = scalar_select %p1122, 2143289344, %s1127
    %s1130 = sshrl.u32 %s1128, 16
    %v1131 = vld [vmem:[%s0] sm:$0xf]
    %v1132 = vld [vmem:[%s0 + $0x4] sm:$0xf]
    %s1133 = sshll.u32 %s1130, 16
    %s1134 = sor.u32 %s1130, %s1133
    %v1135 = vstv %s1134
    %v1137 = vmul.bf16 %v1135, %v1131
    %v1138 = vmul.bf16 %v1135, %v1132
    %s1139 = sld [smem:[#allocation4 + $0x181]]
    %p1141 = scmp.ne.f32.partialorder %s1139, %s1139
    %s1142 = sshrl.u32 %s1139, 16
    %s1143 = sand.u32 %s1142, 1
    %s1144 = sadd.s32 32767, %s1143
    %s1145 = sadd.s32 %s1139, %s1144
    %s1146 = sand.u32 %s1145, 4294901760
    %s1147 = scalar_select %p1141, 2143289344, %s1146
    %s1149 = sshrl.u32 %s1147, 16
    %v1150 = vld [vmem:[%s94] sm:$0xf]
    %v1151 = vld [vmem:[%s94 + $0x4] sm:$0xf]
    %s1152 = sshll.u32 %s1149, 16
    %s1153 = sor.u32 %s1149, %s1152
    %v1154 = vstv %s1153
    %v1156 = vmul.bf16 %v1154, %v1150
    %v1157 = vmul.bf16 %v1154, %v1151
    %v1158 = vadd.bf16 %v1137, %v1156
    %v1159 = vadd.bf16 %v1138, %v1157
    %s1160 = sld [smem:[#allocation4 + $0x182]]
    %p1162 = scmp.ne.f32.partialorder %s1160, %s1160
    %s1163 = sshrl.u32 %s1160, 16
    %s1164 = sand.u32 %s1163, 1
    %s1165 = sadd.s32 32767, %s1164
    %s1166 = sadd.s32 %s1160, %s1165
    %s1167 = sand.u32 %s1166, 4294901760
    %s1168 = scalar_select %p1162, 2143289344, %s1167
    %s1170 = sshrl.u32 %s1168, 16
    %v1171 = vld [vmem:[%s116] sm:$0xf]
    %v1172 = vld [vmem:[%s116 + $0x4] sm:$0xf]
    %s1173 = sshll.u32 %s1170, 16
    %s1174 = sor.u32 %s1170, %s1173
    %v1175 = vstv %s1174
    %v1177 = vmul.bf16 %v1175, %v1171
    %v1178 = vmul.bf16 %v1175, %v1172
    %v1179 = vadd.bf16 %v1158, %v1177
    %v1180 = vadd.bf16 %v1159, %v1178
    %s1181 = sld [smem:[#allocation4 + $0x183]]
    %p1183 = scmp.ne.f32.partialorder %s1181, %s1181
    %s1184 = sshrl.u32 %s1181, 16
    %s1185 = sand.u32 %s1184, 1
    %s1186 = sadd.s32 32767, %s1185
    %s1187 = sadd.s32 %s1181, %s1186
    %s1188 = sand.u32 %s1187, 4294901760
    %s1189 = scalar_select %p1183, 2143289344, %s1188
    %s1191 = sshrl.u32 %s1189, 16
    %v1192 = vld [vmem:[%s138] sm:$0xf]
    %v1193 = vld [vmem:[%s138 + $0x4] sm:$0xf]
    %s1194 = sshll.u32 %s1191, 16
    %s1195 = sor.u32 %s1191, %s1194
    %v1196 = vstv %s1195
    %v1198 = vmul.bf16 %v1196, %v1192
    %v1199 = vmul.bf16 %v1196, %v1193
    %v1200 = vadd.bf16 %v1179, %v1198
    %v1201 = vadd.bf16 %v1180, %v1199
    %s1202 = sld [smem:[#allocation4 + $0x184]]
    %p1204 = scmp.ne.f32.partialorder %s1202, %s1202
    %s1205 = sshrl.u32 %s1202, 16
    %s1206 = sand.u32 %s1205, 1
    %s1207 = sadd.s32 32767, %s1206
    %s1208 = sadd.s32 %s1202, %s1207
    %s1209 = sand.u32 %s1208, 4294901760
    %s1210 = scalar_select %p1204, 2143289344, %s1209
    %s1212 = sshrl.u32 %s1210, 16
    %v1213 = vld [vmem:[%s160] sm:$0xf]
    %v1214 = vld [vmem:[%s160 + $0x4] sm:$0xf]
    %s1215 = sshll.u32 %s1212, 16
    %s1216 = sor.u32 %s1212, %s1215
    %v1217 = vstv %s1216
    %v1219 = vmul.bf16 %v1217, %v1213
    %v1220 = vmul.bf16 %v1217, %v1214
    %v1221 = vadd.bf16 %v1200, %v1219
    %v1222 = vadd.bf16 %v1201, %v1220
    %s1223 = sld [smem:[#allocation4 + $0x185]]
    %p1225 = scmp.ne.f32.partialorder %s1223, %s1223
    %s1226 = sshrl.u32 %s1223, 16
    %s1227 = sand.u32 %s1226, 1
    %s1228 = sadd.s32 32767, %s1227
    %s1229 = sadd.s32 %s1223, %s1228
    %s1230 = sand.u32 %s1229, 4294901760
    %s1231 = scalar_select %p1225, 2143289344, %s1230
    %s1233 = sshrl.u32 %s1231, 16
    %v1234 = vld [vmem:[%s182] sm:$0xf]
    %v1235 = vld [vmem:[%s182 + $0x4] sm:$0xf]
    %s1236 = sshll.u32 %s1233, 16
    %s1237 = sor.u32 %s1233, %s1236
    %v1238 = vstv %s1237
    %v1240 = vmul.bf16 %v1238, %v1234
    %v1241 = vmul.bf16 %v1238, %v1235
    %v1242 = vadd.bf16 %v1221, %v1240
    %v1243 = vadd.bf16 %v1222, %v1241
    %s1244 = sld [smem:[#allocation4 + $0x186]]
    %p1246 = scmp.ne.f32.partialorder %s1244, %s1244
    %s1247 = sshrl.u32 %s1244, 16
    %s1248 = sand.u32 %s1247, 1
    %s1249 = sadd.s32 32767, %s1248
    %s1250 = sadd.s32 %s1244, %s1249
    %s1251 = sand.u32 %s1250, 4294901760
    %s1252 = scalar_select %p1246, 2143289344, %s1251
    %s1254 = sshrl.u32 %s1252, 16
    %v1255 = vld [vmem:[%s204] sm:$0xf]
    %v1256 = vld [vmem:[%s204 + $0x4] sm:$0xf]
    %s1257 = sshll.u32 %s1254, 16
    %s1258 = sor.u32 %s1254, %s1257
    %v1259 = vstv %s1258
    %v1261 = vmul.bf16 %v1259, %v1255
    %v1262 = vmul.bf16 %v1259, %v1256
    %v1263 = vadd.bf16 %v1242, %v1261
    %v1264 = vadd.bf16 %v1243, %v1262
    %s1265 = sld [smem:[#allocation4 + $0x187]]
    %p1267 = scmp.ne.f32.partialorder %s1265, %s1265
    %s1268 = sshrl.u32 %s1265, 16
    %s1269 = sand.u32 %s1268, 1
    %s1270 = sadd.s32 32767, %s1269
    %s1271 = sadd.s32 %s1265, %s1270
    %s1272 = sand.u32 %s1271, 4294901760
    %s1273 = scalar_select %p1267, 2143289344, %s1272
    %s1275 = sshrl.u32 %s1273, 16
    %v1276 = vld [vmem:[%s226] sm:$0xf]
    %v1277 = vld [vmem:[%s226 + $0x4] sm:$0xf]
    %s1278 = sshll.u32 %s1275, 16
    %s1279 = sor.u32 %s1275, %s1278
    %v1280 = vstv %s1279
    %v1282 = vmul.bf16 %v1280, %v1276
    %v1283 = vmul.bf16 %v1280, %v1277
    %v1284 = vadd.bf16 %v1263, %v1282
    %v1285 = vadd.bf16 %v1264, %v1283
    %s1286 = sld [smem:[#allocation4 + $0x188]]
    %p1288 = scmp.ne.f32.partialorder %s1286, %s1286
    %s1289 = sshrl.u32 %s1286, 16
    %s1290 = sand.u32 %s1289, 1
    %s1291 = sadd.s32 32767, %s1290
    %s1292 = sadd.s32 %s1286, %s1291
    %s1293 = sand.u32 %s1292, 4294901760
    %s1294 = scalar_select %p1288, 2143289344, %s1293
    %s1296 = sshrl.u32 %s1294, 16
    %v1297 = vld [vmem:[%s248] sm:$0xf]
    %v1298 = vld [vmem:[%s248 + $0x4] sm:$0xf]
    %s1299 = sshll.u32 %s1296, 16
    %s1300 = sor.u32 %s1296, %s1299
    %v1301 = vstv %s1300
    %v1303 = vmul.bf16 %v1301, %v1297
    %v1304 = vmul.bf16 %v1301, %v1298
    %v1305 = vadd.bf16 %v1284, %v1303
    %v1306 = vadd.bf16 %v1285, %v1304
    %s1307 = sshll.u32 %s1119, 16
    %s1308 = sor.u32 %s1119, %s1307
    %v1309 = vstv %s1308
    %v1311 = vadd.bf16 %v1305, %v1309
    %v1312 = vadd.bf16 %v1306, %v1309
    %v1313 = vmax.bf16 %v1311, 0
    %v1314 = vmax.bf16 %v1312, 0
    %v1315 = vmul.bf16 %v1135, %v1150
    %v1316 = vmul.bf16 %v1135, %v1151
    %v1317 = vmul.bf16 %v1154, %v1171
    %v1318 = vmul.bf16 %v1154, %v1172
    %v1319 = vadd.bf16 %v1315, %v1317
    %v1320 = vadd.bf16 %v1316, %v1318
    %v1321 = vld [vmem:[%s273] sm:$0xf]
    %v1322 = vld [vmem:[%s273 + $0x4] sm:$0xf]
    %v1323 = vmul.bf16 %v1175, %v1321
    %v1324 = vmul.bf16 %v1175, %v1322
    %v1325 = vadd.bf16 %v1319, %v1323
    %v1326 = vadd.bf16 %v1320, %v1324
    %v1327 = vmul.bf16 %v1196, %v1213
    %v1328 = vmul.bf16 %v1196, %v1214
    %v1329 = vadd.bf16 %v1325, %v1327
    %v1330 = vadd.bf16 %v1326, %v1328
    %v1331 = vmul.bf16 %v1217, %v1234
    %v1332 = vmul.bf16 %v1217, %v1235
    %v1333 = vadd.bf16 %v1329, %v1331
    %v1334 = vadd.bf16 %v1330, %v1332
    %v1335 = vld [vmem:[%s288] sm:$0xf]
    %v1336 = vld [vmem:[%s288 + $0x4] sm:$0xf]
    %v1337 = vmul.bf16 %v1238, %v1335
    %v1338 = vmul.bf16 %v1238, %v1336
    %v1339 = vadd.bf16 %v1333, %v1337
    %v1340 = vadd.bf16 %v1334, %v1338
    %v1341 = vmul.bf16 %v1259, %v1276
    %v1342 = vmul.bf16 %v1259, %v1277
    %v1343 = vadd.bf16 %v1339, %v1341
    %v1344 = vadd.bf16 %v1340, %v1342
    %v1345 = vmul.bf16 %v1280, %v1297
    %v1346 = vmul.bf16 %v1280, %v1298
    %v1347 = vadd.bf16 %v1343, %v1345
    %v1348 = vadd.bf16 %v1344, %v1346
    %v1349 = vld [vmem:[%s303] sm:$0xf]
    %v1350 = vld [vmem:[%s303 + $0x4] sm:$0xf]
    %v1351 = vmul.bf16 %v1301, %v1349
    %v1352 = vmul.bf16 %v1301, %v1350
    %v1353 = vadd.bf16 %v1347, %v1351
    %v1354 = vadd.bf16 %v1348, %v1352
    %v1355 = vadd.bf16 %v1353, %v1309
    %v1356 = vadd.bf16 %v1354, %v1309
    %v1357 = vmax.bf16 %v1355, 0
    %v1358 = vmax.bf16 %v1356, 0
    %v1359 = vmax.bf16 %v1313, %v1357
    %v1360 = vmax.bf16 %v1314, %v1358
    %v1361 = vmul.bf16 %v1135, %v1192
    %v1362 = vmul.bf16 %v1135, %v1193
    %v1363 = vmul.bf16 %v1154, %v1213
    %v1364 = vmul.bf16 %v1154, %v1214
    %v1365 = vadd.bf16 %v1361, %v1363
    %v1366 = vadd.bf16 %v1362, %v1364
    %v1367 = vmul.bf16 %v1175, %v1234
    %v1368 = vmul.bf16 %v1175, %v1235
    %v1369 = vadd.bf16 %v1365, %v1367
    %v1370 = vadd.bf16 %v1366, %v1368
    %v1371 = vmul.bf16 %v1196, %v1255
    %v1372 = vmul.bf16 %v1196, %v1256
    %v1373 = vadd.bf16 %v1369, %v1371
    %v1374 = vadd.bf16 %v1370, %v1372
    %v1375 = vmul.bf16 %v1217, %v1276
    %v1376 = vmul.bf16 %v1217, %v1277
    %v1377 = vadd.bf16 %v1373, %v1375
    %v1378 = vadd.bf16 %v1374, %v1376
    %v1379 = vmul.bf16 %v1238, %v1297
    %v1380 = vmul.bf16 %v1238, %v1298
    %v1381 = vadd.bf16 %v1377, %v1379
    %v1382 = vadd.bf16 %v1378, %v1380
    %v1383 = vld [vmem:[%s338] sm:$0xf]
    %v1384 = vld [vmem:[%s338 + $0x4] sm:$0xf]
    %v1385 = vmul.bf16 %v1259, %v1383
    %v1386 = vmul.bf16 %v1259, %v1384
    %v1387 = vadd.bf16 %v1381, %v1385
    %v1388 = vadd.bf16 %v1382, %v1386
    %v1389 = vld [vmem:[%s345] sm:$0xf]
    %v1390 = vld [vmem:[%s345 + $0x4] sm:$0xf]
    %v1391 = vmul.bf16 %v1280, %v1389
    %v1392 = vmul.bf16 %v1280, %v1390
    %v1393 = vadd.bf16 %v1387, %v1391
    %v1394 = vadd.bf16 %v1388, %v1392
    %v1395 = vld [vmem:[%s352] sm:$0xf]
    %v1396 = vld [vmem:[%s352 + $0x4] sm:$0xf]
    %v1397 = vmul.bf16 %v1301, %v1395
    %v1398 = vmul.bf16 %v1301, %v1396
    %v1399 = vadd.bf16 %v1393, %v1397
    %v1400 = vadd.bf16 %v1394, %v1398
    %v1401 = vadd.bf16 %v1399, %v1309
    %v1402 = vadd.bf16 %v1400, %v1309
    %v1403 = vmax.bf16 %v1401, 0
    %v1404 = vmax.bf16 %v1402, 0
    %v1405 = vmax.bf16 %v1359, %v1403
    %v1406 = vmax.bf16 %v1360, %v1404
    %v1407 = vmul.bf16 %v1135, %v1213
    %v1408 = vmul.bf16 %v1135, %v1214
    %v1409 = vmul.bf16 %v1154, %v1234
    %v1410 = vmul.bf16 %v1154, %v1235
    %v1411 = vadd.bf16 %v1407, %v1409
    %v1412 = vadd.bf16 %v1408, %v1410
    %v1413 = vmul.bf16 %v1175, %v1335
    %v1414 = vmul.bf16 %v1175, %v1336
    %v1415 = vadd.bf16 %v1411, %v1413
    %v1416 = vadd.bf16 %v1412, %v1414
    %v1417 = vmul.bf16 %v1196, %v1276
    %v1418 = vmul.bf16 %v1196, %v1277
    %v1419 = vadd.bf16 %v1415, %v1417
    %v1420 = vadd.bf16 %v1416, %v1418
    %v1421 = vmul.bf16 %v1217, %v1297
    %v1422 = vmul.bf16 %v1217, %v1298
    %v1423 = vadd.bf16 %v1419, %v1421
    %v1424 = vadd.bf16 %v1420, %v1422
    %v1425 = vmul.bf16 %v1238, %v1349
    %v1426 = vmul.bf16 %v1238, %v1350
    %v1427 = vadd.bf16 %v1423, %v1425
    %v1428 = vadd.bf16 %v1424, %v1426
    %v1429 = vmul.bf16 %v1259, %v1389
    %v1430 = vmul.bf16 %v1259, %v1390
    %v1431 = vadd.bf16 %v1427, %v1429
    %v1432 = vadd.bf16 %v1428, %v1430
    %v1433 = vmul.bf16 %v1280, %v1395
    %v1434 = vmul.bf16 %v1280, %v1396
    %v1435 = vadd.bf16 %v1431, %v1433
    %v1436 = vadd.bf16 %v1432, %v1434
    %v1437 = vld [vmem:[%s395] sm:$0xf]
    %v1438 = vld [vmem:[%s395 + $0x4] sm:$0xf]
    %v1439 = vmul.bf16 %v1301, %v1437
    %v1440 = vmul.bf16 %v1301, %v1438
    %v1441 = vadd.bf16 %v1435, %v1439
    %v1442 = vadd.bf16 %v1436, %v1440
    %v1443 = vadd.bf16 %v1441, %v1309
    %v1444 = vadd.bf16 %v1442, %v1309
    %v1445 = vmax.bf16 %v1443, 0
    %v1446 = vmax.bf16 %v1444, 0
    %v1447 = vmax.bf16 %v1405, %v1445
    %v1448 = vmax.bf16 %v1406, %v1446
    %v1451 = vunpack.c.l.b16 %v1447
    %v1452 = vunpack.c.l.b16 %v1448
    %v1453 = vpack.c.b16 %v1452, %v1451
    %1455 = vst [vmem:[#allocation2 + $0x18] sm:$0xff] %v1453
    %s1456 = sld [smem:[#allocation6 + $0x4]]
    %p1458 = scmp.ne.f32.partialorder %s1456, %s1456
    %s1459 = sshrl.u32 %s1456, 16
    %s1460 = sand.u32 %s1459, 1
    %s1461 = sadd.s32 32767, %s1460
    %s1462 = sadd.s32 %s1456, %s1461
    %s1463 = sand.u32 %s1462, 4294901760
    %s1464 = scalar_select %p1458, 2143289344, %s1463
    %s1466 = sshrl.u32 %s1464, 16
    %s1467 = sld [smem:[#allocation4 + $0x200]]
    %p1469 = scmp.ne.f32.partialorder %s1467, %s1467
    %s1470 = sshrl.u32 %s1467, 16
    %s1471 = sand.u32 %s1470, 1
    %s1472 = sadd.s32 32767, %s1471
    %s1473 = sadd.s32 %s1467, %s1472
    %s1474 = sand.u32 %s1473, 4294901760
    %s1475 = scalar_select %p1469, 2143289344, %s1474
    %s1477 = sshrl.u32 %s1475, 16
    %v1478 = vld [vmem:[%s0] sm:$0xf]
    %v1479 = vld [vmem:[%s0 + $0x4] sm:$0xf]
    %s1480 = sshll.u32 %s1477, 16
    %s1481 = sor.u32 %s1477, %s1480
    %v1482 = vstv %s1481
    %v1484 = vmul.bf16 %v1482, %v1478
    %v1485 = vmul.bf16 %v1482, %v1479
    %s1486 = sld [smem:[#allocation4 + $0x201]]
    %p1488 = scmp.ne.f32.partialorder %s1486, %s1486
    %s1489 = sshrl.u32 %s1486, 16
    %s1490 = sand.u32 %s1489, 1
    %s1491 = sadd.s32 32767, %s1490
    %s1492 = sadd.s32 %s1486, %s1491
    %s1493 = sand.u32 %s1492, 4294901760
    %s1494 = scalar_select %p1488, 2143289344, %s1493
    %s1496 = sshrl.u32 %s1494, 16
    %v1497 = vld [vmem:[%s94] sm:$0xf]
    %v1498 = vld [vmem:[%s94 + $0x4] sm:$0xf]
    %s1499 = sshll.u32 %s1496, 16
    %s1500 = sor.u32 %s1496, %s1499
    %v1501 = vstv %s1500
    %v1503 = vmul.bf16 %v1501, %v1497
    %v1504 = vmul.bf16 %v1501, %v1498
    %v1505 = vadd.bf16 %v1484, %v1503
    %v1506 = vadd.bf16 %v1485, %v1504
    %s1507 = sld [smem:[#allocation4 + $0x202]]
    %p1509 = scmp.ne.f32.partialorder %s1507, %s1507
    %s1510 = sshrl.u32 %s1507, 16
    %s1511 = sand.u32 %s1510, 1
    %s1512 = sadd.s32 32767, %s1511
    %s1513 = sadd.s32 %s1507, %s1512
    %s1514 = sand.u32 %s1513, 4294901760
    %s1515 = scalar_select %p1509, 2143289344, %s1514
    %s1517 = sshrl.u32 %s1515, 16
    %v1518 = vld [vmem:[%s116] sm:$0xf]
    %v1519 = vld [vmem:[%s116 + $0x4] sm:$0xf]
    %s1520 = sshll.u32 %s1517, 16
    %s1521 = sor.u32 %s1517, %s1520
    %v1522 = vstv %s1521
    %v1524 = vmul.bf16 %v1522, %v1518
    %v1525 = vmul.bf16 %v1522, %v1519
    %v1526 = vadd.bf16 %v1505, %v1524
    %v1527 = vadd.bf16 %v1506, %v1525
    %s1528 = sld [smem:[#allocation4 + $0x203]]
    %p1530 = scmp.ne.f32.partialorder %s1528, %s1528
    %s1531 = sshrl.u32 %s1528, 16
    %s1532 = sand.u32 %s1531, 1
    %s1533 = sadd.s32 32767, %s1532
    %s1534 = sadd.s32 %s1528, %s1533
    %s1535 = sand.u32 %s1534, 4294901760
    %s1536 = scalar_select %p1530, 2143289344, %s1535
    %s1538 = sshrl.u32 %s1536, 16
    %v1539 = vld [vmem:[%s138] sm:$0xf]
    %v1540 = vld [vmem:[%s138 + $0x4] sm:$0xf]
    %s1541 = sshll.u32 %s1538, 16
    %s1542 = sor.u32 %s1538, %s1541
    %v1543 = vstv %s1542
    %v1545 = vmul.bf16 %v1543, %v1539
    %v1546 = vmul.bf16 %v1543, %v1540
    %v1547 = vadd.bf16 %v1526, %v1545
    %v1548 = vadd.bf16 %v1527, %v1546
    %s1549 = sld [smem:[#allocation4 + $0x204]]
    %p1551 = scmp.ne.f32.partialorder %s1549, %s1549
    %s1552 = sshrl.u32 %s1549, 16
    %s1553 = sand.u32 %s1552, 1
    %s1554 = sadd.s32 32767, %s1553
    %s1555 = sadd.s32 %s1549, %s1554
    %s1556 = sand.u32 %s1555, 4294901760
    %s1557 = scalar_select %p1551, 2143289344, %s1556
    %s1559 = sshrl.u32 %s1557, 16
    %v1560 = vld [vmem:[%s160] sm:$0xf]
    %v1561 = vld [vmem:[%s160 + $0x4] sm:$0xf]
    %s1562 = sshll.u32 %s1559, 16
    %s1563 = sor.u32 %s1559, %s1562
    %v1564 = vstv %s1563
    %v1566 = vmul.bf16 %v1564, %v1560
    %v1567 = vmul.bf16 %v1564, %v1561
    %v1568 = vadd.bf16 %v1547, %v1566
    %v1569 = vadd.bf16 %v1548, %v1567
    %s1570 = sld [smem:[#allocation4 + $0x205]]
    %p1572 = scmp.ne.f32.partialorder %s1570, %s1570
    %s1573 = sshrl.u32 %s1570, 16
    %s1574 = sand.u32 %s1573, 1
    %s1575 = sadd.s32 32767, %s1574
    %s1576 = sadd.s32 %s1570, %s1575
    %s1577 = sand.u32 %s1576, 4294901760
    %s1578 = scalar_select %p1572, 2143289344, %s1577
    %s1580 = sshrl.u32 %s1578, 16
    %v1581 = vld [vmem:[%s182] sm:$0xf]
    %v1582 = vld [vmem:[%s182 + $0x4] sm:$0xf]
    %s1583 = sshll.u32 %s1580, 16
    %s1584 = sor.u32 %s1580, %s1583
    %v1585 = vstv %s1584
    %v1587 = vmul.bf16 %v1585, %v1581
    %v1588 = vmul.bf16 %v1585, %v1582
    %v1589 = vadd.bf16 %v1568, %v1587
    %v1590 = vadd.bf16 %v1569, %v1588
    %s1591 = sld [smem:[#allocation4 + $0x206]]
    %p1593 = scmp.ne.f32.partialorder %s1591, %s1591
    %s1594 = sshrl.u32 %s1591, 16
    %s1595 = sand.u32 %s1594, 1
    %s1596 = sadd.s32 32767, %s1595
    %s1597 = sadd.s32 %s1591, %s1596
    %s1598 = sand.u32 %s1597, 4294901760
    %s1599 = scalar_select %p1593, 2143289344, %s1598
    %s1601 = sshrl.u32 %s1599, 16
    %v1602 = vld [vmem:[%s204] sm:$0xf]
    %v1603 = vld [vmem:[%s204 + $0x4] sm:$0xf]
    %s1604 = sshll.u32 %s1601, 16
    %s1605 = sor.u32 %s1601, %s1604
    %v1606 = vstv %s1605
    %v1608 = vmul.bf16 %v1606, %v1602
    %v1609 = vmul.bf16 %v1606, %v1603
    %v1610 = vadd.bf16 %v1589, %v1608
    %v1611 = vadd.bf16 %v1590, %v1609
    %s1612 = sld [smem:[#allocation4 + $0x207]]
    %p1614 = scmp.ne.f32.partialorder %s1612, %s1612
    %s1615 = sshrl.u32 %s1612, 16
    %s1616 = sand.u32 %s1615, 1
    %s1617 = sadd.s32 32767, %s1616
    %s1618 = sadd.s32 %s1612, %s1617
    %s1619 = sand.u32 %s1618, 4294901760
    %s1620 = scalar_select %p1614, 2143289344, %s1619
    %s1622 = sshrl.u32 %s1620, 16
    %v1623 = vld [vmem:[%s226] sm:$0xf]
    %v1624 = vld [vmem:[%s226 + $0x4] sm:$0xf]
    %s1625 = sshll.u32 %s1622, 16
    %s1626 = sor.u32 %s1622, %s1625
    %v1627 = vstv %s1626
    %v1629 = vmul.bf16 %v1627, %v1623
    %v1630 = vmul.bf16 %v1627, %v1624
    %v1631 = vadd.bf16 %v1610, %v1629
    %v1632 = vadd.bf16 %v1611, %v1630
    %s1633 = sld [smem:[#allocation4 + $0x208]]
    %p1635 = scmp.ne.f32.partialorder %s1633, %s1633
    %s1636 = sshrl.u32 %s1633, 16
    %s1637 = sand.u32 %s1636, 1
    %s1638 = sadd.s32 32767, %s1637
    %s1639 = sadd.s32 %s1633, %s1638
    %s1640 = sand.u32 %s1639, 4294901760
    %s1641 = scalar_select %p1635, 2143289344, %s1640
    %s1643 = sshrl.u32 %s1641, 16
    %v1644 = vld [vmem:[%s248] sm:$0xf]
    %v1645 = vld [vmem:[%s248 + $0x4] sm:$0xf]
    %s1646 = sshll.u32 %s1643, 16
    %s1647 = sor.u32 %s1643, %s1646
    %v1648 = vstv %s1647
    %v1650 = vmul.bf16 %v1648, %v1644
    %v1651 = vmul.bf16 %v1648, %v1645
    %v1652 = vadd.bf16 %v1631, %v1650
    %v1653 = vadd.bf16 %v1632, %v1651
    %s1654 = sshll.u32 %s1466, 16
    %s1655 = sor.u32 %s1466, %s1654
    %v1656 = vstv %s1655
    %v1658 = vadd.bf16 %v1652, %v1656
    %v1659 = vadd.bf16 %v1653, %v1656
    %v1660 = vmax.bf16 %v1658, 0
    %v1661 = vmax.bf16 %v1659, 0
    %v1662 = vmul.bf16 %v1482, %v1497
    %v1663 = vmul.bf16 %v1482, %v1498
    %v1664 = vmul.bf16 %v1501, %v1518
    %v1665 = vmul.bf16 %v1501, %v1519
    %v1666 = vadd.bf16 %v1662, %v1664
    %v1667 = vadd.bf16 %v1663, %v1665
    %v1668 = vld [vmem:[%s273] sm:$0xf]
    %v1669 = vld [vmem:[%s273 + $0x4] sm:$0xf]
    %v1670 = vmul.bf16 %v1522, %v1668
    %v1671 = vmul.bf16 %v1522, %v1669
    %v1672 = vadd.bf16 %v1666, %v1670
    %v1673 = vadd.bf16 %v1667, %v1671
    %v1674 = vmul.bf16 %v1543, %v1560
    %v1675 = vmul.bf16 %v1543, %v1561
    %v1676 = vadd.bf16 %v1672, %v1674
    %v1677 = vadd.bf16 %v1673, %v1675
    %v1678 = vmul.bf16 %v1564, %v1581
    %v1679 = vmul.bf16 %v1564, %v1582
    %v1680 = vadd.bf16 %v1676, %v1678
    %v1681 = vadd.bf16 %v1677, %v1679
    %v1682 = vld [vmem:[%s288] sm:$0xf]
    %v1683 = vld [vmem:[%s288 + $0x4] sm:$0xf]
    %v1684 = vmul.bf16 %v1585, %v1682
    %v1685 = vmul.bf16 %v1585, %v1683
    %v1686 = vadd.bf16 %v1680, %v1684
    %v1687 = vadd.bf16 %v1681, %v1685
    %v1688 = vmul.bf16 %v1606, %v1623
    %v1689 = vmul.bf16 %v1606, %v1624
    %v1690 = vadd.bf16 %v1686, %v1688
    %v1691 = vadd.bf16 %v1687, %v1689
    %v1692 = vmul.bf16 %v1627, %v1644
    %v1693 = vmul.bf16 %v1627, %v1645
    %v1694 = vadd.bf16 %v1690, %v1692
    %v1695 = vadd.bf16 %v1691, %v1693
    %v1696 = vld [vmem:[%s303] sm:$0xf]
    %v1697 = vld [vmem:[%s303 + $0x4] sm:$0xf]
    %v1698 = vmul.bf16 %v1648, %v1696
    %v1699 = vmul.bf16 %v1648, %v1697
    %v1700 = vadd.bf16 %v1694, %v1698
    %v1701 = vadd.bf16 %v1695, %v1699
    %v1702 = vadd.bf16 %v1700, %v1656
    %v1703 = vadd.bf16 %v1701, %v1656
    %v1704 = vmax.bf16 %v1702, 0
    %v1705 = vmax.bf16 %v1703, 0
    %v1706 = vmax.bf16 %v1660, %v1704
    %v1707 = vmax.bf16 %v1661, %v1705
    %v1708 = vmul.bf16 %v1482, %v1539
    %v1709 = vmul.bf16 %v1482, %v1540
    %v1710 = vmul.bf16 %v1501, %v1560
    %v1711 = vmul.bf16 %v1501, %v1561
    %v1712 = vadd.bf16 %v1708, %v1710
    %v1713 = vadd.bf16 %v1709, %v1711
    %v1714 = vmul.bf16 %v1522, %v1581
    %v1715 = vmul.bf16 %v1522, %v1582
    %v1716 = vadd.bf16 %v1712, %v1714
    %v1717 = vadd.bf16 %v1713, %v1715
    %v1718 = vmul.bf16 %v1543, %v1602
    %v1719 = vmul.bf16 %v1543, %v1603
    %v1720 = vadd.bf16 %v1716, %v1718
    %v1721 = vadd.bf16 %v1717, %v1719
    %v1722 = vmul.bf16 %v1564, %v1623
    %v1723 = vmul.bf16 %v1564, %v1624
    %v1724 = vadd.bf16 %v1720, %v1722
    %v1725 = vadd.bf16 %v1721, %v1723
    %v1726 = vmul.bf16 %v1585, %v1644
    %v1727 = vmul.bf16 %v1585, %v1645
    %v1728 = vadd.bf16 %v1724, %v1726
    %v1729 = vadd.bf16 %v1725, %v1727
    %v1730 = vld [vmem:[%s338] sm:$0xf]
    %v1731 = vld [vmem:[%s338 + $0x4] sm:$0xf]
    %v1732 = vmul.bf16 %v1606, %v1730
    %v1733 = vmul.bf16 %v1606, %v1731
    %v1734 = vadd.bf16 %v1728, %v1732
    %v1735 = vadd.bf16 %v1729, %v1733
    %v1736 = vld [vmem:[%s345] sm:$0xf]
    %v1737 = vld [vmem:[%s345 + $0x4] sm:$0xf]
    %v1738 = vmul.bf16 %v1627, %v1736
    %v1739 = vmul.bf16 %v1627, %v1737
    %v1740 = vadd.bf16 %v1734, %v1738
    %v1741 = vadd.bf16 %v1735, %v1739
    %v1742 = vld [vmem:[%s352] sm:$0xf]
    %v1743 = vld [vmem:[%s352 + $0x4] sm:$0xf]
    %v1744 = vmul.bf16 %v1648, %v1742
    %v1745 = vmul.bf16 %v1648, %v1743
    %v1746 = vadd.bf16 %v1740, %v1744
    %v1747 = vadd.bf16 %v1741, %v1745
    %v1748 = vadd.bf16 %v1746, %v1656
    %v1749 = vadd.bf16 %v1747, %v1656
    %v1750 = vmax.bf16 %v1748, 0
    %v1751 = vmax.bf16 %v1749, 0
    %v1752 = vmax.bf16 %v1706, %v1750
    %v1753 = vmax.bf16 %v1707, %v1751
    %v1754 = vmul.bf16 %v1482, %v1560
    %v1755 = vmul.bf16 %v1482, %v1561
    %v1756 = vmul.bf16 %v1501, %v1581
    %v1757 = vmul.bf16 %v1501, %v1582
    %v1758 = vadd.bf16 %v1754, %v1756
    %v1759 = vadd.bf16 %v1755, %v1757
    %v1760 = vmul.bf16 %v1522, %v1682
    %v1761 = vmul.bf16 %v1522, %v1683
    %v1762 = vadd.bf16 %v1758, %v1760
    %v1763 = vadd.bf16 %v1759, %v1761
    %v1764 = vmul.bf16 %v1543, %v1623
    %v1765 = vmul.bf16 %v1543, %v1624
    %v1766 = vadd.bf16 %v1762, %v1764
    %v1767 = vadd.bf16 %v1763, %v1765
    %v1768 = vmul.bf16 %v1564, %v1644
    %v1769 = vmul.bf16 %v1564, %v1645
    %v1770 = vadd.bf16 %v1766, %v1768
    %v1771 = vadd.bf16 %v1767, %v1769
    %v1772 = vmul.bf16 %v1585, %v1696
    %v1773 = vmul.bf16 %v1585, %v1697
    %v1774 = vadd.bf16 %v1770, %v1772
    %v1775 = vadd.bf16 %v1771, %v1773
    %v1776 = vmul.bf16 %v1606, %v1736
    %v1777 = vmul.bf16 %v1606, %v1737
    %v1778 = vadd.bf16 %v1774, %v1776
    %v1779 = vadd.bf16 %v1775, %v1777
    %v1780 = vmul.bf16 %v1627, %v1742
    %v1781 = vmul.bf16 %v1627, %v1743
    %v1782 = vadd.bf16 %v1778, %v1780
    %v1783 = vadd.bf16 %v1779, %v1781
    %v1784 = vld [vmem:[%s395] sm:$0xf]
    %v1785 = vld [vmem:[%s395 + $0x4] sm:$0xf]
    %v1786 = vmul.bf16 %v1648, %v1784
    %v1787 = vmul.bf16 %v1648, %v1785
    %v1788 = vadd.bf16 %v1782, %v1786
    %v1789 = vadd.bf16 %v1783, %v1787
    %v1790 = vadd.bf16 %v1788, %v1656
    %v1791 = vadd.bf16 %v1789, %v1656
    %v1792 = vmax.bf16 %v1790, 0
    %v1793 = vmax.bf16 %v1791, 0
    %v1794 = vmax.bf16 %v1752, %v1792
    %v1795 = vmax.bf16 %v1753, %v1793
    %v1798 = vunpack.c.l.b16 %v1794
    %v1799 = vunpack.c.l.b16 %v1795
    %v1800 = vpack.c.b16 %v1799, %v1798
    %1802 = vst [vmem:[#allocation2 + $0x20] sm:$0xff] %v1800
    %s1803 = sld [smem:[#allocation6 + $0x5]]
    %p1805 = scmp.ne.f32.partialorder %s1803, %s1803
    %s1806 = sshrl.u32 %s1803, 16
    %s1807 = sand.u32 %s1806, 1
    %s1808 = sadd.s32 32767, %s1807
    %s1809 = sadd.s32 %s1803, %s1808
    %s1810 = sand.u32 %s1809, 4294901760
    %s1811 = scalar_select %p1805, 2143289344, %s1810
    %s1813 = sshrl.u32 %s1811, 16
    %s1814 = sld [smem:[#allocation4 + $0x280]]
    %p1816 = scmp.ne.f32.partialorder %s1814, %s1814
    %s1817 = sshrl.u32 %s1814, 16
    %s1818 = sand.u32 %s1817, 1
    %s1819 = sadd.s32 32767, %s1818
    %s1820 = sadd.s32 %s1814, %s1819
    %s1821 = sand.u32 %s1820, 4294901760
    %s1822 = scalar_select %p1816, 2143289344, %s1821
    %s1824 = sshrl.u32 %s1822, 16
    %v1825 = vld [vmem:[%s0] sm:$0xf]
    %v1826 = vld [vmem:[%s0 + $0x4] sm:$0xf]
    %s1827 = sshll.u32 %s1824, 16
    %s1828 = sor.u32 %s1824, %s1827
    %v1829 = vstv %s1828
    %v1831 = vmul.bf16 %v1829, %v1825
    %v1832 = vmul.bf16 %v1829, %v1826
    %s1833 = sld [smem:[#allocation4 + $0x281]]
    %p1835 = scmp.ne.f32.partialorder %s1833, %s1833
    %s1836 = sshrl.u32 %s1833, 16
    %s1837 = sand.u32 %s1836, 1
    %s1838 = sadd.s32 32767, %s1837
    %s1839 = sadd.s32 %s1833, %s1838
    %s1840 = sand.u32 %s1839, 4294901760
    %s1841 = scalar_select %p1835, 2143289344, %s1840
    %s1843 = sshrl.u32 %s1841, 16
    %v1844 = vld [vmem:[%s94] sm:$0xf]
    %v1845 = vld [vmem:[%s94 + $0x4] sm:$0xf]
    %s1846 = sshll.u32 %s1843, 16
    %s1847 = sor.u32 %s1843, %s1846
    %v1848 = vstv %s1847
    %v1850 = vmul.bf16 %v1848, %v1844
    %v1851 = vmul.bf16 %v1848, %v1845
    %v1852 = vadd.bf16 %v1831, %v1850
    %v1853 = vadd.bf16 %v1832, %v1851
    %s1854 = sld [smem:[#allocation4 + $0x282]]
    %p1856 = scmp.ne.f32.partialorder %s1854, %s1854
    %s1857 = sshrl.u32 %s1854, 16
    %s1858 = sand.u32 %s1857, 1
    %s1859 = sadd.s32 32767, %s1858
    %s1860 = sadd.s32 %s1854, %s1859
    %s1861 = sand.u32 %s1860, 4294901760
    %s1862 = scalar_select %p1856, 2143289344, %s1861
    %s1864 = sshrl.u32 %s1862, 16
    %v1865 = vld [vmem:[%s116] sm:$0xf]
    %v1866 = vld [vmem:[%s116 + $0x4] sm:$0xf]
    %s1867 = sshll.u32 %s1864, 16
    %s1868 = sor.u32 %s1864, %s1867
    %v1869 = vstv %s1868
    %v1871 = vmul.bf16 %v1869, %v1865
    %v1872 = vmul.bf16 %v1869, %v1866
    %v1873 = vadd.bf16 %v1852, %v1871
    %v1874 = vadd.bf16 %v1853, %v1872
    %s1875 = sld [smem:[#allocation4 + $0x283]]
    %p1877 = scmp.ne.f32.partialorder %s1875, %s1875
    %s1878 = sshrl.u32 %s1875, 16
    %s1879 = sand.u32 %s1878, 1
    %s1880 = sadd.s32 32767, %s1879
    %s1881 = sadd.s32 %s1875, %s1880
    %s1882 = sand.u32 %s1881, 4294901760
    %s1883 = scalar_select %p1877, 2143289344, %s1882
    %s1885 = sshrl.u32 %s1883, 16
    %v1886 = vld [vmem:[%s138] sm:$0xf]
    %v1887 = vld [vmem:[%s138 + $0x4] sm:$0xf]
    %s1888 = sshll.u32 %s1885, 16
    %s1889 = sor.u32 %s1885, %s1888
    %v1890 = vstv %s1889
    %v1892 = vmul.bf16 %v1890, %v1886
    %v1893 = vmul.bf16 %v1890, %v1887
    %v1894 = vadd.bf16 %v1873, %v1892
    %v1895 = vadd.bf16 %v1874, %v1893
    %s1896 = sld [smem:[#allocation4 + $0x284]]
    %p1898 = scmp.ne.f32.partialorder %s1896, %s1896
    %s1899 = sshrl.u32 %s1896, 16
    %s1900 = sand.u32 %s1899, 1
    %s1901 = sadd.s32 32767, %s1900
    %s1902 = sadd.s32 %s1896, %s1901
    %s1903 = sand.u32 %s1902, 4294901760
    %s1904 = scalar_select %p1898, 2143289344, %s1903
    %s1906 = sshrl.u32 %s1904, 16
    %v1907 = vld [vmem:[%s160] sm:$0xf]
    %v1908 = vld [vmem:[%s160 + $0x4] sm:$0xf]
    %s1909 = sshll.u32 %s1906, 16
    %s1910 = sor.u32 %s1906, %s1909
    %v1911 = vstv %s1910
    %v1913 = vmul.bf16 %v1911, %v1907
    %v1914 = vmul.bf16 %v1911, %v1908
    %v1915 = vadd.bf16 %v1894, %v1913
    %v1916 = vadd.bf16 %v1895, %v1914
    %s1917 = sld [smem:[#allocation4 + $0x285]]
    %p1919 = scmp.ne.f32.partialorder %s1917, %s1917
    %s1920 = sshrl.u32 %s1917, 16
    %s1921 = sand.u32 %s1920, 1
    %s1922 = sadd.s32 32767, %s1921
    %s1923 = sadd.s32 %s1917, %s1922
    %s1924 = sand.u32 %s1923, 4294901760
    %s1925 = scalar_select %p1919, 2143289344, %s1924
    %s1927 = sshrl.u32 %s1925, 16
    %v1928 = vld [vmem:[%s182] sm:$0xf]
    %v1929 = vld [vmem:[%s182 + $0x4] sm:$0xf]
    %s1930 = sshll.u32 %s1927, 16
    %s1931 = sor.u32 %s1927, %s1930
    %v1932 = vstv %s1931
    %v1934 = vmul.bf16 %v1932, %v1928
    %v1935 = vmul.bf16 %v1932, %v1929
    %v1936 = vadd.bf16 %v1915, %v1934
    %v1937 = vadd.bf16 %v1916, %v1935
    %s1938 = sld [smem:[#allocation4 + $0x286]]
    %p1940 = scmp.ne.f32.partialorder %s1938, %s1938
    %s1941 = sshrl.u32 %s1938, 16
    %s1942 = sand.u32 %s1941, 1
    %s1943 = sadd.s32 32767, %s1942
    %s1944 = sadd.s32 %s1938, %s1943
    %s1945 = sand.u32 %s1944, 4294901760
    %s1946 = scalar_select %p1940, 2143289344, %s1945
    %s1948 = sshrl.u32 %s1946, 16
    %v1949 = vld [vmem:[%s204] sm:$0xf]
    %v1950 = vld [vmem:[%s204 + $0x4] sm:$0xf]
    %s1951 = sshll.u32 %s1948, 16
    %s1952 = sor.u32 %s1948, %s1951
    %v1953 = vstv %s1952
    %v1955 = vmul.bf16 %v1953, %v1949
    %v1956 = vmul.bf16 %v1953, %v1950
    %v1957 = vadd.bf16 %v1936, %v1955
    %v1958 = vadd.bf16 %v1937, %v1956
    %s1959 = sld [smem:[#allocation4 + $0x287]]
    %p1961 = scmp.ne.f32.partialorder %s1959, %s1959
    %s1962 = sshrl.u32 %s1959, 16
    %s1963 = sand.u32 %s1962, 1
    %s1964 = sadd.s32 32767, %s1963
    %s1965 = sadd.s32 %s1959, %s1964
    %s1966 = sand.u32 %s1965, 4294901760
    %s1967 = scalar_select %p1961, 2143289344, %s1966
    %s1969 = sshrl.u32 %s1967, 16
    %v1970 = vld [vmem:[%s226] sm:$0xf]
    %v1971 = vld [vmem:[%s226 + $0x4] sm:$0xf]
    %s1972 = sshll.u32 %s1969, 16
    %s1973 = sor.u32 %s1969, %s1972
    %v1974 = vstv %s1973
    %v1976 = vmul.bf16 %v1974, %v1970
    %v1977 = vmul.bf16 %v1974, %v1971
    %v1978 = vadd.bf16 %v1957, %v1976
    %v1979 = vadd.bf16 %v1958, %v1977
    %s1980 = sld [smem:[#allocation4 + $0x288]]
    %p1982 = scmp.ne.f32.partialorder %s1980, %s1980
    %s1983 = sshrl.u32 %s1980, 16
    %s1984 = sand.u32 %s1983, 1
    %s1985 = sadd.s32 32767, %s1984
    %s1986 = sadd.s32 %s1980, %s1985
    %s1987 = sand.u32 %s1986, 4294901760
    %s1988 = scalar_select %p1982, 2143289344, %s1987
    %s1990 = sshrl.u32 %s1988, 16
    %v1991 = vld [vmem:[%s248] sm:$0xf]
    %v1992 = vld [vmem:[%s248 + $0x4] sm:$0xf]
    %s1993 = sshll.u32 %s1990, 16
    %s1994 = sor.u32 %s1990, %s1993
    %v1995 = vstv %s1994
    %v1997 = vmul.bf16 %v1995, %v1991
    %v1998 = vmul.bf16 %v1995, %v1992
    %v1999 = vadd.bf16 %v1978, %v1997
    %v2000 = vadd.bf16 %v1979, %v1998
    %s2001 = sshll.u32 %s1813, 16
    %s2002 = sor.u32 %s1813, %s2001
    %v2003 = vstv %s2002
    %v2005 = vadd.bf16 %v1999, %v2003
    %v2006 = vadd.bf16 %v2000, %v2003
    %v2007 = vmax.bf16 %v2005, 0
    %v2008 = vmax.bf16 %v2006, 0
    %v2009 = vmul.bf16 %v1829, %v1844
    %v2010 = vmul.bf16 %v1829, %v1845
    %v2011 = vmul.bf16 %v1848, %v1865
    %v2012 = vmul.bf16 %v1848, %v1866
    %v2013 = vadd.bf16 %v2009, %v2011
    %v2014 = vadd.bf16 %v2010, %v2012
    %v2015 = vld [vmem:[%s273] sm:$0xf]
    %v2016 = vld [vmem:[%s273 + $0x4] sm:$0xf]
    %v2017 = vmul.bf16 %v1869, %v2015
    %v2018 = vmul.bf16 %v1869, %v2016
    %v2019 = vadd.bf16 %v2013, %v2017
    %v2020 = vadd.bf16 %v2014, %v2018
    %v2021 = vmul.bf16 %v1890, %v1907
    %v2022 = vmul.bf16 %v1890, %v1908
    %v2023 = vadd.bf16 %v2019, %v2021
    %v2024 = vadd.bf16 %v2020, %v2022
    %v2025 = vmul.bf16 %v1911, %v1928
    %v2026 = vmul.bf16 %v1911, %v1929
    %v2027 = vadd.bf16 %v2023, %v2025
    %v2028 = vadd.bf16 %v2024, %v2026
    %v2029 = vld [vmem:[%s288] sm:$0xf]
    %v2030 = vld [vmem:[%s288 + $0x4] sm:$0xf]
    %v2031 = vmul.bf16 %v1932, %v2029
    %v2032 = vmul.bf16 %v1932, %v2030
    %v2033 = vadd.bf16 %v2027, %v2031
    %v2034 = vadd.bf16 %v2028, %v2032
    %v2035 = vmul.bf16 %v1953, %v1970
    %v2036 = vmul.bf16 %v1953, %v1971
    %v2037 = vadd.bf16 %v2033, %v2035
    %v2038 = vadd.bf16 %v2034, %v2036
    %v2039 = vmul.bf16 %v1974, %v1991
    %v2040 = vmul.bf16 %v1974, %v1992
    %v2041 = vadd.bf16 %v2037, %v2039
    %v2042 = vadd.bf16 %v2038, %v2040
    %v2043 = vld [vmem:[%s303] sm:$0xf]
    %v2044 = vld [vmem:[%s303 + $0x4] sm:$0xf]
    %v2045 = vmul.bf16 %v1995, %v2043
    %v2046 = vmul.bf16 %v1995, %v2044
    %v2047 = vadd.bf16 %v2041, %v2045
    %v2048 = vadd.bf16 %v2042, %v2046
    %v2049 = vadd.bf16 %v2047, %v2003
    %v2050 = vadd.bf16 %v2048, %v2003
    %v2051 = vmax.bf16 %v2049, 0
    %v2052 = vmax.bf16 %v2050, 0
    %v2053 = vmax.bf16 %v2007, %v2051
    %v2054 = vmax.bf16 %v2008, %v2052
    %v2055 = vmul.bf16 %v1829, %v1886
    %v2056 = vmul.bf16 %v1829, %v1887
    %v2057 = vmul.bf16 %v1848, %v1907
    %v2058 = vmul.bf16 %v1848, %v1908
    %v2059 = vadd.bf16 %v2055, %v2057
    %v2060 = vadd.bf16 %v2056, %v2058
    %v2061 = vmul.bf16 %v1869, %v1928
    %v2062 = vmul.bf16 %v1869, %v1929
    %v2063 = vadd.bf16 %v2059, %v2061
    %v2064 = vadd.bf16 %v2060, %v2062
    %v2065 = vmul.bf16 %v1890, %v1949
    %v2066 = vmul.bf16 %v1890, %v1950
    %v2067 = vadd.bf16 %v2063, %v2065
    %v2068 = vadd.bf16 %v2064, %v2066
    %v2069 = vmul.bf16 %v1911, %v1970
    %v2070 = vmul.bf16 %v1911, %v1971
    %v2071 = vadd.bf16 %v2067, %v2069
    %v2072 = vadd.bf16 %v2068, %v2070
    %v2073 = vmul.bf16 %v1932, %v1991
    %v2074 = vmul.bf16 %v1932, %v1992
    %v2075 = vadd.bf16 %v2071, %v2073
    %v2076 = vadd.bf16 %v2072, %v2074
    %v2077 = vld [vmem:[%s338] sm:$0xf]
    %v2078 = vld [vmem:[%s338 + $0x4] sm:$0xf]
    %v2079 = vmul.bf16 %v1953, %v2077
    %v2080 = vmul.bf16 %v1953, %v2078
    %v2081 = vadd.bf16 %v2075, %v2079
    %v2082 = vadd.bf16 %v2076, %v2080
    %v2083 = vld [vmem:[%s345] sm:$0xf]
    %v2084 = vld [vmem:[%s345 + $0x4] sm:$0xf]
    %v2085 = vmul.bf16 %v1974, %v2083
    %v2086 = vmul.bf16 %v1974, %v2084
    %v2087 = vadd.bf16 %v2081, %v2085
    %v2088 = vadd.bf16 %v2082, %v2086
    %v2089 = vld [vmem:[%s352] sm:$0xf]
    %v2090 = vld [vmem:[%s352 + $0x4] sm:$0xf]
    %v2091 = vmul.bf16 %v1995, %v2089
    %v2092 = vmul.bf16 %v1995, %v2090
    %v2093 = vadd.bf16 %v2087, %v2091
    %v2094 = vadd.bf16 %v2088, %v2092
    %v2095 = vadd.bf16 %v2093, %v2003
    %v2096 = vadd.bf16 %v2094, %v2003
    %v2097 = vmax.bf16 %v2095, 0
    %v2098 = vmax.bf16 %v2096, 0
    %v2099 = vmax.bf16 %v2053, %v2097
    %v2100 = vmax.bf16 %v2054, %v2098
    %v2101 = vmul.bf16 %v1829, %v1907
    %v2102 = vmul.bf16 %v1829, %v1908
    %v2103 = vmul.bf16 %v1848, %v1928
    %v2104 = vmul.bf16 %v1848, %v1929
    %v2105 = vadd.bf16 %v2101, %v2103
    %v2106 = vadd.bf16 %v2102, %v2104
    %v2107 = vmul.bf16 %v1869, %v2029
    %v2108 = vmul.bf16 %v1869, %v2030
    %v2109 = vadd.bf16 %v2105, %v2107
    %v2110 = vadd.bf16 %v2106, %v2108
    %v2111 = vmul.bf16 %v1890, %v1970
    %v2112 = vmul.bf16 %v1890, %v1971
    %v2113 = vadd.bf16 %v2109, %v2111
    %v2114 = vadd.bf16 %v2110, %v2112
    %v2115 = vmul.bf16 %v1911, %v1991
    %v2116 = vmul.bf16 %v1911, %v1992
    %v2117 = vadd.bf16 %v2113, %v2115
    %v2118 = vadd.bf16 %v2114, %v2116
    %v2119 = vmul.bf16 %v1932, %v2043
    %v2120 = vmul.bf16 %v1932, %v2044
    %v2121 = vadd.bf16 %v2117, %v2119
    %v2122 = vadd.bf16 %v2118, %v2120
    %v2123 = vmul.bf16 %v1953, %v2083
    %v2124 = vmul.bf16 %v1953, %v2084
    %v2125 = vadd.bf16 %v2121, %v2123
    %v2126 = vadd.bf16 %v2122, %v2124
    %v2127 = vmul.bf16 %v1974, %v2089
    %v2128 = vmul.bf16 %v1974, %v2090
    %v2129 = vadd.bf16 %v2125, %v2127
    %v2130 = vadd.bf16 %v2126, %v2128
    %v2131 = vld [vmem:[%s395] sm:$0xf]
    %v2132 = vld [vmem:[%s395 + $0x4] sm:$0xf]
    %v2133 = vmul.bf16 %v1995, %v2131
    %v2134 = vmul.bf16 %v1995, %v2132
    %v2135 = vadd.bf16 %v2129, %v2133
    %v2136 = vadd.bf16 %v2130, %v2134
    %v2137 = vadd.bf16 %v2135, %v2003
    %v2138 = vadd.bf16 %v2136, %v2003
    %v2139 = vmax.bf16 %v2137, 0
    %v2140 = vmax.bf16 %v2138, 0
    %v2141 = vmax.bf16 %v2099, %v2139
    %v2142 = vmax.bf16 %v2100, %v2140
    %v2145 = vunpack.c.l.b16 %v2141
    %v2146 = vunpack.c.l.b16 %v2142
    %v2147 = vpack.c.b16 %v2146, %v2145
    %2149 = vst [vmem:[#allocation2 + $0x28] sm:$0xff] %v2147
    %s2150 = sld [smem:[#allocation6 + $0x6]]
    %p2152 = scmp.ne.f32.partialorder %s2150, %s2150
    %s2153 = sshrl.u32 %s2150, 16
    %s2154 = sand.u32 %s2153, 1
    %s2155 = sadd.s32 32767, %s2154
    %s2156 = sadd.s32 %s2150, %s2155
    %s2157 = sand.u32 %s2156, 4294901760
    %s2158 = scalar_select %p2152, 2143289344, %s2157
    %s2160 = sshrl.u32 %s2158, 16
    %s2161 = sld [smem:[#allocation4 + $0x300]]
    %p2163 = scmp.ne.f32.partialorder %s2161, %s2161
    %s2164 = sshrl.u32 %s2161, 16
    %s2165 = sand.u32 %s2164, 1
    %s2166 = sadd.s32 32767, %s2165
    %s2167 = sadd.s32 %s2161, %s2166
    %s2168 = sand.u32 %s2167, 4294901760
    %s2169 = scalar_select %p2163, 2143289344, %s2168
    %s2171 = sshrl.u32 %s2169, 16
    %v2172 = vld [vmem:[%s0] sm:$0xf]
    %v2173 = vld [vmem:[%s0 + $0x4] sm:$0xf]
    %s2174 = sshll.u32 %s2171, 16
    %s2175 = sor.u32 %s2171, %s2174
    %v2176 = vstv %s2175
    %v2178 = vmul.bf16 %v2176, %v2172
    %v2179 = vmul.bf16 %v2176, %v2173
    %s2180 = sld [smem:[#allocation4 + $0x301]]
    %p2182 = scmp.ne.f32.partialorder %s2180, %s2180
    %s2183 = sshrl.u32 %s2180, 16
    %s2184 = sand.u32 %s2183, 1
    %s2185 = sadd.s32 32767, %s2184
    %s2186 = sadd.s32 %s2180, %s2185
    %s2187 = sand.u32 %s2186, 4294901760
    %s2188 = scalar_select %p2182, 2143289344, %s2187
    %s2190 = sshrl.u32 %s2188, 16
    %v2191 = vld [vmem:[%s94] sm:$0xf]
    %v2192 = vld [vmem:[%s94 + $0x4] sm:$0xf]
    %s2193 = sshll.u32 %s2190, 16
    %s2194 = sor.u32 %s2190, %s2193
    %v2195 = vstv %s2194
    %v2197 = vmul.bf16 %v2195, %v2191
    %v2198 = vmul.bf16 %v2195, %v2192
    %v2199 = vadd.bf16 %v2178, %v2197
    %v2200 = vadd.bf16 %v2179, %v2198
    %s2201 = sld [smem:[#allocation4 + $0x302]]
    %p2203 = scmp.ne.f32.partialorder %s2201, %s2201
    %s2204 = sshrl.u32 %s2201, 16
    %s2205 = sand.u32 %s2204, 1
    %s2206 = sadd.s32 32767, %s2205
    %s2207 = sadd.s32 %s2201, %s2206
    %s2208 = sand.u32 %s2207, 4294901760
    %s2209 = scalar_select %p2203, 2143289344, %s2208
    %s2211 = sshrl.u32 %s2209, 16
    %v2212 = vld [vmem:[%s116] sm:$0xf]
    %v2213 = vld [vmem:[%s116 + $0x4] sm:$0xf]
    %s2214 = sshll.u32 %s2211, 16
    %s2215 = sor.u32 %s2211, %s2214
    %v2216 = vstv %s2215
    %v2218 = vmul.bf16 %v2216, %v2212
    %v2219 = vmul.bf16 %v2216, %v2213
    %v2220 = vadd.bf16 %v2199, %v2218
    %v2221 = vadd.bf16 %v2200, %v2219
    %s2222 = sld [smem:[#allocation4 + $0x303]]
    %p2224 = scmp.ne.f32.partialorder %s2222, %s2222
    %s2225 = sshrl.u32 %s2222, 16
    %s2226 = sand.u32 %s2225, 1
    %s2227 = sadd.s32 32767, %s2226
    %s2228 = sadd.s32 %s2222, %s2227
    %s2229 = sand.u32 %s2228, 4294901760
    %s2230 = scalar_select %p2224, 2143289344, %s2229
    %s2232 = sshrl.u32 %s2230, 16
    %v2233 = vld [vmem:[%s138] sm:$0xf]
    %v2234 = vld [vmem:[%s138 + $0x4] sm:$0xf]
    %s2235 = sshll.u32 %s2232, 16
    %s2236 = sor.u32 %s2232, %s2235
    %v2237 = vstv %s2236
    %v2239 = vmul.bf16 %v2237, %v2233
    %v2240 = vmul.bf16 %v2237, %v2234
    %v2241 = vadd.bf16 %v2220, %v2239
    %v2242 = vadd.bf16 %v2221, %v2240
    %s2243 = sld [smem:[#allocation4 + $0x304]]
    %p2245 = scmp.ne.f32.partialorder %s2243, %s2243
    %s2246 = sshrl.u32 %s2243, 16
    %s2247 = sand.u32 %s2246, 1
    %s2248 = sadd.s32 32767, %s2247
    %s2249 = sadd.s32 %s2243, %s2248
    %s2250 = sand.u32 %s2249, 4294901760
    %s2251 = scalar_select %p2245, 2143289344, %s2250
    %s2253 = sshrl.u32 %s2251, 16
    %v2254 = vld [vmem:[%s160] sm:$0xf]
    %v2255 = vld [vmem:[%s160 + $0x4] sm:$0xf]
    %s2256 = sshll.u32 %s2253, 16
    %s2257 = sor.u32 %s2253, %s2256
    %v2258 = vstv %s2257
    %v2260 = vmul.bf16 %v2258, %v2254
    %v2261 = vmul.bf16 %v2258, %v2255
    %v2262 = vadd.bf16 %v2241, %v2260
    %v2263 = vadd.bf16 %v2242, %v2261
    %s2264 = sld [smem:[#allocation4 + $0x305]]
    %p2266 = scmp.ne.f32.partialorder %s2264, %s2264
    %s2267 = sshrl.u32 %s2264, 16
    %s2268 = sand.u32 %s2267, 1
    %s2269 = sadd.s32 32767, %s2268
    %s2270 = sadd.s32 %s2264, %s2269
    %s2271 = sand.u32 %s2270, 4294901760
    %s2272 = scalar_select %p2266, 2143289344, %s2271
    %s2274 = sshrl.u32 %s2272, 16
    %v2275 = vld [vmem:[%s182] sm:$0xf]
    %v2276 = vld [vmem:[%s182 + $0x4] sm:$0xf]
    %s2277 = sshll.u32 %s2274, 16
    %s2278 = sor.u32 %s2274, %s2277
    %v2279 = vstv %s2278
    %v2281 = vmul.bf16 %v2279, %v2275
    %v2282 = vmul.bf16 %v2279, %v2276
    %v2283 = vadd.bf16 %v2262, %v2281
    %v2284 = vadd.bf16 %v2263, %v2282
    %s2285 = sld [smem:[#allocation4 + $0x306]]
    %p2287 = scmp.ne.f32.partialorder %s2285, %s2285
    %s2288 = sshrl.u32 %s2285, 16
    %s2289 = sand.u32 %s2288, 1
    %s2290 = sadd.s32 32767, %s2289
    %s2291 = sadd.s32 %s2285, %s2290
    %s2292 = sand.u32 %s2291, 4294901760
    %s2293 = scalar_select %p2287, 2143289344, %s2292
    %s2295 = sshrl.u32 %s2293, 16
    %v2296 = vld [vmem:[%s204] sm:$0xf]
    %v2297 = vld [vmem:[%s204 + $0x4] sm:$0xf]
    %s2298 = sshll.u32 %s2295, 16
    %s2299 = sor.u32 %s2295, %s2298
    %v2300 = vstv %s2299
    %v2302 = vmul.bf16 %v2300, %v2296
    %v2303 = vmul.bf16 %v2300, %v2297
    %v2304 = vadd.bf16 %v2283, %v2302
    %v2305 = vadd.bf16 %v2284, %v2303
    %s2306 = sld [smem:[#allocation4 + $0x307]]
    %p2308 = scmp.ne.f32.partialorder %s2306, %s2306
    %s2309 = sshrl.u32 %s2306, 16
    %s2310 = sand.u32 %s2309, 1
    %s2311 = sadd.s32 32767, %s2310
    %s2312 = sadd.s32 %s2306, %s2311
    %s2313 = sand.u32 %s2312, 4294901760
    %s2314 = scalar_select %p2308, 2143289344, %s2313
    %s2316 = sshrl.u32 %s2314, 16
    %v2317 = vld [vmem:[%s226] sm:$0xf]
    %v2318 = vld [vmem:[%s226 + $0x4] sm:$0xf]
    %s2319 = sshll.u32 %s2316, 16
    %s2320 = sor.u32 %s2316, %s2319
    %v2321 = vstv %s2320
    %v2323 = vmul.bf16 %v2321, %v2317
    %v2324 = vmul.bf16 %v2321, %v2318
    %v2325 = vadd.bf16 %v2304, %v2323
    %v2326 = vadd.bf16 %v2305, %v2324
    %s2327 = sld [smem:[#allocation4 + $0x308]]
    %p2329 = scmp.ne.f32.partialorder %s2327, %s2327
    %s2330 = sshrl.u32 %s2327, 16
    %s2331 = sand.u32 %s2330, 1
    %s2332 = sadd.s32 32767, %s2331
    %s2333 = sadd.s32 %s2327, %s2332
    %s2334 = sand.u32 %s2333, 4294901760
    %s2335 = scalar_select %p2329, 2143289344, %s2334
    %s2337 = sshrl.u32 %s2335, 16
    %v2338 = vld [vmem:[%s248] sm:$0xf]
    %v2339 = vld [vmem:[%s248 + $0x4] sm:$0xf]
    %s2340 = sshll.u32 %s2337, 16
    %s2341 = sor.u32 %s2337, %s2340
    %v2342 = vstv %s2341
    %v2344 = vmul.bf16 %v2342, %v2338
    %v2345 = vmul.bf16 %v2342, %v2339
    %v2346 = vadd.bf16 %v2325, %v2344
    %v2347 = vadd.bf16 %v2326, %v2345
    %s2348 = sshll.u32 %s2160, 16
    %s2349 = sor.u32 %s2160, %s2348
    %v2350 = vstv %s2349
    %v2352 = vadd.bf16 %v2346, %v2350
    %v2353 = vadd.bf16 %v2347, %v2350
    %v2354 = vmax.bf16 %v2352, 0
    %v2355 = vmax.bf16 %v2353, 0
    %v2356 = vmul.bf16 %v2176, %v2191
    %v2357 = vmul.bf16 %v2176, %v2192
    %v2358 = vmul.bf16 %v2195, %v2212
    %v2359 = vmul.bf16 %v2195, %v2213
    %v2360 = vadd.bf16 %v2356, %v2358
    %v2361 = vadd.bf16 %v2357, %v2359
    %v2362 = vld [vmem:[%s273] sm:$0xf]
    %v2363 = vld [vmem:[%s273 + $0x4] sm:$0xf]
    %v2364 = vmul.bf16 %v2216, %v2362
    %v2365 = vmul.bf16 %v2216, %v2363
    %v2366 = vadd.bf16 %v2360, %v2364
    %v2367 = vadd.bf16 %v2361, %v2365
    %v2368 = vmul.bf16 %v2237, %v2254
    %v2369 = vmul.bf16 %v2237, %v2255
    %v2370 = vadd.bf16 %v2366, %v2368
    %v2371 = vadd.bf16 %v2367, %v2369
    %v2372 = vmul.bf16 %v2258, %v2275
    %v2373 = vmul.bf16 %v2258, %v2276
    %v2374 = vadd.bf16 %v2370, %v2372
    %v2375 = vadd.bf16 %v2371, %v2373
    %v2376 = vld [vmem:[%s288] sm:$0xf]
    %v2377 = vld [vmem:[%s288 + $0x4] sm:$0xf]
    %v2378 = vmul.bf16 %v2279, %v2376
    %v2379 = vmul.bf16 %v2279, %v2377
    %v2380 = vadd.bf16 %v2374, %v2378
    %v2381 = vadd.bf16 %v2375, %v2379
    %v2382 = vmul.bf16 %v2300, %v2317
    %v2383 = vmul.bf16 %v2300, %v2318
    %v2384 = vadd.bf16 %v2380, %v2382
    %v2385 = vadd.bf16 %v2381, %v2383
    %v2386 = vmul.bf16 %v2321, %v2338
    %v2387 = vmul.bf16 %v2321, %v2339
    %v2388 = vadd.bf16 %v2384, %v2386
    %v2389 = vadd.bf16 %v2385, %v2387
    %v2390 = vld [vmem:[%s303] sm:$0xf]
    %v2391 = vld [vmem:[%s303 + $0x4] sm:$0xf]
    %v2392 = vmul.bf16 %v2342, %v2390
    %v2393 = vmul.bf16 %v2342, %v2391
    %v2394 = vadd.bf16 %v2388, %v2392
    %v2395 = vadd.bf16 %v2389, %v2393
    %v2396 = vadd.bf16 %v2394, %v2350
    %v2397 = vadd.bf16 %v2395, %v2350
    %v2398 = vmax.bf16 %v2396, 0
    %v2399 = vmax.bf16 %v2397, 0
    %v2400 = vmax.bf16 %v2354, %v2398
    %v2401 = vmax.bf16 %v2355, %v2399
    %v2402 = vmul.bf16 %v2176, %v2233
    %v2403 = vmul.bf16 %v2176, %v2234
    %v2404 = vmul.bf16 %v2195, %v2254
    %v2405 = vmul.bf16 %v2195, %v2255
    %v2406 = vadd.bf16 %v2402, %v2404
    %v2407 = vadd.bf16 %v2403, %v2405
    %v2408 = vmul.bf16 %v2216, %v2275
    %v2409 = vmul.bf16 %v2216, %v2276
    %v2410 = vadd.bf16 %v2406, %v2408
    %v2411 = vadd.bf16 %v2407, %v2409
    %v2412 = vmul.bf16 %v2237, %v2296
    %v2413 = vmul.bf16 %v2237, %v2297
    %v2414 = vadd.bf16 %v2410, %v2412
    %v2415 = vadd.bf16 %v2411, %v2413
    %v2416 = vmul.bf16 %v2258, %v2317
    %v2417 = vmul.bf16 %v2258, %v2318
    %v2418 = vadd.bf16 %v2414, %v2416
    %v2419 = vadd.bf16 %v2415, %v2417
    %v2420 = vmul.bf16 %v2279, %v2338
    %v2421 = vmul.bf16 %v2279, %v2339
    %v2422 = vadd.bf16 %v2418, %v2420
    %v2423 = vadd.bf16 %v2419, %v2421
    %v2424 = vld [vmem:[%s338] sm:$0xf]
    %v2425 = vld [vmem:[%s338 + $0x4] sm:$0xf]
    %v2426 = vmul.bf16 %v2300, %v2424
    %v2427 = vmul.bf16 %v2300, %v2425
    %v2428 = vadd.bf16 %v2422, %v2426
    %v2429 = vadd.bf16 %v2423, %v2427
    %v2430 = vld [vmem:[%s345] sm:$0xf]
    %v2431 = vld [vmem:[%s345 + $0x4] sm:$0xf]
    %v2432 = vmul.bf16 %v2321, %v2430
    %v2433 = vmul.bf16 %v2321, %v2431
    %v2434 = vadd.bf16 %v2428, %v2432
    %v2435 = vadd.bf16 %v2429, %v2433
    %v2436 = vld [vmem:[%s352] sm:$0xf]
    %v2437 = vld [vmem:[%s352 + $0x4] sm:$0xf]
    %v2438 = vmul.bf16 %v2342, %v2436
    %v2439 = vmul.bf16 %v2342, %v2437
    %v2440 = vadd.bf16 %v2434, %v2438
    %v2441 = vadd.bf16 %v2435, %v2439
    %v2442 = vadd.bf16 %v2440, %v2350
    %v2443 = vadd.bf16 %v2441, %v2350
    %v2444 = vmax.bf16 %v2442, 0
    %v2445 = vmax.bf16 %v2443, 0
    %v2446 = vmax.bf16 %v2400, %v2444
    %v2447 = vmax.bf16 %v2401, %v2445
    %v2448 = vmul.bf16 %v2176, %v2254
    %v2449 = vmul.bf16 %v2176, %v2255
    %v2450 = vmul.bf16 %v2195, %v2275
    %v2451 = vmul.bf16 %v2195, %v2276
    %v2452 = vadd.bf16 %v2448, %v2450
    %v2453 = vadd.bf16 %v2449, %v2451
    %v2454 = vmul.bf16 %v2216, %v2376
    %v2455 = vmul.bf16 %v2216, %v2377
    %v2456 = vadd.bf16 %v2452, %v2454
    %v2457 = vadd.bf16 %v2453, %v2455
    %v2458 = vmul.bf16 %v2237, %v2317
    %v2459 = vmul.bf16 %v2237, %v2318
    %v2460 = vadd.bf16 %v2456, %v2458
    %v2461 = vadd.bf16 %v2457, %v2459
    %v2462 = vmul.bf16 %v2258, %v2338
    %v2463 = vmul.bf16 %v2258, %v2339
    %v2464 = vadd.bf16 %v2460, %v2462
    %v2465 = vadd.bf16 %v2461, %v2463
    %v2466 = vmul.bf16 %v2279, %v2390
    %v2467 = vmul.bf16 %v2279, %v2391
    %v2468 = vadd.bf16 %v2464, %v2466
    %v2469 = vadd.bf16 %v2465, %v2467
    %v2470 = vmul.bf16 %v2300, %v2430
    %v2471 = vmul.bf16 %v2300, %v2431
    %v2472 = vadd.bf16 %v2468, %v2470
    %v2473 = vadd.bf16 %v2469, %v2471
    %v2474 = vmul.bf16 %v2321, %v2436
    %v2475 = vmul.bf16 %v2321, %v2437
    %v2476 = vadd.bf16 %v2472, %v2474
    %v2477 = vadd.bf16 %v2473, %v2475
    %v2478 = vld [vmem:[%s395] sm:$0xf]
    %v2479 = vld [vmem:[%s395 + $0x4] sm:$0xf]
    %v2480 = vmul.bf16 %v2342, %v2478
    %v2481 = vmul.bf16 %v2342, %v2479
    %v2482 = vadd.bf16 %v2476, %v2480
    %v2483 = vadd.bf16 %v2477, %v2481
    %v2484 = vadd.bf16 %v2482, %v2350
    %v2485 = vadd.bf16 %v2483, %v2350
    %v2486 = vmax.bf16 %v2484, 0
    %v2487 = vmax.bf16 %v2485, 0
    %v2488 = vmax.bf16 %v2446, %v2486
    %v2489 = vmax.bf16 %v2447, %v2487
    %v2492 = vunpack.c.l.b16 %v2488
    %v2493 = vunpack.c.l.b16 %v2489
    %v2494 = vpack.c.b16 %v2493, %v2492
    %2496 = vst [vmem:[#allocation2 + $0x30] sm:$0xff] %v2494
    %s2497 = sld [smem:[#allocation6 + $0x7]]
    %p2499 = scmp.ne.f32.partialorder %s2497, %s2497
    %s2500 = sshrl.u32 %s2497, 16
    %s2501 = sand.u32 %s2500, 1
    %s2502 = sadd.s32 32767, %s2501
    %s2503 = sadd.s32 %s2497, %s2502
    %s2504 = sand.u32 %s2503, 4294901760
    %s2505 = scalar_select %p2499, 2143289344, %s2504
    %s2507 = sshrl.u32 %s2505, 16
    %s2508 = sld [smem:[#allocation4 + $0x380]]
    %p2510 = scmp.ne.f32.partialorder %s2508, %s2508
    %s2511 = sshrl.u32 %s2508, 16
    %s2512 = sand.u32 %s2511, 1
    %s2513 = sadd.s32 32767, %s2512
    %s2514 = sadd.s32 %s2508, %s2513
    %s2515 = sand.u32 %s2514, 4294901760
    %s2516 = scalar_select %p2510, 2143289344, %s2515
    %s2518 = sshrl.u32 %s2516, 16
    %v2519 = vld [vmem:[%s0] sm:$0xf]
    %v2520 = vld [vmem:[%s0 + $0x4] sm:$0xf]
    %s2521 = sshll.u32 %s2518, 16
    %s2522 = sor.u32 %s2518, %s2521
    %v2523 = vstv %s2522
    %v2525 = vmul.bf16 %v2523, %v2519
    %v2526 = vmul.bf16 %v2523, %v2520
    %s2527 = sld [smem:[#allocation4 + $0x381]]
    %p2529 = scmp.ne.f32.partialorder %s2527, %s2527
    %s2530 = sshrl.u32 %s2527, 16
    %s2531 = sand.u32 %s2530, 1
    %s2532 = sadd.s32 32767, %s2531
    %s2533 = sadd.s32 %s2527, %s2532
    %s2534 = sand.u32 %s2533, 4294901760
    %s2535 = scalar_select %p2529, 2143289344, %s2534
    %s2537 = sshrl.u32 %s2535, 16
    %v2538 = vld [vmem:[%s94] sm:$0xf]
    %v2539 = vld [vmem:[%s94 + $0x4] sm:$0xf]
    %s2540 = sshll.u32 %s2537, 16
    %s2541 = sor.u32 %s2537, %s2540
    %v2542 = vstv %s2541
    %v2544 = vmul.bf16 %v2542, %v2538
    %v2545 = vmul.bf16 %v2542, %v2539
    %v2546 = vadd.bf16 %v2525, %v2544
    %v2547 = vadd.bf16 %v2526, %v2545
    %s2548 = sld [smem:[#allocation4 + $0x382]]
    %p2550 = scmp.ne.f32.partialorder %s2548, %s2548
    %s2551 = sshrl.u32 %s2548, 16
    %s2552 = sand.u32 %s2551, 1
    %s2553 = sadd.s32 32767, %s2552
    %s2554 = sadd.s32 %s2548, %s2553
    %s2555 = sand.u32 %s2554, 4294901760
    %s2556 = scalar_select %p2550, 2143289344, %s2555
    %s2558 = sshrl.u32 %s2556, 16
    %v2559 = vld [vmem:[%s116] sm:$0xf]
    %v2560 = vld [vmem:[%s116 + $0x4] sm:$0xf]
    %s2561 = sshll.u32 %s2558, 16
    %s2562 = sor.u32 %s2558, %s2561
    %v2563 = vstv %s2562
    %v2565 = vmul.bf16 %v2563, %v2559
    %v2566 = vmul.bf16 %v2563, %v2560
    %v2567 = vadd.bf16 %v2546, %v2565
    %v2568 = vadd.bf16 %v2547, %v2566
    %s2569 = sld [smem:[#allocation4 + $0x383]]
    %p2571 = scmp.ne.f32.partialorder %s2569, %s2569
    %s2572 = sshrl.u32 %s2569, 16
    %s2573 = sand.u32 %s2572, 1
    %s2574 = sadd.s32 32767, %s2573
    %s2575 = sadd.s32 %s2569, %s2574
    %s2576 = sand.u32 %s2575, 4294901760
    %s2577 = scalar_select %p2571, 2143289344, %s2576
    %s2579 = sshrl.u32 %s2577, 16
    %v2580 = vld [vmem:[%s138] sm:$0xf]
    %v2581 = vld [vmem:[%s138 + $0x4] sm:$0xf]
    %s2582 = sshll.u32 %s2579, 16
    %s2583 = sor.u32 %s2579, %s2582
    %v2584 = vstv %s2583
    %v2586 = vmul.bf16 %v2584, %v2580
    %v2587 = vmul.bf16 %v2584, %v2581
    %v2588 = vadd.bf16 %v2567, %v2586
    %v2589 = vadd.bf16 %v2568, %v2587
    %s2590 = sld [smem:[#allocation4 + $0x384]]
    %p2592 = scmp.ne.f32.partialorder %s2590, %s2590
    %s2593 = sshrl.u32 %s2590, 16
    %s2594 = sand.u32 %s2593, 1
    %s2595 = sadd.s32 32767, %s2594
    %s2596 = sadd.s32 %s2590, %s2595
    %s2597 = sand.u32 %s2596, 4294901760
    %s2598 = scalar_select %p2592, 2143289344, %s2597
    %s2600 = sshrl.u32 %s2598, 16
    %v2601 = vld [vmem:[%s160] sm:$0xf]
    %v2602 = vld [vmem:[%s160 + $0x4] sm:$0xf]
    %s2603 = sshll.u32 %s2600, 16
    %s2604 = sor.u32 %s2600, %s2603
    %v2605 = vstv %s2604
    %v2607 = vmul.bf16 %v2605, %v2601
    %v2608 = vmul.bf16 %v2605, %v2602
    %v2609 = vadd.bf16 %v2588, %v2607
    %v2610 = vadd.bf16 %v2589, %v2608
    %s2611 = sld [smem:[#allocation4 + $0x385]]
    %p2613 = scmp.ne.f32.partialorder %s2611, %s2611
    %s2614 = sshrl.u32 %s2611, 16
    %s2615 = sand.u32 %s2614, 1
    %s2616 = sadd.s32 32767, %s2615
    %s2617 = sadd.s32 %s2611, %s2616
    %s2618 = sand.u32 %s2617, 4294901760
    %s2619 = scalar_select %p2613, 2143289344, %s2618
    %s2621 = sshrl.u32 %s2619, 16
    %v2622 = vld [vmem:[%s182] sm:$0xf]
    %v2623 = vld [vmem:[%s182 + $0x4] sm:$0xf]
    %s2624 = sshll.u32 %s2621, 16
    %s2625 = sor.u32 %s2621, %s2624
    %v2626 = vstv %s2625
    %v2628 = vmul.bf16 %v2626, %v2622
    %v2629 = vmul.bf16 %v2626, %v2623
    %v2630 = vadd.bf16 %v2609, %v2628
    %v2631 = vadd.bf16 %v2610, %v2629
    %s2632 = sld [smem:[#allocation4 + $0x386]]
    %p2634 = scmp.ne.f32.partialorder %s2632, %s2632
    %s2635 = sshrl.u32 %s2632, 16
    %s2636 = sand.u32 %s2635, 1
    %s2637 = sadd.s32 32767, %s2636
    %s2638 = sadd.s32 %s2632, %s2637
    %s2639 = sand.u32 %s2638, 4294901760
    %s2640 = scalar_select %p2634, 2143289344, %s2639
    %s2642 = sshrl.u32 %s2640, 16
    %v2643 = vld [vmem:[%s204] sm:$0xf]
    %v2644 = vld [vmem:[%s204 + $0x4] sm:$0xf]
    %s2645 = sshll.u32 %s2642, 16
    %s2646 = sor.u32 %s2642, %s2645
    %v2647 = vstv %s2646
    %v2649 = vmul.bf16 %v2647, %v2643
    %v2650 = vmul.bf16 %v2647, %v2644
    %v2651 = vadd.bf16 %v2630, %v2649
    %v2652 = vadd.bf16 %v2631, %v2650
    %s2653 = sld [smem:[#allocation4 + $0x387]]
    %p2655 = scmp.ne.f32.partialorder %s2653, %s2653
    %s2656 = sshrl.u32 %s2653, 16
    %s2657 = sand.u32 %s2656, 1
    %s2658 = sadd.s32 32767, %s2657
    %s2659 = sadd.s32 %s2653, %s2658
    %s2660 = sand.u32 %s2659, 4294901760
    %s2661 = scalar_select %p2655, 2143289344, %s2660
    %s2663 = sshrl.u32 %s2661, 16
    %v2664 = vld [vmem:[%s226] sm:$0xf]
    %v2665 = vld [vmem:[%s226 + $0x4] sm:$0xf]
    %s2666 = sshll.u32 %s2663, 16
    %s2667 = sor.u32 %s2663, %s2666
    %v2668 = vstv %s2667
    %v2670 = vmul.bf16 %v2668, %v2664
    %v2671 = vmul.bf16 %v2668, %v2665
    %v2672 = vadd.bf16 %v2651, %v2670
    %v2673 = vadd.bf16 %v2652, %v2671
    %s2674 = sld [smem:[#allocation4 + $0x388]]
    %p2676 = scmp.ne.f32.partialorder %s2674, %s2674
    %s2677 = sshrl.u32 %s2674, 16
    %s2678 = sand.u32 %s2677, 1
    %s2679 = sadd.s32 32767, %s2678
    %s2680 = sadd.s32 %s2674, %s2679
    %s2681 = sand.u32 %s2680, 4294901760
    %s2682 = scalar_select %p2676, 2143289344, %s2681
    %s2684 = sshrl.u32 %s2682, 16
    %v2685 = vld [vmem:[%s248] sm:$0xf]
    %v2686 = vld [vmem:[%s248 + $0x4] sm:$0xf]
    %s2687 = sshll.u32 %s2684, 16
    %s2688 = sor.u32 %s2684, %s2687
    %v2689 = vstv %s2688
    %v2691 = vmul.bf16 %v2689, %v2685
    %v2692 = vmul.bf16 %v2689, %v2686
    %v2693 = vadd.bf16 %v2672, %v2691
    %v2694 = vadd.bf16 %v2673, %v2692
    %s2695 = sshll.u32 %s2507, 16
    %s2696 = sor.u32 %s2507, %s2695
    %v2697 = vstv %s2696
    %v2699 = vadd.bf16 %v2693, %v2697
    %v2700 = vadd.bf16 %v2694, %v2697
    %v2701 = vmax.bf16 %v2699, 0
    %v2702 = vmax.bf16 %v2700, 0
    %v2703 = vmul.bf16 %v2523, %v2538
    %v2704 = vmul.bf16 %v2523, %v2539
    %v2705 = vmul.bf16 %v2542, %v2559
    %v2706 = vmul.bf16 %v2542, %v2560
    %v2707 = vadd.bf16 %v2703, %v2705
    %v2708 = vadd.bf16 %v2704, %v2706
    %v2709 = vld [vmem:[%s273] sm:$0xf]
    %v2710 = vld [vmem:[%s273 + $0x4] sm:$0xf]
    %v2711 = vmul.bf16 %v2563, %v2709
    %v2712 = vmul.bf16 %v2563, %v2710
    %v2713 = vadd.bf16 %v2707, %v2711
    %v2714 = vadd.bf16 %v2708, %v2712
    %v2715 = vmul.bf16 %v2584, %v2601
    %v2716 = vmul.bf16 %v2584, %v2602
    %v2717 = vadd.bf16 %v2713, %v2715
    %v2718 = vadd.bf16 %v2714, %v2716
    %v2719 = vmul.bf16 %v2605, %v2622
    %v2720 = vmul.bf16 %v2605, %v2623
    %v2721 = vadd.bf16 %v2717, %v2719
    %v2722 = vadd.bf16 %v2718, %v2720
    %v2723 = vld [vmem:[%s288] sm:$0xf]
    %v2724 = vld [vmem:[%s288 + $0x4] sm:$0xf]
    %v2725 = vmul.bf16 %v2626, %v2723
    %v2726 = vmul.bf16 %v2626, %v2724
    %v2727 = vadd.bf16 %v2721, %v2725
    %v2728 = vadd.bf16 %v2722, %v2726
    %v2729 = vmul.bf16 %v2647, %v2664
    %v2730 = vmul.bf16 %v2647, %v2665
    %v2731 = vadd.bf16 %v2727, %v2729
    %v2732 = vadd.bf16 %v2728, %v2730
    %v2733 = vmul.bf16 %v2668, %v2685
    %v2734 = vmul.bf16 %v2668, %v2686
    %v2735 = vadd.bf16 %v2731, %v2733
    %v2736 = vadd.bf16 %v2732, %v2734
    %v2737 = vld [vmem:[%s303] sm:$0xf]
    %v2738 = vld [vmem:[%s303 + $0x4] sm:$0xf]
    %v2739 = vmul.bf16 %v2689, %v2737
    %v2740 = vmul.bf16 %v2689, %v2738
    %v2741 = vadd.bf16 %v2735, %v2739
    %v2742 = vadd.bf16 %v2736, %v2740
    %v2743 = vadd.bf16 %v2741, %v2697
    %v2744 = vadd.bf16 %v2742, %v2697
    %v2745 = vmax.bf16 %v2743, 0
    %v2746 = vmax.bf16 %v2744, 0
    %v2747 = vmax.bf16 %v2701, %v2745
    %v2748 = vmax.bf16 %v2702, %v2746
    %v2749 = vmul.bf16 %v2523, %v2580
    %v2750 = vmul.bf16 %v2523, %v2581
    %v2751 = vmul.bf16 %v2542, %v2601
    %v2752 = vmul.bf16 %v2542, %v2602
    %v2753 = vadd.bf16 %v2749, %v2751
    %v2754 = vadd.bf16 %v2750, %v2752
    %v2755 = vmul.bf16 %v2563, %v2622
    %v2756 = vmul.bf16 %v2563, %v2623
    %v2757 = vadd.bf16 %v2753, %v2755
    %v2758 = vadd.bf16 %v2754, %v2756
    %v2759 = vmul.bf16 %v2584, %v2643
    %v2760 = vmul.bf16 %v2584, %v2644
    %v2761 = vadd.bf16 %v2757, %v2759
    %v2762 = vadd.bf16 %v2758, %v2760
    %v2763 = vmul.bf16 %v2605, %v2664
    %v2764 = vmul.bf16 %v2605, %v2665
    %v2765 = vadd.bf16 %v2761, %v2763
    %v2766 = vadd.bf16 %v2762, %v2764
    %v2767 = vmul.bf16 %v2626, %v2685
    %v2768 = vmul.bf16 %v2626, %v2686
    %v2769 = vadd.bf16 %v2765, %v2767
    %v2770 = vadd.bf16 %v2766, %v2768
    %v2771 = vld [vmem:[%s338] sm:$0xf]
    %v2772 = vld [vmem:[%s338 + $0x4] sm:$0xf]
    %v2773 = vmul.bf16 %v2647, %v2771
    %v2774 = vmul.bf16 %v2647, %v2772
    %v2775 = vadd.bf16 %v2769, %v2773
    %v2776 = vadd.bf16 %v2770, %v2774
    %v2777 = vld [vmem:[%s345] sm:$0xf]
    %v2778 = vld [vmem:[%s345 + $0x4] sm:$0xf]
    %v2779 = vmul.bf16 %v2668, %v2777
    %v2780 = vmul.bf16 %v2668, %v2778
    %v2781 = vadd.bf16 %v2775, %v2779
    %v2782 = vadd.bf16 %v2776, %v2780
    %v2783 = vld [vmem:[%s352] sm:$0xf]
    %v2784 = vld [vmem:[%s352 + $0x4] sm:$0xf]
    %v2785 = vmul.bf16 %v2689, %v2783
    %v2786 = vmul.bf16 %v2689, %v2784
    %v2787 = vadd.bf16 %v2781, %v2785
    %v2788 = vadd.bf16 %v2782, %v2786
    %v2789 = vadd.bf16 %v2787, %v2697
    %v2790 = vadd.bf16 %v2788, %v2697
    %v2791 = vmax.bf16 %v2789, 0
    %v2792 = vmax.bf16 %v2790, 0
    %v2793 = vmax.bf16 %v2747, %v2791
    %v2794 = vmax.bf16 %v2748, %v2792
    %v2795 = vmul.bf16 %v2523, %v2601
    %v2796 = vmul.bf16 %v2523, %v2602
    %v2797 = vmul.bf16 %v2542, %v2622
    %v2798 = vmul.bf16 %v2542, %v2623
    %v2799 = vadd.bf16 %v2795, %v2797
    %v2800 = vadd.bf16 %v2796, %v2798
    %v2801 = vmul.bf16 %v2563, %v2723
    %v2802 = vmul.bf16 %v2563, %v2724
    %v2803 = vadd.bf16 %v2799, %v2801
    %v2804 = vadd.bf16 %v2800, %v2802
    %v2805 = vmul.bf16 %v2584, %v2664
    %v2806 = vmul.bf16 %v2584, %v2665
    %v2807 = vadd.bf16 %v2803, %v2805
    %v2808 = vadd.bf16 %v2804, %v2806
    %v2809 = vmul.bf16 %v2605, %v2685
    %v2810 = vmul.bf16 %v2605, %v2686
    %v2811 = vadd.bf16 %v2807, %v2809
    %v2812 = vadd.bf16 %v2808, %v2810
    %v2813 = vmul.bf16 %v2626, %v2737
    %v2814 = vmul.bf16 %v2626, %v2738
    %v2815 = vadd.bf16 %v2811, %v2813
    %v2816 = vadd.bf16 %v2812, %v2814
    %v2817 = vmul.bf16 %v2647, %v2777
    %v2818 = vmul.bf16 %v2647, %v2778
    %v2819 = vadd.bf16 %v2815, %v2817
    %v2820 = vadd.bf16 %v2816, %v2818
    %v2821 = vmul.bf16 %v2668, %v2783
    %v2822 = vmul.bf16 %v2668, %v2784
    %v2823 = vadd.bf16 %v2819, %v2821
    %v2824 = vadd.bf16 %v2820, %v2822
    %v2825 = vld [vmem:[%s395] sm:$0xf]
    %v2826 = vld [vmem:[%s395 + $0x4] sm:$0xf]
    %v2827 = vmul.bf16 %v2689, %v2825
    %v2828 = vmul.bf16 %v2689, %v2826
    %v2829 = vadd.bf16 %v2823, %v2827
    %v2830 = vadd.bf16 %v2824, %v2828
    %v2831 = vadd.bf16 %v2829, %v2697
    %v2832 = vadd.bf16 %v2830, %v2697
    %v2833 = vmax.bf16 %v2831, 0
    %v2834 = vmax.bf16 %v2832, 0
    %v2835 = vmax.bf16 %v2793, %v2833
    %v2836 = vmax.bf16 %v2794, %v2834
    %v2839 = vunpack.c.l.b16 %v2835
    %v2840 = vunpack.c.l.b16 %v2836
    %v2841 = vpack.c.b16 %v2840, %v2839
    %2843 = vst [vmem:[#allocation2 + $0x38] sm:$0xff] %v2841
    %v2844 = vld [vmem:[#allocation2] sm:$0xff]
    %v2845 = vld [vmem:[#allocation2 + $0x8] sm:$0xff]
    %v2846 = vld [vmem:[#allocation2 + $0x10] sm:$0xff]
    %v2847 = vld [vmem:[#allocation2 + $0x18] sm:$0xff]
    %v2848 = vld [vmem:[#allocation2 + $0x20] sm:$0xff]
    %v2849 = vld [vmem:[#allocation2 + $0x28] sm:$0xff]
    %v2850 = vld [vmem:[#allocation2 + $0x30] sm:$0xff]
    %v2851 = vld [vmem:[#allocation2 + $0x38] sm:$0xff]
    %v2852 = vld [vmem:[%s4] sm:$0xf]
    %v2853 = vld [vmem:[%s4 + $0x4] sm:$0xf]
    %v2854 = vld [vmem:[%s4 + $0x8] sm:$0xf]
    %v2855 = vld [vmem:[%s4 + $0xc] sm:$0xf]
    %v2856 = vld [vmem:[%s4 + $0x10] sm:$0xf]
    %v2857 = vld [vmem:[%s4 + $0x14] sm:$0xf]
    %v2858 = vld [vmem:[%s4 + $0x18] sm:$0xf]
    %v2859 = vld [vmem:[%s4 + $0x1c] sm:$0xf]
    %v2860 = vld [vmem:[%s4 + $0x20] sm:$0xf]
    %v2861 = vld [vmem:[%s4 + $0x24] sm:$0xf]
    %v2862 = vld [vmem:[%s4 + $0x28] sm:$0xf]
    %v2863 = vld [vmem:[%s4 + $0x2c] sm:$0xf]
    %v2864 = vld [vmem:[%s4 + $0x30] sm:$0xf]
    %v2865 = vld [vmem:[%s4 + $0x34] sm:$0xf]
    %v2866 = vld [vmem:[%s4 + $0x38] sm:$0xf]
    %v2867 = vld [vmem:[%s4 + $0x3c] sm:$0xf]
    %v2868 = vld [vmem:[%s4 + $0x40] sm:$0xf]
    %v2869 = vld [vmem:[%s4 + $0x44] sm:$0xf]
    %v2870 = vld [vmem:[%s4 + $0x48] sm:$0xf]
    %v2871 = vld [vmem:[%s4 + $0x4c] sm:$0xf]
    %v2872 = vld [vmem:[%s4 + $0x50] sm:$0xf]
    %v2873 = vld [vmem:[%s4 + $0x54] sm:$0xf]
    %v2874 = vld [vmem:[%s4 + $0x58] sm:$0xf]
    %v2875 = vld [vmem:[%s4 + $0x5c] sm:$0xf]
    %v2876 = vld [vmem:[%s4 + $0x60] sm:$0xf]
    %v2877 = vld [vmem:[%s4 + $0x64] sm:$0xf]
    %v2878 = vld [vmem:[%s4 + $0x68] sm:$0xf]
    %v2879 = vld [vmem:[%s4 + $0x6c] sm:$0xf]
    %v2880 = vld [vmem:[%s4 + $0x70] sm:$0xf]
    %v2881 = vld [vmem:[%s4 + $0x74] sm:$0xf]
    %v2882 = vld [vmem:[%s4 + $0x78] sm:$0xf]
    %v2883 = vld [vmem:[%s4 + $0x7c] sm:$0xf]
    %v2884 = vld [vmem:[%s4 + $0x80] sm:$0xf]
    %v2885 = vld [vmem:[%s4 + $0x84] sm:$0xf]
    %v2886 = vld [vmem:[%s4 + $0x88] sm:$0xf]
    %v2887 = vld [vmem:[%s4 + $0x8c] sm:$0xf]
    %v2888 = vld [vmem:[%s4 + $0x90] sm:$0xf]
    %v2889 = vld [vmem:[%s4 + $0x94] sm:$0xf]
    %v2890 = vld [vmem:[%s4 + $0x98] sm:$0xf]
    %v2891 = vld [vmem:[%s4 + $0x9c] sm:$0xf]
    %v2892 = vld [vmem:[%s4 + $0xa0] sm:$0xf]
    %v2893 = vld [vmem:[%s4 + $0xa4] sm:$0xf]
    %v2894 = vld [vmem:[%s4 + $0xa8] sm:$0xf]
    %v2895 = vld [vmem:[%s4 + $0xac] sm:$0xf]
    %v2896 = vld [vmem:[%s4 + $0xb0] sm:$0xf]
    %v2897 = vld [vmem:[%s4 + $0xb4] sm:$0xf]
    %v2898 = vld [vmem:[%s4 + $0xb8] sm:$0xf]
    %v2899 = vld [vmem:[%s4 + $0xbc] sm:$0xf]
    %v2900 = vld [vmem:[%s4 + $0xc0] sm:$0xf]
    %v2901 = vld [vmem:[%s4 + $0xc4] sm:$0xf]
    %v2902 = vld [vmem:[%s4 + $0xc8] sm:$0xf]
    %v2903 = vld [vmem:[%s4 + $0xcc] sm:$0xf]
    %v2904 = vld [vmem:[%s4 + $0xd0] sm:$0xf]
    %v2905 = vld [vmem:[%s4 + $0xd4] sm:$0xf]
    %v2906 = vld [vmem:[%s4 + $0xd8] sm:$0xf]
    %v2907 = vld [vmem:[%s4 + $0xdc] sm:$0xf]
    %v2908 = vld [vmem:[%s4 + $0xe0] sm:$0xf]
    %v2909 = vld [vmem:[%s4 + $0xe4] sm:$0xf]
    %v2910 = vld [vmem:[%s4 + $0xe8] sm:$0xf]
    %v2911 = vld [vmem:[%s4 + $0xec] sm:$0xf]
    %v2912 = vld [vmem:[%s4 + $0xf0] sm:$0xf]
    %v2913 = vld [vmem:[%s4 + $0xf4] sm:$0xf]
    %v2914 = vld [vmem:[%s4 + $0xf8] sm:$0xf]
    %v2915 = vld [vmem:[%s4 + $0xfc] sm:$0xf]
    %v2916 = vld [vmem:[%s4 + $0x100] sm:$0xf]
    %v2917 = vld [vmem:[%s4 + $0x104] sm:$0xf]
    %v2918 = vld [vmem:[%s4 + $0x108] sm:$0xf]
    %v2919 = vld [vmem:[%s4 + $0x10c] sm:$0xf]
    %v2920 = vld [vmem:[%s4 + $0x110] sm:$0xf]
    %v2921 = vld [vmem:[%s4 + $0x114] sm:$0xf]
    %v2922 = vld [vmem:[%s4 + $0x118] sm:$0xf]
    %v2923 = vld [vmem:[%s4 + $0x11c] sm:$0xf]
    %v2924 = vld [vmem:[%s4 + $0x120] sm:$0xf]
    %v2925 = vld [vmem:[%s4 + $0x124] sm:$0xf]
    %v2926 = vld [vmem:[%s4 + $0x128] sm:$0xf]
    %v2927 = vld [vmem:[%s4 + $0x12c] sm:$0xf]
    %v2928 = vld [vmem:[%s4 + $0x130] sm:$0xf]
    %v2929 = vld [vmem:[%s4 + $0x134] sm:$0xf]
    %v2930 = vld [vmem:[%s4 + $0x138] sm:$0xf]
    %v2931 = vld [vmem:[%s4 + $0x13c] sm:$0xf]
    %v2932 = vld [vmem:[%s4 + $0x140] sm:$0xf]
    %v2933 = vld [vmem:[%s4 + $0x144] sm:$0xf]
    %v2934 = vld [vmem:[%s4 + $0x148] sm:$0xf]
    %v2935 = vld [vmem:[%s4 + $0x14c] sm:$0xf]
    %v2936 = vld [vmem:[%s4 + $0x150] sm:$0xf]
    %v2937 = vld [vmem:[%s4 + $0x154] sm:$0xf]
    %v2938 = vld [vmem:[%s4 + $0x158] sm:$0xf]
    %v2939 = vld [vmem:[%s4 + $0x15c] sm:$0xf]
    %v2940 = vld [vmem:[%s4 + $0x160] sm:$0xf]
    %v2941 = vld [vmem:[%s4 + $0x164] sm:$0xf]
    %v2942 = vld [vmem:[%s4 + $0x168] sm:$0xf]
    %v2943 = vld [vmem:[%s4 + $0x16c] sm:$0xf]
    %v2944 = vld [vmem:[%s4 + $0x170] sm:$0xf]
    %v2945 = vld [vmem:[%s4 + $0x174] sm:$0xf]
    %v2946 = vld [vmem:[%s4 + $0x178] sm:$0xf]
    %v2947 = vld [vmem:[%s4 + $0x17c] sm:$0xf]
    %v2948 = vld [vmem:[%s4 + $0x180] sm:$0xf]
    %v2949 = vld [vmem:[%s4 + $0x184] sm:$0xf]
    %v2950 = vld [vmem:[%s4 + $0x188] sm:$0xf]
    %v2951 = vld [vmem:[%s4 + $0x18c] sm:$0xf]
    %v2952 = vld [vmem:[%s4 + $0x190] sm:$0xf]
    %v2953 = vld [vmem:[%s4 + $0x194] sm:$0xf]
    %v2954 = vld [vmem:[%s4 + $0x198] sm:$0xf]
    %v2955 = vld [vmem:[%s4 + $0x19c] sm:$0xf]
    %v2956 = vld [vmem:[%s4 + $0x1a0] sm:$0xf]
    %v2957 = vld [vmem:[%s4 + $0x1a4] sm:$0xf]
    %v2958 = vld [vmem:[%s4 + $0x1a8] sm:$0xf]
    %v2959 = vld [vmem:[%s4 + $0x1ac] sm:$0xf]
    %v2960 = vld [vmem:[%s4 + $0x1b0] sm:$0xf]
    %v2961 = vld [vmem:[%s4 + $0x1b4] sm:$0xf]
    %v2962 = vld [vmem:[%s4 + $0x1b8] sm:$0xf]
    %v2963 = vld [vmem:[%s4 + $0x1bc] sm:$0xf]
    %v2964 = vld [vmem:[%s4 + $0x1c0] sm:$0xf]
    %v2965 = vld [vmem:[%s4 + $0x1c4] sm:$0xf]
    %v2966 = vld [vmem:[%s4 + $0x1c8] sm:$0xf]
    %v2967 = vld [vmem:[%s4 + $0x1cc] sm:$0xf]
    %v2968 = vld [vmem:[%s4 + $0x1d0] sm:$0xf]
    %v2969 = vld [vmem:[%s4 + $0x1d4] sm:$0xf]
    %v2970 = vld [vmem:[%s4 + $0x1d8] sm:$0xf]
    %v2971 = vld [vmem:[%s4 + $0x1dc] sm:$0xf]
    %v2972 = vld [vmem:[%s4 + $0x1e0] sm:$0xf]
    %v2973 = vld [vmem:[%s4 + $0x1e4] sm:$0xf]
    %v2974 = vld [vmem:[%s4 + $0x1e8] sm:$0xf]
    %v2975 = vld [vmem:[%s4 + $0x1ec] sm:$0xf]
    %v2976 = vld [vmem:[%s4 + $0x1f0] sm:$0xf]
    %v2977 = vld [vmem:[%s4 + $0x1f4] sm:$0xf]
    %v2978 = vld [vmem:[%s4 + $0x1f8] sm:$0xf]
    %v2979 = vld [vmem:[%s4 + $0x1fc] sm:$0xf]
    %v2980 = vld [vmem:[%s3] sm:$0xf]
    %v2981 = vld [vmem:[%s3 + $0x4] sm:$0xf]
    %v2982 = vunpack.c.l.bf16 %v2980
    %v2983 = vunpack.c.l.bf16 %v2981
    %v3112 = vunpack.c.l.b16 %v2852
    %v3113 = vunpack.c.l.b16 %v2853
    %v3114 = vunpack.c.l.b16 %v2854
    %v3115 = vunpack.c.l.b16 %v2855
    %v3116 = vunpack.c.l.b16 %v2856
    %v3117 = vunpack.c.l.b16 %v2857
    %v3118 = vunpack.c.l.b16 %v2858
    %v3119 = vunpack.c.l.b16 %v2859
    %v3120 = vunpack.c.l.b16 %v2860
    %v3121 = vunpack.c.l.b16 %v2861
    %v3122 = vunpack.c.l.b16 %v2862
    %v3123 = vunpack.c.l.b16 %v2863
    %v3124 = vunpack.c.l.b16 %v2864
    %v3125 = vunpack.c.l.b16 %v2865
    %v3126 = vunpack.c.l.b16 %v2866
    %v3127 = vunpack.c.l.b16 %v2867
    %v3128 = vunpack.c.l.b16 %v2868
    %v3129 = vunpack.c.l.b16 %v2869
    %v3130 = vunpack.c.l.b16 %v2870
    %v3131 = vunpack.c.l.b16 %v2871
    %v3132 = vunpack.c.l.b16 %v2872
    %v3133 = vunpack.c.l.b16 %v2873
    %v3134 = vunpack.c.l.b16 %v2874
    %v3135 = vunpack.c.l.b16 %v2875
    %v3136 = vunpack.c.l.b16 %v2876
    %v3137 = vunpack.c.l.b16 %v2877
    %v3138 = vunpack.c.l.b16 %v2878
    %v3139 = vunpack.c.l.b16 %v2879
    %v3140 = vunpack.c.l.b16 %v2880
    %v3141 = vunpack.c.l.b16 %v2881
    %v3142 = vunpack.c.l.b16 %v2882
    %v3143 = vunpack.c.l.b16 %v2883
    %v3144 = vunpack.c.l.b16 %v2884
    %v3145 = vunpack.c.l.b16 %v2885
    %v3146 = vunpack.c.l.b16 %v2886
    %v3147 = vunpack.c.l.b16 %v2887
    %v3148 = vunpack.c.l.b16 %v2888
    %v3149 = vunpack.c.l.b16 %v2889
    %v3150 = vunpack.c.l.b16 %v2890
    %v3151 = vunpack.c.l.b16 %v2891
    %v3152 = vunpack.c.l.b16 %v2892
    %v3153 = vunpack.c.l.b16 %v2893
    %v3154 = vunpack.c.l.b16 %v2894
    %v3155 = vunpack.c.l.b16 %v2895
    %v3156 = vunpack.c.l.b16 %v2896
    %v3157 = vunpack.c.l.b16 %v2897
    %v3158 = vunpack.c.l.b16 %v2898
    %v3159 = vunpack.c.l.b16 %v2899
    %v3160 = vunpack.c.l.b16 %v2900
    %v3161 = vunpack.c.l.b16 %v2901
    %v3162 = vunpack.c.l.b16 %v2902
    %v3163 = vunpack.c.l.b16 %v2903
    %v3164 = vunpack.c.l.b16 %v2904
    %v3165 = vunpack.c.l.b16 %v2905
    %v3166 = vunpack.c.l.b16 %v2906
    %v3167 = vunpack.c.l.b16 %v2907
    %v3168 = vunpack.c.l.b16 %v2908
    %v3169 = vunpack.c.l.b16 %v2909
    %v3170 = vunpack.c.l.b16 %v2910
    %v3171 = vunpack.c.l.b16 %v2911
    %v3172 = vunpack.c.l.b16 %v2912
    %v3173 = vunpack.c.l.b16 %v2913
    %v3174 = vunpack.c.l.b16 %v2914
    %v3175 = vunpack.c.l.b16 %v2915
    %v3176 = vunpack.c.l.b16 %v2916
    %v3177 = vunpack.c.l.b16 %v2917
    %v3178 = vunpack.c.l.b16 %v2918
    %v3179 = vunpack.c.l.b16 %v2919
    %v3180 = vunpack.c.l.b16 %v2920
    %v3181 = vunpack.c.l.b16 %v2921
    %v3182 = vunpack.c.l.b16 %v2922
    %v3183 = vunpack.c.l.b16 %v2923
    %v3184 = vunpack.c.l.b16 %v2924
    %v3185 = vunpack.c.l.b16 %v2925
    %v3186 = vunpack.c.l.b16 %v2926
    %v3187 = vunpack.c.l.b16 %v2927
    %v3188 = vunpack.c.l.b16 %v2928
    %v3189 = vunpack.c.l.b16 %v2929
    %v3190 = vunpack.c.l.b16 %v2930
    %v3191 = vunpack.c.l.b16 %v2931
    %v3192 = vunpack.c.l.b16 %v2932
    %v3193 = vunpack.c.l.b16 %v2933
    %v3194 = vunpack.c.l.b16 %v2934
    %v3195 = vunpack.c.l.b16 %v2935
    %v3196 = vunpack.c.l.b16 %v2936
    %v3197 = vunpack.c.l.b16 %v2937
    %v3198 = vunpack.c.l.b16 %v2938
    %v3199 = vunpack.c.l.b16 %v2939
    %v3200 = vunpack.c.l.b16 %v2940
    %v3201 = vunpack.c.l.b16 %v2941
    %v3202 = vunpack.c.l.b16 %v2942
    %v3203 = vunpack.c.l.b16 %v2943
    %v3204 = vunpack.c.l.b16 %v2944
    %v3205 = vunpack.c.l.b16 %v2945
    %v3206 = vunpack.c.l.b16 %v2946
    %v3207 = vunpack.c.l.b16 %v2947
    %v3208 = vunpack.c.l.b16 %v2948
    %v3209 = vunpack.c.l.b16 %v2949
    %v3210 = vunpack.c.l.b16 %v2950
    %v3211 = vunpack.c.l.b16 %v2951
    %v3212 = vunpack.c.l.b16 %v2952
    %v3213 = vunpack.c.l.b16 %v2953
    %v3214 = vunpack.c.l.b16 %v2954
    %v3215 = vunpack.c.l.b16 %v2955
    %v3216 = vunpack.c.l.b16 %v2956
    %v3217 = vunpack.c.l.b16 %v2957
    %v3218 = vunpack.c.l.b16 %v2958
    %v3219 = vunpack.c.l.b16 %v2959
    %v3220 = vunpack.c.l.b16 %v2960
    %v3221 = vunpack.c.l.b16 %v2961
    %v3222 = vunpack.c.l.b16 %v2962
    %v3223 = vunpack.c.l.b16 %v2963
    %v3224 = vunpack.c.l.b16 %v2964
    %v3225 = vunpack.c.l.b16 %v2965
    %v3226 = vunpack.c.l.b16 %v2966
    %v3227 = vunpack.c.l.b16 %v2967
    %v3228 = vunpack.c.l.b16 %v2968
    %v3229 = vunpack.c.l.b16 %v2969
    %v3230 = vunpack.c.l.b16 %v2970
    %v3231 = vunpack.c.l.b16 %v2971
    %v3232 = vunpack.c.l.b16 %v2972
    %v3233 = vunpack.c.l.b16 %v2973
    %v3234 = vunpack.c.l.b16 %v2974
    %v3235 = vunpack.c.l.b16 %v2975
    %v3236 = vunpack.c.l.b16 %v2976
    %v3237 = vunpack.c.l.b16 %v2977
    %v3238 = vunpack.c.l.b16 %v2978
    %v3239 = vunpack.c.l.b16 %v2979
    %v3240 = vpack.c.b16 %v3113, %v3112
    %v3241 = vpack.c.b16 %v3115, %v3114
    %v3242 = vpack.c.b16 %v3117, %v3116
    %v3243 = vpack.c.b16 %v3119, %v3118
    %v3244 = vpack.c.b16 %v3121, %v3120
    %v3245 = vpack.c.b16 %v3123, %v3122
    %v3246 = vpack.c.b16 %v3125, %v3124
    %v3247 = vpack.c.b16 %v3127, %v3126
    %v3248 = vpack.c.b16 %v3129, %v3128
    %v3249 = vpack.c.b16 %v3131, %v3130
    %v3250 = vpack.c.b16 %v3133, %v3132
    %v3251 = vpack.c.b16 %v3135, %v3134
    %v3252 = vpack.c.b16 %v3137, %v3136
    %v3253 = vpack.c.b16 %v3139, %v3138
    %v3254 = vpack.c.b16 %v3141, %v3140
    %v3255 = vpack.c.b16 %v3143, %v3142
    %v3256 = vpack.c.b16 %v3145, %v3144
    %v3257 = vpack.c.b16 %v3147, %v3146
    %v3258 = vpack.c.b16 %v3149, %v3148
    %v3259 = vpack.c.b16 %v3151, %v3150
    %v3260 = vpack.c.b16 %v3153, %v3152
    %v3261 = vpack.c.b16 %v3155, %v3154
    %v3262 = vpack.c.b16 %v3157, %v3156
    %v3263 = vpack.c.b16 %v3159, %v3158
    %v3264 = vpack.c.b16 %v3161, %v3160
    %v3265 = vpack.c.b16 %v3163, %v3162
    %v3266 = vpack.c.b16 %v3165, %v3164
    %v3267 = vpack.c.b16 %v3167, %v3166
    %v3268 = vpack.c.b16 %v3169, %v3168
    %v3269 = vpack.c.b16 %v3171, %v3170
    %v3270 = vpack.c.b16 %v3173, %v3172
    %v3271 = vpack.c.b16 %v3175, %v3174
    %v3272 = vpack.c.b16 %v3177, %v3176
    %v3273 = vpack.c.b16 %v3179, %v3178
    %v3274 = vpack.c.b16 %v3181, %v3180
    %v3275 = vpack.c.b16 %v3183, %v3182
    %v3276 = vpack.c.b16 %v3185, %v3184
    %v3277 = vpack.c.b16 %v3187, %v3186
    %v3278 = vpack.c.b16 %v3189, %v3188
    %v3279 = vpack.c.b16 %v3191, %v3190
    %v3280 = vpack.c.b16 %v3193, %v3192
    %v3281 = vpack.c.b16 %v3195, %v3194
    %v3282 = vpack.c.b16 %v3197, %v3196
    %v3283 = vpack.c.b16 %v3199, %v3198
    %v3284 = vpack.c.b16 %v3201, %v3200
    %v3285 = vpack.c.b16 %v3203, %v3202
    %v3286 = vpack.c.b16 %v3205, %v3204
    %v3287 = vpack.c.b16 %v3207, %v3206
    %v3288 = vpack.c.b16 %v3209, %v3208
    %v3289 = vpack.c.b16 %v3211, %v3210
    %v3290 = vpack.c.b16 %v3213, %v3212
    %v3291 = vpack.c.b16 %v3215, %v3214
    %v3292 = vpack.c.b16 %v3217, %v3216
    %v3293 = vpack.c.b16 %v3219, %v3218
    %v3294 = vpack.c.b16 %v3221, %v3220
    %v3295 = vpack.c.b16 %v3223, %v3222
    %v3296 = vpack.c.b16 %v3225, %v3224
    %v3297 = vpack.c.b16 %v3227, %v3226
    %v3298 = vpack.c.b16 %v3229, %v3228
    %v3299 = vpack.c.b16 %v3231, %v3230
    %v3300 = vpack.c.b16 %v3233, %v3232
    %v3301 = vpack.c.b16 %v3235, %v3234
    %v3302 = vpack.c.b16 %v3237, %v3236
    %v3303 = vpack.c.b16 %v3239, %v3238
    %3368 = vmatprep.subr.bf16.mxu0 0
    %3369 = vmatpush1.bf16.msra.mxu0 %v3240
    %3370 = vmatprep.subr.bf16.mxu0 0
    %3371 = vmatpush1.bf16.msra.mxu0 %v3241
    %3372 = vmatprep.subr.bf16.mxu0 0
    %3373 = vmatpush1.bf16.msra.mxu0 %v3242
    %3374 = vmatprep.subr.bf16.mxu0 0
    %3375 = vmatpush1.bf16.msra.mxu0 %v3243
    %3376 = vmatprep.subr.bf16.mxu0 0
    %3377 = vmatpush1.bf16.msra.mxu0 %v3244
    %3378 = vmatprep.subr.bf16.mxu0 0
    %3379 = vmatpush1.bf16.msra.mxu0 %v3245
    %3380 = vmatprep.subr.bf16.mxu0 0
    %3381 = vmatpush1.bf16.msra.mxu0 %v3246
    %3382 = vmatprep.subr.bf16.mxu0 0
    %3383 = vmatpush1.bf16.msra.mxu0 %v3247
    %3384 = vmatprep.subr.bf16.mxu0 0
    %3385 = vmatpush1.bf16.msra.mxu0 %v3248
    %3386 = vmatprep.subr.bf16.mxu0 0
    %3387 = vmatpush1.bf16.msra.mxu0 %v3249
    %3388 = vmatprep.subr.bf16.mxu0 0
    %3389 = vmatpush1.bf16.msra.mxu0 %v3250
    %3390 = vmatprep.subr.bf16.mxu0 0
    %3391 = vmatpush1.bf16.msra.mxu0 %v3251
    %3392 = vmatprep.subr.bf16.mxu0 0
    %3393 = vmatpush1.bf16.msra.mxu0 %v3252
    %3394 = vmatprep.subr.bf16.mxu0 0
    %3395 = vmatpush1.bf16.msra.mxu0 %v3253
    %3396 = vmatprep.subr.bf16.mxu0 0
    %3397 = vmatpush1.bf16.msra.mxu0 %v3254
    %3398 = vmatprep.subr.bf16.mxu0 0
    %3399 = vmatpush1.bf16.msra.mxu0 %v3255
    %3400 = vmatprep.mubr.bf16.mxu0 %v2845
    %3401 = vmatmul.mubr.bf16.gmra.mrb[0].mxu0 %v2844
    %v3402 = vpop.f32.mrb[0].mxu0
    %v3403 = vadd.f32 %v2982, %v3402
    %v3404 = vpop.f32.mrb[0].mxu0
    %v3405 = vpop.f32.mrb[0].mxu0
    %v3406 = vadd.f32 %v2983, %v3405
    %v3407 = vpop.f32.mrb[0].mxu0
    %3408 = vdwg.mxu0
    %3409 = vmatprep.subr.bf16.mxu0 0
    %3410 = vmatpush1.bf16.msra.mxu0 %v3256
    %3411 = vmatprep.subr.bf16.mxu0 0
    %3412 = vmatpush1.bf16.msra.mxu0 %v3257
    %3413 = vmatprep.subr.bf16.mxu0 0
    %3414 = vmatpush1.bf16.msra.mxu0 %v3258
    %3415 = vmatprep.subr.bf16.mxu0 0
    %3416 = vmatpush1.bf16.msra.mxu0 %v3259
    %3417 = vmatprep.subr.bf16.mxu0 0
    %3418 = vmatpush1.bf16.msra.mxu0 %v3260
    %3419 = vmatprep.subr.bf16.mxu0 0
    %3420 = vmatpush1.bf16.msra.mxu0 %v3261
    %3421 = vmatprep.subr.bf16.mxu0 0
    %3422 = vmatpush1.bf16.msra.mxu0 %v3262
    %3423 = vmatprep.subr.bf16.mxu0 0
    %3424 = vmatpush1.bf16.msra.mxu0 %v3263
    %3425 = vmatprep.subr.bf16.mxu0 0
    %3426 = vmatpush1.bf16.msra.mxu0 %v3264
    %3427 = vmatprep.subr.bf16.mxu0 0
    %3428 = vmatpush1.bf16.msra.mxu0 %v3265
    %3429 = vmatprep.subr.bf16.mxu0 0
    %3430 = vmatpush1.bf16.msra.mxu0 %v3266
    %3431 = vmatprep.subr.bf16.mxu0 0
    %3432 = vmatpush1.bf16.msra.mxu0 %v3267
    %3433 = vmatprep.subr.bf16.mxu0 0
    %3434 = vmatpush1.bf16.msra.mxu0 %v3268
    %3435 = vmatprep.subr.bf16.mxu0 0
    %3436 = vmatpush1.bf16.msra.mxu0 %v3269
    %3437 = vmatprep.subr.bf16.mxu0 0
    %3438 = vmatpush1.bf16.msra.mxu0 %v3270
    %3439 = vmatprep.subr.bf16.mxu0 0
    %3440 = vmatpush1.bf16.msra.mxu0 %v3271
    %3441 = vmatprep.mubr.bf16.mxu0 %v2847
    %3442 = vmatmul.mubr.bf16.gmra.mrb[0].mxu0 %v2846
    %v3443 = vpop.f32.mrb[0].mxu0
    %v3444 = vadd.f32 %v3403, %v3443
    %v3445 = vpop.f32.mrb[0].mxu0
    %v3446 = vpop.f32.mrb[0].mxu0
    %v3447 = vadd.f32 %v3406, %v3446
    %v3448 = vpop.f32.mrb[0].mxu0
    %3449 = vdwg.mxu0
    %3450 = vmatprep.subr.bf16.mxu0 0
    %3451 = vmatpush1.bf16.msra.mxu0 %v3272
    %3452 = vmatprep.subr.bf16.mxu0 0
    %3453 = vmatpush1.bf16.msra.mxu0 %v3273
    %3454 = vmatprep.subr.bf16.mxu0 0
    %3455 = vmatpush1.bf16.msra.mxu0 %v3274
    %3456 = vmatprep.subr.bf16.mxu0 0
    %3457 = vmatpush1.bf16.msra.mxu0 %v3275
    %3458 = vmatprep.subr.bf16.mxu0 0
    %3459 = vmatpush1.bf16.msra.mxu0 %v3276
    %3460 = vmatprep.subr.bf16.mxu0 0
    %3461 = vmatpush1.bf16.msra.mxu0 %v3277
    %3462 = vmatprep.subr.bf16.mxu0 0
    %3463 = vmatpush1.bf16.msra.mxu0 %v3278
    %3464 = vmatprep.subr.bf16.mxu0 0
    %3465 = vmatpush1.bf16.msra.mxu0 %v3279
    %3466 = vmatprep.subr.bf16.mxu0 0
    %3467 = vmatpush1.bf16.msra.mxu0 %v3280
    %3468 = vmatprep.subr.bf16.mxu0 0
    %3469 = vmatpush1.bf16.msra.mxu0 %v3281
    %3470 = vmatprep.subr.bf16.mxu0 0
    %3471 = vmatpush1.bf16.msra.mxu0 %v3282
    %3472 = vmatprep.subr.bf16.mxu0 0
    %3473 = vmatpush1.bf16.msra.mxu0 %v3283
    %3474 = vmatprep.subr.bf16.mxu0 0
    %3475 = vmatpush1.bf16.msra.mxu0 %v3284
    %3476 = vmatprep.subr.bf16.mxu0 0
    %3477 = vmatpush1.bf16.msra.mxu0 %v3285
    %3478 = vmatprep.subr.bf16.mxu0 0
    %3479 = vmatpush1.bf16.msra.mxu0 %v3286
    %3480 = vmatprep.subr.bf16.mxu0 0
    %3481 = vmatpush1.bf16.msra.mxu0 %v3287
    %3482 = vmatprep.mubr.bf16.mxu0 %v2849
    %3483 = vmatmul.mubr.bf16.gmra.mrb[0].mxu0 %v2848
    %v3484 = vpop.f32.mrb[0].mxu0
    %v3485 = vadd.f32 %v3444, %v3484
    %v3486 = vpop.f32.mrb[0].mxu0
    %v3487 = vpop.f32.mrb[0].mxu0
    %v3488 = vadd.f32 %v3447, %v3487
    %v3489 = vpop.f32.mrb[0].mxu0
    %3490 = vdwg.mxu0
    %3491 = vmatprep.subr.bf16.mxu0 0
    %3492 = vmatpush1.bf16.msra.mxu0 %v3288
    %3493 = vmatprep.subr.bf16.mxu0 0
    %3494 = vmatpush1.bf16.msra.mxu0 %v3289
    %3495 = vmatprep.subr.bf16.mxu0 0
    %3496 = vmatpush1.bf16.msra.mxu0 %v3290
    %3497 = vmatprep.subr.bf16.mxu0 0
    %3498 = vmatpush1.bf16.msra.mxu0 %v3291
    %3499 = vmatprep.subr.bf16.mxu0 0
    %3500 = vmatpush1.bf16.msra.mxu0 %v3292
    %3501 = vmatprep.subr.bf16.mxu0 0
    %3502 = vmatpush1.bf16.msra.mxu0 %v3293
    %3503 = vmatprep.subr.bf16.mxu0 0
    %3504 = vmatpush1.bf16.msra.mxu0 %v3294
    %3505 = vmatprep.subr.bf16.mxu0 0
    %3506 = vmatpush1.bf16.msra.mxu0 %v3295
    %3507 = vmatprep.subr.bf16.mxu0 0
    %3508 = vmatpush1.bf16.msra.mxu0 %v3296
    %3509 = vmatprep.subr.bf16.mxu0 0
    %3510 = vmatpush1.bf16.msra.mxu0 %v3297
    %3511 = vmatprep.subr.bf16.mxu0 0
    %3512 = vmatpush1.bf16.msra.mxu0 %v3298
    %3513 = vmatprep.subr.bf16.mxu0 0
    %3514 = vmatpush1.bf16.msra.mxu0 %v3299
    %3515 = vmatprep.subr.bf16.mxu0 0
    %3516 = vmatpush1.bf16.msra.mxu0 %v3300
    %3517 = vmatprep.subr.bf16.mxu0 0
    %3518 = vmatpush1.bf16.msra.mxu0 %v3301
    %3519 = vmatprep.subr.bf16.mxu0 0
    %3520 = vmatpush1.bf16.msra.mxu0 %v3302
    %3521 = vmatprep.subr.bf16.mxu0 0
    %3522 = vmatpush1.bf16.msra.mxu0 %v3303
    %3523 = vmatprep.mubr.bf16.mxu0 %v2851
    %3524 = vmatmul.mubr.bf16.gmra.mrb[0].mxu0 %v2850
    %v3525 = vpop.f32.mrb[0].mxu0
    %v3526 = vadd.f32 %v3485, %v3525
    %v3527 = vpop.f32.mrb[0].mxu0
    %v3528 = vpop.f32.mrb[0].mxu0
    %v3529 = vadd.f32 %v3488, %v3528
    %v3530 = vpop.f32.mrb[0].mxu0
    %3531 = vdwg.mxu0
    %v3532 = vmax.f32 %v3526, 0.0
    %v3533 = vmax.f32 %v3529, 0.0
    %v3534 = vld [vmem:[%s5] sm:$0x1]
    %s3535 = sld [smem:[#allocation3]]
    %v3536 = vstv %s3535
    %3537 = vmatprep.subr.mxu0 0.0
    %3538 = vmatpush1.xpose.msra.mxu0 %v3532
    %3539 = vmatprep.subr.mxu0 0.0
    %3540 = vmatpush1.xpose.msra.mxu0 %v3533
    %3541 = vmatprep.subr.mxu0 0.0
    %3542 = vmatpush1.xpose.msra.mxu0 0.0
    %3543 = vmatprep.subr.mxu0 0.0
    %3544 = vmatpush1.xpose.msra.mxu0 0.0
    %3545 = vmatprep.subr.mxu0 0.0
    %3546 = vmatpush1.xpose.msra.mxu0 0.0
    %3547 = vmatprep.subr.mxu0 0.0
    %3548 = vmatpush1.xpose.msra.mxu0 0.0
    %3549 = vmatprep.subr.mxu0 0.0
    %3550 = vmatpush1.xpose.msra.mxu0 0.0
    %3551 = vmatprep.subr.mxu0 0.0
    %3552 = vmatpush1.xpose.msra.mxu0 0.0
    %3553 = vmatprep.subr.mxu0 0.0
    %3554 = vmatpush1.xpose.msra.mxu0 0.0
    %3555 = vmatprep.subr.mxu0 0.0
    %3556 = vmatpush1.xpose.msra.mxu0 0.0
    %3557 = vmatprep.subr.mxu0 0.0
    %3558 = vmatpush1.xpose.msra.mxu0 0.0
    %3559 = vmatprep.subr.mxu0 0.0
    %3560 = vmatpush1.xpose.msra.mxu0 0.0
    %3561 = vmatprep.subr.mxu0 0.0
    %3562 = vmatpush1.xpose.msra.mxu0 0.0
    %3563 = vmatprep.subr.mxu0 0.0
    %3564 = vmatpush1.xpose.msra.mxu0 0.0
    %3565 = vmatprep.subr.mxu0 0.0
    %3566 = vmatpush1.xpose.msra.mxu0 0.0
    %3567 = vmatprep.subr.mxu0 0.0
    %3568 = vmatpush1.xpose.msra.mxu0 0.0
    %3569 = vmatprep.subr.mxu0 0.0
    %3570 = vmatpush1.xpose.msra.mxu0 0.0
    %3571 = vmatprep.subr.mxu0 0.0
    %3572 = vmatpush1.xpose.msra.mxu0 0.0
    %3573 = vmatprep.subr.mxu0 0.0
    %3574 = vmatpush1.xpose.msra.mxu0 0.0
    %3575 = vmatprep.subr.mxu0 0.0
    %3576 = vmatpush1.xpose.msra.mxu0 0.0
    %3577 = vmatprep.subr.mxu0 0.0
    %3578 = vmatpush1.xpose.msra.mxu0 0.0
    %3579 = vmatprep.subr.mxu0 0.0
    %3580 = vmatpush1.xpose.msra.mxu0 0.0
    %3581 = vmatprep.subr.mxu0 0.0
    %3582 = vmatpush1.xpose.msra.mxu0 0.0
    %3583 = vmatprep.subr.mxu0 0.0
    %3584 = vmatpush1.xpose.msra.mxu0 0.0
    %3585 = vmatprep.subr.mxu0 0.0
    %3586 = vmatpush1.xpose.msra.mxu0 0.0
    %3587 = vmatprep.subr.mxu0 0.0
    %3588 = vmatpush1.xpose.msra.mxu0 0.0
    %3589 = vmatprep.subr.mxu0 0.0
    %3590 = vmatpush1.xpose.msra.mxu0 0.0
    %3591 = vmatprep.subr.mxu0 0.0
    %3592 = vmatpush1.xpose.msra.mxu0 0.0
    %3593 = vmatprep.subr.mxu0 0.0
    %3594 = vmatpush1.xpose.msra.mxu0 0.0
    %3595 = vmatprep.subr.mxu0 0.0
    %3596 = vmatpush1.xpose.msra.mxu0 0.0
    %3597 = vmatprep.subr.mxu0 0.0
    %3598 = vmatpush1.xpose.msra.mxu0 0.0
    %3599 = vmatprep.subr.mxu0 0.0
    %3600 = vmatpush1.xpose.msra.mxu0 0.0
    %3601 = vmatprep.mubr.f32.mxu0 0.0
    %3602 = vmatmul.mubr.f32.gmra.mrb[0].mxu0 %v3534
    %v3603 = vpop.f32.mrb[0].mxu0
    %v3604 = vadd.f32 %v3536, %v3603
    %v3605 = vpop.f32.mrb[0].mxu0
    %3606 = vdwg.mxu0
    %vm3607 = vcmask 122880
    %3608 = vst.msk [vmem:[%s7] sm:$0x1] %vm3607, %v3604
    // Predicated region
    $region38: #{reward_forward.1} parent=1 // pred_check
      _
    $region39: #{reward_forward.1} parent=1 // pred_check_branch
      %3610 = sbr.rel (0) target = $region41
    $region40: #{reward_forward.1} parent=1 // pred_region
      _
    $region41: #{reward_forward.1} parent=1 // pred_fallthru
      _
    // Predicated region
    $region42: #{reward_forward.1} parent=1 // pred_check
      _
    $region43: #{reward_forward.1} parent=1 // pred_check_branch
      %3612 = sbr.rel (0) target = $region45
    $region44: #{reward_forward.1} parent=1 // pred_region
      _
    $region45: #{reward_forward.1} parent=1 // pred_fallthru
      _
    %3613 = vsyncpa [#allocation5], 1
    %3614 = vsyncpa [#allocation7], 1

</llo_original>
